<compile_context>
chip_gen: v7x
topology: tpu7x:2x2x1
jax: 0.10.0
libtpu: 0.0.40
codegen_flags: <defaults>
</compile_context>

<pallas_src>
import numpy as np
import jax
import jax.numpy as jnp
from jax.experimental import pallas as pl
from jax.experimental.pallas import tpu as pltpu

# ----------------------------- config ---------------------------------------
TARGET_SR = 1600
ORIG_SR = 1600                  # == TARGET_SR -> forward skips Resample
SSL_DURATION = 3
SPEC_FRAME_SEC = 1.4
NUM_SPEC_FRAMES = 2
N_FFT = 256
HOP = 32
N_MELS = 128
SPEC_H, SPEC_W = 128, 128       # valid_transform Resize target
NORM_DB = 80.0
WIN_LENGTHS = [256, 128, 64, 32]
N_CFG = len(WIN_LENGTHS)
N_FREQ = N_FFT // 2 + 1         # 129
NF_PAD = 136                    # 129 padded to multiple of 8

SSL_LEN = SSL_DURATION * TARGET_SR            # 4800
SPEC_LEN = int(SPEC_FRAME_SEC * TARGET_SR)    # 2240
N_TIME = 1 + SPEC_LEN // HOP                  # 71 STFT frames (center=True)
TPAD = 128                                    # time frames padded 71 -> 128 (lane-dense)

# synthetic utmos head dims
SSL_PATCH = 160
SSL_NPATCH = SSL_LEN // SSL_PATCH             # 30
SSL_HID = 64
CONV_COUT = 16
CONV_HW = SPEC_H // 2                         # 64 conv output pixels per side
HEAD_HID = 32
D_DIM = 10

# stacked-layout sizes
NCOS = N_CFG * NF_PAD                         # 544  (cfg, freq) rows
NMEL_STACK = N_CFG * N_MELS                   # 512  (cfg, mel) rows
NROW = N_CFG * CONV_HW                        # 256  (cfg, conv-row) rows
NSEL = 3 * NROW                               # 768  (dy, cfg, conv-row) rows
NCOL = CONV_HW * CONV_COUT                    # 1024 (cout, conv-col) lanes


# ----------------------------- Pallas kernel ---------------------------------
def utmos_kernel(frames_ref, x_ref, d_ref,
                 basis_ref, melw_ref, rwt_ref, asel_ref, bw_ref, bias_ref, fold_ref,
                 wssl_ref, bssl_ref, w1s_ref, w1p_ref, w1d_ref, b1_ref, w2t_ref, b2_ref,
                 o_ref):
    """One batch row end-to-end: fused spec path (all 4 configs stacked),
    synthetic SSL encoder and fusion head."""
    # ---------------- spectrogram branch (all 4 configs stacked) ----------------
    fr = frames_ref[0]                                                  # (256,128) bf16
    # single windowed-DFT matmul for all configs: rows = [cos x4 | -sin x4]
    cs = jnp.dot(basis_ref[...], fr, preferred_element_type=jnp.float32)  # (1088,128)
    re = cs[:NCOS]
    im = cs[NCOS:]
    power = (re * re + im * im).astype(jnp.bfloat16)                    # |STFT|^2 (544,128)
    # block-diagonal mel filterbank: one matmul for all configs
    mel = jnp.dot(melw_ref[...], power, preferred_element_type=jnp.float32)  # (512,128)
    logmel = jnp.log10(jnp.maximum(mel, 1e-5))                          # clamp(min=1e-5)
    # dB + norm with the amax segmented per 128-row config block
    k = 10.0 / NORM_DB
    blocks = []
    for c in range(N_CFG):                                              # static, 4 blocks
        blk = logmel[c * N_MELS:(c + 1) * N_MELS]
        logref = jnp.max(blk)                                           # log10(amax); clamp folded
        blocks.append((blk * k + (1.0 - k * logref)).astype(jnp.bfloat16))
    db = jnp.concatenate(blocks, axis=0)                                # (512,128) bf16
    # bilinear resize 71->128 along time (zero rows kill the padded STFT columns)
    spec = jnp.dot(db, rwt_ref[...], preferred_element_type=jnp.float32)   # (512,128)

    # TODO(synk): utmosv2 EfficientNet spec backbone replaced by a single
    #             3x3/s2 conv + ReLU + global average pool (fused below).
    # stride-2 row selection for all (dy, cfg) at once, then dy-fused conv matmul
    sel = jnp.dot(asel_ref[...], spec.astype(jnp.bfloat16),
                  preferred_element_type=jnp.float32)                   # (768,128)
    sel = sel.astype(jnp.bfloat16)
    lcat = jnp.concatenate([sel[:NROW], sel[NROW:2 * NROW], sel[2 * NROW:]],
                           axis=1)                                      # (256,384) 128-aligned
    conv = jnp.dot(lcat, bw_ref[...], preferred_element_type=jnp.float32)  # (256,1024)
    conv = jnp.maximum(conv + bias_ref[...], 0.0)
    colsum = jnp.sum(conv, axis=0, keepdims=True).astype(jnp.bfloat16)  # (1,1024)
    # fold = per-channel GAP with the 1/N_CFG config-mean folded in
    spec_feat = jnp.dot(colsum, fold_ref[...],
                        preferred_element_type=jnp.float32)             # (1,16)

    # ---------------- SSL branch (per-row) ----------------
    x = x_ref[0]                                                        # (30,160) f32
    n = x.shape[0] * x.shape[1]                                         # 4800 samples
    mean = jnp.sum(x) / n
    xc = x - mean
    var = jnp.sum(xc * xc) / (n - 1)                                    # unbiased std
    std = jnp.maximum(jnp.sqrt(var), 1e-5)
    xn = (xc / std).astype(jnp.bfloat16)
    # TODO(synk): facebook/wav2vec2-base transformer stack replaced by a single
    #             patch projection + GELU + mean pool over time.
    h = jnp.dot(xn, wssl_ref[...], preferred_element_type=jnp.float32) + bssl_ref[...]
    h = jax.nn.gelu(h, approximate=True)
    pooled = jnp.mean(h, axis=0, keepdims=True)                         # (1,64)

    # ---------------- fusion head: [ssl | spec | d] MLP -> scalar ----------------
    h1 = (jnp.dot(pooled, w1s_ref[...], preferred_element_type=jnp.float32)
          + jnp.dot(spec_feat, w1p_ref[...], preferred_element_type=jnp.float32)
          + jnp.dot(d_ref[0], w1d_ref[...], preferred_element_type=jnp.float32)
          + b1_ref[...])
    h1 = jnp.maximum(h1, 0.0)                                           # (1,32)
    out = jnp.sum(h1 * w2t_ref[...], axis=1, keepdims=True) + b2_ref[...]  # (1,1)
    o_ref[0] = out


# ----------------------------- pallas_call wrapper ----------------------------
def utmos_fused(frames, x3, d3, p):
    B = frames.shape[0]

    def full(shape):
        return pl.BlockSpec(shape, lambda b, _s=shape: (0,) * len(_s))

    out = pl.pallas_call(
        utmos_kernel,
        out_shape=jax.ShapeDtypeStruct((B, 1, 1), jnp.float32),
        grid=(B,),
        in_specs=[
            pl.BlockSpec((1, N_FFT, TPAD), lambda b: (b, 0, 0)),         # frames
            pl.BlockSpec((1, SSL_NPATCH, SSL_PATCH), lambda b: (b, 0, 0)),  # ssl patches
            pl.BlockSpec((1, 1, D_DIM), lambda b: (b, 0, 0)),            # d one-hot
            full((2 * NCOS, N_FFT)),          # windowed DFT basis (resident)
            full((NMEL_STACK, NCOS)),         # block-diag mel filterbank
            full((TPAD, SPEC_W)),             # resize RHS
            full((NSEL, NMEL_STACK)),         # stride-2 row selection
            full((3 * SPEC_W, NCOL)),         # K-stacked conv weights
            full((1, NCOL)),                  # conv bias row
            full((NCOL, CONV_COUT)),          # GAP + cfg-mean fold
            full((SSL_PATCH, SSL_HID)),       # ssl projection
            full((1, SSL_HID)),
            full((SSL_HID, HEAD_HID)),
            full((CONV_COUT, HEAD_HID)),
            full((D_DIM, HEAD_HID)),
            full((1, HEAD_HID)),
            full((1, HEAD_HID)),
            full((1, 1)),
        ],
        out_specs=pl.BlockSpec((1, 1, 1), lambda b: (b, 0, 0)),
        compiler_params=pltpu.CompilerParams(
            dimension_semantics=("parallel",),      # shards rows over v7x's 2 TCs
            vmem_limit_bytes=32 * 1024 * 1024),
    )(frames, x3, d3, p["basis"], p["melw_blk"], p["rwt"], p["asel"], p["bw_cat"],
      p["bias_row"], p["fold"], p["w_ssl"], p["b_ssl"],
      p["w1_ssl"], p["w1_spec"], p["w1_d"], p["b1"], p["w2_T"], p["b2"])
    return out.reshape(B, 1)


# ----------------------------- glue (plain JAX / numpy) ----------------------
def extend_audio(y, length):
    L = y.shape[-1]
    if L >= length:
        return y[:, :length]
    n = -(-length // L)
    return jnp.tile(y, (1, n))[:, :length]


def frame_audio(seg):
    # torchaudio Spectrogram framing: center=True, pad_mode="reflect"; emit the
    # frames already transposed (B, n_fft, time) and zero-padded to 128 frames.
    # TODO(synk): at the real 16 kHz / n_fft=4096 config this XLA gather should
    #             be replaced by in-kernel framing to avoid 8x HBM duplication.
    pad = N_FFT // 2
    padded = jnp.pad(seg, ((0, 0), (pad, pad)), mode="reflect")
    idx = np.arange(N_FFT)[:, None] + (np.arange(N_TIME) * HOP)[None, :]   # (256,71)
    fr = padded[:, idx]                                                    # (B,256,71)
    return jnp.pad(fr, ((0, 0), (0, 0), (0, TPAD - N_TIME)))               # (B,256,128)


def make_windows():
    # periodic Hann, centered zero-pad to n_fft (as torch.stft does)
    wins = np.zeros((N_CFG, N_FFT), np.float32)
    for ci, wl in enumerate(WIN_LENGTHS):
        w = 0.5 * (1.0 - np.cos(2.0 * np.pi * np.arange(wl) / wl))
        lo = (N_FFT - wl) // 2
        wins[ci, lo:lo + wl] = w
    return wins


def make_windowed_basis():
    # stacked windowed DFT basis: rows [cos blocks cfg0..3 | -sin blocks cfg0..3],
    # each block = 129 real freqs padded to 136 rows (sublane-aligned).
    k = np.arange(N_FFT)
    f = np.arange(N_FREQ)
    ang = 2.0 * np.pi * np.outer(f, k) / N_FFT                       # (129,256)
    cos_b, sin_b = np.cos(ang), -np.sin(ang)
    wins = make_windows()
    out = np.zeros((2 * NCOS, N_FFT), np.float32)
    for c in range(N_CFG):
        out[c * NF_PAD:c * NF_PAD + N_FREQ] = cos_b * wins[c][None, :]
        out[NCOS + c * NF_PAD:NCOS + c * NF_PAD + N_FREQ] = sin_b * wins[c][None, :]
    return out                                                       # (1088,256)


def mel_filterbank():
    # torchaudio melscale_fbanks, HTK scale, norm=None -> (n_freq, n_mels)
    def hz_to_mel(fq): return 2595.0 * np.log10(1.0 + fq / 700.0)
    def mel_to_hz(m): return 700.0 * (10.0 ** (m / 2595.0) - 1.0)
    all_freqs = np.linspace(0.0, TARGET_SR / 2.0, N_FREQ)
    m_pts = np.linspace(hz_to_mel(0.0), hz_to_mel(TARGET_SR / 2.0), N_MELS + 2)
    f_pts = mel_to_hz(m_pts)
    f_diff = np.diff(f_pts)
    slopes = f_pts[None, :] - all_freqs[:, None]
    down = -slopes[:, :-2] / f_diff[:-1]
    up = slopes[:, 2:] / f_diff[1:]
    return np.maximum(0.0, np.minimum(down, up)).astype(np.float32)  # (129,128)


def mel_block_diag():
    fb_t = mel_filterbank().T                                        # (128,129)
    out = np.zeros((NMEL_STACK, NCOS), np.float32)
    for c in range(N_CFG):
        out[c * N_MELS:(c + 1) * N_MELS, c * NF_PAD:c * NF_PAD + N_FREQ] = fb_t
    return out                                                       # (512,544)


def resize_matrix(in_size, out_size):
    # bilinear, align_corners=False (upscale -> antialias is a no-op)
    R = np.zeros((out_size, in_size), np.float32)
    scale = in_size / out_size
    for j in range(out_size):
        x = (j + 0.5) * scale - 0.5
        x0 = int(np.floor(x))
        w1 = x - x0
        lo = min(max(x0, 0), in_size - 1)
        hi = min(max(x0 + 1, 0), in_size - 1)
        R[j, lo] += 1.0 - w1
        R[j, hi] += w1
    return R


def make_resize_rhs():
    # (time_in padded to 128, time_out 128); rows >= 71 are zero so the padded
    # STFT frames never reach the conv.
    out = np.zeros((TPAD, SPEC_W), np.float32)
    out[:N_TIME] = resize_matrix(N_TIME, SPEC_W).T
    return out                                                       # (128,128)


def make_asel():
    # stride-2 row selection for all (dy, cfg) stacked along M:
    # row (dy*256 + c*64 + i) selects spec row 2i+dy-1 of config c; out-of-range
    # rows stay zero so the conv's zero-padding is exact.
    A = np.zeros((NSEL, NMEL_STACK), np.float32)
    for dy in range(3):
        for c in range(N_CFG):
            for i in range(CONV_HW):
                r = 2 * i + dy - 1
                if 0 <= r < N_MELS:
                    A[dy * NROW + c * CONV_HW + i, c * N_MELS + r] = 1.0
    return A                                                         # (768,512)


def make_bw_cat(w9):
    # K-stacked conv RHS: Bw[dy*128 + x, o*64 + j] = sum_dx w9[3dy+dx,o]*[x==2j+dx-1]
    Bw = np.zeros((3 * SPEC_W, NCOL), np.float32)
    for dy in range(3):
        for dx in range(3):
            for j in range(CONV_HW):
                col = 2 * j + dx - 1
                if 0 <= col < SPEC_W:
                    Bw[dy * SPEC_W + col, np.arange(CONV_COUT) * CONV_HW + j] += w9[3 * dy + dx, :]
    return Bw                                                        # (384,1024)


def init_params(key):
    ks = jax.random.split(key, 8)
    # synthetic 3x3/s2 conv; 3 identical input channels folded to 9 taps
    w_conv = 0.05 * jax.random.normal(ks[2], (27, CONV_COUT), jnp.float32)
    b_conv = 0.01 * jax.random.normal(ks[3], (CONV_COUT,), jnp.float32)
    w9 = np.asarray(w_conv).reshape(3, 9, CONV_COUT).sum(axis=0)     # (9,16)
    bias_row = np.repeat(np.asarray(b_conv), CONV_HW)[None, :]       # (1,1024)
    fold = np.zeros((NCOL, CONV_COUT), np.float32)                   # GAP + cfg-mean
    for o in range(CONV_COUT):
        fold[o * CONV_HW:(o + 1) * CONV_HW, o] = 1.0 / float(N_CFG * CONV_HW * CONV_HW)
    w1 = 0.05 * jax.random.normal(ks[4], (SSL_HID + CONV_COUT + D_DIM, HEAD_HID), jnp.float32)
    return dict(
        # big matmul constants in bf16 (MXU-native); precision-sensitive parts in f32
        basis=jnp.asarray(make_windowed_basis(), jnp.bfloat16),      # (1088,256)
        melw_blk=jnp.asarray(mel_block_diag(), jnp.bfloat16),        # (512,544)
        rwt=jnp.asarray(make_resize_rhs(), jnp.bfloat16),            # (128,128)
        asel=jnp.asarray(make_asel(), jnp.bfloat16),                 # (768,512)
        bw_cat=jnp.asarray(make_bw_cat(w9), jnp.bfloat16),           # (384,1024)
        bias_row=jnp.asarray(bias_row, jnp.float32),                 # (1,1024)
        fold=jnp.asarray(fold, jnp.bfloat16),                        # (1024,16), 1/16384 exact
        w_ssl=(0.05 * jax.random.normal(ks[0], (SSL_PATCH, SSL_HID), jnp.float32)
               ).astype(jnp.bfloat16),                               # (160,64)
        b_ssl=0.01 * jax.random.normal(ks[1], (1, SSL_HID), jnp.float32),
        w1_ssl=w1[:SSL_HID],                                         # (64,32)
        w1_spec=w1[SSL_HID:SSL_HID + CONV_COUT],                     # (16,32)
        w1_d=w1[SSL_HID + CONV_COUT:],                               # (10,32)
        b1=0.01 * jax.random.normal(ks[5], (1, HEAD_HID), jnp.float32),
        w2_T=(0.05 * jax.random.normal(ks[6], (HEAD_HID, 1), jnp.float32)).reshape(1, HEAD_HID),
        b2=0.01 * jax.random.normal(ks[7], (1, 1), jnp.float32),
    )


def utmosv2_forward(y, params):
    B = y.shape[0]
    # orig_sr == target_sr -> Resample skipped (exactly like the PyTorch forward)

    # ---- _getitem_ssl: extend to 3 s; random start over a range of size 1 -> 0 ----
    ssl_seg = extend_audio(y, SSL_LEN)                               # (B,4800)
    x3 = ssl_seg.reshape(B, SSL_NPATCH, SSL_PATCH)                   # (B,30,160)

    # ---- _getitem_multispec ----
    # _extend_audio returns exactly SPEC_LEN samples, so _select_random_start's
    # randint(0, 1) is always 0 -> y1 == y2 and the inner mixup is the identity;
    # the 2 "frames" and the 3 image channels are identical too, so the conv runs
    # once per (row, cfg) with channel-folded weights and the mean over the
    # 8 (frame, cfg) slots equals the mean over the 4 configs (folded in `fold`).
    spec_seg = extend_audio(y, SPEC_LEN)                             # (B,2240)
    frames = frame_audio(spec_seg).astype(jnp.bfloat16)              # (B,256,128)

    # ---- data-domain one-hot ----
    d3 = jnp.zeros((B, 1, D_DIM), jnp.float32).at[:, :, 1].set(1.0)

    return utmos_fused(frames, x3, d3, params)                       # (B,1)


# ----------------------------- main ------------------------------------------
if __name__ == "__main__":
    key = jax.random.PRNGKey(0)
    k_in, k_par = jax.random.split(key)
    B, L = 2, 6000
    y = jax.random.normal(k_in, (B, L), jnp.float32)
    params = init_params(k_par)

    fwd = jax.jit(lambda y: utmosv2_forward(y, params))
    out = fwd(y)
    jax.block_until_ready(out)
    assert out.shape == (B, 1) and out.dtype == jnp.float32
    assert bool(jnp.all(jnp.isfinite(out)))
    print("KERNEL_OK")
</pallas_src>

<mosaic_0001>
module attributes {stable_mosaic.version = 11 : i64} {
  func.func @utmos_kernel(%arg0: i32, %arg1: memref<1x256x128xbf16, #tpu.memory_space<vmem>>, %arg2: memref<1x30x160xf32, #tpu.memory_space<vmem>>, %arg3: memref<1x1x10xf32, #tpu.memory_space<vmem>>, %arg4: memref<1088x256xbf16, #tpu.memory_space<vmem>>, %arg5: memref<512x544xbf16, #tpu.memory_space<vmem>>, %arg6: memref<128x128xbf16, #tpu.memory_space<vmem>>, %arg7: memref<768x512xbf16, #tpu.memory_space<vmem>>, %arg8: memref<384x1024xbf16, #tpu.memory_space<vmem>>, %arg9: memref<1x1024xf32, #tpu.memory_space<vmem>>, %arg10: memref<1024x16xbf16, #tpu.memory_space<vmem>>, %arg11: memref<160x64xbf16, #tpu.memory_space<vmem>>, %arg12: memref<1x64xf32, #tpu.memory_space<vmem>>, %arg13: memref<64x32xf32, #tpu.memory_space<vmem>>, %arg14: memref<16x32xf32, #tpu.memory_space<vmem>>, %arg15: memref<10x32xf32, #tpu.memory_space<vmem>>, %arg16: memref<1x32xf32, #tpu.memory_space<vmem>>, %arg17: memref<1x32xf32, #tpu.memory_space<vmem>>, %arg18: memref<1x1xf32, #tpu.memory_space<vmem>>, %arg19: memref<1x1x1xf32, #tpu.memory_space<vmem>>) attributes {dimension_semantics = [#tpu.dimension_semantics<parallel>], iteration_bounds = array<i64: 2>, scalar_prefetch = 0 : i64, scratch_operands = 0 : i64, tpu.core_type = #tpu.core_type<tc>, window_params = [{transform_indices = @transform_0, window_bounds = array<i64: 1, 256, 128>}, {transform_indices = @transform_1, window_bounds = array<i64: 1, 30, 160>}, {transform_indices = @transform_2, window_bounds = array<i64: 1, 1, 10>}, {pipeline_mode = #tpu.pipeline_mode<synchronous>, transform_indices = @transform_3, window_bounds = array<i64: 1088, 256>}, {pipeline_mode = #tpu.pipeline_mode<synchronous>, transform_indices = @transform_4, window_bounds = array<i64: 512, 544>}, {pipeline_mode = #tpu.pipeline_mode<synchronous>, transform_indices = @transform_5, window_bounds = array<i64: 128, 128>}, {pipeline_mode = #tpu.pipeline_mode<synchronous>, transform_indices = @transform_6, window_bounds = array<i64: 768, 512>}, {pipeline_mode = #tpu.pipeline_mode<synchronous>, transform_indices = @transform_7, window_bounds = array<i64: 384, 1024>}, {pipeline_mode = #tpu.pipeline_mode<synchronous>, transform_indices = @transform_8, window_bounds = array<i64: 1, 1024>}, {pipeline_mode = #tpu.pipeline_mode<synchronous>, transform_indices = @transform_9, window_bounds = array<i64: 1024, 16>}, {pipeline_mode = #tpu.pipeline_mode<synchronous>, transform_indices = @transform_10, window_bounds = array<i64: 160, 64>}, {pipeline_mode = #tpu.pipeline_mode<synchronous>, transform_indices = @transform_11, window_bounds = array<i64: 1, 64>}, {pipeline_mode = #tpu.pipeline_mode<synchronous>, transform_indices = @transform_12, window_bounds = array<i64: 64, 32>}, {pipeline_mode = #tpu.pipeline_mode<synchronous>, transform_indices = @transform_13, window_bounds = array<i64: 16, 32>}, {pipeline_mode = #tpu.pipeline_mode<synchronous>, transform_indices = @transform_14, window_bounds = array<i64: 10, 32>}, {pipeline_mode = #tpu.pipeline_mode<synchronous>, transform_indices = @transform_15, window_bounds = array<i64: 1, 32>}, {pipeline_mode = #tpu.pipeline_mode<synchronous>, transform_indices = @transform_16, window_bounds = array<i64: 1, 32>}, {pipeline_mode = #tpu.pipeline_mode<synchronous>, transform_indices = @transform_17, window_bounds = array<i64: 1, 1>}, {transform_indices = @transform_18, window_bounds = array<i64: 1, 1, 1>}]} {
    %c0 = arith.constant 0 : index
    %c0_0 = arith.constant 0 : index
    %c0_1 = arith.constant 0 : index
    %0 = vector.load %arg1[%c0, %c0_0, %c0_1] : memref<1x256x128xbf16, #tpu.memory_space<vmem>>, vector<1x256x128xbf16>
    %1 = vector.shape_cast %0 : vector<1x256x128xbf16> to vector<256x128xbf16>
    %c0_2 = arith.constant 0 : index
    %c0_3 = arith.constant 0 : index
    %2 = vector.load %arg4[%c0_2, %c0_3] : memref<1088x256xbf16, #tpu.memory_space<vmem>>, vector<1088x256xbf16>
    %cst = arith.constant dense<0.000000e+00> : vector<1088x128xf32>
    %3 = tpu.matmul %2, %1, %cst {dimension_numbers = #tpu.dot_dimension_numbers<[1], [0], [0], [1], [0, 0, 1, 1], [], []>} : vector<1088x256xbf16>, vector<256x128xbf16>, vector<1088x128xf32> -> vector<1088x128xf32>
    %4 = vector.extract_strided_slice %3 {offsets = [0, 0], sizes = [544, 128], strides = [1, 1]} : vector<1088x128xf32> to vector<544x128xf32>
    %5 = vector.extract_strided_slice %3 {offsets = [544, 0], sizes = [544, 128], strides = [1, 1]} : vector<1088x128xf32> to vector<544x128xf32>
    %6 = arith.mulf %4, %4 : vector<544x128xf32>
    %7 = arith.mulf %5, %5 : vector<544x128xf32>
    %8 = arith.addf %6, %7 : vector<544x128xf32>
    %9 = arith.truncf %8 : vector<544x128xf32> to vector<544x128xbf16>
    %c0_4 = arith.constant 0 : index
    %c0_5 = arith.constant 0 : index
    %10 = vector.load %arg5[%c0_4, %c0_5] : memref<512x544xbf16, #tpu.memory_space<vmem>>, vector<512x544xbf16>
    %cst_6 = arith.constant dense<0.000000e+00> : vector<512x128xf32>
    %11 = tpu.matmul %10, %9, %cst_6 {dimension_numbers = #tpu.dot_dimension_numbers<[1], [0], [0], [1], [0, 0, 1, 1], [], []>} : vector<512x544xbf16>, vector<544x128xbf16>, vector<512x128xf32> -> vector<512x128xf32>
    %cst_7 = arith.constant 9.99999974E-6 : f32
    %12 = vector.broadcast %cst_7 : f32 to vector<512x128xf32>
    %13 = arith.maximumf %11, %12 : vector<512x128xf32>
    %14 = math.log %13 : vector<512x128xf32>
    %cst_8 = arith.constant 0.434294492 : f32
    %15 = vector.broadcast %cst_8 : f32 to vector<512x128xf32>
    %16 = arith.mulf %14, %15 : vector<512x128xf32>
    %17 = vector.extract_strided_slice %16 {offsets = [0, 0], sizes = [128, 128], strides = [1, 1]} : vector<512x128xf32> to vector<128x128xf32>
    %18 = vector.shape_cast %17 : vector<128x128xf32> to vector<1x128x128xf32>
    %cst_9 = arith.constant dense<0xFF800000> : vector<1xf32>
    %19 = vector.multi_reduction <maximumf>, %18, %cst_9 [1, 2] : vector<1x128x128xf32> to vector<1xf32>
    %20 = vector.shape_cast %19 : vector<1xf32> to vector<1x1x1xf32>
    %21 = vector.extract %20[0, 0, 0] : f32 from vector<1x1x1xf32>
    %cst_10 = arith.constant 1.250000e-01 : f32
    %22 = vector.broadcast %cst_10 : f32 to vector<128x128xf32>
    %23 = arith.mulf %17, %22 : vector<128x128xf32>
    %cst_11 = arith.constant 1.250000e-01 : f32
    %24 = arith.mulf %cst_11, %21 : f32
    %cst_12 = arith.constant 1.000000e+00 : f32
    %25 = arith.subf %cst_12, %24 : f32
    %26 = vector.broadcast %25 : f32 to vector<128x128xf32>
    %27 = arith.addf %23, %26 : vector<128x128xf32>
    %28 = arith.truncf %27 : vector<128x128xf32> to vector<128x128xbf16>
    %29 = vector.extract_strided_slice %16 {offsets = [128, 0], sizes = [128, 128], strides = [1, 1]} : vector<512x128xf32> to vector<128x128xf32>
    %30 = vector.shape_cast %29 : vector<128x128xf32> to vector<1x128x128xf32>
    %cst_13 = arith.constant dense<0xFF800000> : vector<1xf32>
    %31 = vector.multi_reduction <maximumf>, %30, %cst_13 [1, 2] : vector<1x128x128xf32> to vector<1xf32>
    %32 = vector.shape_cast %31 : vector<1xf32> to vector<1x1x1xf32>
    %33 = vector.extract %32[0, 0, 0] : f32 from vector<1x1x1xf32>
    %cst_14 = arith.constant 1.250000e-01 : f32
    %34 = vector.broadcast %cst_14 : f32 to vector<128x128xf32>
    %35 = arith.mulf %29, %34 : vector<128x128xf32>
    %cst_15 = arith.constant 1.250000e-01 : f32
    %36 = arith.mulf %cst_15, %33 : f32
    %cst_16 = arith.constant 1.000000e+00 : f32
    %37 = arith.subf %cst_16, %36 : f32
    %38 = vector.broadcast %37 : f32 to vector<128x128xf32>
    %39 = arith.addf %35, %38 : vector<128x128xf32>
    %40 = arith.truncf %39 : vector<128x128xf32> to vector<128x128xbf16>
    %41 = vector.extract_strided_slice %16 {offsets = [256, 0], sizes = [128, 128], strides = [1, 1]} : vector<512x128xf32> to vector<128x128xf32>
    %42 = vector.shape_cast %41 : vector<128x128xf32> to vector<1x128x128xf32>
    %cst_17 = arith.constant dense<0xFF800000> : vector<1xf32>
    %43 = vector.multi_reduction <maximumf>, %42, %cst_17 [1, 2] : vector<1x128x128xf32> to vector<1xf32>
    %44 = vector.shape_cast %43 : vector<1xf32> to vector<1x1x1xf32>
    %45 = vector.extract %44[0, 0, 0] : f32 from vector<1x1x1xf32>
    %cst_18 = arith.constant 1.250000e-01 : f32
    %46 = vector.broadcast %cst_18 : f32 to vector<128x128xf32>
    %47 = arith.mulf %41, %46 : vector<128x128xf32>
    %cst_19 = arith.constant 1.250000e-01 : f32
    %48 = arith.mulf %cst_19, %45 : f32
    %cst_20 = arith.constant 1.000000e+00 : f32
    %49 = arith.subf %cst_20, %48 : f32
    %50 = vector.broadcast %49 : f32 to vector<128x128xf32>
    %51 = arith.addf %47, %50 : vector<128x128xf32>
    %52 = arith.truncf %51 : vector<128x128xf32> to vector<128x128xbf16>
    %53 = vector.extract_strided_slice %16 {offsets = [384, 0], sizes = [128, 128], strides = [1, 1]} : vector<512x128xf32> to vector<128x128xf32>
    %54 = vector.shape_cast %53 : vector<128x128xf32> to vector<1x128x128xf32>
    %cst_21 = arith.constant dense<0xFF800000> : vector<1xf32>
    %55 = vector.multi_reduction <maximumf>, %54, %cst_21 [1, 2] : vector<1x128x128xf32> to vector<1xf32>
    %56 = vector.shape_cast %55 : vector<1xf32> to vector<1x1x1xf32>
    %57 = vector.extract %56[0, 0, 0] : f32 from vector<1x1x1xf32>
    %cst_22 = arith.constant 1.250000e-01 : f32
    %58 = vector.broadcast %cst_22 : f32 to vector<128x128xf32>
    %59 = arith.mulf %53, %58 : vector<128x128xf32>
    %cst_23 = arith.constant 1.250000e-01 : f32
    %60 = arith.mulf %cst_23, %57 : f32
    %cst_24 = arith.constant 1.000000e+00 : f32
    %61 = arith.subf %cst_24, %60 : f32
    %62 = vector.broadcast %61 : f32 to vector<128x128xf32>
    %63 = arith.addf %59, %62 : vector<128x128xf32>
    %64 = arith.truncf %63 : vector<128x128xf32> to vector<128x128xbf16>
    %65 = tpu.concatenate %28, %40, %52, %64 in 0 : vector<128x128xbf16>, vector<128x128xbf16>, vector<128x128xbf16>, vector<128x128xbf16> -> vector<512x128xbf16>
    %c0_25 = arith.constant 0 : index
    %c0_26 = arith.constant 0 : index
    %66 = vector.load %arg6[%c0_25, %c0_26] : memref<128x128xbf16, #tpu.memory_space<vmem>>, vector<128x128xbf16>
    %cst_27 = arith.constant dense<0.000000e+00> : vector<512x128xf32>
    %67 = tpu.matmul %65, %66, %cst_27 {dimension_numbers = #tpu.dot_dimension_numbers<[1], [0], [0], [1], [0, 0, 1, 1], [], []>} : vector<512x128xbf16>, vector<128x128xbf16>, vector<512x128xf32> -> vector<512x128xf32>
    %c0_28 = arith.constant 0 : index
    %c0_29 = arith.constant 0 : index
    %68 = vector.load %arg7[%c0_28, %c0_29] : memref<768x512xbf16, #tpu.memory_space<vmem>>, vector<768x512xbf16>
    %69 = arith.truncf %67 : vector<512x128xf32> to vector<512x128xbf16>
    %cst_30 = arith.constant dense<0.000000e+00> : vector<768x128xf32>
    %70 = tpu.matmul %68, %69, %cst_30 {dimension_numbers = #tpu.dot_dimension_numbers<[1], [0], [0], [1], [0, 0, 1, 1], [], []>} : vector<768x512xbf16>, vector<512x128xbf16>, vector<768x128xf32> -> vector<768x128xf32>
    %71 = arith.truncf %70 : vector<768x128xf32> to vector<768x128xbf16>
    %72 = vector.extract_strided_slice %71 {offsets = [0, 0], sizes = [256, 128], strides = [1, 1]} : vector<768x128xbf16> to vector<256x128xbf16>
    %73 = vector.extract_strided_slice %71 {offsets = [256, 0], sizes = [256, 128], strides = [1, 1]} : vector<768x128xbf16> to vector<256x128xbf16>
    %74 = vector.extract_strided_slice %71 {offsets = [512, 0], sizes = [256, 128], strides = [1, 1]} : vector<768x128xbf16> to vector<256x128xbf16>
    %75 = tpu.concatenate %72, %73, %74 in 1 : vector<256x128xbf16>, vector<256x128xbf16>, vector<256x128xbf16> -> vector<256x384xbf16>
    %c0_31 = arith.constant 0 : index
    %c0_32 = arith.constant 0 : index
    %76 = vector.load %arg8[%c0_31, %c0_32] : memref<384x1024xbf16, #tpu.memory_space<vmem>>, vector<384x1024xbf16>
    %cst_33 = arith.constant dense<0.000000e+00> : vector<256x1024xf32>
    %77 = tpu.matmul %75, %76, %cst_33 {dimension_numbers = #tpu.dot_dimension_numbers<[1], [0], [0], [1], [0, 0, 1, 1], [], []>} : vector<256x384xbf16>, vector<384x1024xbf16>, vector<256x1024xf32> -> vector<256x1024xf32>
    %c0_34 = arith.constant 0 : index
    %c0_35 = arith.constant 0 : index
    %78 = vector.load %arg9[%c0_34, %c0_35] : memref<1x1024xf32, #tpu.memory_space<vmem>>, vector<1x1024xf32>
    %79 = vector.broadcast %78 : vector<1x1024xf32> to vector<256x1024xf32>
    %80 = arith.addf %77, %79 : vector<256x1024xf32>
    %cst_36 = arith.constant 0.000000e+00 : f32
    %81 = vector.broadcast %cst_36 : f32 to vector<256x1024xf32>
    %82 = arith.maximumf %80, %81 : vector<256x1024xf32>
    %cst_37 = arith.constant dense<0.000000e+00> : vector<1024xf32>
    %83 = vector.multi_reduction <add>, %82, %cst_37 [0] : vector<256x1024xf32> to vector<1024xf32>
    %84 = vector.shape_cast %83 : vector<1024xf32> to vector<1x1024xf32>
    %85 = arith.truncf %84 : vector<1x1024xf32> to vector<1x1024xbf16>
    %c0_38 = arith.constant 0 : index
    %c0_39 = arith.constant 0 : index
    %86 = vector.load %arg10[%c0_38, %c0_39] : memref<1024x16xbf16, #tpu.memory_space<vmem>>, vector<1024x16xbf16>
    %cst_40 = arith.constant dense<0.000000e+00> : vector<1x16xf32>
    %87 = tpu.matmul %85, %86, %cst_40 {dimension_numbers = #tpu.dot_dimension_numbers<[1], [0], [0], [1], [0, 0, 1, 1], [], []>} : vector<1x1024xbf16>, vector<1024x16xbf16>, vector<1x16xf32> -> vector<1x16xf32>
    %c0_41 = arith.constant 0 : index
    %c0_42 = arith.constant 0 : index
    %c0_43 = arith.constant 0 : index
    %88 = vector.load %arg2[%c0_41, %c0_42, %c0_43] : memref<1x30x160xf32, #tpu.memory_space<vmem>>, vector<1x30x160xf32>
    %89 = vector.shape_cast %88 : vector<1x30x160xf32> to vector<30x160xf32>
    %90 = vector.shape_cast %89 : vector<30x160xf32> to vector<1x30x160xf32>
    %cst_44 = arith.constant dense<0.000000e+00> : vector<1xf32>
    %91 = vector.multi_reduction <add>, %90, %cst_44 [1, 2] : vector<1x30x160xf32> to vector<1xf32>
    %92 = vector.shape_cast %91 : vector<1xf32> to vector<1x1x1xf32>
    %93 = vector.extract %92[0, 0, 0] : f32 from vector<1x1x1xf32>
    %cst_45 = arith.constant 4.800000e+03 : f32
    %94 = arith.divf %93, %cst_45 : f32
    %95 = vector.broadcast %94 : f32 to vector<30x160xf32>
    %96 = arith.subf %89, %95 : vector<30x160xf32>
    %97 = arith.mulf %96, %96 : vector<30x160xf32>
    %98 = vector.shape_cast %97 : vector<30x160xf32> to vector<1x30x160xf32>
    %cst_46 = arith.constant dense<0.000000e+00> : vector<1xf32>
    %99 = vector.multi_reduction <add>, %98, %cst_46 [1, 2] : vector<1x30x160xf32> to vector<1xf32>
    %100 = vector.shape_cast %99 : vector<1xf32> to vector<1x1x1xf32>
    %101 = vector.extract %100[0, 0, 0] : f32 from vector<1x1x1xf32>
    %cst_47 = arith.constant 4.799000e+03 : f32
    %102 = arith.divf %101, %cst_47 : f32
    %103 = math.sqrt %102 : f32
    %cst_48 = arith.constant 9.99999974E-6 : f32
    %104 = arith.maximumf %103, %cst_48 : f32
    %105 = vector.broadcast %104 : f32 to vector<30x160xf32>
    %106 = arith.divf %96, %105 : vector<30x160xf32>
    %107 = arith.truncf %106 : vector<30x160xf32> to vector<30x160xbf16>
    %c0_49 = arith.constant 0 : index
    %c0_50 = arith.constant 0 : index
    %108 = vector.load %arg11[%c0_49, %c0_50] : memref<160x64xbf16, #tpu.memory_space<vmem>>, vector<160x64xbf16>
    %cst_51 = arith.constant dense<0.000000e+00> : vector<30x64xf32>
    %109 = tpu.matmul %107, %108, %cst_51 {dimension_numbers = #tpu.dot_dimension_numbers<[1], [0], [0], [1], [0, 0, 1, 1], [], []>} : vector<30x160xbf16>, vector<160x64xbf16>, vector<30x64xf32> -> vector<30x64xf32>
    %c0_52 = arith.constant 0 : index
    %c0_53 = arith.constant 0 : index
    %110 = vector.load %arg12[%c0_52, %c0_53] : memref<1x64xf32, #tpu.memory_space<vmem>>, vector<1x64xf32>
    %111 = vector.broadcast %110 : vector<1x64xf32> to vector<30x64xf32>
    %112 = arith.addf %109, %111 : vector<30x64xf32>
    %113 = arith.mulf %112, %112 : vector<30x64xf32>
    %114 = arith.mulf %112, %113 : vector<30x64xf32>
    %cst_54 = arith.constant 4.471500e-02 : f32
    %115 = vector.broadcast %cst_54 : f32 to vector<30x64xf32>
    %116 = arith.mulf %115, %114 : vector<30x64xf32>
    %117 = arith.addf %112, %116 : vector<30x64xf32>
    %cst_55 = arith.constant 0.797884583 : f32
    %118 = vector.broadcast %cst_55 : f32 to vector<30x64xf32>
    %119 = arith.mulf %118, %117 : vector<30x64xf32>
    %120 = math.tanh %119 : vector<30x64xf32>
    %cst_56 = arith.constant 1.000000e+00 : f32
    %121 = vector.broadcast %cst_56 : f32 to vector<30x64xf32>
    %122 = arith.addf %121, %120 : vector<30x64xf32>
    %cst_57 = arith.constant 5.000000e-01 : f32
    %123 = vector.broadcast %cst_57 : f32 to vector<30x64xf32>
    %124 = arith.mulf %123, %122 : vector<30x64xf32>
    %125 = arith.mulf %112, %124 : vector<30x64xf32>
    %cst_58 = arith.constant dense<0.000000e+00> : vector<64xf32>
    %126 = vector.multi_reduction <add>, %125, %cst_58 [0] : vector<30x64xf32> to vector<64xf32>
    %127 = vector.shape_cast %126 : vector<64xf32> to vector<1x64xf32>
    %cst_59 = arith.constant 3.000000e+01 : f32
    %128 = vector.broadcast %cst_59 : f32 to vector<1x64xf32>
    %129 = arith.divf %127, %128 : vector<1x64xf32>
    %c0_60 = arith.constant 0 : index
    %c0_61 = arith.constant 0 : index
    %130 = vector.load %arg13[%c0_60, %c0_61] : memref<64x32xf32, #tpu.memory_space<vmem>>, vector<64x32xf32>
    %cst_62 = arith.constant dense<0.000000e+00> : vector<1x32xf32>
    %131 = tpu.matmul %129, %130, %cst_62 {dimension_numbers = #tpu.dot_dimension_numbers<[1], [0], [0], [1], [0, 0, 1, 1], [], []>} : vector<1x64xf32>, vector<64x32xf32>, vector<1x32xf32> -> vector<1x32xf32>
    %c0_63 = arith.constant 0 : index
    %c0_64 = arith.constant 0 : index
    %132 = vector.load %arg14[%c0_63, %c0_64] : memref<16x32xf32, #tpu.memory_space<vmem>>, vector<16x32xf32>
    %cst_65 = arith.constant dense<0.000000e+00> : vector<1x32xf32>
    %133 = tpu.matmul %87, %132, %cst_65 {dimension_numbers = #tpu.dot_dimension_numbers<[1], [0], [0], [1], [0, 0, 1, 1], [], []>} : vector<1x16xf32>, vector<16x32xf32>, vector<1x32xf32> -> vector<1x32xf32>
    %134 = arith.addf %131, %133 : vector<1x32xf32>
    %c0_66 = arith.constant 0 : index
    %c0_67 = arith.constant 0 : index
    %c0_68 = arith.constant 0 : index
    %135 = vector.load %arg3[%c0_66, %c0_67, %c0_68] : memref<1x1x10xf32, #tpu.memory_space<vmem>>, vector<1x1x10xf32>
    %136 = vector.shape_cast %135 : vector<1x1x10xf32> to vector<1x10xf32>
    %c0_69 = arith.constant 0 : index
    %c0_70 = arith.constant 0 : index
    %137 = vector.load %arg15[%c0_69, %c0_70] : memref<10x32xf32, #tpu.memory_space<vmem>>, vector<10x32xf32>
    %cst_71 = arith.constant dense<0.000000e+00> : vector<1x32xf32>
    %138 = tpu.matmul %136, %137, %cst_71 {dimension_numbers = #tpu.dot_dimension_numbers<[1], [0], [0], [1], [0, 0, 1, 1], [], []>} : vector<1x10xf32>, vector<10x32xf32>, vector<1x32xf32> -> vector<1x32xf32>
    %139 = arith.addf %134, %138 : vector<1x32xf32>
    %c0_72 = arith.constant 0 : index
    %c0_73 = arith.constant 0 : index
    %140 = vector.load %arg16[%c0_72, %c0_73] : memref<1x32xf32, #tpu.memory_space<vmem>>, vector<1x32xf32>
    %141 = arith.addf %139, %140 : vector<1x32xf32>
    %cst_74 = arith.constant 0.000000e+00 : f32
    %142 = vector.broadcast %cst_74 : f32 to vector<1x32xf32>
    %143 = arith.maximumf %141, %142 : vector<1x32xf32>
    %c0_75 = arith.constant 0 : index
    %c0_76 = arith.constant 0 : index
    %144 = vector.load %arg17[%c0_75, %c0_76] : memref<1x32xf32, #tpu.memory_space<vmem>>, vector<1x32xf32>
    %145 = arith.mulf %143, %144 : vector<1x32xf32>
    %cst_77 = arith.constant dense<0.000000e+00> : vector<1xf32>
    %146 = vector.multi_reduction <add>, %145, %cst_77 [1] : vector<1x32xf32> to vector<1xf32>
    %147 = vector.shape_cast %146 : vector<1xf32> to vector<1x1xf32>
    %c0_78 = arith.constant 0 : index
    %c0_79 = arith.constant 0 : index
    %148 = vector.load %arg18[%c0_78, %c0_79] : memref<1x1xf32, #tpu.memory_space<vmem>>, vector<1x1xf32>
    %149 = arith.addf %147, %148 : vector<1x1xf32>
    %c0_80 = arith.constant 0 : index
    %c0_81 = arith.constant 0 : index
    %c0_82 = arith.constant 0 : index
    %150 = vector.load %arg19[%c0_80, %c0_81, %c0_82] : memref<1x1x1xf32, #tpu.memory_space<vmem>>, vector<1x1x1xf32>
    %151 = vector.shape_cast %150 : vector<1x1x1xf32> to vector<1x1xf32>
    %152 = vector.shape_cast %149 : vector<1x1xf32> to vector<1x1x1xf32>
    tpu.vector_store %arg19[%c0_80, %c0_81, %c0_82], %152 {strides = array<i32>} : memref<1x1x1xf32, #tpu.memory_space<vmem>>, vector<1x1x1xf32>,
    return
  }
  func.func @transform_0(%arg0: i32) -> (i32, i32, i32) {
    %c0_i32 = arith.constant 0 : i32
    %c0_i32_0 = arith.constant 0 : i32
    %c0_i32_1 = arith.constant 0 : i32
    return %arg0, %c0_i32, %c0_i32_0 : i32, i32, i32
  }
  func.func @transform_1(%arg0: i32) -> (i32, i32, i32) {
    %c0_i32 = arith.constant 0 : i32
    %c0_i32_0 = arith.constant 0 : i32
    %c0_i32_1 = arith.constant 0 : i32
    return %arg0, %c0_i32, %c0_i32_0 : i32, i32, i32
  }
  func.func @transform_2(%arg0: i32) -> (i32, i32, i32) {
    %c0_i32 = arith.constant 0 : i32
    %c0_i32_0 = arith.constant 0 : i32
    %c0_i32_1 = arith.constant 0 : i32
    return %arg0, %c0_i32, %c0_i32_0 : i32, i32, i32
  }
  func.func @transform_3(%arg0: i32) -> (i32, i32) {
    %c0_i32 = arith.constant 0 : i32
    %c0_i32_0 = arith.constant 0 : i32
    %c0_i32_1 = arith.constant 0 : i32
    return %c0_i32, %c0_i32_0 : i32, i32
  }
  func.func @transform_4(%arg0: i32) -> (i32, i32) {
    %c0_i32 = arith.constant 0 : i32
    %c0_i32_0 = arith.constant 0 : i32
    %c0_i32_1 = arith.constant 0 : i32
    return %c0_i32, %c0_i32_0 : i32, i32
  }
  func.func @transform_5(%arg0: i32) -> (i32, i32) {
    %c0_i32 = arith.constant 0 : i32
    %c0_i32_0 = arith.constant 0 : i32
    %c0_i32_1 = arith.constant 0 : i32
    return %c0_i32, %c0_i32_0 : i32, i32
  }
  func.func @transform_6(%arg0: i32) -> (i32, i32) {
    %c0_i32 = arith.constant 0 : i32
    %c0_i32_0 = arith.constant 0 : i32
    %c0_i32_1 = arith.constant 0 : i32
    return %c0_i32, %c0_i32_0 : i32, i32
  }
  func.func @transform_7(%arg0: i32) -> (i32, i32) {
    %c0_i32 = arith.constant 0 : i32
    %c0_i32_0 = arith.constant 0 : i32
    %c0_i32_1 = arith.constant 0 : i32
    return %c0_i32, %c0_i32_0 : i32, i32
  }
  func.func @transform_8(%arg0: i32) -> (i32, i32) {
    %c0_i32 = arith.constant 0 : i32
    %c0_i32_0 = arith.constant 0 : i32
    %c0_i32_1 = arith.constant 0 : i32
    return %c0_i32, %c0_i32_0 : i32, i32
  }
  func.func @transform_9(%arg0: i32) -> (i32, i32) {
    %c0_i32 = arith.constant 0 : i32
    %c0_i32_0 = arith.constant 0 : i32
    %c0_i32_1 = arith.constant 0 : i32
    return %c0_i32, %c0_i32_0 : i32, i32
  }
  func.func @transform_10(%arg0: i32) -> (i32, i32) {
    %c0_i32 = arith.constant 0 : i32
    %c0_i32_0 = arith.constant 0 : i32
    %c0_i32_1 = arith.constant 0 : i32
    return %c0_i32, %c0_i32_0 : i32, i32
  }
  func.func @transform_11(%arg0: i32) -> (i32, i32) {
    %c0_i32 = arith.constant 0 : i32
    %c0_i32_0 = arith.constant 0 : i32
    %c0_i32_1 = arith.constant 0 : i32
    return %c0_i32, %c0_i32_0 : i32, i32
  }
  func.func @transform_12(%arg0: i32) -> (i32, i32) {
    %c0_i32 = arith.constant 0 : i32
    %c0_i32_0 = arith.constant 0 : i32
    %c0_i32_1 = arith.constant 0 : i32
    return %c0_i32, %c0_i32_0 : i32, i32
  }
  func.func @transform_13(%arg0: i32) -> (i32, i32) {
    %c0_i32 = arith.constant 0 : i32
    %c0_i32_0 = arith.constant 0 : i32
    %c0_i32_1 = arith.constant 0 : i32
    return %c0_i32, %c0_i32_0 : i32, i32
  }
  func.func @transform_14(%arg0: i32) -> (i32, i32) {
    %c0_i32 = arith.constant 0 : i32
    %c0_i32_0 = arith.constant 0 : i32
    %c0_i32_1 = arith.constant 0 : i32
    return %c0_i32, %c0_i32_0 : i32, i32
  }
  func.func @transform_15(%arg0: i32) -> (i32, i32) {
    %c0_i32 = arith.constant 0 : i32
    %c0_i32_0 = arith.constant 0 : i32
    %c0_i32_1 = arith.constant 0 : i32
    return %c0_i32, %c0_i32_0 : i32, i32
  }
  func.func @transform_16(%arg0: i32) -> (i32, i32) {
    %c0_i32 = arith.constant 0 : i32
    %c0_i32_0 = arith.constant 0 : i32
    %c0_i32_1 = arith.constant 0 : i32
    return %c0_i32, %c0_i32_0 : i32, i32
  }
  func.func @transform_17(%arg0: i32) -> (i32, i32) {
    %c0_i32 = arith.constant 0 : i32
    %c0_i32_0 = arith.constant 0 : i32
    %c0_i32_1 = arith.constant 0 : i32
    return %c0_i32, %c0_i32_0 : i32, i32
  }
  func.func @transform_18(%arg0: i32) -> (i32, i32, i32) {
    %c0_i32 = arith.constant 0 : i32
    %c0_i32_0 = arith.constant 0 : i32
    %c0_i32_1 = arith.constant 0 : i32
    return %arg0, %c0_i32, %c0_i32_0 : i32, i32, i32
  }
}

</mosaic_0001>

<llo_original>
// kernel: _lambda_.1
$region0: #{_lambda_.1}
  #allocation0 [shape = 'u32[]', space=smem, size = 0x4, offset = 0x4, fixed_abs, tag = 'smem constant byte address 0x4 - core index']
  #allocation1 [shape = 'u32[144,128]{1,0:T(1,128)}', space=vmem, size = 0x12000, scoped, tag = 'internal scratch']
  #allocation2 [shape = 'f32[1,1]{1,0:T(1,128)S(1)}', space=vmem, size = 0x200, scoped, tag = 'scoped memory for _lambda_.1']
  %s0 = inlined_call_operand.vmem [shape: bf16[2,256,128], index: 0, kind: input, shape index: {}]
  %s1 = inlined_call_operand.vmem [shape: f32[2,30,160], index: 1, kind: input, shape index: {}]
  %s2 = inlined_call_operand.vmem [shape: f32[2,1,10], index: 2, kind: input, shape index: {}]
  %s3 = inlined_call_operand.vmem [shape: bf16[1088,256], index: 3, kind: input, shape index: {}]
  %s4 = inlined_call_operand.vmem [shape: bf16[512,544], index: 4, kind: input, shape index: {}]
  %s5 = inlined_call_operand.vmem [shape: bf16[128,128], index: 5, kind: input, shape index: {}]
  %s6 = inlined_call_operand.vmem [shape: bf16[768,512], index: 6, kind: input, shape index: {}]
  %s7 = inlined_call_operand.vmem [shape: bf16[384,1024], index: 7, kind: input, shape index: {}]
  %s8 = inlined_call_operand.vmem [shape: f32[1,1024], index: 8, kind: input, shape index: {}]
  %s9 = inlined_call_operand.vmem [shape: bf16[1024,16], index: 9, kind: input, shape index: {}]
  %s10 = inlined_call_operand.vmem [shape: bf16[160,64], index: 10, kind: input, shape index: {}]
  %s11 = inlined_call_operand.vmem [shape: f32[1,64], index: 11, kind: input, shape index: {}]
  %s12 = inlined_call_operand.vmem [shape: f32[64,32], index: 12, kind: input, shape index: {}]
  %s13 = inlined_call_operand.vmem [shape: f32[16,32], index: 13, kind: input, shape index: {}]
  %s14 = inlined_call_operand.vmem [shape: f32[10,32], index: 14, kind: input, shape index: {}]
  %s15 = inlined_call_operand.vmem [shape: f32[1,32], index: 15, kind: input, shape index: {}]
  %s16 = inlined_call_operand.vmem [shape: f32[1,32], index: 16, kind: input, shape index: {}]
  %s17 = inlined_call_operand.<no memory space> [shape: f32[1,1], index: 17, kind: input, shape index: {}]
  %s18 = inlined_call_operand.vmem [shape: f32[2,1,1], index: 18, kind: output, shape index: {}]
  %s19 = sld [smem:[#allocation0]]
  $region105: #{_lambda_.1} parent=0
    _
  %s21 = ssub.s32 1, %s19
  %s22 = scalar_select 0, %s21, %s19
  %v23 = vstv %s17
  %24 = vst [vmem:[#allocation2] sm:$0x1] %v23
  loop: start=0, step=1, limit=4
  $region2: #{_lambda_.1} parent=0 // loop_pre_header
    _
  $region3: #{_lambda_.1} parent=0 // loop_header
    %s26 = sphi 0, %s30
    %p27 = scmp.ge.s32.totalorder %s26, 4
    %s36 = sphi 0, %s38
    %s39 = sphi 0, %s36
    %s40 = sphi 0, %s39
    %s56 = sphi 0, %s40
    %s62 = sphi 0, %s64
    %s65 = sphi 0, %s62
    %s66 = sphi 0, %s65
    %s82 = sphi 0, %s66
    %s88 = sphi 0, %s90
    %s91 = sphi 0, %s88
    %s92 = sphi 0, %s91
    %s108 = sphi 0, %s92
    %s112 = sphi 0, %s112
    %s114 = sphi 0, %s112
    %s115 = sphi 0, %s114
    %s129 = sphi 0, %s115
    %s133 = sphi 0, %s133
    %s135 = sphi 0, %s133
    %s136 = sphi 0, %s135
    %s150 = sphi 0, %s136
    %s154 = sphi 0, %s154
    %s156 = sphi 0, %s154
    %s157 = sphi 0, %s156
    %s171 = sphi 0, %s157
    %s175 = sphi 0, %s175
    %s177 = sphi 0, %s175
    %s178 = sphi 0, %s177
    %s192 = sphi 0, %s178
    %s196 = sphi 0, %s196
    %s198 = sphi 0, %s196
    %s199 = sphi 0, %s198
    %s213 = sphi 0, %s199
    %s217 = sphi 0, %s217
    %s219 = sphi 0, %s217
    %s220 = sphi 0, %s219
    %s234 = sphi 0, %s220
    %s238 = sphi 0, %s238
    %s240 = sphi 0, %s238
    %s241 = sphi 0, %s240
    %s255 = sphi 0, %s241
    %s259 = sphi 0, %s259
    %s261 = sphi 0, %s259
    %s262 = sphi 0, %s261
    %s276 = sphi 0, %s262
    %s280 = sphi 0, %s280
    %s282 = sphi 0, %s280
    %s283 = sphi 0, %s282
    %s297 = sphi 0, %s283
    %s301 = sphi 0, %s301
    %s303 = sphi 0, %s301
    %s304 = sphi 0, %s303
    %s318 = sphi 0, %s304
    %s322 = sphi 0, %s322
    %s324 = sphi 0, %s322
    %s325 = sphi 0, %s324
    %s339 = sphi 0, %s325
    %s343 = sphi 0, %s343
    %s345 = sphi 0, %s343
    %s346 = sphi 0, %s345
    %s360 = sphi 0, %s346
    %s364 = sphi 0, %s364
    %s366 = sphi 0, %s364
    %s367 = sphi 0, %s366
    %s381 = sphi 0, %s367
    %s385 = sphi 0, %s385
    %s387 = sphi 0, %s385
    %s388 = sphi 0, %s387
    %s402 = sphi 0, %s388
    %s406 = sphi 0, %s406
    %s408 = sphi 0, %s406
    %s409 = sphi 0, %s408
    %s423 = sphi 0, %s409
    %s429 = sphi 0, %s431
    %s432 = sphi 0, %s429
    %s433 = sphi 0, %s432
    %s449 = sphi 0, %s433
  $region4: #{_lambda_.1} parent=0 // loop_header_branch
    %29 = sbr.rel (%p27) target = $region8
  $region5: #{_lambda_.1} parent=0 // loop_body
    %s31 = ssub.s32 %s26, 1
    %s32 = ssub.s32 %s26, 2
    %s33 = sadd.s32 %s26, 1
    %s34 = ssub.s32 %s26, %s33
    %p35 = scmp.eq.s32.totalorder %s34, 0
    %s37 = sadd.s32 %s36, 1
    %s38 = scalar_select %p35, %s36, %s37
    %p41 = pneg %p35
    %p42 = scmp.eq.s32.totalorder %s26, 1
    %p43 = por %p41, %p42
    %p44 = scmp.ne.s32.totalorder %s36, %s39
    %p45 = scmp.eq.s32.totalorder %s26, 0
    %p46 = por %p44, %p45
    %p47 = scmp.ne.s32.totalorder %s36, %s39
    %p48 = scmp.eq.s32.totalorder %s31, 1
    %p49 = por %p47, %p48
    %p50 = scmp.ne.s32.totalorder %s39, %s40
    %p51 = scmp.eq.s32.totalorder %s31, 0
    %p52 = por %p50, %p51
    %p53 = scmp.ne.s32.totalorder %s39, %s40
    %p54 = scmp.eq.s32.totalorder %s32, 1
    %p55 = por %p53, %p54
    %p57 = scmp.ne.s32.totalorder %s40, %s56
    %p58 = scmp.eq.s32.totalorder %s32, 0
    %p59 = por %p57, %p58
    %s60 = ssub.s32 %s26, %s33
    %p61 = scmp.eq.s32.totalorder %s60, 0
    %s63 = sadd.s32 %s62, 1
    %s64 = scalar_select %p61, %s62, %s63
    %p67 = pneg %p61
    %p68 = scmp.eq.s32.totalorder %s26, 1
    %p69 = por %p67, %p68
    %p70 = scmp.ne.s32.totalorder %s62, %s65
    %p71 = scmp.eq.s32.totalorder %s26, 0
    %p72 = por %p70, %p71
    %p73 = scmp.ne.s32.totalorder %s62, %s65
    %p74 = scmp.eq.s32.totalorder %s31, 1
    %p75 = por %p73, %p74
    %p76 = scmp.ne.s32.totalorder %s65, %s66
    %p77 = scmp.eq.s32.totalorder %s31, 0
    %p78 = por %p76, %p77
    %p79 = scmp.ne.s32.totalorder %s65, %s66
    %p80 = scmp.eq.s32.totalorder %s32, 1
    %p81 = por %p79, %p80
    %p83 = scmp.ne.s32.totalorder %s66, %s82
    %p84 = scmp.eq.s32.totalorder %s32, 0
    %p85 = por %p83, %p84
    %s86 = ssub.s32 %s26, %s33
    %p87 = scmp.eq.s32.totalorder %s86, 0
    %s89 = sadd.s32 %s88, 1
    %s90 = scalar_select %p87, %s88, %s89
    %p93 = pneg %p87
    %p94 = scmp.eq.s32.totalorder %s26, 1
    %p95 = por %p93, %p94
    %p96 = scmp.ne.s32.totalorder %s88, %s91
    %p97 = scmp.eq.s32.totalorder %s26, 0
    %p98 = por %p96, %p97
    %p99 = scmp.ne.s32.totalorder %s88, %s91
    %p100 = scmp.eq.s32.totalorder %s31, 1
    %p101 = por %p99, %p100
    %p102 = scmp.ne.s32.totalorder %s91, %s92
    %p103 = scmp.eq.s32.totalorder %s31, 0
    %p104 = por %p102, %p103
    %p105 = scmp.ne.s32.totalorder %s91, %s92
    %p106 = scmp.eq.s32.totalorder %s32, 1
    %p107 = por %p105, %p106
    %p109 = scmp.ne.s32.totalorder %s92, %s108
    %p110 = scmp.eq.s32.totalorder %s32, 0
    %p111 = por %p109, %p110
    %s113 = sadd.s32 %s112, 1
    %p116 = scmp.eq.s32.totalorder %s26, 1
    %p117 = scmp.ne.s32.totalorder %s112, %s114
    %p118 = scmp.eq.s32.totalorder %s26, 0
    %p119 = por %p117, %p118
    %p120 = scmp.ne.s32.totalorder %s112, %s114
    %p121 = scmp.eq.s32.totalorder %s31, 1
    %p122 = por %p120, %p121
    %p123 = scmp.ne.s32.totalorder %s114, %s115
    %p124 = scmp.eq.s32.totalorder %s31, 0
    %p125 = por %p123, %p124
    %p126 = scmp.ne.s32.totalorder %s114, %s115
    %p127 = scmp.eq.s32.totalorder %s32, 1
    %p128 = por %p126, %p127
    %p130 = scmp.ne.s32.totalorder %s115, %s129
    %p131 = scmp.eq.s32.totalorder %s32, 0
    %p132 = por %p130, %p131
    %s134 = sadd.s32 %s133, 1
    %p137 = scmp.eq.s32.totalorder %s26, 1
    %p138 = scmp.ne.s32.totalorder %s133, %s135
    %p139 = scmp.eq.s32.totalorder %s26, 0
    %p140 = por %p138, %p139
    %p141 = scmp.ne.s32.totalorder %s133, %s135
    %p142 = scmp.eq.s32.totalorder %s31, 1
    %p143 = por %p141, %p142
    %p144 = scmp.ne.s32.totalorder %s135, %s136
    %p145 = scmp.eq.s32.totalorder %s31, 0
    %p146 = por %p144, %p145
    %p147 = scmp.ne.s32.totalorder %s135, %s136
    %p148 = scmp.eq.s32.totalorder %s32, 1
    %p149 = por %p147, %p148
    %p151 = scmp.ne.s32.totalorder %s136, %s150
    %p152 = scmp.eq.s32.totalorder %s32, 0
    %p153 = por %p151, %p152
    %s155 = sadd.s32 %s154, 1
    %p158 = scmp.eq.s32.totalorder %s26, 1
    %p159 = scmp.ne.s32.totalorder %s154, %s156
    %p160 = scmp.eq.s32.totalorder %s26, 0
    %p161 = por %p159, %p160
    %p162 = scmp.ne.s32.totalorder %s154, %s156
    %p163 = scmp.eq.s32.totalorder %s31, 1
    %p164 = por %p162, %p163
    %p165 = scmp.ne.s32.totalorder %s156, %s157
    %p166 = scmp.eq.s32.totalorder %s31, 0
    %p167 = por %p165, %p166
    %p168 = scmp.ne.s32.totalorder %s156, %s157
    %p169 = scmp.eq.s32.totalorder %s32, 1
    %p170 = por %p168, %p169
    %p172 = scmp.ne.s32.totalorder %s157, %s171
    %p173 = scmp.eq.s32.totalorder %s32, 0
    %p174 = por %p172, %p173
    %s176 = sadd.s32 %s175, 1
    %p179 = scmp.eq.s32.totalorder %s26, 1
    %p180 = scmp.ne.s32.totalorder %s175, %s177
    %p181 = scmp.eq.s32.totalorder %s26, 0
    %p182 = por %p180, %p181
    %p183 = scmp.ne.s32.totalorder %s175, %s177
    %p184 = scmp.eq.s32.totalorder %s31, 1
    %p185 = por %p183, %p184
    %p186 = scmp.ne.s32.totalorder %s177, %s178
    %p187 = scmp.eq.s32.totalorder %s31, 0
    %p188 = por %p186, %p187
    %p189 = scmp.ne.s32.totalorder %s177, %s178
    %p190 = scmp.eq.s32.totalorder %s32, 1
    %p191 = por %p189, %p190
    %p193 = scmp.ne.s32.totalorder %s178, %s192
    %p194 = scmp.eq.s32.totalorder %s32, 0
    %p195 = por %p193, %p194
    %s197 = sadd.s32 %s196, 1
    %p200 = scmp.eq.s32.totalorder %s26, 1
    %p201 = scmp.ne.s32.totalorder %s196, %s198
    %p202 = scmp.eq.s32.totalorder %s26, 0
    %p203 = por %p201, %p202
    %p204 = scmp.ne.s32.totalorder %s196, %s198
    %p205 = scmp.eq.s32.totalorder %s31, 1
    %p206 = por %p204, %p205
    %p207 = scmp.ne.s32.totalorder %s198, %s199
    %p208 = scmp.eq.s32.totalorder %s31, 0
    %p209 = por %p207, %p208
    %p210 = scmp.ne.s32.totalorder %s198, %s199
    %p211 = scmp.eq.s32.totalorder %s32, 1
    %p212 = por %p210, %p211
    %p214 = scmp.ne.s32.totalorder %s199, %s213
    %p215 = scmp.eq.s32.totalorder %s32, 0
    %p216 = por %p214, %p215
    %s218 = sadd.s32 %s217, 1
    %p221 = scmp.eq.s32.totalorder %s26, 1
    %p222 = scmp.ne.s32.totalorder %s217, %s219
    %p223 = scmp.eq.s32.totalorder %s26, 0
    %p224 = por %p222, %p223
    %p225 = scmp.ne.s32.totalorder %s217, %s219
    %p226 = scmp.eq.s32.totalorder %s31, 1
    %p227 = por %p225, %p226
    %p228 = scmp.ne.s32.totalorder %s219, %s220
    %p229 = scmp.eq.s32.totalorder %s31, 0
    %p230 = por %p228, %p229
    %p231 = scmp.ne.s32.totalorder %s219, %s220
    %p232 = scmp.eq.s32.totalorder %s32, 1
    %p233 = por %p231, %p232
    %p235 = scmp.ne.s32.totalorder %s220, %s234
    %p236 = scmp.eq.s32.totalorder %s32, 0
    %p237 = por %p235, %p236
    %s239 = sadd.s32 %s238, 1
    %p242 = scmp.eq.s32.totalorder %s26, 1
    %p243 = scmp.ne.s32.totalorder %s238, %s240
    %p244 = scmp.eq.s32.totalorder %s26, 0
    %p245 = por %p243, %p244
    %p246 = scmp.ne.s32.totalorder %s238, %s240
    %p247 = scmp.eq.s32.totalorder %s31, 1
    %p248 = por %p246, %p247
    %p249 = scmp.ne.s32.totalorder %s240, %s241
    %p250 = scmp.eq.s32.totalorder %s31, 0
    %p251 = por %p249, %p250
    %p252 = scmp.ne.s32.totalorder %s240, %s241
    %p253 = scmp.eq.s32.totalorder %s32, 1
    %p254 = por %p252, %p253
    %p256 = scmp.ne.s32.totalorder %s241, %s255
    %p257 = scmp.eq.s32.totalorder %s32, 0
    %p258 = por %p256, %p257
    %s260 = sadd.s32 %s259, 1
    %p263 = scmp.eq.s32.totalorder %s26, 1
    %p264 = scmp.ne.s32.totalorder %s259, %s261
    %p265 = scmp.eq.s32.totalorder %s26, 0
    %p266 = por %p264, %p265
    %p267 = scmp.ne.s32.totalorder %s259, %s261
    %p268 = scmp.eq.s32.totalorder %s31, 1
    %p269 = por %p267, %p268
    %p270 = scmp.ne.s32.totalorder %s261, %s262
    %p271 = scmp.eq.s32.totalorder %s31, 0
    %p272 = por %p270, %p271
    %p273 = scmp.ne.s32.totalorder %s261, %s262
    %p274 = scmp.eq.s32.totalorder %s32, 1
    %p275 = por %p273, %p274
    %p277 = scmp.ne.s32.totalorder %s262, %s276
    %p278 = scmp.eq.s32.totalorder %s32, 0
    %p279 = por %p277, %p278
    %s281 = sadd.s32 %s280, 1
    %p284 = scmp.eq.s32.totalorder %s26, 1
    %p285 = scmp.ne.s32.totalorder %s280, %s282
    %p286 = scmp.eq.s32.totalorder %s26, 0
    %p287 = por %p285, %p286
    %p288 = scmp.ne.s32.totalorder %s280, %s282
    %p289 = scmp.eq.s32.totalorder %s31, 1
    %p290 = por %p288, %p289
    %p291 = scmp.ne.s32.totalorder %s282, %s283
    %p292 = scmp.eq.s32.totalorder %s31, 0
    %p293 = por %p291, %p292
    %p294 = scmp.ne.s32.totalorder %s282, %s283
    %p295 = scmp.eq.s32.totalorder %s32, 1
    %p296 = por %p294, %p295
    %p298 = scmp.ne.s32.totalorder %s283, %s297
    %p299 = scmp.eq.s32.totalorder %s32, 0
    %p300 = por %p298, %p299
    %s302 = sadd.s32 %s301, 1
    %p305 = scmp.eq.s32.totalorder %s26, 1
    %p306 = scmp.ne.s32.totalorder %s301, %s303
    %p307 = scmp.eq.s32.totalorder %s26, 0
    %p308 = por %p306, %p307
    %p309 = scmp.ne.s32.totalorder %s301, %s303
    %p310 = scmp.eq.s32.totalorder %s31, 1
    %p311 = por %p309, %p310
    %p312 = scmp.ne.s32.totalorder %s303, %s304
    %p313 = scmp.eq.s32.totalorder %s31, 0
    %p314 = por %p312, %p313
    %p315 = scmp.ne.s32.totalorder %s303, %s304
    %p316 = scmp.eq.s32.totalorder %s32, 1
    %p317 = por %p315, %p316
    %p319 = scmp.ne.s32.totalorder %s304, %s318
    %p320 = scmp.eq.s32.totalorder %s32, 0
    %p321 = por %p319, %p320
    %s323 = sadd.s32 %s322, 1
    %p326 = scmp.eq.s32.totalorder %s26, 1
    %p327 = scmp.ne.s32.totalorder %s322, %s324
    %p328 = scmp.eq.s32.totalorder %s26, 0
    %p329 = por %p327, %p328
    %p330 = scmp.ne.s32.totalorder %s322, %s324
    %p331 = scmp.eq.s32.totalorder %s31, 1
    %p332 = por %p330, %p331
    %p333 = scmp.ne.s32.totalorder %s324, %s325
    %p334 = scmp.eq.s32.totalorder %s31, 0
    %p335 = por %p333, %p334
    %p336 = scmp.ne.s32.totalorder %s324, %s325
    %p337 = scmp.eq.s32.totalorder %s32, 1
    %p338 = por %p336, %p337
    %p340 = scmp.ne.s32.totalorder %s325, %s339
    %p341 = scmp.eq.s32.totalorder %s32, 0
    %p342 = por %p340, %p341
    %s344 = sadd.s32 %s343, 1
    %p347 = scmp.eq.s32.totalorder %s26, 1
    %p348 = scmp.ne.s32.totalorder %s343, %s345
    %p349 = scmp.eq.s32.totalorder %s26, 0
    %p350 = por %p348, %p349
    %p351 = scmp.ne.s32.totalorder %s343, %s345
    %p352 = scmp.eq.s32.totalorder %s31, 1
    %p353 = por %p351, %p352
    %p354 = scmp.ne.s32.totalorder %s345, %s346
    %p355 = scmp.eq.s32.totalorder %s31, 0
    %p356 = por %p354, %p355
    %p357 = scmp.ne.s32.totalorder %s345, %s346
    %p358 = scmp.eq.s32.totalorder %s32, 1
    %p359 = por %p357, %p358
    %p361 = scmp.ne.s32.totalorder %s346, %s360
    %p362 = scmp.eq.s32.totalorder %s32, 0
    %p363 = por %p361, %p362
    %s365 = sadd.s32 %s364, 1
    %p368 = scmp.eq.s32.totalorder %s26, 1
    %p369 = scmp.ne.s32.totalorder %s364, %s366
    %p370 = scmp.eq.s32.totalorder %s26, 0
    %p371 = por %p369, %p370
    %p372 = scmp.ne.s32.totalorder %s364, %s366
    %p373 = scmp.eq.s32.totalorder %s31, 1
    %p374 = por %p372, %p373
    %p375 = scmp.ne.s32.totalorder %s366, %s367
    %p376 = scmp.eq.s32.totalorder %s31, 0
    %p377 = por %p375, %p376
    %p378 = scmp.ne.s32.totalorder %s366, %s367
    %p379 = scmp.eq.s32.totalorder %s32, 1
    %p380 = por %p378, %p379
    %p382 = scmp.ne.s32.totalorder %s367, %s381
    %p383 = scmp.eq.s32.totalorder %s32, 0
    %p384 = por %p382, %p383
    %s386 = sadd.s32 %s385, 1
    %p389 = scmp.eq.s32.totalorder %s26, 1
    %p390 = scmp.ne.s32.totalorder %s385, %s387
    %p391 = scmp.eq.s32.totalorder %s26, 0
    %p392 = por %p390, %p391
    %p393 = scmp.ne.s32.totalorder %s385, %s387
    %p394 = scmp.eq.s32.totalorder %s31, 1
    %p395 = por %p393, %p394
    %p396 = scmp.ne.s32.totalorder %s387, %s388
    %p397 = scmp.eq.s32.totalorder %s31, 0
    %p398 = por %p396, %p397
    %p399 = scmp.ne.s32.totalorder %s387, %s388
    %p400 = scmp.eq.s32.totalorder %s32, 1
    %p401 = por %p399, %p400
    %p403 = scmp.ne.s32.totalorder %s388, %s402
    %p404 = scmp.eq.s32.totalorder %s32, 0
    %p405 = por %p403, %p404
    %s407 = sadd.s32 %s406, 1
    %p410 = scmp.eq.s32.totalorder %s26, 1
    %p411 = scmp.ne.s32.totalorder %s406, %s408
    %p412 = scmp.eq.s32.totalorder %s26, 0
    %p413 = por %p411, %p412
    %p414 = scmp.ne.s32.totalorder %s406, %s408
    %p415 = scmp.eq.s32.totalorder %s31, 1
    %p416 = por %p414, %p415
    %p417 = scmp.ne.s32.totalorder %s408, %s409
    %p418 = scmp.eq.s32.totalorder %s31, 0
    %p419 = por %p417, %p418
    %p420 = scmp.ne.s32.totalorder %s408, %s409
    %p421 = scmp.eq.s32.totalorder %s32, 1
    %p422 = por %p420, %p421
    %p424 = scmp.ne.s32.totalorder %s409, %s423
    %p425 = scmp.eq.s32.totalorder %s32, 0
    %p426 = por %p424, %p425
    %s427 = ssub.s32 %s26, %s33
    %p428 = scmp.eq.s32.totalorder %s427, 0
    %s430 = sadd.s32 %s429, 1
    %s431 = scalar_select %p428, %s429, %s430
    %p434 = pneg %p428
    %p435 = scmp.eq.s32.totalorder %s26, 1
    %p436 = por %p434, %p435
    %p437 = scmp.ne.s32.totalorder %s429, %s432
    %p438 = scmp.eq.s32.totalorder %s26, 0
    %p439 = por %p437, %p438
    %p440 = scmp.ne.s32.totalorder %s429, %s432
    %p441 = scmp.eq.s32.totalorder %s31, 1
    %p442 = por %p440, %p441
    %p443 = scmp.ne.s32.totalorder %s432, %s433
    %p444 = scmp.eq.s32.totalorder %s31, 0
    %p445 = por %p443, %p444
    %p446 = scmp.ne.s32.totalorder %s432, %s433
    %p447 = scmp.eq.s32.totalorder %s32, 1
    %p448 = por %p446, %p447
    %p450 = scmp.ne.s32.totalorder %s433, %s449
    %p451 = scmp.eq.s32.totalorder %s32, 0
    %p452 = por %p450, %p451
    %p453 = scmp.le.s32.totalorder 1, %s26
    %p454 = scmp.lt.s32.totalorder %s26, 3
    %p455 = pnand %p453, %p454
    %p456 = pneg %p455
    // Predicated region
    $region9: #{_lambda_.1} parent=5 // pred_check
      _
    $region10: #{_lambda_.1} parent=5 // pred_check_branch
      %458 = sbr.rel (%p455) target = $region12
    $region11: #{_lambda_.1} parent=5 // pred_region
      %s459 = ssub.s32 %s26, 1
      // Predicated region
      $region13: #{_lambda_.1} parent=11 // pred_check
        %p460 = pneg %p125
      $region14: #{_lambda_.1} parent=11 // pred_check_branch
        %462 = sbr.rel (%p460) target = $region16
      $region15: #{_lambda_.1} parent=11 // pred_region
        _
      $region16: #{_lambda_.1} parent=11 // pred_fallthru
        _
      // Predicated region
      $region17: #{_lambda_.1} parent=11 // pred_check
        %p463 = pneg %p146
      $region18: #{_lambda_.1} parent=11 // pred_check_branch
        %465 = sbr.rel (%p463) target = $region20
      $region19: #{_lambda_.1} parent=11 // pred_region
        _
      $region20: #{_lambda_.1} parent=11 // pred_fallthru
        _
      // Predicated region
      $region21: #{_lambda_.1} parent=11 // pred_check
        %p466 = pneg %p167
      $region22: #{_lambda_.1} parent=11 // pred_check_branch
        %468 = sbr.rel (%p466) target = $region24
      $region23: #{_lambda_.1} parent=11 // pred_region
        _
      $region24: #{_lambda_.1} parent=11 // pred_fallthru
        _
      // Predicated region
      $region25: #{_lambda_.1} parent=11 // pred_check
        %p469 = pneg %p188
      $region26: #{_lambda_.1} parent=11 // pred_check_branch
        %471 = sbr.rel (%p469) target = $region28
      $region27: #{_lambda_.1} parent=11 // pred_region
        _
      $region28: #{_lambda_.1} parent=11 // pred_fallthru
        _
      // Predicated region
      $region29: #{_lambda_.1} parent=11 // pred_check
        %p472 = pneg %p209
      $region30: #{_lambda_.1} parent=11 // pred_check_branch
        %474 = sbr.rel (%p472) target = $region32
      $region31: #{_lambda_.1} parent=11 // pred_region
        _
      $region32: #{_lambda_.1} parent=11 // pred_fallthru
        _
      // Predicated region
      $region33: #{_lambda_.1} parent=11 // pred_check
        %p475 = pneg %p230
      $region34: #{_lambda_.1} parent=11 // pred_check_branch
        %477 = sbr.rel (%p475) target = $region36
      $region35: #{_lambda_.1} parent=11 // pred_region
        _
      $region36: #{_lambda_.1} parent=11 // pred_fallthru
        _
      // Predicated region
      $region37: #{_lambda_.1} parent=11 // pred_check
        %p478 = pneg %p251
      $region38: #{_lambda_.1} parent=11 // pred_check_branch
        %480 = sbr.rel (%p478) target = $region40
      $region39: #{_lambda_.1} parent=11 // pred_region
        _
      $region40: #{_lambda_.1} parent=11 // pred_fallthru
        _
      // Predicated region
      $region41: #{_lambda_.1} parent=11 // pred_check
        %p481 = pneg %p272
      $region42: #{_lambda_.1} parent=11 // pred_check_branch
        %483 = sbr.rel (%p481) target = $region44
      $region43: #{_lambda_.1} parent=11 // pred_region
        _
      $region44: #{_lambda_.1} parent=11 // pred_fallthru
        _
      // Predicated region
      $region45: #{_lambda_.1} parent=11 // pred_check
        %p484 = pneg %p293
      $region46: #{_lambda_.1} parent=11 // pred_check_branch
        %486 = sbr.rel (%p484) target = $region48
      $region47: #{_lambda_.1} parent=11 // pred_region
        _
      $region48: #{_lambda_.1} parent=11 // pred_fallthru
        _
      // Predicated region
      $region49: #{_lambda_.1} parent=11 // pred_check
        %p487 = pneg %p314
      $region50: #{_lambda_.1} parent=11 // pred_check_branch
        %489 = sbr.rel (%p487) target = $region52
      $region51: #{_lambda_.1} parent=11 // pred_region
        _
      $region52: #{_lambda_.1} parent=11 // pred_fallthru
        _
      // Predicated region
      $region53: #{_lambda_.1} parent=11 // pred_check
        %p490 = pneg %p335
      $region54: #{_lambda_.1} parent=11 // pred_check_branch
        %492 = sbr.rel (%p490) target = $region56
      $region55: #{_lambda_.1} parent=11 // pred_region
        _
      $region56: #{_lambda_.1} parent=11 // pred_fallthru
        _
      // Predicated region
      $region57: #{_lambda_.1} parent=11 // pred_check
        %p493 = pneg %p356
      $region58: #{_lambda_.1} parent=11 // pred_check_branch
        %495 = sbr.rel (%p493) target = $region60
      $region59: #{_lambda_.1} parent=11 // pred_region
        _
      $region60: #{_lambda_.1} parent=11 // pred_fallthru
        _
      // Predicated region
      $region61: #{_lambda_.1} parent=11 // pred_check
        %p496 = pneg %p377
      $region62: #{_lambda_.1} parent=11 // pred_check_branch
        %498 = sbr.rel (%p496) target = $region64
      $region63: #{_lambda_.1} parent=11 // pred_region
        _
      $region64: #{_lambda_.1} parent=11 // pred_fallthru
        _
      // Predicated region
      $region65: #{_lambda_.1} parent=11 // pred_check
        %p499 = pneg %p398
      $region66: #{_lambda_.1} parent=11 // pred_check_branch
        %501 = sbr.rel (%p499) target = $region68
      $region67: #{_lambda_.1} parent=11 // pred_region
        _
      $region68: #{_lambda_.1} parent=11 // pred_fallthru
        _
      // Predicated region
      $region69: #{_lambda_.1} parent=11 // pred_check
        %p502 = pneg %p419
      $region70: #{_lambda_.1} parent=11 // pred_check_branch
        %504 = sbr.rel (%p502) target = $region72
      $region71: #{_lambda_.1} parent=11 // pred_region
        _
      $region72: #{_lambda_.1} parent=11 // pred_fallthru
        _
    $region12: #{_lambda_.1} parent=5 // pred_fallthru
      _
    %p505 = scmp.lt.s32.totalorder %s26, 2
    // Predicated region
    $region73: #{_lambda_.1} parent=5 // pred_check
      %p506 = pneg %p505
    $region74: #{_lambda_.1} parent=5 // pred_check_branch
      %508 = sbr.rel (%p506) target = $region76
    $region75: #{_lambda_.1} parent=5 // pred_region
      // Predicated region
      $region77: #{_lambda_.1} parent=75 // pred_check
        %p509 = pneg %p46
      $region78: #{_lambda_.1} parent=75 // pred_check_branch
        %511 = sbr.rel (%p509) target = $region80
      $region79: #{_lambda_.1} parent=75 // pred_region
        %p512 = scmp.lt.s32.totalorder %s26, 1
        %s513 = scalar_select %p512, %s26, 1
        %s514 = smul.addr %s513, 32
        %s515 = smul.addr %s514, 4
        %s516 = scalar_lea.vmem %s0, %s515
      $region80: #{_lambda_.1} parent=75 // pred_fallthru
        _
      // Predicated region
      $region81: #{_lambda_.1} parent=75 // pred_check
        %p517 = pneg %p72
      $region82: #{_lambda_.1} parent=75 // pred_check_branch
        %519 = sbr.rel (%p517) target = $region84
      $region83: #{_lambda_.1} parent=75 // pred_region
        %p520 = scmp.lt.s32.totalorder %s26, 1
        %s521 = scalar_select %p520, %s26, 1
        %s522 = smul.addr %s521, 8
        %s523 = smul.addr %s522, 8
        %s524 = scalar_lea.vmem %s1, %s523
      $region84: #{_lambda_.1} parent=75 // pred_fallthru
        _
      // Predicated region
      $region85: #{_lambda_.1} parent=75 // pred_check
        %p525 = pneg %p98
      $region86: #{_lambda_.1} parent=75 // pred_check_branch
        %527 = sbr.rel (%p525) target = $region88
      $region87: #{_lambda_.1} parent=75 // pred_region
        %p528 = scmp.lt.s32.totalorder %s26, 1
        %s529 = scalar_select %p528, %s26, 1
        %s530 = scalar_lea.vmem %s2, %s529
      $region88: #{_lambda_.1} parent=75 // pred_fallthru
        _
    $region76: #{_lambda_.1} parent=5 // pred_fallthru
      _
    %p531 = scmp.le.s32.totalorder 1, %s26
    %p532 = scmp.lt.s32.totalorder %s26, 3
    %p533 = pnand %p531, %p532
    %p534 = pneg %p533
    // Predicated region
    $region89: #{_lambda_.1} parent=5 // pred_check
      _
    $region90: #{_lambda_.1} parent=5 // pred_check_branch
      %536 = sbr.rel (%p533) target = $region92
    $region91: #{_lambda_.1} parent=5 // pred_region
      %s537 = ssub.s32 %s26, 1
      %p538 = scmp.lt.s32.totalorder %s31, 1
      %s539 = scalar_select %p538, %s31, 1
      %s540 = smul.addr %s539, 32
      %s541 = smul.addr %s540, 4
      %s542 = scalar_lea.vmem %s0, %s541
      %p543 = pneg %p52
      %p544 = pneg %p49
      %p545 = scmp.lt.s32.totalorder %s31, 1
      %s546 = scalar_select %p545, %s31, 1
      %s547 = smul.addr %s546, 8
      %s548 = smul.addr %s547, 8
      %s549 = scalar_lea.vmem %s1, %s548
      %p550 = pneg %p78
      %p551 = pneg %p75
      %p552 = scmp.lt.s32.totalorder %s31, 1
      %s553 = scalar_select %p552, %s31, 1
      %s554 = scalar_lea.vmem %s2, %s553
      %p555 = pneg %p104
      %p556 = pneg %p101
      %p557 = pneg %p125
      %p558 = pneg %p122
      %p559 = pneg %p146
      %p560 = pneg %p143
      %p561 = pneg %p167
      %p562 = pneg %p164
      %p563 = pneg %p188
      %p564 = pneg %p185
      %p565 = pneg %p209
      %p566 = pneg %p206
      %p567 = pneg %p230
      %p568 = pneg %p227
      %p569 = pneg %p251
      %p570 = pneg %p248
      %p571 = pneg %p272
      %p572 = pneg %p269
      %p573 = pneg %p293
      %p574 = pneg %p290
      %p575 = pneg %p314
      %p576 = pneg %p311
      %p577 = pneg %p335
      %p578 = pneg %p332
      %p579 = pneg %p356
      %p580 = pneg %p353
      %p581 = pneg %p377
      %p582 = pneg %p374
      %p583 = pneg %p398
      %p584 = pneg %p395
      %p585 = pneg %p419
      %p586 = pneg %p416
      %p587 = pneg %p445
      %p588 = pneg %p442
      %p589 = scmp.lt.s32.totalorder %s31, 1
      %s590 = scalar_select %p589, %s31, 1
      %s591 = scalar_lea.vmem %s18, %s590
      %p592 = scmp.lt.s32.totalorder %s31, 1
      %s593 = scalar_select %p592, %s31, 1
      %s594 = smul.addr %s593, 32
      %s595 = smul.addr %s594, 4
      %s596 = scalar_lea.vmem %s0, %s595
      %p597 = scmp.lt.s32.totalorder %s31, 1
      %s598 = scalar_select %p597, %s31, 1
      %s599 = smul.addr %s598, 8
      %s600 = smul.addr %s599, 8
      %s601 = scalar_lea.vmem %s1, %s600
      %p602 = scmp.lt.s32.totalorder %s31, 1
      %s603 = scalar_select %p602, %s31, 1
      %s604 = scalar_lea.vmem %s2, %s603
      %p605 = scmp.lt.s32.totalorder %s31, 1
      %s606 = scalar_select %p605, %s31, 1
      %s607 = scalar_lea.vmem %s18, %s606
      %v609 = vld [vmem:[%s596] sm:$0xf]
      %v610 = vld [vmem:[%s596 + $0x4] sm:$0xf]
      %v611 = vld [vmem:[%s596 + $0x8] sm:$0xf]
      %v612 = vld [vmem:[%s596 + $0xc] sm:$0xf]
      %v613 = vld [vmem:[%s596 + $0x10] sm:$0xf]
      %v614 = vld [vmem:[%s596 + $0x14] sm:$0xf]
      %v615 = vld [vmem:[%s596 + $0x18] sm:$0xf]
      %v616 = vld [vmem:[%s596 + $0x1c] sm:$0xf]
      %v617 = vld [vmem:[%s596 + $0x20] sm:$0xf]
      %v618 = vld [vmem:[%s596 + $0x24] sm:$0xf]
      %v619 = vld [vmem:[%s596 + $0x28] sm:$0xf]
      %v620 = vld [vmem:[%s596 + $0x2c] sm:$0xf]
      %v621 = vld [vmem:[%s596 + $0x30] sm:$0xf]
      %v622 = vld [vmem:[%s596 + $0x34] sm:$0xf]
      %v623 = vld [vmem:[%s596 + $0x38] sm:$0xf]
      %v624 = vld [vmem:[%s596 + $0x3c] sm:$0xf]
      %v625 = vld [vmem:[%s596 + $0x40] sm:$0xf]
      %v626 = vld [vmem:[%s596 + $0x44] sm:$0xf]
      %v627 = vld [vmem:[%s596 + $0x48] sm:$0xf]
      %v628 = vld [vmem:[%s596 + $0x4c] sm:$0xf]
      %v629 = vld [vmem:[%s596 + $0x50] sm:$0xf]
      %v630 = vld [vmem:[%s596 + $0x54] sm:$0xf]
      %v631 = vld [vmem:[%s596 + $0x58] sm:$0xf]
      %v632 = vld [vmem:[%s596 + $0x5c] sm:$0xf]
      %v633 = vld [vmem:[%s596 + $0x60] sm:$0xf]
      %v634 = vld [vmem:[%s596 + $0x64] sm:$0xf]
      %v635 = vld [vmem:[%s596 + $0x68] sm:$0xf]
      %v636 = vld [vmem:[%s596 + $0x6c] sm:$0xf]
      %v637 = vld [vmem:[%s596 + $0x70] sm:$0xf]
      %v638 = vld [vmem:[%s596 + $0x74] sm:$0xf]
      %v639 = vld [vmem:[%s596 + $0x78] sm:$0xf]
      %v640 = vld [vmem:[%s596 + $0x7c] sm:$0xf]
      %v641 = vld [vmem:[%s3] sm:$0xff]
      %v642 = vld [vmem:[%s3 + $0x8] sm:$0xff]
      %v643 = vld [vmem:[%s3 + $0x10] sm:$0xff]
      %v644 = vld [vmem:[%s3 + $0x18] sm:$0xff]
      %v645 = vld [vmem:[%s3 + $0x20] sm:$0xff]
      %v646 = vld [vmem:[%s3 + $0x28] sm:$0xff]
      %v647 = vld [vmem:[%s3 + $0x30] sm:$0xff]
      %v648 = vld [vmem:[%s3 + $0x38] sm:$0xff]
      %v649 = vld [vmem:[%s3 + $0x40] sm:$0xff]
      %v650 = vld [vmem:[%s3 + $0x48] sm:$0xff]
      %v651 = vld [vmem:[%s3 + $0x50] sm:$0xff]
      %v652 = vld [vmem:[%s3 + $0x58] sm:$0xff]
      %v653 = vld [vmem:[%s3 + $0x60] sm:$0xff]
      %v654 = vld [vmem:[%s3 + $0x68] sm:$0xff]
      %v655 = vld [vmem:[%s3 + $0x70] sm:$0xff]
      %v656 = vld [vmem:[%s3 + $0x78] sm:$0xff]
      %v657 = vld [vmem:[%s3 + $0x80] sm:$0xff]
      %v658 = vld [vmem:[%s3 + $0x88] sm:$0xff]
      %v659 = vld [vmem:[%s3 + $0x90] sm:$0xff]
      %v660 = vld [vmem:[%s3 + $0x98] sm:$0xff]
      %v661 = vld [vmem:[%s3 + $0xa0] sm:$0xff]
      %v662 = vld [vmem:[%s3 + $0xa8] sm:$0xff]
      %v663 = vld [vmem:[%s3 + $0xb0] sm:$0xff]
      %v664 = vld [vmem:[%s3 + $0xb8] sm:$0xff]
      %v665 = vld [vmem:[%s3 + $0xc0] sm:$0xff]
      %v666 = vld [vmem:[%s3 + $0xc8] sm:$0xff]
      %v667 = vld [vmem:[%s3 + $0xd0] sm:$0xff]
      %v668 = vld [vmem:[%s3 + $0xd8] sm:$0xff]
      %v669 = vld [vmem:[%s3 + $0xe0] sm:$0xff]
      %v670 = vld [vmem:[%s3 + $0xe8] sm:$0xff]
      %v671 = vld [vmem:[%s3 + $0xf0] sm:$0xff]
      %v672 = vld [vmem:[%s3 + $0xf8] sm:$0xff]
      %v673 = vld [vmem:[%s3 + $0x100] sm:$0xff]
      %v674 = vld [vmem:[%s3 + $0x108] sm:$0xff]
      %v675 = vld [vmem:[%s3 + $0x110] sm:$0xff]
      %v676 = vld [vmem:[%s3 + $0x118] sm:$0xff]
      %v677 = vld [vmem:[%s3 + $0x120] sm:$0xff]
      %v678 = vld [vmem:[%s3 + $0x128] sm:$0xff]
      %v679 = vld [vmem:[%s3 + $0x130] sm:$0xff]
      %v680 = vld [vmem:[%s3 + $0x138] sm:$0xff]
      %v681 = vld [vmem:[%s3 + $0x140] sm:$0xff]
      %v682 = vld [vmem:[%s3 + $0x148] sm:$0xff]
      %v683 = vld [vmem:[%s3 + $0x150] sm:$0xff]
      %v684 = vld [vmem:[%s3 + $0x158] sm:$0xff]
      %v685 = vld [vmem:[%s3 + $0x160] sm:$0xff]
      %v686 = vld [vmem:[%s3 + $0x168] sm:$0xff]
      %v687 = vld [vmem:[%s3 + $0x170] sm:$0xff]
      %v688 = vld [vmem:[%s3 + $0x178] sm:$0xff]
      %v689 = vld [vmem:[%s3 + $0x180] sm:$0xff]
      %v690 = vld [vmem:[%s3 + $0x188] sm:$0xff]
      %v691 = vld [vmem:[%s3 + $0x190] sm:$0xff]
      %v692 = vld [vmem:[%s3 + $0x198] sm:$0xff]
      %v693 = vld [vmem:[%s3 + $0x1a0] sm:$0xff]
      %v694 = vld [vmem:[%s3 + $0x1a8] sm:$0xff]
      %v695 = vld [vmem:[%s3 + $0x1b0] sm:$0xff]
      %v696 = vld [vmem:[%s3 + $0x1b8] sm:$0xff]
      %v697 = vld [vmem:[%s3 + $0x1c0] sm:$0xff]
      %v698 = vld [vmem:[%s3 + $0x1c8] sm:$0xff]
      %v699 = vld [vmem:[%s3 + $0x1d0] sm:$0xff]
      %v700 = vld [vmem:[%s3 + $0x1d8] sm:$0xff]
      %v701 = vld [vmem:[%s3 + $0x1e0] sm:$0xff]
      %v702 = vld [vmem:[%s3 + $0x1e8] sm:$0xff]
      %v703 = vld [vmem:[%s3 + $0x1f0] sm:$0xff]
      %v704 = vld [vmem:[%s3 + $0x1f8] sm:$0xff]
      %v705 = vld [vmem:[%s3 + $0x200] sm:$0xff]
      %v706 = vld [vmem:[%s3 + $0x208] sm:$0xff]
      %v707 = vld [vmem:[%s3 + $0x210] sm:$0xff]
      %v708 = vld [vmem:[%s3 + $0x218] sm:$0xff]
      %v709 = vld [vmem:[%s3 + $0x220] sm:$0xff]
      %v710 = vld [vmem:[%s3 + $0x228] sm:$0xff]
      %v711 = vld [vmem:[%s3 + $0x230] sm:$0xff]
      %v712 = vld [vmem:[%s3 + $0x238] sm:$0xff]
      %v713 = vld [vmem:[%s3 + $0x240] sm:$0xff]
      %v714 = vld [vmem:[%s3 + $0x248] sm:$0xff]
      %v715 = vld [vmem:[%s3 + $0x250] sm:$0xff]
      %v716 = vld [vmem:[%s3 + $0x258] sm:$0xff]
      %v717 = vld [vmem:[%s3 + $0x260] sm:$0xff]
      %v718 = vld [vmem:[%s3 + $0x268] sm:$0xff]
      %v719 = vld [vmem:[%s3 + $0x270] sm:$0xff]
      %v720 = vld [vmem:[%s3 + $0x278] sm:$0xff]
      %v721 = vld [vmem:[%s3 + $0x280] sm:$0xff]
      %v722 = vld [vmem:[%s3 + $0x288] sm:$0xff]
      %v723 = vld [vmem:[%s3 + $0x290] sm:$0xff]
      %v724 = vld [vmem:[%s3 + $0x298] sm:$0xff]
      %v725 = vld [vmem:[%s3 + $0x2a0] sm:$0xff]
      %v726 = vld [vmem:[%s3 + $0x2a8] sm:$0xff]
      %v727 = vld [vmem:[%s3 + $0x2b0] sm:$0xff]
      %v728 = vld [vmem:[%s3 + $0x2b8] sm:$0xff]
      %v729 = vld [vmem:[%s3 + $0x2c0] sm:$0xff]
      %v730 = vld [vmem:[%s3 + $0x2c8] sm:$0xff]
      %v731 = vld [vmem:[%s3 + $0x2d0] sm:$0xff]
      %v732 = vld [vmem:[%s3 + $0x2d8] sm:$0xff]
      %v733 = vld [vmem:[%s3 + $0x2e0] sm:$0xff]
      %v734 = vld [vmem:[%s3 + $0x2e8] sm:$0xff]
      %v735 = vld [vmem:[%s3 + $0x2f0] sm:$0xff]
      %v736 = vld [vmem:[%s3 + $0x2f8] sm:$0xff]
      %v737 = vld [vmem:[%s3 + $0x300] sm:$0xff]
      %v738 = vld [vmem:[%s3 + $0x308] sm:$0xff]
      %v739 = vld [vmem:[%s3 + $0x310] sm:$0xff]
      %v740 = vld [vmem:[%s3 + $0x318] sm:$0xff]
      %v741 = vld [vmem:[%s3 + $0x320] sm:$0xff]
      %v742 = vld [vmem:[%s3 + $0x328] sm:$0xff]
      %v743 = vld [vmem:[%s3 + $0x330] sm:$0xff]
      %v744 = vld [vmem:[%s3 + $0x338] sm:$0xff]
      %v745 = vld [vmem:[%s3 + $0x340] sm:$0xff]
      %v746 = vld [vmem:[%s3 + $0x348] sm:$0xff]
      %v747 = vld [vmem:[%s3 + $0x350] sm:$0xff]
      %v748 = vld [vmem:[%s3 + $0x358] sm:$0xff]
      %v749 = vld [vmem:[%s3 + $0x360] sm:$0xff]
      %v750 = vld [vmem:[%s3 + $0x368] sm:$0xff]
      %v751 = vld [vmem:[%s3 + $0x370] sm:$0xff]
      %v752 = vld [vmem:[%s3 + $0x378] sm:$0xff]
      %v753 = vld [vmem:[%s3 + $0x380] sm:$0xff]
      %v754 = vld [vmem:[%s3 + $0x388] sm:$0xff]
      %v755 = vld [vmem:[%s3 + $0x390] sm:$0xff]
      %v756 = vld [vmem:[%s3 + $0x398] sm:$0xff]
      %v757 = vld [vmem:[%s3 + $0x3a0] sm:$0xff]
      %v758 = vld [vmem:[%s3 + $0x3a8] sm:$0xff]
      %v759 = vld [vmem:[%s3 + $0x3b0] sm:$0xff]
      %v760 = vld [vmem:[%s3 + $0x3b8] sm:$0xff]
      %v761 = vld [vmem:[%s3 + $0x3c0] sm:$0xff]
      %v762 = vld [vmem:[%s3 + $0x3c8] sm:$0xff]
      %v763 = vld [vmem:[%s3 + $0x3d0] sm:$0xff]
      %v764 = vld [vmem:[%s3 + $0x3d8] sm:$0xff]
      %v765 = vld [vmem:[%s3 + $0x3e0] sm:$0xff]
      %v766 = vld [vmem:[%s3 + $0x3e8] sm:$0xff]
      %v767 = vld [vmem:[%s3 + $0x3f0] sm:$0xff]
      %v768 = vld [vmem:[%s3 + $0x3f8] sm:$0xff]
      %v769 = vld [vmem:[%s3 + $0x400] sm:$0xff]
      %v770 = vld [vmem:[%s3 + $0x408] sm:$0xff]
      %v771 = vld [vmem:[%s3 + $0x410] sm:$0xff]
      %v772 = vld [vmem:[%s3 + $0x418] sm:$0xff]
      %v773 = vld [vmem:[%s3 + $0x420] sm:$0xff]
      %v774 = vld [vmem:[%s3 + $0x428] sm:$0xff]
      %v775 = vld [vmem:[%s3 + $0x430] sm:$0xff]
      %v776 = vld [vmem:[%s3 + $0x438] sm:$0xff]
      %v913 = vunpack.c.l.b16 %v641
      %v914 = vunpack.c.h.b16 %v641
      %v915 = vunpack.c.l.b16 %v642
      %v916 = vunpack.c.h.b16 %v642
      %v917 = vunpack.c.l.b16 %v643
      %v918 = vunpack.c.h.b16 %v643
      %v919 = vunpack.c.l.b16 %v644
      %v920 = vunpack.c.h.b16 %v644
      %v921 = vunpack.c.l.b16 %v645
      %v922 = vunpack.c.h.b16 %v645
      %v923 = vunpack.c.l.b16 %v646
      %v924 = vunpack.c.h.b16 %v646
      %v925 = vunpack.c.l.b16 %v647
      %v926 = vunpack.c.h.b16 %v647
      %v927 = vunpack.c.l.b16 %v648
      %v928 = vunpack.c.h.b16 %v648
      %v929 = vunpack.c.l.b16 %v649
      %v930 = vunpack.c.h.b16 %v649
      %v931 = vunpack.c.l.b16 %v650
      %v932 = vunpack.c.h.b16 %v650
      %v933 = vunpack.c.l.b16 %v651
      %v934 = vunpack.c.h.b16 %v651
      %v935 = vunpack.c.l.b16 %v652
      %v936 = vunpack.c.h.b16 %v652
      %v937 = vunpack.c.l.b16 %v653
      %v938 = vunpack.c.h.b16 %v653
      %v939 = vunpack.c.l.b16 %v654
      %v940 = vunpack.c.h.b16 %v654
      %v941 = vunpack.c.l.b16 %v655
      %v942 = vunpack.c.h.b16 %v655
      %v943 = vunpack.c.l.b16 %v656
      %v944 = vunpack.c.h.b16 %v656
      %v945 = vunpack.c.l.b16 %v657
      %v946 = vunpack.c.h.b16 %v657
      %v947 = vunpack.c.l.b16 %v658
      %v948 = vunpack.c.h.b16 %v658
      %v949 = vunpack.c.l.b16 %v659
      %v950 = vunpack.c.h.b16 %v659
      %v951 = vunpack.c.l.b16 %v660
      %v952 = vunpack.c.h.b16 %v660
      %v953 = vunpack.c.l.b16 %v661
      %v954 = vunpack.c.h.b16 %v661
      %v955 = vunpack.c.l.b16 %v662
      %v956 = vunpack.c.h.b16 %v662
      %v957 = vunpack.c.l.b16 %v663
      %v958 = vunpack.c.h.b16 %v663
      %v959 = vunpack.c.l.b16 %v664
      %v960 = vunpack.c.h.b16 %v664
      %v961 = vunpack.c.l.b16 %v665
      %v962 = vunpack.c.h.b16 %v665
      %v963 = vunpack.c.l.b16 %v666
      %v964 = vunpack.c.h.b16 %v666
      %v965 = vunpack.c.l.b16 %v667
      %v966 = vunpack.c.h.b16 %v667
      %v967 = vunpack.c.l.b16 %v668
      %v968 = vunpack.c.h.b16 %v668
      %v969 = vunpack.c.l.b16 %v669
      %v970 = vunpack.c.h.b16 %v669
      %v971 = vunpack.c.l.b16 %v670
      %v972 = vunpack.c.h.b16 %v670
      %v973 = vunpack.c.l.b16 %v671
      %v974 = vunpack.c.h.b16 %v671
      %v975 = vunpack.c.l.b16 %v672
      %v976 = vunpack.c.h.b16 %v672
      %v977 = vunpack.c.l.b16 %v673
      %v978 = vunpack.c.h.b16 %v673
      %v979 = vunpack.c.l.b16 %v674
      %v980 = vunpack.c.h.b16 %v674
      %v981 = vunpack.c.l.b16 %v675
      %v982 = vunpack.c.h.b16 %v675
      %v983 = vunpack.c.l.b16 %v676
      %v984 = vunpack.c.h.b16 %v676
      %v985 = vunpack.c.l.b16 %v677
      %v986 = vunpack.c.h.b16 %v677
      %v987 = vunpack.c.l.b16 %v678
      %v988 = vunpack.c.h.b16 %v678
      %v989 = vunpack.c.l.b16 %v679
      %v990 = vunpack.c.h.b16 %v679
      %v991 = vunpack.c.l.b16 %v680
      %v992 = vunpack.c.h.b16 %v680
      %v993 = vunpack.c.l.b16 %v681
      %v994 = vunpack.c.h.b16 %v681
      %v995 = vunpack.c.l.b16 %v682
      %v996 = vunpack.c.h.b16 %v682
      %v997 = vunpack.c.l.b16 %v683
      %v998 = vunpack.c.h.b16 %v683
      %v999 = vunpack.c.l.b16 %v684
      %v1000 = vunpack.c.h.b16 %v684
      %v1001 = vunpack.c.l.b16 %v685
      %v1002 = vunpack.c.h.b16 %v685
      %v1003 = vunpack.c.l.b16 %v686
      %v1004 = vunpack.c.h.b16 %v686
      %v1005 = vunpack.c.l.b16 %v687
      %v1006 = vunpack.c.h.b16 %v687
      %v1007 = vunpack.c.l.b16 %v688
      %v1008 = vunpack.c.h.b16 %v688
      %v1009 = vunpack.c.l.b16 %v689
      %v1010 = vunpack.c.h.b16 %v689
      %v1011 = vunpack.c.l.b16 %v690
      %v1012 = vunpack.c.h.b16 %v690
      %v1013 = vunpack.c.l.b16 %v691
      %v1014 = vunpack.c.h.b16 %v691
      %v1015 = vunpack.c.l.b16 %v692
      %v1016 = vunpack.c.h.b16 %v692
      %v1017 = vunpack.c.l.b16 %v693
      %v1018 = vunpack.c.h.b16 %v693
      %v1019 = vunpack.c.l.b16 %v694
      %v1020 = vunpack.c.h.b16 %v694
      %v1021 = vunpack.c.l.b16 %v695
      %v1022 = vunpack.c.h.b16 %v695
      %v1023 = vunpack.c.l.b16 %v696
      %v1024 = vunpack.c.h.b16 %v696
      %v1025 = vunpack.c.l.b16 %v697
      %v1026 = vunpack.c.h.b16 %v697
      %v1027 = vunpack.c.l.b16 %v698
      %v1028 = vunpack.c.h.b16 %v698
      %v1029 = vunpack.c.l.b16 %v699
      %v1030 = vunpack.c.h.b16 %v699
      %v1031 = vunpack.c.l.b16 %v700
      %v1032 = vunpack.c.h.b16 %v700
      %v1033 = vunpack.c.l.b16 %v701
      %v1034 = vunpack.c.h.b16 %v701
      %v1035 = vunpack.c.l.b16 %v702
      %v1036 = vunpack.c.h.b16 %v702
      %v1037 = vunpack.c.l.b16 %v703
      %v1038 = vunpack.c.h.b16 %v703
      %v1039 = vunpack.c.l.b16 %v704
      %v1040 = vunpack.c.h.b16 %v704
      %v1041 = vunpack.c.l.b16 %v705
      %v1042 = vunpack.c.h.b16 %v705
      %v1043 = vunpack.c.l.b16 %v706
      %v1044 = vunpack.c.h.b16 %v706
      %v1045 = vunpack.c.l.b16 %v707
      %v1046 = vunpack.c.h.b16 %v707
      %v1047 = vunpack.c.l.b16 %v708
      %v1048 = vunpack.c.h.b16 %v708
      %v1049 = vunpack.c.l.b16 %v709
      %v1050 = vunpack.c.h.b16 %v709
      %v1051 = vunpack.c.l.b16 %v710
      %v1052 = vunpack.c.h.b16 %v710
      %v1053 = vunpack.c.l.b16 %v711
      %v1054 = vunpack.c.h.b16 %v711
      %v1055 = vunpack.c.l.b16 %v712
      %v1056 = vunpack.c.h.b16 %v712
      %v1057 = vunpack.c.l.b16 %v713
      %v1058 = vunpack.c.h.b16 %v713
      %v1059 = vunpack.c.l.b16 %v714
      %v1060 = vunpack.c.h.b16 %v714
      %v1061 = vunpack.c.l.b16 %v715
      %v1062 = vunpack.c.h.b16 %v715
      %v1063 = vunpack.c.l.b16 %v716
      %v1064 = vunpack.c.h.b16 %v716
      %v1065 = vunpack.c.l.b16 %v717
      %v1066 = vunpack.c.h.b16 %v717
      %v1067 = vunpack.c.l.b16 %v718
      %v1068 = vunpack.c.h.b16 %v718
      %v1069 = vunpack.c.l.b16 %v719
      %v1070 = vunpack.c.h.b16 %v719
      %v1071 = vunpack.c.l.b16 %v720
      %v1072 = vunpack.c.h.b16 %v720
      %v1073 = vunpack.c.l.b16 %v721
      %v1074 = vunpack.c.h.b16 %v721
      %v1075 = vunpack.c.l.b16 %v722
      %v1076 = vunpack.c.h.b16 %v722
      %v1077 = vunpack.c.l.b16 %v723
      %v1078 = vunpack.c.h.b16 %v723
      %v1079 = vunpack.c.l.b16 %v724
      %v1080 = vunpack.c.h.b16 %v724
      %v1081 = vunpack.c.l.b16 %v725
      %v1082 = vunpack.c.h.b16 %v725
      %v1083 = vunpack.c.l.b16 %v726
      %v1084 = vunpack.c.h.b16 %v726
      %v1085 = vunpack.c.l.b16 %v727
      %v1086 = vunpack.c.h.b16 %v727
      %v1087 = vunpack.c.l.b16 %v728
      %v1088 = vunpack.c.h.b16 %v728
      %v1089 = vunpack.c.l.b16 %v729
      %v1090 = vunpack.c.h.b16 %v729
      %v1091 = vunpack.c.l.b16 %v730
      %v1092 = vunpack.c.h.b16 %v730
      %v1093 = vunpack.c.l.b16 %v731
      %v1094 = vunpack.c.h.b16 %v731
      %v1095 = vunpack.c.l.b16 %v732
      %v1096 = vunpack.c.h.b16 %v732
      %v1097 = vunpack.c.l.b16 %v733
      %v1098 = vunpack.c.h.b16 %v733
      %v1099 = vunpack.c.l.b16 %v734
      %v1100 = vunpack.c.h.b16 %v734
      %v1101 = vunpack.c.l.b16 %v735
      %v1102 = vunpack.c.h.b16 %v735
      %v1103 = vunpack.c.l.b16 %v736
      %v1104 = vunpack.c.h.b16 %v736
      %v1105 = vunpack.c.l.b16 %v737
      %v1106 = vunpack.c.h.b16 %v737
      %v1107 = vunpack.c.l.b16 %v738
      %v1108 = vunpack.c.h.b16 %v738
      %v1109 = vunpack.c.l.b16 %v739
      %v1110 = vunpack.c.h.b16 %v739
      %v1111 = vunpack.c.l.b16 %v740
      %v1112 = vunpack.c.h.b16 %v740
      %v1113 = vunpack.c.l.b16 %v741
      %v1114 = vunpack.c.h.b16 %v741
      %v1115 = vunpack.c.l.b16 %v742
      %v1116 = vunpack.c.h.b16 %v742
      %v1117 = vunpack.c.l.b16 %v743
      %v1118 = vunpack.c.h.b16 %v743
      %v1119 = vunpack.c.l.b16 %v744
      %v1120 = vunpack.c.h.b16 %v744
      %v1121 = vunpack.c.l.b16 %v745
      %v1122 = vunpack.c.h.b16 %v745
      %v1123 = vunpack.c.l.b16 %v746
      %v1124 = vunpack.c.h.b16 %v746
      %v1125 = vunpack.c.l.b16 %v747
      %v1126 = vunpack.c.h.b16 %v747
      %v1127 = vunpack.c.l.b16 %v748
      %v1128 = vunpack.c.h.b16 %v748
      %v1129 = vunpack.c.l.b16 %v749
      %v1130 = vunpack.c.h.b16 %v749
      %v1131 = vunpack.c.l.b16 %v750
      %v1132 = vunpack.c.h.b16 %v750
      %v1133 = vunpack.c.l.b16 %v751
      %v1134 = vunpack.c.h.b16 %v751
      %v1135 = vunpack.c.l.b16 %v752
      %v1136 = vunpack.c.h.b16 %v752
      %v1137 = vunpack.c.l.b16 %v753
      %v1138 = vunpack.c.h.b16 %v753
      %v1139 = vunpack.c.l.b16 %v754
      %v1140 = vunpack.c.h.b16 %v754
      %v1141 = vunpack.c.l.b16 %v755
      %v1142 = vunpack.c.h.b16 %v755
      %v1143 = vunpack.c.l.b16 %v756
      %v1144 = vunpack.c.h.b16 %v756
      %v1145 = vunpack.c.l.b16 %v757
      %v1146 = vunpack.c.h.b16 %v757
      %v1147 = vunpack.c.l.b16 %v758
      %v1148 = vunpack.c.h.b16 %v758
      %v1149 = vunpack.c.l.b16 %v759
      %v1150 = vunpack.c.h.b16 %v759
      %v1151 = vunpack.c.l.b16 %v760
      %v1152 = vunpack.c.h.b16 %v760
      %v1153 = vunpack.c.l.b16 %v761
      %v1154 = vunpack.c.h.b16 %v761
      %v1155 = vunpack.c.l.b16 %v762
      %v1156 = vunpack.c.h.b16 %v762
      %v1157 = vunpack.c.l.b16 %v763
      %v1158 = vunpack.c.h.b16 %v763
      %v1159 = vunpack.c.l.b16 %v764
      %v1160 = vunpack.c.h.b16 %v764
      %v1161 = vunpack.c.l.b16 %v765
      %v1162 = vunpack.c.h.b16 %v765
      %v1163 = vunpack.c.l.b16 %v766
      %v1164 = vunpack.c.h.b16 %v766
      %v1165 = vunpack.c.l.b16 %v767
      %v1166 = vunpack.c.h.b16 %v767
      %v1167 = vunpack.c.l.b16 %v768
      %v1168 = vunpack.c.h.b16 %v768
      %v1169 = vunpack.c.l.b16 %v769
      %v1170 = vunpack.c.h.b16 %v769
      %v1171 = vunpack.c.l.b16 %v770
      %v1172 = vunpack.c.h.b16 %v770
      %v1173 = vunpack.c.l.b16 %v771
      %v1174 = vunpack.c.h.b16 %v771
      %v1175 = vunpack.c.l.b16 %v772
      %v1176 = vunpack.c.h.b16 %v772
      %v1177 = vunpack.c.l.b16 %v773
      %v1178 = vunpack.c.h.b16 %v773
      %v1179 = vunpack.c.l.b16 %v774
      %v1180 = vunpack.c.h.b16 %v774
      %v1181 = vunpack.c.l.b16 %v775
      %v1182 = vunpack.c.h.b16 %v775
      %v1183 = vunpack.c.l.b16 %v776
      %v1184 = vunpack.c.h.b16 %v776
      %v1185 = vpack.c.b16 %v915, %v913
      %v1186 = vpack.c.b16 %v916, %v914
      %v1187 = vpack.c.b16 %v919, %v917
      %v1188 = vpack.c.b16 %v920, %v918
      %v1189 = vpack.c.b16 %v923, %v921
      %v1190 = vpack.c.b16 %v924, %v922
      %v1191 = vpack.c.b16 %v927, %v925
      %v1192 = vpack.c.b16 %v928, %v926
      %v1193 = vpack.c.b16 %v931, %v929
      %v1194 = vpack.c.b16 %v932, %v930
      %v1195 = vpack.c.b16 %v935, %v933
      %v1196 = vpack.c.b16 %v936, %v934
      %v1197 = vpack.c.b16 %v939, %v937
      %v1198 = vpack.c.b16 %v940, %v938
      %v1199 = vpack.c.b16 %v943, %v941
      %v1200 = vpack.c.b16 %v944, %v942
      %v1201 = vpack.c.b16 %v947, %v945
      %v1202 = vpack.c.b16 %v948, %v946
      %v1203 = vpack.c.b16 %v951, %v949
      %v1204 = vpack.c.b16 %v952, %v950
      %v1205 = vpack.c.b16 %v955, %v953
      %v1206 = vpack.c.b16 %v956, %v954
      %v1207 = vpack.c.b16 %v959, %v957
      %v1208 = vpack.c.b16 %v960, %v958
      %v1209 = vpack.c.b16 %v963, %v961
      %v1210 = vpack.c.b16 %v964, %v962
      %v1211 = vpack.c.b16 %v967, %v965
      %v1212 = vpack.c.b16 %v968, %v966
      %v1213 = vpack.c.b16 %v971, %v969
      %v1214 = vpack.c.b16 %v972, %v970
      %v1215 = vpack.c.b16 %v975, %v973
      %v1216 = vpack.c.b16 %v976, %v974
      %v1217 = vpack.c.b16 %v979, %v977
      %v1218 = vpack.c.b16 %v980, %v978
      %v1219 = vpack.c.b16 %v983, %v981
      %v1220 = vpack.c.b16 %v984, %v982
      %v1221 = vpack.c.b16 %v987, %v985
      %v1222 = vpack.c.b16 %v988, %v986
      %v1223 = vpack.c.b16 %v991, %v989
      %v1224 = vpack.c.b16 %v992, %v990
      %v1225 = vpack.c.b16 %v995, %v993
      %v1226 = vpack.c.b16 %v996, %v994
      %v1227 = vpack.c.b16 %v999, %v997
      %v1228 = vpack.c.b16 %v1000, %v998
      %v1229 = vpack.c.b16 %v1003, %v1001
      %v1230 = vpack.c.b16 %v1004, %v1002
      %v1231 = vpack.c.b16 %v1007, %v1005
      %v1232 = vpack.c.b16 %v1008, %v1006
      %v1233 = vpack.c.b16 %v1011, %v1009
      %v1234 = vpack.c.b16 %v1012, %v1010
      %v1235 = vpack.c.b16 %v1015, %v1013
      %v1236 = vpack.c.b16 %v1016, %v1014
      %v1237 = vpack.c.b16 %v1019, %v1017
      %v1238 = vpack.c.b16 %v1020, %v1018
      %v1239 = vpack.c.b16 %v1023, %v1021
      %v1240 = vpack.c.b16 %v1024, %v1022
      %v1241 = vpack.c.b16 %v1027, %v1025
      %v1242 = vpack.c.b16 %v1028, %v1026
      %v1243 = vpack.c.b16 %v1031, %v1029
      %v1244 = vpack.c.b16 %v1032, %v1030
      %v1245 = vpack.c.b16 %v1035, %v1033
      %v1246 = vpack.c.b16 %v1036, %v1034
      %v1247 = vpack.c.b16 %v1039, %v1037
      %v1248 = vpack.c.b16 %v1040, %v1038
      %v1249 = vpack.c.b16 %v1043, %v1041
      %v1250 = vpack.c.b16 %v1044, %v1042
      %v1251 = vpack.c.b16 %v1047, %v1045
      %v1252 = vpack.c.b16 %v1048, %v1046
      %v1253 = vpack.c.b16 %v1051, %v1049
      %v1254 = vpack.c.b16 %v1052, %v1050
      %v1255 = vpack.c.b16 %v1055, %v1053
      %v1256 = vpack.c.b16 %v1056, %v1054
      %v1257 = vpack.c.b16 %v1059, %v1057
      %v1258 = vpack.c.b16 %v1060, %v1058
      %v1259 = vpack.c.b16 %v1063, %v1061
      %v1260 = vpack.c.b16 %v1064, %v1062
      %v1261 = vpack.c.b16 %v1067, %v1065
      %v1262 = vpack.c.b16 %v1068, %v1066
      %v1263 = vpack.c.b16 %v1071, %v1069
      %v1264 = vpack.c.b16 %v1072, %v1070
      %v1265 = vpack.c.b16 %v1075, %v1073
      %v1266 = vpack.c.b16 %v1076, %v1074
      %v1267 = vpack.c.b16 %v1079, %v1077
      %v1268 = vpack.c.b16 %v1080, %v1078
      %v1269 = vpack.c.b16 %v1083, %v1081
      %v1270 = vpack.c.b16 %v1084, %v1082
      %v1271 = vpack.c.b16 %v1087, %v1085
      %v1272 = vpack.c.b16 %v1088, %v1086
      %v1273 = vpack.c.b16 %v1091, %v1089
      %v1274 = vpack.c.b16 %v1092, %v1090
      %v1275 = vpack.c.b16 %v1095, %v1093
      %v1276 = vpack.c.b16 %v1096, %v1094
      %v1277 = vpack.c.b16 %v1099, %v1097
      %v1278 = vpack.c.b16 %v1100, %v1098
      %v1279 = vpack.c.b16 %v1103, %v1101
      %v1280 = vpack.c.b16 %v1104, %v1102
      %v1281 = vpack.c.b16 %v1107, %v1105
      %v1282 = vpack.c.b16 %v1108, %v1106
      %v1283 = vpack.c.b16 %v1111, %v1109
      %v1284 = vpack.c.b16 %v1112, %v1110
      %v1285 = vpack.c.b16 %v1115, %v1113
      %v1286 = vpack.c.b16 %v1116, %v1114
      %v1287 = vpack.c.b16 %v1119, %v1117
      %v1288 = vpack.c.b16 %v1120, %v1118
      %v1289 = vpack.c.b16 %v1123, %v1121
      %v1290 = vpack.c.b16 %v1124, %v1122
      %v1291 = vpack.c.b16 %v1127, %v1125
      %v1292 = vpack.c.b16 %v1128, %v1126
      %v1293 = vpack.c.b16 %v1131, %v1129
      %v1294 = vpack.c.b16 %v1132, %v1130
      %v1295 = vpack.c.b16 %v1135, %v1133
      %v1296 = vpack.c.b16 %v1136, %v1134
      %v1297 = vpack.c.b16 %v1139, %v1137
      %v1298 = vpack.c.b16 %v1140, %v1138
      %v1299 = vpack.c.b16 %v1143, %v1141
      %v1300 = vpack.c.b16 %v1144, %v1142
      %v1301 = vpack.c.b16 %v1147, %v1145
      %v1302 = vpack.c.b16 %v1148, %v1146
      %v1303 = vpack.c.b16 %v1151, %v1149
      %v1304 = vpack.c.b16 %v1152, %v1150
      %v1305 = vpack.c.b16 %v1155, %v1153
      %v1306 = vpack.c.b16 %v1156, %v1154
      %v1307 = vpack.c.b16 %v1159, %v1157
      %v1308 = vpack.c.b16 %v1160, %v1158
      %v1309 = vpack.c.b16 %v1163, %v1161
      %v1310 = vpack.c.b16 %v1164, %v1162
      %v1311 = vpack.c.b16 %v1167, %v1165
      %v1312 = vpack.c.b16 %v1168, %v1166
      %v1313 = vpack.c.b16 %v1171, %v1169
      %v1314 = vpack.c.b16 %v1172, %v1170
      %v1315 = vpack.c.b16 %v1175, %v1173
      %v1316 = vpack.c.b16 %v1176, %v1174
      %v1317 = vpack.c.b16 %v1179, %v1177
      %v1318 = vpack.c.b16 %v1180, %v1178
      %v1319 = vpack.c.b16 %v1183, %v1181
      %v1320 = vpack.c.b16 %v1184, %v1182
      %v1489 = vunpack.c.l.b16 %v609
      %v1490 = vunpack.c.l.b16 %v610
      %v1491 = vunpack.c.l.b16 %v611
      %v1492 = vunpack.c.l.b16 %v612
      %v1493 = vunpack.c.l.b16 %v613
      %v1494 = vunpack.c.l.b16 %v614
      %v1495 = vunpack.c.l.b16 %v615
      %v1496 = vunpack.c.l.b16 %v616
      %v1497 = vunpack.c.l.b16 %v617
      %v1498 = vunpack.c.l.b16 %v618
      %v1499 = vunpack.c.l.b16 %v619
      %v1500 = vunpack.c.l.b16 %v620
      %v1501 = vunpack.c.l.b16 %v621
      %v1502 = vunpack.c.l.b16 %v622
      %v1503 = vunpack.c.l.b16 %v623
      %v1504 = vunpack.c.l.b16 %v624
      %v1505 = vunpack.c.l.b16 %v625
      %v1506 = vunpack.c.l.b16 %v626
      %v1507 = vunpack.c.l.b16 %v627
      %v1508 = vunpack.c.l.b16 %v628
      %v1509 = vunpack.c.l.b16 %v629
      %v1510 = vunpack.c.l.b16 %v630
      %v1511 = vunpack.c.l.b16 %v631
      %v1512 = vunpack.c.l.b16 %v632
      %v1513 = vunpack.c.l.b16 %v633
      %v1514 = vunpack.c.l.b16 %v634
      %v1515 = vunpack.c.l.b16 %v635
      %v1516 = vunpack.c.l.b16 %v636
      %v1517 = vunpack.c.l.b16 %v637
      %v1518 = vunpack.c.l.b16 %v638
      %v1519 = vunpack.c.l.b16 %v639
      %v1520 = vunpack.c.l.b16 %v640
      %v1521 = vpack.c.b16 %v1490, %v1489
      %v1522 = vpack.c.b16 %v1492, %v1491
      %v1523 = vpack.c.b16 %v1494, %v1493
      %v1524 = vpack.c.b16 %v1496, %v1495
      %v1525 = vpack.c.b16 %v1498, %v1497
      %v1526 = vpack.c.b16 %v1500, %v1499
      %v1527 = vpack.c.b16 %v1502, %v1501
      %v1528 = vpack.c.b16 %v1504, %v1503
      %v1529 = vpack.c.b16 %v1506, %v1505
      %v1530 = vpack.c.b16 %v1508, %v1507
      %v1531 = vpack.c.b16 %v1510, %v1509
      %v1532 = vpack.c.b16 %v1512, %v1511
      %v1533 = vpack.c.b16 %v1514, %v1513
      %v1534 = vpack.c.b16 %v1516, %v1515
      %v1535 = vpack.c.b16 %v1518, %v1517
      %v1536 = vpack.c.b16 %v1520, %v1519
      %1553 = vmatprep.subr.bf16.mxu0 0
      %1554 = vmatpush1.bf16.msra.mxu0 %v1521
      %1555 = vmatprep.subr.bf16.mxu0 0
      %1556 = vmatpush1.bf16.msra.mxu0 %v1522
      %1557 = vmatprep.subr.bf16.mxu0 0
      %1558 = vmatpush1.bf16.msra.mxu0 %v1523
      %1559 = vmatprep.subr.bf16.mxu0 0
      %1560 = vmatpush1.bf16.msra.mxu0 %v1524
      %1561 = vmatprep.subr.bf16.mxu0 0
      %1562 = vmatpush1.bf16.msra.mxu0 %v1525
      %1563 = vmatprep.subr.bf16.mxu0 0
      %1564 = vmatpush1.bf16.msra.mxu0 %v1526
      %1565 = vmatprep.subr.bf16.mxu0 0
      %1566 = vmatpush1.bf16.msra.mxu0 %v1527
      %1567 = vmatprep.subr.bf16.mxu0 0
      %1568 = vmatpush1.bf16.msra.mxu0 %v1528
      %1569 = vmatprep.subr.bf16.mxu0 0
      %1570 = vmatpush1.bf16.msra.mxu0 %v1529
      %1571 = vmatprep.subr.bf16.mxu0 0
      %1572 = vmatpush1.bf16.msra.mxu0 %v1530
      %1573 = vmatprep.subr.bf16.mxu0 0
      %1574 = vmatpush1.bf16.msra.mxu0 %v1531
      %1575 = vmatprep.subr.bf16.mxu0 0
      %1576 = vmatpush1.bf16.msra.mxu0 %v1532
      %1577 = vmatprep.subr.bf16.mxu0 0
      %1578 = vmatpush1.bf16.msra.mxu0 %v1533
      %1579 = vmatprep.subr.bf16.mxu0 0
      %1580 = vmatpush1.bf16.msra.mxu0 %v1534
      %1581 = vmatprep.subr.bf16.mxu0 0
      %1582 = vmatpush1.bf16.msra.mxu0 %v1535
      %1583 = vmatprep.subr.bf16.mxu0 0
      %1584 = vmatpush1.bf16.msra.mxu0 %v1536
      %1585 = vmatprep.mubr.bf16.mxu0 %v1186
      %1586 = vmatmul.mubr.bf16.gmra.mrb[0].mxu0 %v1185
      %v1587 = vpop.f32.mrb[0].mxu0
      %v1588 = vadd.f32 0.0, %v1587
      %v1589 = vpop.f32.mrb[0].mxu0
      %v1590 = vpop.f32.mrb[0].mxu0
      %v1591 = vadd.f32 0.0, %v1590
      %v1592 = vpop.f32.mrb[0].mxu0
      %1593 = vmatprep.mubr.bf16.mxu0 %v1188
      %1594 = vmatmul.mubr.bf16.gmra.mrb[0].mxu0 %v1187
      %v1595 = vpop.f32.mrb[0].mxu0
      %v1596 = vadd.f32 0.0, %v1595
      %v1597 = vpop.f32.mrb[0].mxu0
      %v1598 = vpop.f32.mrb[0].mxu0
      %v1599 = vadd.f32 0.0, %v1598
      %v1600 = vpop.f32.mrb[0].mxu0
      %1601 = vmatprep.mubr.bf16.mxu0 %v1190
      %1602 = vmatmul.mubr.bf16.gmra.mrb[0].mxu0 %v1189
      %v1603 = vpop.f32.mrb[0].mxu0
      %v1604 = vadd.f32 0.0, %v1603
      %v1605 = vpop.f32.mrb[0].mxu0
      %v1606 = vpop.f32.mrb[0].mxu0
      %v1607 = vadd.f32 0.0, %v1606
      %v1608 = vpop.f32.mrb[0].mxu0
      %1609 = vmatprep.mubr.bf16.mxu0 %v1192
      %1610 = vmatmul.mubr.bf16.gmra.mrb[0].mxu0 %v1191
      %v1611 = vpop.f32.mrb[0].mxu0
      %v1612 = vadd.f32 0.0, %v1611
      %v1613 = vpop.f32.mrb[0].mxu0
      %v1614 = vpop.f32.mrb[0].mxu0
      %v1615 = vadd.f32 0.0, %v1614
      %v1616 = vpop.f32.mrb[0].mxu0
      %1617 = vmatprep.mubr.bf16.mxu0 %v1194
      %1618 = vmatmul.mubr.bf16.gmra.mrb[0].mxu0 %v1193
      %v1619 = vpop.f32.mrb[0].mxu0
      %v1620 = vadd.f32 0.0, %v1619
      %v1621 = vpop.f32.mrb[0].mxu0
      %v1622 = vpop.f32.mrb[0].mxu0
      %v1623 = vadd.f32 0.0, %v1622
      %v1624 = vpop.f32.mrb[0].mxu0
      %1625 = vmatprep.mubr.bf16.mxu0 %v1196
      %1626 = vmatmul.mubr.bf16.gmra.mrb[0].mxu0 %v1195
      %v1627 = vpop.f32.mrb[0].mxu0
      %v1628 = vadd.f32 0.0, %v1627
      %v1629 = vpop.f32.mrb[0].mxu0
      %v1630 = vpop.f32.mrb[0].mxu0
      %v1631 = vadd.f32 0.0, %v1630
      %v1632 = vpop.f32.mrb[0].mxu0
      %1633 = vmatprep.mubr.bf16.mxu0 %v1198
      %1634 = vmatmul.mubr.bf16.gmra.mrb[0].mxu0 %v1197
      %v1635 = vpop.f32.mrb[0].mxu0
      %v1636 = vadd.f32 0.0, %v1635
      %v1637 = vpop.f32.mrb[0].mxu0
      %v1638 = vpop.f32.mrb[0].mxu0
      %v1639 = vadd.f32 0.0, %v1638
      %v1640 = vpop.f32.mrb[0].mxu0
      %1641 = vmatprep.mubr.bf16.mxu0 %v1200
      %1642 = vmatmul.mubr.bf16.gmra.mrb[0].mxu0 %v1199
      %v1643 = vpop.f32.mrb[0].mxu0
      %v1644 = vadd.f32 0.0, %v1643
      %v1645 = vpop.f32.mrb[0].mxu0
      %v1646 = vpop.f32.mrb[0].mxu0
      %v1647 = vadd.f32 0.0, %v1646
      %v1648 = vpop.f32.mrb[0].mxu0
      %1649 = vmatprep.mubr.bf16.mxu0 %v1202
      %1650 = vmatmul.mubr.bf16.gmra.mrb[0].mxu0 %v1201
      %v1651 = vpop.f32.mrb[0].mxu0
      %v1652 = vadd.f32 0.0, %v1651
      %v1653 = vpop.f32.mrb[0].mxu0
      %v1654 = vpop.f32.mrb[0].mxu0
      %v1655 = vadd.f32 0.0, %v1654
      %v1656 = vpop.f32.mrb[0].mxu0
      %1657 = vmatprep.mubr.bf16.mxu0 %v1204
      %1658 = vmatmul.mubr.bf16.gmra.mrb[0].mxu0 %v1203
      %v1659 = vpop.f32.mrb[0].mxu0
      %v1660 = vadd.f32 0.0, %v1659
      %v1661 = vpop.f32.mrb[0].mxu0
      %v1662 = vpop.f32.mrb[0].mxu0
      %v1663 = vadd.f32 0.0, %v1662
      %v1664 = vpop.f32.mrb[0].mxu0
      %1665 = vmatprep.mubr.bf16.mxu0 %v1206
      %1666 = vmatmul.mubr.bf16.gmra.mrb[0].mxu0 %v1205
      %v1667 = vpop.f32.mrb[0].mxu0
      %v1668 = vadd.f32 0.0, %v1667
      %v1669 = vpop.f32.mrb[0].mxu0
      %v1670 = vpop.f32.mrb[0].mxu0
      %v1671 = vadd.f32 0.0, %v1670
      %v1672 = vpop.f32.mrb[0].mxu0
      %1673 = vmatprep.mubr.bf16.mxu0 %v1208
      %1674 = vmatmul.mubr.bf16.gmra.mrb[0].mxu0 %v1207
      %v1675 = vpop.f32.mrb[0].mxu0
      %v1676 = vadd.f32 0.0, %v1675
      %v1677 = vpop.f32.mrb[0].mxu0
      %v1678 = vpop.f32.mrb[0].mxu0
      %v1679 = vadd.f32 0.0, %v1678
      %v1680 = vpop.f32.mrb[0].mxu0
      %1681 = vmatprep.mubr.bf16.mxu0 %v1210
      %1682 = vmatmul.mubr.bf16.gmra.mrb[0].mxu0 %v1209
      %v1683 = vpop.f32.mrb[0].mxu0
      %v1684 = vadd.f32 0.0, %v1683
      %v1685 = vpop.f32.mrb[0].mxu0
      %v1686 = vpop.f32.mrb[0].mxu0
      %v1687 = vadd.f32 0.0, %v1686
      %v1688 = vpop.f32.mrb[0].mxu0
      %1689 = vmatprep.mubr.bf16.mxu0 %v1212
      %1690 = vmatmul.mubr.bf16.gmra.mrb[0].mxu0 %v1211
      %v1691 = vpop.f32.mrb[0].mxu0
      %v1692 = vadd.f32 0.0, %v1691
      %v1693 = vpop.f32.mrb[0].mxu0
      %v1694 = vpop.f32.mrb[0].mxu0
      %v1695 = vadd.f32 0.0, %v1694
      %v1696 = vpop.f32.mrb[0].mxu0
      %1697 = vmatprep.mubr.bf16.mxu0 %v1214
      %1698 = vmatmul.mubr.bf16.gmra.mrb[0].mxu0 %v1213
      %v1699 = vpop.f32.mrb[0].mxu0
      %v1700 = vadd.f32 0.0, %v1699
      %v1701 = vpop.f32.mrb[0].mxu0
      %v1702 = vpop.f32.mrb[0].mxu0
      %v1703 = vadd.f32 0.0, %v1702
      %v1704 = vpop.f32.mrb[0].mxu0
      %1705 = vmatprep.mubr.bf16.mxu0 %v1216
      %1706 = vmatmul.mubr.bf16.gmra.mrb[0].mxu0 %v1215
      %v1707 = vpop.f32.mrb[0].mxu0
      %v1708 = vadd.f32 0.0, %v1707
      %v1709 = vpop.f32.mrb[0].mxu0
      %v1710 = vpop.f32.mrb[0].mxu0
      %v1711 = vadd.f32 0.0, %v1710
      %v1712 = vpop.f32.mrb[0].mxu0
      %1713 = vmatprep.mubr.bf16.mxu0 %v1218
      %1714 = vmatmul.mubr.bf16.gmra.mrb[0].mxu0 %v1217
      %v1715 = vpop.f32.mrb[0].mxu0
      %v1716 = vadd.f32 0.0, %v1715
      %v1717 = vpop.f32.mrb[0].mxu0
      %v1718 = vpop.f32.mrb[0].mxu0
      %v1719 = vadd.f32 0.0, %v1718
      %v1720 = vpop.f32.mrb[0].mxu0
      %1721 = vmatprep.mubr.bf16.mxu0 %v1220
      %1722 = vmatmul.mubr.bf16.gmra.mrb[0].mxu0 %v1219
      %v1723 = vpop.f32.mrb[0].mxu0
      %v1724 = vadd.f32 0.0, %v1723
      %v1725 = vpop.f32.mrb[0].mxu0
      %v1726 = vpop.f32.mrb[0].mxu0
      %v1727 = vadd.f32 0.0, %v1726
      %v1728 = vpop.f32.mrb[0].mxu0
      %1729 = vmatprep.mubr.bf16.mxu0 %v1222
      %1730 = vmatmul.mubr.bf16.gmra.mrb[0].mxu0 %v1221
      %v1731 = vpop.f32.mrb[0].mxu0
      %v1732 = vadd.f32 0.0, %v1731
      %v1733 = vpop.f32.mrb[0].mxu0
      %v1734 = vpop.f32.mrb[0].mxu0
      %v1735 = vadd.f32 0.0, %v1734
      %v1736 = vpop.f32.mrb[0].mxu0
      %1737 = vmatprep.mubr.bf16.mxu0 %v1224
      %1738 = vmatmul.mubr.bf16.gmra.mrb[0].mxu0 %v1223
      %v1739 = vpop.f32.mrb[0].mxu0
      %v1740 = vadd.f32 0.0, %v1739
      %v1741 = vpop.f32.mrb[0].mxu0
      %v1742 = vpop.f32.mrb[0].mxu0
      %v1743 = vadd.f32 0.0, %v1742
      %v1744 = vpop.f32.mrb[0].mxu0
      %1745 = vmatprep.mubr.bf16.mxu0 %v1226
      %1746 = vmatmul.mubr.bf16.gmra.mrb[0].mxu0 %v1225
      %v1747 = vpop.f32.mrb[0].mxu0
      %v1748 = vadd.f32 0.0, %v1747
      %v1749 = vpop.f32.mrb[0].mxu0
      %v1750 = vpop.f32.mrb[0].mxu0
      %v1751 = vadd.f32 0.0, %v1750
      %v1752 = vpop.f32.mrb[0].mxu0
      %1753 = vmatprep.mubr.bf16.mxu0 %v1228
      %1754 = vmatmul.mubr.bf16.gmra.mrb[0].mxu0 %v1227
      %v1755 = vpop.f32.mrb[0].mxu0
      %v1756 = vadd.f32 0.0, %v1755
      %v1757 = vpop.f32.mrb[0].mxu0
      %v1758 = vpop.f32.mrb[0].mxu0
      %v1759 = vadd.f32 0.0, %v1758
      %v1760 = vpop.f32.mrb[0].mxu0
      %1761 = vmatprep.mubr.bf16.mxu0 %v1230
      %1762 = vmatmul.mubr.bf16.gmra.mrb[0].mxu0 %v1229
      %v1763 = vpop.f32.mrb[0].mxu0
      %v1764 = vadd.f32 0.0, %v1763
      %v1765 = vpop.f32.mrb[0].mxu0
      %v1766 = vpop.f32.mrb[0].mxu0
      %v1767 = vadd.f32 0.0, %v1766
      %v1768 = vpop.f32.mrb[0].mxu0
      %1769 = vmatprep.mubr.bf16.mxu0 %v1232
      %1770 = vmatmul.mubr.bf16.gmra.mrb[0].mxu0 %v1231
      %v1771 = vpop.f32.mrb[0].mxu0
      %v1772 = vadd.f32 0.0, %v1771
      %v1773 = vpop.f32.mrb[0].mxu0
      %v1774 = vpop.f32.mrb[0].mxu0
      %v1775 = vadd.f32 0.0, %v1774
      %v1776 = vpop.f32.mrb[0].mxu0
      %1777 = vmatprep.mubr.bf16.mxu0 %v1234
      %1778 = vmatmul.mubr.bf16.gmra.mrb[0].mxu0 %v1233
      %v1779 = vpop.f32.mrb[0].mxu0
      %v1780 = vadd.f32 0.0, %v1779
      %v1781 = vpop.f32.mrb[0].mxu0
      %v1782 = vpop.f32.mrb[0].mxu0
      %v1783 = vadd.f32 0.0, %v1782
      %v1784 = vpop.f32.mrb[0].mxu0
      %1785 = vmatprep.mubr.bf16.mxu0 %v1236
      %1786 = vmatmul.mubr.bf16.gmra.mrb[0].mxu0 %v1235
      %v1787 = vpop.f32.mrb[0].mxu0
      %v1788 = vadd.f32 0.0, %v1787
      %v1789 = vpop.f32.mrb[0].mxu0
      %v1790 = vpop.f32.mrb[0].mxu0
      %v1791 = vadd.f32 0.0, %v1790
      %v1792 = vpop.f32.mrb[0].mxu0
      %1793 = vmatprep.mubr.bf16.mxu0 %v1238
      %1794 = vmatmul.mubr.bf16.gmra.mrb[0].mxu0 %v1237
      %v1795 = vpop.f32.mrb[0].mxu0
      %v1796 = vadd.f32 0.0, %v1795
      %v1797 = vpop.f32.mrb[0].mxu0
      %v1798 = vpop.f32.mrb[0].mxu0
      %v1799 = vadd.f32 0.0, %v1798
      %v1800 = vpop.f32.mrb[0].mxu0
      %1801 = vmatprep.mubr.bf16.mxu0 %v1240
      %1802 = vmatmul.mubr.bf16.gmra.mrb[0].mxu0 %v1239
      %v1803 = vpop.f32.mrb[0].mxu0
      %v1804 = vadd.f32 0.0, %v1803
      %v1805 = vpop.f32.mrb[0].mxu0
      %v1806 = vpop.f32.mrb[0].mxu0
      %v1807 = vadd.f32 0.0, %v1806
      %v1808 = vpop.f32.mrb[0].mxu0
      %1809 = vmatprep.mubr.bf16.mxu0 %v1242
      %1810 = vmatmul.mubr.bf16.gmra.mrb[0].mxu0 %v1241
      %v1811 = vpop.f32.mrb[0].mxu0
      %v1812 = vadd.f32 0.0, %v1811
      %v1813 = vpop.f32.mrb[0].mxu0
      %v1814 = vpop.f32.mrb[0].mxu0
      %v1815 = vadd.f32 0.0, %v1814
      %v1816 = vpop.f32.mrb[0].mxu0
      %1817 = vmatprep.mubr.bf16.mxu0 %v1244
      %1818 = vmatmul.mubr.bf16.gmra.mrb[0].mxu0 %v1243
      %v1819 = vpop.f32.mrb[0].mxu0
      %v1820 = vadd.f32 0.0, %v1819
      %v1821 = vpop.f32.mrb[0].mxu0
      %v1822 = vpop.f32.mrb[0].mxu0
      %v1823 = vadd.f32 0.0, %v1822
      %v1824 = vpop.f32.mrb[0].mxu0
      %1825 = vmatprep.mubr.bf16.mxu0 %v1246
      %1826 = vmatmul.mubr.bf16.gmra.mrb[0].mxu0 %v1245
      %v1827 = vpop.f32.mrb[0].mxu0
      %v1828 = vadd.f32 0.0, %v1827
      %v1829 = vpop.f32.mrb[0].mxu0
      %v1830 = vpop.f32.mrb[0].mxu0
      %v1831 = vadd.f32 0.0, %v1830
      %v1832 = vpop.f32.mrb[0].mxu0
      %1833 = vmatprep.mubr.bf16.mxu0 %v1248
      %1834 = vmatmul.mubr.bf16.gmra.mrb[0].mxu0 %v1247
      %v1835 = vpop.f32.mrb[0].mxu0
      %v1836 = vadd.f32 0.0, %v1835
      %v1837 = vpop.f32.mrb[0].mxu0
      %v1838 = vpop.f32.mrb[0].mxu0
      %v1839 = vadd.f32 0.0, %v1838
      %v1840 = vpop.f32.mrb[0].mxu0
      %1841 = vmatprep.mubr.bf16.mxu0 %v1250
      %1842 = vmatmul.mubr.bf16.gmra.mrb[0].mxu0 %v1249
      %v1843 = vpop.f32.mrb[0].mxu0
      %v1844 = vadd.f32 0.0, %v1843
      %v1845 = vpop.f32.mrb[0].mxu0
      %v1846 = vpop.f32.mrb[0].mxu0
      %v1847 = vadd.f32 0.0, %v1846
      %v1848 = vpop.f32.mrb[0].mxu0
      %1849 = vmatprep.mubr.bf16.mxu0 %v1252
      %1850 = vmatmul.mubr.bf16.gmra.mrb[0].mxu0 %v1251
      %v1851 = vpop.f32.mrb[0].mxu0
      %v1852 = vadd.f32 0.0, %v1851
      %v1853 = vpop.f32.mrb[0].mxu0
      %v1854 = vpop.f32.mrb[0].mxu0
      %v1855 = vadd.f32 0.0, %v1854
      %v1856 = vpop.f32.mrb[0].mxu0
      %1857 = vmatprep.mubr.bf16.mxu0 %v1254
      %1858 = vmatmul.mubr.bf16.gmra.mrb[0].mxu0 %v1253
      %v1859 = vpop.f32.mrb[0].mxu0
      %v1860 = vadd.f32 0.0, %v1859
      %v1861 = vpop.f32.mrb[0].mxu0
      %v1862 = vpop.f32.mrb[0].mxu0
      %v1863 = vadd.f32 0.0, %v1862
      %v1864 = vpop.f32.mrb[0].mxu0
      %1865 = vmatprep.mubr.bf16.mxu0 %v1256
      %1866 = vmatmul.mubr.bf16.gmra.mrb[0].mxu0 %v1255
      %v1867 = vpop.f32.mrb[0].mxu0
      %v1868 = vadd.f32 0.0, %v1867
      %v1869 = vpop.f32.mrb[0].mxu0
      %v1870 = vpop.f32.mrb[0].mxu0
      %v1871 = vadd.f32 0.0, %v1870
      %v1872 = vpop.f32.mrb[0].mxu0
      %1873 = vmatprep.mubr.bf16.mxu0 %v1258
      %1874 = vmatmul.mubr.bf16.gmra.mrb[0].mxu0 %v1257
      %v1875 = vpop.f32.mrb[0].mxu0
      %v1876 = vadd.f32 0.0, %v1875
      %v1877 = vpop.f32.mrb[0].mxu0
      %v1878 = vpop.f32.mrb[0].mxu0
      %v1879 = vadd.f32 0.0, %v1878
      %v1880 = vpop.f32.mrb[0].mxu0
      %1881 = vmatprep.mubr.bf16.mxu0 %v1260
      %1882 = vmatmul.mubr.bf16.gmra.mrb[0].mxu0 %v1259
      %v1883 = vpop.f32.mrb[0].mxu0
      %v1884 = vadd.f32 0.0, %v1883
      %v1885 = vpop.f32.mrb[0].mxu0
      %v1886 = vpop.f32.mrb[0].mxu0
      %v1887 = vadd.f32 0.0, %v1886
      %v1888 = vpop.f32.mrb[0].mxu0
      %1889 = vmatprep.mubr.bf16.mxu0 %v1262
      %1890 = vmatmul.mubr.bf16.gmra.mrb[0].mxu0 %v1261
      %v1891 = vpop.f32.mrb[0].mxu0
      %v1892 = vadd.f32 0.0, %v1891
      %v1893 = vpop.f32.mrb[0].mxu0
      %v1894 = vpop.f32.mrb[0].mxu0
      %v1895 = vadd.f32 0.0, %v1894
      %v1896 = vpop.f32.mrb[0].mxu0
      %1897 = vmatprep.mubr.bf16.mxu0 %v1264
      %1898 = vmatmul.mubr.bf16.gmra.mrb[0].mxu0 %v1263
      %v1899 = vpop.f32.mrb[0].mxu0
      %v1900 = vadd.f32 0.0, %v1899
      %v1901 = vpop.f32.mrb[0].mxu0
      %v1902 = vpop.f32.mrb[0].mxu0
      %v1903 = vadd.f32 0.0, %v1902
      %v1904 = vpop.f32.mrb[0].mxu0
      %1905 = vmatprep.mubr.bf16.mxu0 %v1266
      %1906 = vmatmul.mubr.bf16.gmra.mrb[0].mxu0 %v1265
      %v1907 = vpop.f32.mrb[0].mxu0
      %v1908 = vadd.f32 0.0, %v1907
      %v1909 = vpop.f32.mrb[0].mxu0
      %v1910 = vpop.f32.mrb[0].mxu0
      %v1911 = vadd.f32 0.0, %v1910
      %v1912 = vpop.f32.mrb[0].mxu0
      %1913 = vmatprep.mubr.bf16.mxu0 %v1268
      %1914 = vmatmul.mubr.bf16.gmra.mrb[0].mxu0 %v1267
      %v1915 = vpop.f32.mrb[0].mxu0
      %v1916 = vadd.f32 0.0, %v1915
      %v1917 = vpop.f32.mrb[0].mxu0
      %v1918 = vpop.f32.mrb[0].mxu0
      %v1919 = vadd.f32 0.0, %v1918
      %v1920 = vpop.f32.mrb[0].mxu0
      %1921 = vmatprep.mubr.bf16.mxu0 %v1270
      %1922 = vmatmul.mubr.bf16.gmra.mrb[0].mxu0 %v1269
      %v1923 = vpop.f32.mrb[0].mxu0
      %v1924 = vadd.f32 0.0, %v1923
      %v1925 = vpop.f32.mrb[0].mxu0
      %v1926 = vpop.f32.mrb[0].mxu0
      %v1927 = vadd.f32 0.0, %v1926
      %v1928 = vpop.f32.mrb[0].mxu0
      %1929 = vmatprep.mubr.bf16.mxu0 %v1272
      %1930 = vmatmul.mubr.bf16.gmra.mrb[0].mxu0 %v1271
      %v1931 = vpop.f32.mrb[0].mxu0
      %v1932 = vadd.f32 0.0, %v1931
      %v1933 = vpop.f32.mrb[0].mxu0
      %v1934 = vpop.f32.mrb[0].mxu0
      %v1935 = vadd.f32 0.0, %v1934
      %v1936 = vpop.f32.mrb[0].mxu0
      %1937 = vmatprep.mubr.bf16.mxu0 %v1274
      %1938 = vmatmul.mubr.bf16.gmra.mrb[0].mxu0 %v1273
      %v1939 = vpop.f32.mrb[0].mxu0
      %v1940 = vadd.f32 0.0, %v1939
      %v1941 = vpop.f32.mrb[0].mxu0
      %v1942 = vpop.f32.mrb[0].mxu0
      %v1943 = vadd.f32 0.0, %v1942
      %v1944 = vpop.f32.mrb[0].mxu0
      %1945 = vmatprep.mubr.bf16.mxu0 %v1276
      %1946 = vmatmul.mubr.bf16.gmra.mrb[0].mxu0 %v1275
      %v1947 = vpop.f32.mrb[0].mxu0
      %v1948 = vadd.f32 0.0, %v1947
      %v1949 = vpop.f32.mrb[0].mxu0
      %v1950 = vpop.f32.mrb[0].mxu0
      %v1951 = vadd.f32 0.0, %v1950
      %v1952 = vpop.f32.mrb[0].mxu0
      %1953 = vmatprep.mubr.bf16.mxu0 %v1278
      %1954 = vmatmul.mubr.bf16.gmra.mrb[0].mxu0 %v1277
      %v1955 = vpop.f32.mrb[0].mxu0
      %v1956 = vadd.f32 0.0, %v1955
      %v1957 = vpop.f32.mrb[0].mxu0
      %v1958 = vpop.f32.mrb[0].mxu0
      %v1959 = vadd.f32 0.0, %v1958
      %v1960 = vpop.f32.mrb[0].mxu0
      %1961 = vmatprep.mubr.bf16.mxu0 %v1280
      %1962 = vmatmul.mubr.bf16.gmra.mrb[0].mxu0 %v1279
      %v1963 = vpop.f32.mrb[0].mxu0
      %v1964 = vadd.f32 0.0, %v1963
      %v1965 = vpop.f32.mrb[0].mxu0
      %v1966 = vpop.f32.mrb[0].mxu0
      %v1967 = vadd.f32 0.0, %v1966
      %v1968 = vpop.f32.mrb[0].mxu0
      %1969 = vmatprep.mubr.bf16.mxu0 %v1282
      %1970 = vmatmul.mubr.bf16.gmra.mrb[0].mxu0 %v1281
      %v1971 = vpop.f32.mrb[0].mxu0
      %v1972 = vadd.f32 0.0, %v1971
      %v1973 = vpop.f32.mrb[0].mxu0
      %v1974 = vpop.f32.mrb[0].mxu0
      %v1975 = vadd.f32 0.0, %v1974
      %v1976 = vpop.f32.mrb[0].mxu0
      %1977 = vmatprep.mubr.bf16.mxu0 %v1284
      %1978 = vmatmul.mubr.bf16.gmra.mrb[0].mxu0 %v1283
      %v1979 = vpop.f32.mrb[0].mxu0
      %v1980 = vadd.f32 0.0, %v1979
      %v1981 = vpop.f32.mrb[0].mxu0
      %v1982 = vpop.f32.mrb[0].mxu0
      %v1983 = vadd.f32 0.0, %v1982
      %v1984 = vpop.f32.mrb[0].mxu0
      %1985 = vmatprep.mubr.bf16.mxu0 %v1286
      %1986 = vmatmul.mubr.bf16.gmra.mrb[0].mxu0 %v1285
      %v1987 = vpop.f32.mrb[0].mxu0
      %v1988 = vadd.f32 0.0, %v1987
      %v1989 = vpop.f32.mrb[0].mxu0
      %v1990 = vpop.f32.mrb[0].mxu0
      %v1991 = vadd.f32 0.0, %v1990
      %v1992 = vpop.f32.mrb[0].mxu0
      %1993 = vmatprep.mubr.bf16.mxu0 %v1288
      %1994 = vmatmul.mubr.bf16.gmra.mrb[0].mxu0 %v1287
      %v1995 = vpop.f32.mrb[0].mxu0
      %v1996 = vadd.f32 0.0, %v1995
      %v1997 = vpop.f32.mrb[0].mxu0
      %v1998 = vpop.f32.mrb[0].mxu0
      %v1999 = vadd.f32 0.0, %v1998
      %v2000 = vpop.f32.mrb[0].mxu0
      %2001 = vmatprep.mubr.bf16.mxu0 %v1290
      %2002 = vmatmul.mubr.bf16.gmra.mrb[0].mxu0 %v1289
      %v2003 = vpop.f32.mrb[0].mxu0
      %v2004 = vadd.f32 0.0, %v2003
      %v2005 = vpop.f32.mrb[0].mxu0
      %v2006 = vpop.f32.mrb[0].mxu0
      %v2007 = vadd.f32 0.0, %v2006
      %v2008 = vpop.f32.mrb[0].mxu0
      %2009 = vmatprep.mubr.bf16.mxu0 %v1292
      %2010 = vmatmul.mubr.bf16.gmra.mrb[0].mxu0 %v1291
      %v2011 = vpop.f32.mrb[0].mxu0
      %v2012 = vadd.f32 0.0, %v2011
      %v2013 = vpop.f32.mrb[0].mxu0
      %v2014 = vpop.f32.mrb[0].mxu0
      %v2015 = vadd.f32 0.0, %v2014
      %v2016 = vpop.f32.mrb[0].mxu0
      %2017 = vmatprep.mubr.bf16.mxu0 %v1294
      %2018 = vmatmul.mubr.bf16.gmra.mrb[0].mxu0 %v1293
      %v2019 = vpop.f32.mrb[0].mxu0
      %v2020 = vadd.f32 0.0, %v2019
      %v2021 = vpop.f32.mrb[0].mxu0
      %v2022 = vpop.f32.mrb[0].mxu0
      %v2023 = vadd.f32 0.0, %v2022
      %v2024 = vpop.f32.mrb[0].mxu0
      %2025 = vmatprep.mubr.bf16.mxu0 %v1296
      %2026 = vmatmul.mubr.bf16.gmra.mrb[0].mxu0 %v1295
      %v2027 = vpop.f32.mrb[0].mxu0
      %v2028 = vadd.f32 0.0, %v2027
      %v2029 = vpop.f32.mrb[0].mxu0
      %v2030 = vpop.f32.mrb[0].mxu0
      %v2031 = vadd.f32 0.0, %v2030
      %v2032 = vpop.f32.mrb[0].mxu0
      %2033 = vmatprep.mubr.bf16.mxu0 %v1298
      %2034 = vmatmul.mubr.bf16.gmra.mrb[0].mxu0 %v1297
      %v2035 = vpop.f32.mrb[0].mxu0
      %v2036 = vadd.f32 0.0, %v2035
      %v2037 = vpop.f32.mrb[0].mxu0
      %v2038 = vpop.f32.mrb[0].mxu0
      %v2039 = vadd.f32 0.0, %v2038
      %v2040 = vpop.f32.mrb[0].mxu0
      %2041 = vmatprep.mubr.bf16.mxu0 %v1300
      %2042 = vmatmul.mubr.bf16.gmra.mrb[0].mxu0 %v1299
      %v2043 = vpop.f32.mrb[0].mxu0
      %v2044 = vadd.f32 0.0, %v2043
      %v2045 = vpop.f32.mrb[0].mxu0
      %v2046 = vpop.f32.mrb[0].mxu0
      %v2047 = vadd.f32 0.0, %v2046
      %v2048 = vpop.f32.mrb[0].mxu0
      %2049 = vmatprep.mubr.bf16.mxu0 %v1302
      %2050 = vmatmul.mubr.bf16.gmra.mrb[0].mxu0 %v1301
      %v2051 = vpop.f32.mrb[0].mxu0
      %v2052 = vadd.f32 0.0, %v2051
      %v2053 = vpop.f32.mrb[0].mxu0
      %v2054 = vpop.f32.mrb[0].mxu0
      %v2055 = vadd.f32 0.0, %v2054
      %v2056 = vpop.f32.mrb[0].mxu0
      %2057 = vmatprep.mubr.bf16.mxu0 %v1304
      %2058 = vmatmul.mubr.bf16.gmra.mrb[0].mxu0 %v1303
      %v2059 = vpop.f32.mrb[0].mxu0
      %v2060 = vadd.f32 0.0, %v2059
      %v2061 = vpop.f32.mrb[0].mxu0
      %v2062 = vpop.f32.mrb[0].mxu0
      %v2063 = vadd.f32 0.0, %v2062
      %v2064 = vpop.f32.mrb[0].mxu0
      %2065 = vmatprep.mubr.bf16.mxu0 %v1306
      %2066 = vmatmul.mubr.bf16.gmra.mrb[0].mxu0 %v1305
      %v2067 = vpop.f32.mrb[0].mxu0
      %v2068 = vadd.f32 0.0, %v2067
      %v2069 = vpop.f32.mrb[0].mxu0
      %v2070 = vpop.f32.mrb[0].mxu0
      %v2071 = vadd.f32 0.0, %v2070
      %v2072 = vpop.f32.mrb[0].mxu0
      %2073 = vmatprep.mubr.bf16.mxu0 %v1308
      %2074 = vmatmul.mubr.bf16.gmra.mrb[0].mxu0 %v1307
      %v2075 = vpop.f32.mrb[0].mxu0
      %v2076 = vadd.f32 0.0, %v2075
      %v2077 = vpop.f32.mrb[0].mxu0
      %v2078 = vpop.f32.mrb[0].mxu0
      %v2079 = vadd.f32 0.0, %v2078
      %v2080 = vpop.f32.mrb[0].mxu0
      %2081 = vmatprep.mubr.bf16.mxu0 %v1310
      %2082 = vmatmul.mubr.bf16.gmra.mrb[0].mxu0 %v1309
      %v2083 = vpop.f32.mrb[0].mxu0
      %v2084 = vadd.f32 0.0, %v2083
      %v2085 = vpop.f32.mrb[0].mxu0
      %v2086 = vpop.f32.mrb[0].mxu0
      %v2087 = vadd.f32 0.0, %v2086
      %v2088 = vpop.f32.mrb[0].mxu0
      %2089 = vmatprep.mubr.bf16.mxu0 %v1312
      %2090 = vmatmul.mubr.bf16.gmra.mrb[0].mxu0 %v1311
      %v2091 = vpop.f32.mrb[0].mxu0
      %v2092 = vadd.f32 0.0, %v2091
      %v2093 = vpop.f32.mrb[0].mxu0
      %v2094 = vpop.f32.mrb[0].mxu0
      %v2095 = vadd.f32 0.0, %v2094
      %v2096 = vpop.f32.mrb[0].mxu0
      %2097 = vmatprep.mubr.bf16.mxu0 %v1314
      %2098 = vmatmul.mubr.bf16.gmra.mrb[0].mxu0 %v1313
      %v2099 = vpop.f32.mrb[0].mxu0
      %v2100 = vadd.f32 0.0, %v2099
      %v2101 = vpop.f32.mrb[0].mxu0
      %v2102 = vpop.f32.mrb[0].mxu0
      %v2103 = vadd.f32 0.0, %v2102
      %v2104 = vpop.f32.mrb[0].mxu0
      %2105 = vmatprep.mubr.bf16.mxu0 %v1316
      %2106 = vmatmul.mubr.bf16.gmra.mrb[0].mxu0 %v1315
      %v2107 = vpop.f32.mrb[0].mxu0
      %v2108 = vadd.f32 0.0, %v2107
      %v2109 = vpop.f32.mrb[0].mxu0
      %v2110 = vpop.f32.mrb[0].mxu0
      %v2111 = vadd.f32 0.0, %v2110
      %v2112 = vpop.f32.mrb[0].mxu0
      %2113 = vmatprep.mubr.bf16.mxu0 %v1318
      %2114 = vmatmul.mubr.bf16.gmra.mrb[0].mxu0 %v1317
      %v2115 = vpop.f32.mrb[0].mxu0
      %v2116 = vadd.f32 0.0, %v2115
      %v2117 = vpop.f32.mrb[0].mxu0
      %v2118 = vpop.f32.mrb[0].mxu0
      %v2119 = vadd.f32 0.0, %v2118
      %v2120 = vpop.f32.mrb[0].mxu0
      %2121 = vmatprep.mubr.bf16.mxu0 %v1320
      %2122 = vmatmul.mubr.bf16.gmra.mrb[0].mxu0 %v1319
      %v2123 = vpop.f32.mrb[0].mxu0
      %v2124 = vadd.f32 0.0, %v2123
      %v2125 = vpop.f32.mrb[0].mxu0
      %v2126 = vpop.f32.mrb[0].mxu0
      %v2127 = vadd.f32 0.0, %v2126
      %v2128 = vpop.f32.mrb[0].mxu0
      %2129 = vdwg.mxu0
      %v2130 = vmul.f32 %v1588, %v1588
      %v2131 = vmul.f32 %v1591, %v1591
      %v2132 = vmul.f32 %v1596, %v1596
      %v2133 = vmul.f32 %v1599, %v1599
      %v2134 = vmul.f32 %v1604, %v1604
      %v2135 = vmul.f32 %v1607, %v1607
      %v2136 = vmul.f32 %v1612, %v1612
      %v2137 = vmul.f32 %v1615, %v1615
      %v2138 = vmul.f32 %v1620, %v1620
      %v2139 = vmul.f32 %v1623, %v1623
      %v2140 = vmul.f32 %v1628, %v1628
      %v2141 = vmul.f32 %v1631, %v1631
      %v2142 = vmul.f32 %v1636, %v1636
      %v2143 = vmul.f32 %v1639, %v1639
      %v2144 = vmul.f32 %v1644, %v1644
      %v2145 = vmul.f32 %v1647, %v1647
      %v2146 = vmul.f32 %v1652, %v1652
      %v2147 = vmul.f32 %v1655, %v1655
      %v2148 = vmul.f32 %v1660, %v1660
      %v2149 = vmul.f32 %v1663, %v1663
      %v2150 = vmul.f32 %v1668, %v1668
      %v2151 = vmul.f32 %v1671, %v1671
      %v2152 = vmul.f32 %v1676, %v1676
      %v2153 = vmul.f32 %v1679, %v1679
      %v2154 = vmul.f32 %v1684, %v1684
      %v2155 = vmul.f32 %v1687, %v1687
      %v2156 = vmul.f32 %v1692, %v1692
      %v2157 = vmul.f32 %v1695, %v1695
      %v2158 = vmul.f32 %v1700, %v1700
      %v2159 = vmul.f32 %v1703, %v1703
      %v2160 = vmul.f32 %v1708, %v1708
      %v2161 = vmul.f32 %v1711, %v1711
      %v2162 = vmul.f32 %v1716, %v1716
      %v2163 = vmul.f32 %v1719, %v1719
      %v2164 = vmul.f32 %v1724, %v1724
      %v2165 = vmul.f32 %v1727, %v1727
      %v2166 = vmul.f32 %v1732, %v1732
      %v2167 = vmul.f32 %v1735, %v1735
      %v2168 = vmul.f32 %v1740, %v1740
      %v2169 = vmul.f32 %v1743, %v1743
      %v2170 = vmul.f32 %v1748, %v1748
      %v2171 = vmul.f32 %v1751, %v1751
      %v2172 = vmul.f32 %v1756, %v1756
      %v2173 = vmul.f32 %v1759, %v1759
      %v2174 = vmul.f32 %v1764, %v1764
      %v2175 = vmul.f32 %v1767, %v1767
      %v2176 = vmul.f32 %v1772, %v1772
      %v2177 = vmul.f32 %v1775, %v1775
      %v2178 = vmul.f32 %v1780, %v1780
      %v2179 = vmul.f32 %v1783, %v1783
      %v2180 = vmul.f32 %v1788, %v1788
      %v2181 = vmul.f32 %v1791, %v1791
      %v2182 = vmul.f32 %v1796, %v1796
      %v2183 = vmul.f32 %v1799, %v1799
      %v2184 = vmul.f32 %v1804, %v1804
      %v2185 = vmul.f32 %v1807, %v1807
      %v2186 = vmul.f32 %v1812, %v1812
      %v2187 = vmul.f32 %v1815, %v1815
      %v2188 = vmul.f32 %v1820, %v1820
      %v2189 = vmul.f32 %v1823, %v1823
      %v2190 = vmul.f32 %v1828, %v1828
      %v2191 = vmul.f32 %v1831, %v1831
      %v2192 = vmul.f32 %v1836, %v1836
      %v2193 = vmul.f32 %v1839, %v1839
      %v2194 = vmul.f32 %v1844, %v1844
      %v2195 = vmul.f32 %v1847, %v1847
      %v2196 = vmul.f32 %v1852, %v1852
      %v2197 = vmul.f32 %v1855, %v1855
      %v2198 = vmul.f32 %v1860, %v1860
      %v2199 = vmul.f32 %v1863, %v1863
      %v2200 = vmul.f32 %v1868, %v1868
      %v2201 = vmul.f32 %v1871, %v1871
      %v2202 = vmul.f32 %v1876, %v1876
      %v2203 = vmul.f32 %v1879, %v1879
      %v2204 = vmul.f32 %v1884, %v1884
      %v2205 = vmul.f32 %v1887, %v1887
      %v2206 = vmul.f32 %v1892, %v1892
      %v2207 = vmul.f32 %v1895, %v1895
      %v2208 = vmul.f32 %v1900, %v1900
      %v2209 = vmul.f32 %v1903, %v1903
      %v2210 = vmul.f32 %v1908, %v1908
      %v2211 = vmul.f32 %v1911, %v1911
      %v2212 = vmul.f32 %v1916, %v1916
      %v2213 = vmul.f32 %v1919, %v1919
      %v2214 = vmul.f32 %v1924, %v1924
      %v2215 = vmul.f32 %v1927, %v1927
      %v2216 = vmul.f32 %v1932, %v1932
      %v2217 = vmul.f32 %v1935, %v1935
      %v2218 = vmul.f32 %v1940, %v1940
      %v2219 = vmul.f32 %v1943, %v1943
      %v2220 = vmul.f32 %v1948, %v1948
      %v2221 = vmul.f32 %v1951, %v1951
      %v2222 = vmul.f32 %v1956, %v1956
      %v2223 = vmul.f32 %v1959, %v1959
      %v2224 = vmul.f32 %v1964, %v1964
      %v2225 = vmul.f32 %v1967, %v1967
      %v2226 = vmul.f32 %v1972, %v1972
      %v2227 = vmul.f32 %v1975, %v1975
      %v2228 = vmul.f32 %v1980, %v1980
      %v2229 = vmul.f32 %v1983, %v1983
      %v2230 = vmul.f32 %v1988, %v1988
      %v2231 = vmul.f32 %v1991, %v1991
      %v2232 = vmul.f32 %v1996, %v1996
      %v2233 = vmul.f32 %v1999, %v1999
      %v2234 = vmul.f32 %v2004, %v2004
      %v2235 = vmul.f32 %v2007, %v2007
      %v2236 = vmul.f32 %v2012, %v2012
      %v2237 = vmul.f32 %v2015, %v2015
      %v2238 = vmul.f32 %v2020, %v2020
      %v2239 = vmul.f32 %v2023, %v2023
      %v2240 = vmul.f32 %v2028, %v2028
      %v2241 = vmul.f32 %v2031, %v2031
      %v2242 = vmul.f32 %v2036, %v2036
      %v2243 = vmul.f32 %v2039, %v2039
      %v2244 = vmul.f32 %v2044, %v2044
      %v2245 = vmul.f32 %v2047, %v2047
      %v2246 = vmul.f32 %v2052, %v2052
      %v2247 = vmul.f32 %v2055, %v2055
      %v2248 = vmul.f32 %v2060, %v2060
      %v2249 = vmul.f32 %v2063, %v2063
      %v2250 = vmul.f32 %v2068, %v2068
      %v2251 = vmul.f32 %v2071, %v2071
      %v2252 = vmul.f32 %v2076, %v2076
      %v2253 = vmul.f32 %v2079, %v2079
      %v2254 = vmul.f32 %v2084, %v2084
      %v2255 = vmul.f32 %v2087, %v2087
      %v2256 = vmul.f32 %v2092, %v2092
      %v2257 = vmul.f32 %v2095, %v2095
      %v2258 = vmul.f32 %v2100, %v2100
      %v2259 = vmul.f32 %v2103, %v2103
      %v2260 = vmul.f32 %v2108, %v2108
      %v2261 = vmul.f32 %v2111, %v2111
      %v2262 = vmul.f32 %v2116, %v2116
      %v2263 = vmul.f32 %v2119, %v2119
      %v2264 = vmul.f32 %v2124, %v2124
      %v2265 = vmul.f32 %v2127, %v2127
      %v2266 = vadd.f32 %v2130, %v2198
      %v2267 = vadd.f32 %v2131, %v2199
      %v2268 = vadd.f32 %v2132, %v2200
      %v2269 = vadd.f32 %v2133, %v2201
      %v2270 = vadd.f32 %v2134, %v2202
      %v2271 = vadd.f32 %v2135, %v2203
      %v2272 = vadd.f32 %v2136, %v2204
      %v2273 = vadd.f32 %v2137, %v2205
      %v2274 = vadd.f32 %v2138, %v2206
      %v2275 = vadd.f32 %v2139, %v2207
      %v2276 = vadd.f32 %v2140, %v2208
      %v2277 = vadd.f32 %v2141, %v2209
      %v2278 = vadd.f32 %v2142, %v2210
      %v2279 = vadd.f32 %v2143, %v2211
      %v2280 = vadd.f32 %v2144, %v2212
      %v2281 = vadd.f32 %v2145, %v2213
      %v2282 = vadd.f32 %v2146, %v2214
      %v2283 = vadd.f32 %v2147, %v2215
      %v2284 = vadd.f32 %v2148, %v2216
      %v2285 = vadd.f32 %v2149, %v2217
      %v2286 = vadd.f32 %v2150, %v2218
      %v2287 = vadd.f32 %v2151, %v2219
      %v2288 = vadd.f32 %v2152, %v2220
      %v2289 = vadd.f32 %v2153, %v2221
      %v2290 = vadd.f32 %v2154, %v2222
      %v2291 = vadd.f32 %v2155, %v2223
      %v2292 = vadd.f32 %v2156, %v2224
      %v2293 = vadd.f32 %v2157, %v2225
      %v2294 = vadd.f32 %v2158, %v2226
      %v2295 = vadd.f32 %v2159, %v2227
      %v2296 = vadd.f32 %v2160, %v2228
      %v2297 = vadd.f32 %v2161, %v2229
      %v2298 = vadd.f32 %v2162, %v2230
      %v2299 = vadd.f32 %v2163, %v2231
      %v2300 = vadd.f32 %v2164, %v2232
      %v2301 = vadd.f32 %v2165, %v2233
      %v2302 = vadd.f32 %v2166, %v2234
      %v2303 = vadd.f32 %v2167, %v2235
      %v2304 = vadd.f32 %v2168, %v2236
      %v2305 = vadd.f32 %v2169, %v2237
      %v2306 = vadd.f32 %v2170, %v2238
      %v2307 = vadd.f32 %v2171, %v2239
      %v2308 = vadd.f32 %v2172, %v2240
      %v2309 = vadd.f32 %v2173, %v2241
      %v2310 = vadd.f32 %v2174, %v2242
      %v2311 = vadd.f32 %v2175, %v2243
      %v2312 = vadd.f32 %v2176, %v2244
      %v2313 = vadd.f32 %v2177, %v2245
      %v2314 = vadd.f32 %v2178, %v2246
      %v2315 = vadd.f32 %v2179, %v2247
      %v2316 = vadd.f32 %v2180, %v2248
      %v2317 = vadd.f32 %v2181, %v2249
      %v2318 = vadd.f32 %v2182, %v2250
      %v2319 = vadd.f32 %v2183, %v2251
      %v2320 = vadd.f32 %v2184, %v2252
      %v2321 = vadd.f32 %v2185, %v2253
      %v2322 = vadd.f32 %v2186, %v2254
      %v2323 = vadd.f32 %v2187, %v2255
      %v2324 = vadd.f32 %v2188, %v2256
      %v2325 = vadd.f32 %v2189, %v2257
      %v2326 = vadd.f32 %v2190, %v2258
      %v2327 = vadd.f32 %v2191, %v2259
      %v2328 = vadd.f32 %v2192, %v2260
      %v2329 = vadd.f32 %v2193, %v2261
      %v2330 = vadd.f32 %v2194, %v2262
      %v2331 = vadd.f32 %v2195, %v2263
      %v2332 = vadd.f32 %v2196, %v2264
      %v2333 = vadd.f32 %v2197, %v2265
      %v2334 = vpack.c.bf16 %v2267, %v2266
      %v2335 = vpack.c.bf16 %v2269, %v2268
      %v2336 = vpack.c.bf16 %v2271, %v2270
      %v2337 = vpack.c.bf16 %v2273, %v2272
      %v2338 = vpack.c.bf16 %v2275, %v2274
      %v2339 = vpack.c.bf16 %v2277, %v2276
      %v2340 = vpack.c.bf16 %v2279, %v2278
      %v2341 = vpack.c.bf16 %v2281, %v2280
      %v2342 = vpack.c.bf16 %v2283, %v2282
      %v2343 = vpack.c.bf16 %v2285, %v2284
      %v2344 = vpack.c.bf16 %v2287, %v2286
      %v2345 = vpack.c.bf16 %v2289, %v2288
      %v2346 = vpack.c.bf16 %v2291, %v2290
      %v2347 = vpack.c.bf16 %v2293, %v2292
      %v2348 = vpack.c.bf16 %v2295, %v2294
      %v2349 = vpack.c.bf16 %v2297, %v2296
      %v2350 = vpack.c.bf16 %v2299, %v2298
      %v2351 = vpack.c.bf16 %v2301, %v2300
      %v2352 = vpack.c.bf16 %v2303, %v2302
      %v2353 = vpack.c.bf16 %v2305, %v2304
      %v2354 = vpack.c.bf16 %v2307, %v2306
      %v2355 = vpack.c.bf16 %v2309, %v2308
      %v2356 = vpack.c.bf16 %v2311, %v2310
      %v2357 = vpack.c.bf16 %v2313, %v2312
      %v2358 = vpack.c.bf16 %v2315, %v2314
      %v2359 = vpack.c.bf16 %v2317, %v2316
      %v2360 = vpack.c.bf16 %v2319, %v2318
      %v2361 = vpack.c.bf16 %v2321, %v2320
      %v2362 = vpack.c.bf16 %v2323, %v2322
      %v2363 = vpack.c.bf16 %v2325, %v2324
      %v2364 = vpack.c.bf16 %v2327, %v2326
      %v2365 = vpack.c.bf16 %v2329, %v2328
      %v2366 = vpack.c.bf16 %v2331, %v2330
      %v2367 = vpack.c.bf16 %v2333, %v2332
      %v2368 = vld [vmem:[%s4] sm:$0xff]
      %v2369 = vld [vmem:[%s4 + $0x8] sm:$0xff]
      %v2370 = vld [vmem:[%s4 + $0x10] sm:$0xf]
      %v2371 = vld [vmem:[%s4 + $0x14] sm:$0xff]
      %v2372 = vld [vmem:[%s4 + $0x1c] sm:$0xff]
      %v2373 = vld [vmem:[%s4 + $0x24] sm:$0xf]
      %v2374 = vld [vmem:[%s4 + $0x28] sm:$0xff]
      %v2375 = vld [vmem:[%s4 + $0x30] sm:$0xff]
      %v2376 = vld [vmem:[%s4 + $0x38] sm:$0xf]
      %v2377 = vld [vmem:[%s4 + $0x3c] sm:$0xff]
      %v2378 = vld [vmem:[%s4 + $0x44] sm:$0xff]
      %v2379 = vld [vmem:[%s4 + $0x4c] sm:$0xf]
      %v2380 = vld [vmem:[%s4 + $0x50] sm:$0xff]
      %v2381 = vld [vmem:[%s4 + $0x58] sm:$0xff]
      %v2382 = vld [vmem:[%s4 + $0x60] sm:$0xf]
      %v2383 = vld [vmem:[%s4 + $0x64] sm:$0xff]
      %v2384 = vld [vmem:[%s4 + $0x6c] sm:$0xff]
      %v2385 = vld [vmem:[%s4 + $0x74] sm:$0xf]
      %v2386 = vld [vmem:[%s4 + $0x78] sm:$0xff]
      %v2387 = vld [vmem:[%s4 + $0x80] sm:$0xff]
      %v2388 = vld [vmem:[%s4 + $0x88] sm:$0xf]
      %v2389 = vld [vmem:[%s4 + $0x8c] sm:$0xff]
      %v2390 = vld [vmem:[%s4 + $0x94] sm:$0xff]
      %v2391 = vld [vmem:[%s4 + $0x9c] sm:$0xf]
      %v2392 = vld [vmem:[%s4 + $0xa0] sm:$0xff]
      %v2393 = vld [vmem:[%s4 + $0xa8] sm:$0xff]
      %v2394 = vld [vmem:[%s4 + $0xb0] sm:$0xf]
      %v2395 = vld [vmem:[%s4 + $0xb4] sm:$0xff]
      %v2396 = vld [vmem:[%s4 + $0xbc] sm:$0xff]
      %v2397 = vld [vmem:[%s4 + $0xc4] sm:$0xf]
      %v2398 = vld [vmem:[%s4 + $0xc8] sm:$0xff]
      %v2399 = vld [vmem:[%s4 + $0xd0] sm:$0xff]
      %v2400 = vld [vmem:[%s4 + $0xd8] sm:$0xf]
      %v2401 = vld [vmem:[%s4 + $0xdc] sm:$0xff]
      %v2402 = vld [vmem:[%s4 + $0xe4] sm:$0xff]
      %v2403 = vld [vmem:[%s4 + $0xec] sm:$0xf]
      %v2404 = vld [vmem:[%s4 + $0xf0] sm:$0xff]
      %v2405 = vld [vmem:[%s4 + $0xf8] sm:$0xff]
      %v2406 = vld [vmem:[%s4 + $0x100] sm:$0xf]
      %v2407 = vld [vmem:[%s4 + $0x104] sm:$0xff]
      %v2408 = vld [vmem:[%s4 + $0x10c] sm:$0xff]
      %v2409 = vld [vmem:[%s4 + $0x114] sm:$0xf]
      %v2410 = vld [vmem:[%s4 + $0x118] sm:$0xff]
      %v2411 = vld [vmem:[%s4 + $0x120] sm:$0xff]
      %v2412 = vld [vmem:[%s4 + $0x128] sm:$0xf]
      %v2413 = vld [vmem:[%s4 + $0x12c] sm:$0xff]
      %v2414 = vld [vmem:[%s4 + $0x134] sm:$0xff]
      %v2415 = vld [vmem:[%s4 + $0x13c] sm:$0xf]
      %v2416 = vld [vmem:[%s4 + $0x140] sm:$0xff]
      %v2417 = vld [vmem:[%s4 + $0x148] sm:$0xff]
      %v2418 = vld [vmem:[%s4 + $0x150] sm:$0xf]
      %v2419 = vld [vmem:[%s4 + $0x154] sm:$0xff]
      %v2420 = vld [vmem:[%s4 + $0x15c] sm:$0xff]
      %v2421 = vld [vmem:[%s4 + $0x164] sm:$0xf]
      %v2422 = vld [vmem:[%s4 + $0x168] sm:$0xff]
      %v2423 = vld [vmem:[%s4 + $0x170] sm:$0xff]
      %v2424 = vld [vmem:[%s4 + $0x178] sm:$0xf]
      %v2425 = vld [vmem:[%s4 + $0x17c] sm:$0xff]
      %v2426 = vld [vmem:[%s4 + $0x184] sm:$0xff]
      %v2427 = vld [vmem:[%s4 + $0x18c] sm:$0xf]
      %v2428 = vld [vmem:[%s4 + $0x190] sm:$0xff]
      %v2429 = vld [vmem:[%s4 + $0x198] sm:$0xff]
      %v2430 = vld [vmem:[%s4 + $0x1a0] sm:$0xf]
      %v2431 = vld [vmem:[%s4 + $0x1a4] sm:$0xff]
      %v2432 = vld [vmem:[%s4 + $0x1ac] sm:$0xff]
      %v2433 = vld [vmem:[%s4 + $0x1b4] sm:$0xf]
      %v2434 = vld [vmem:[%s4 + $0x1b8] sm:$0xff]
      %v2435 = vld [vmem:[%s4 + $0x1c0] sm:$0xff]
      %v2436 = vld [vmem:[%s4 + $0x1c8] sm:$0xf]
      %v2437 = vld [vmem:[%s4 + $0x1cc] sm:$0xff]
      %v2438 = vld [vmem:[%s4 + $0x1d4] sm:$0xff]
      %v2439 = vld [vmem:[%s4 + $0x1dc] sm:$0xf]
      %v2440 = vld [vmem:[%s4 + $0x1e0] sm:$0xff]
      %v2441 = vld [vmem:[%s4 + $0x1e8] sm:$0xff]
      %v2442 = vld [vmem:[%s4 + $0x1f0] sm:$0xf]
      %v2443 = vld [vmem:[%s4 + $0x1f4] sm:$0xff]
      %v2444 = vld [vmem:[%s4 + $0x1fc] sm:$0xff]
      %v2445 = vld [vmem:[%s4 + $0x204] sm:$0xf]
      %v2446 = vld [vmem:[%s4 + $0x208] sm:$0xff]
      %v2447 = vld [vmem:[%s4 + $0x210] sm:$0xff]
      %v2448 = vld [vmem:[%s4 + $0x218] sm:$0xf]
      %v2449 = vld [vmem:[%s4 + $0x21c] sm:$0xff]
      %v2450 = vld [vmem:[%s4 + $0x224] sm:$0xff]
      %v2451 = vld [vmem:[%s4 + $0x22c] sm:$0xf]
      %v2452 = vld [vmem:[%s4 + $0x230] sm:$0xff]
      %v2453 = vld [vmem:[%s4 + $0x238] sm:$0xff]
      %v2454 = vld [vmem:[%s4 + $0x240] sm:$0xf]
      %v2455 = vld [vmem:[%s4 + $0x244] sm:$0xff]
      %v2456 = vld [vmem:[%s4 + $0x24c] sm:$0xff]
      %v2457 = vld [vmem:[%s4 + $0x254] sm:$0xf]
      %v2458 = vld [vmem:[%s4 + $0x258] sm:$0xff]
      %v2459 = vld [vmem:[%s4 + $0x260] sm:$0xff]
      %v2460 = vld [vmem:[%s4 + $0x268] sm:$0xf]
      %v2461 = vld [vmem:[%s4 + $0x26c] sm:$0xff]
      %v2462 = vld [vmem:[%s4 + $0x274] sm:$0xff]
      %v2463 = vld [vmem:[%s4 + $0x27c] sm:$0xf]
      %v2464 = vld [vmem:[%s4 + $0x280] sm:$0xff]
      %v2465 = vld [vmem:[%s4 + $0x288] sm:$0xff]
      %v2466 = vld [vmem:[%s4 + $0x290] sm:$0xf]
      %v2467 = vld [vmem:[%s4 + $0x294] sm:$0xff]
      %v2468 = vld [vmem:[%s4 + $0x29c] sm:$0xff]
      %v2469 = vld [vmem:[%s4 + $0x2a4] sm:$0xf]
      %v2470 = vld [vmem:[%s4 + $0x2a8] sm:$0xff]
      %v2471 = vld [vmem:[%s4 + $0x2b0] sm:$0xff]
      %v2472 = vld [vmem:[%s4 + $0x2b8] sm:$0xf]
      %v2473 = vld [vmem:[%s4 + $0x2bc] sm:$0xff]
      %v2474 = vld [vmem:[%s4 + $0x2c4] sm:$0xff]
      %v2475 = vld [vmem:[%s4 + $0x2cc] sm:$0xf]
      %v2476 = vld [vmem:[%s4 + $0x2d0] sm:$0xff]
      %v2477 = vld [vmem:[%s4 + $0x2d8] sm:$0xff]
      %v2478 = vld [vmem:[%s4 + $0x2e0] sm:$0xf]
      %v2479 = vld [vmem:[%s4 + $0x2e4] sm:$0xff]
      %v2480 = vld [vmem:[%s4 + $0x2ec] sm:$0xff]
      %v2481 = vld [vmem:[%s4 + $0x2f4] sm:$0xf]
      %v2482 = vld [vmem:[%s4 + $0x2f8] sm:$0xff]
      %v2483 = vld [vmem:[%s4 + $0x300] sm:$0xff]
      %v2484 = vld [vmem:[%s4 + $0x308] sm:$0xf]
      %v2485 = vld [vmem:[%s4 + $0x30c] sm:$0xff]
      %v2486 = vld [vmem:[%s4 + $0x314] sm:$0xff]
      %v2487 = vld [vmem:[%s4 + $0x31c] sm:$0xf]
      %v2488 = vld [vmem:[%s4 + $0x320] sm:$0xff]
      %v2489 = vld [vmem:[%s4 + $0x328] sm:$0xff]
      %v2490 = vld [vmem:[%s4 + $0x330] sm:$0xf]
      %v2491 = vld [vmem:[%s4 + $0x334] sm:$0xff]
      %v2492 = vld [vmem:[%s4 + $0x33c] sm:$0xff]
      %v2493 = vld [vmem:[%s4 + $0x344] sm:$0xf]
      %v2494 = vld [vmem:[%s4 + $0x348] sm:$0xff]
      %v2495 = vld [vmem:[%s4 + $0x350] sm:$0xff]
      %v2496 = vld [vmem:[%s4 + $0x358] sm:$0xf]
      %v2497 = vld [vmem:[%s4 + $0x35c] sm:$0xff]
      %v2498 = vld [vmem:[%s4 + $0x364] sm:$0xff]
      %v2499 = vld [vmem:[%s4 + $0x36c] sm:$0xf]
      %v2500 = vld [vmem:[%s4 + $0x370] sm:$0xff]
      %v2501 = vld [vmem:[%s4 + $0x378] sm:$0xff]
      %v2502 = vld [vmem:[%s4 + $0x380] sm:$0xf]
      %v2503 = vld [vmem:[%s4 + $0x384] sm:$0xff]
      %v2504 = vld [vmem:[%s4 + $0x38c] sm:$0xff]
      %v2505 = vld [vmem:[%s4 + $0x394] sm:$0xf]
      %v2506 = vld [vmem:[%s4 + $0x398] sm:$0xff]
      %v2507 = vld [vmem:[%s4 + $0x3a0] sm:$0xff]
      %v2508 = vld [vmem:[%s4 + $0x3a8] sm:$0xf]
      %v2509 = vld [vmem:[%s4 + $0x3ac] sm:$0xff]
      %v2510 = vld [vmem:[%s4 + $0x3b4] sm:$0xff]
      %v2511 = vld [vmem:[%s4 + $0x3bc] sm:$0xf]
      %v2512 = vld [vmem:[%s4 + $0x3c0] sm:$0xff]
      %v2513 = vld [vmem:[%s4 + $0x3c8] sm:$0xff]
      %v2514 = vld [vmem:[%s4 + $0x3d0] sm:$0xf]
      %v2515 = vld [vmem:[%s4 + $0x3d4] sm:$0xff]
      %v2516 = vld [vmem:[%s4 + $0x3dc] sm:$0xff]
      %v2517 = vld [vmem:[%s4 + $0x3e4] sm:$0xf]
      %v2518 = vld [vmem:[%s4 + $0x3e8] sm:$0xff]
      %v2519 = vld [vmem:[%s4 + $0x3f0] sm:$0xff]
      %v2520 = vld [vmem:[%s4 + $0x3f8] sm:$0xf]
      %v2521 = vld [vmem:[%s4 + $0x3fc] sm:$0xff]
      %v2522 = vld [vmem:[%s4 + $0x404] sm:$0xff]
      %v2523 = vld [vmem:[%s4 + $0x40c] sm:$0xf]
      %v2524 = vld [vmem:[%s4 + $0x410] sm:$0xff]
      %v2525 = vld [vmem:[%s4 + $0x418] sm:$0xff]
      %v2526 = vld [vmem:[%s4 + $0x420] sm:$0xf]
      %v2527 = vld [vmem:[%s4 + $0x424] sm:$0xff]
      %v2528 = vld [vmem:[%s4 + $0x42c] sm:$0xff]
      %v2529 = vld [vmem:[%s4 + $0x434] sm:$0xf]
      %v2530 = vld [vmem:[%s4 + $0x438] sm:$0xff]
      %v2531 = vld [vmem:[%s4 + $0x440] sm:$0xff]
      %v2532 = vld [vmem:[%s4 + $0x448] sm:$0xf]
      %v2533 = vld [vmem:[%s4 + $0x44c] sm:$0xff]
      %v2534 = vld [vmem:[%s4 + $0x454] sm:$0xff]
      %v2535 = vld [vmem:[%s4 + $0x45c] sm:$0xf]
      %v2536 = vld [vmem:[%s4 + $0x460] sm:$0xff]
      %v2537 = vld [vmem:[%s4 + $0x468] sm:$0xff]
      %v2538 = vld [vmem:[%s4 + $0x470] sm:$0xf]
      %v2539 = vld [vmem:[%s4 + $0x474] sm:$0xff]
      %v2540 = vld [vmem:[%s4 + $0x47c] sm:$0xff]
      %v2541 = vld [vmem:[%s4 + $0x484] sm:$0xf]
      %v2542 = vld [vmem:[%s4 + $0x488] sm:$0xff]
      %v2543 = vld [vmem:[%s4 + $0x490] sm:$0xff]
      %v2544 = vld [vmem:[%s4 + $0x498] sm:$0xf]
      %v2545 = vld [vmem:[%s4 + $0x49c] sm:$0xff]
      %v2546 = vld [vmem:[%s4 + $0x4a4] sm:$0xff]
      %v2547 = vld [vmem:[%s4 + $0x4ac] sm:$0xf]
      %v2548 = vld [vmem:[%s4 + $0x4b0] sm:$0xff]
      %v2549 = vld [vmem:[%s4 + $0x4b8] sm:$0xff]
      %v2550 = vld [vmem:[%s4 + $0x4c0] sm:$0xf]
      %v2551 = vld [vmem:[%s4 + $0x4c4] sm:$0xff]
      %v2552 = vld [vmem:[%s4 + $0x4cc] sm:$0xff]
      %v2553 = vld [vmem:[%s4 + $0x4d4] sm:$0xf]
      %v2554 = vld [vmem:[%s4 + $0x4d8] sm:$0xff]
      %v2555 = vld [vmem:[%s4 + $0x4e0] sm:$0xff]
      %v2556 = vld [vmem:[%s4 + $0x4e8] sm:$0xf]
      %v2557 = vld [vmem:[%s4 + $0x4ec] sm:$0xff]
      %v2558 = vld [vmem:[%s4 + $0x4f4] sm:$0xff]
      %v2559 = vld [vmem:[%s4 + $0x4fc] sm:$0xf]
      %v2752 = vunpack.c.l.b16 %v2368
      %v2753 = vunpack.c.h.b16 %v2368
      %v2754 = vunpack.c.l.b16 %v2369
      %v2755 = vunpack.c.h.b16 %v2369
      %v2756 = vunpack.c.l.b16 %v2370
      %v2757 = vunpack.c.l.b16 %v2371
      %v2758 = vunpack.c.h.b16 %v2371
      %v2759 = vunpack.c.l.b16 %v2372
      %v2760 = vunpack.c.h.b16 %v2372
      %v2761 = vunpack.c.l.b16 %v2373
      %v2762 = vunpack.c.l.b16 %v2374
      %v2763 = vunpack.c.h.b16 %v2374
      %v2764 = vunpack.c.l.b16 %v2375
      %v2765 = vunpack.c.h.b16 %v2375
      %v2766 = vunpack.c.l.b16 %v2376
      %v2767 = vunpack.c.l.b16 %v2377
      %v2768 = vunpack.c.h.b16 %v2377
      %v2769 = vunpack.c.l.b16 %v2378
      %v2770 = vunpack.c.h.b16 %v2378
      %v2771 = vunpack.c.l.b16 %v2379
      %v2772 = vunpack.c.l.b16 %v2380
      %v2773 = vunpack.c.h.b16 %v2380
      %v2774 = vunpack.c.l.b16 %v2381
      %v2775 = vunpack.c.h.b16 %v2381
      %v2776 = vunpack.c.l.b16 %v2382
      %v2777 = vunpack.c.l.b16 %v2383
      %v2778 = vunpack.c.h.b16 %v2383
      %v2779 = vunpack.c.l.b16 %v2384
      %v2780 = vunpack.c.h.b16 %v2384
      %v2781 = vunpack.c.l.b16 %v2385
      %v2782 = vunpack.c.l.b16 %v2386
      %v2783 = vunpack.c.h.b16 %v2386
      %v2784 = vunpack.c.l.b16 %v2387
      %v2785 = vunpack.c.h.b16 %v2387
      %v2786 = vunpack.c.l.b16 %v2388
      %v2787 = vunpack.c.l.b16 %v2389
      %v2788 = vunpack.c.h.b16 %v2389
      %v2789 = vunpack.c.l.b16 %v2390
      %v2790 = vunpack.c.h.b16 %v2390
      %v2791 = vunpack.c.l.b16 %v2391
      %v2792 = vunpack.c.l.b16 %v2392
      %v2793 = vunpack.c.h.b16 %v2392
      %v2794 = vunpack.c.l.b16 %v2393
      %v2795 = vunpack.c.h.b16 %v2393
      %v2796 = vunpack.c.l.b16 %v2394
      %v2797 = vunpack.c.l.b16 %v2395
      %v2798 = vunpack.c.h.b16 %v2395
      %v2799 = vunpack.c.l.b16 %v2396
      %v2800 = vunpack.c.h.b16 %v2396
      %v2801 = vunpack.c.l.b16 %v2397
      %v2802 = vunpack.c.l.b16 %v2398
      %v2803 = vunpack.c.h.b16 %v2398
      %v2804 = vunpack.c.l.b16 %v2399
      %v2805 = vunpack.c.h.b16 %v2399
      %v2806 = vunpack.c.l.b16 %v2400
      %v2807 = vunpack.c.l.b16 %v2401
      %v2808 = vunpack.c.h.b16 %v2401
      %v2809 = vunpack.c.l.b16 %v2402
      %v2810 = vunpack.c.h.b16 %v2402
      %v2811 = vunpack.c.l.b16 %v2403
      %v2812 = vunpack.c.l.b16 %v2404
      %v2813 = vunpack.c.h.b16 %v2404
      %v2814 = vunpack.c.l.b16 %v2405
      %v2815 = vunpack.c.h.b16 %v2405
      %v2816 = vunpack.c.l.b16 %v2406
      %v2817 = vunpack.c.l.b16 %v2407
      %v2818 = vunpack.c.h.b16 %v2407
      %v2819 = vunpack.c.l.b16 %v2408
      %v2820 = vunpack.c.h.b16 %v2408
      %v2821 = vunpack.c.l.b16 %v2409
      %v2822 = vunpack.c.l.b16 %v2410
      %v2823 = vunpack.c.h.b16 %v2410
      %v2824 = vunpack.c.l.b16 %v2411
      %v2825 = vunpack.c.h.b16 %v2411
      %v2826 = vunpack.c.l.b16 %v2412
      %v2827 = vunpack.c.l.b16 %v2413
      %v2828 = vunpack.c.h.b16 %v2413
      %v2829 = vunpack.c.l.b16 %v2414
      %v2830 = vunpack.c.h.b16 %v2414
      %v2831 = vunpack.c.l.b16 %v2415
      %v2832 = vunpack.c.l.b16 %v2416
      %v2833 = vunpack.c.h.b16 %v2416
      %v2834 = vunpack.c.l.b16 %v2417
      %v2835 = vunpack.c.h.b16 %v2417
      %v2836 = vunpack.c.l.b16 %v2418
      %v2837 = vunpack.c.l.b16 %v2419
      %v2838 = vunpack.c.h.b16 %v2419
      %v2839 = vunpack.c.l.b16 %v2420
      %v2840 = vunpack.c.h.b16 %v2420
      %v2841 = vunpack.c.l.b16 %v2421
      %v2842 = vunpack.c.l.b16 %v2422
      %v2843 = vunpack.c.h.b16 %v2422
      %v2844 = vunpack.c.l.b16 %v2423
      %v2845 = vunpack.c.h.b16 %v2423
      %v2846 = vunpack.c.l.b16 %v2424
      %v2847 = vunpack.c.l.b16 %v2425
      %v2848 = vunpack.c.h.b16 %v2425
      %v2849 = vunpack.c.l.b16 %v2426
      %v2850 = vunpack.c.h.b16 %v2426
      %v2851 = vunpack.c.l.b16 %v2427
      %v2852 = vunpack.c.l.b16 %v2428
      %v2853 = vunpack.c.h.b16 %v2428
      %v2854 = vunpack.c.l.b16 %v2429
      %v2855 = vunpack.c.h.b16 %v2429
      %v2856 = vunpack.c.l.b16 %v2430
      %v2857 = vunpack.c.l.b16 %v2431
      %v2858 = vunpack.c.h.b16 %v2431
      %v2859 = vunpack.c.l.b16 %v2432
      %v2860 = vunpack.c.h.b16 %v2432
      %v2861 = vunpack.c.l.b16 %v2433
      %v2862 = vunpack.c.l.b16 %v2434
      %v2863 = vunpack.c.h.b16 %v2434
      %v2864 = vunpack.c.l.b16 %v2435
      %v2865 = vunpack.c.h.b16 %v2435
      %v2866 = vunpack.c.l.b16 %v2436
      %v2867 = vunpack.c.l.b16 %v2437
      %v2868 = vunpack.c.h.b16 %v2437
      %v2869 = vunpack.c.l.b16 %v2438
      %v2870 = vunpack.c.h.b16 %v2438
      %v2871 = vunpack.c.l.b16 %v2439
      %v2872 = vunpack.c.l.b16 %v2440
      %v2873 = vunpack.c.h.b16 %v2440
      %v2874 = vunpack.c.l.b16 %v2441
      %v2875 = vunpack.c.h.b16 %v2441
      %v2876 = vunpack.c.l.b16 %v2442
      %v2877 = vunpack.c.l.b16 %v2443
      %v2878 = vunpack.c.h.b16 %v2443
      %v2879 = vunpack.c.l.b16 %v2444
      %v2880 = vunpack.c.h.b16 %v2444
      %v2881 = vunpack.c.l.b16 %v2445
      %v2882 = vunpack.c.l.b16 %v2446
      %v2883 = vunpack.c.h.b16 %v2446
      %v2884 = vunpack.c.l.b16 %v2447
      %v2885 = vunpack.c.h.b16 %v2447
      %v2886 = vunpack.c.l.b16 %v2448
      %v2887 = vunpack.c.l.b16 %v2449
      %v2888 = vunpack.c.h.b16 %v2449
      %v2889 = vunpack.c.l.b16 %v2450
      %v2890 = vunpack.c.h.b16 %v2450
      %v2891 = vunpack.c.l.b16 %v2451
      %v2892 = vunpack.c.l.b16 %v2452
      %v2893 = vunpack.c.h.b16 %v2452
      %v2894 = vunpack.c.l.b16 %v2453
      %v2895 = vunpack.c.h.b16 %v2453
      %v2896 = vunpack.c.l.b16 %v2454
      %v2897 = vunpack.c.l.b16 %v2455
      %v2898 = vunpack.c.h.b16 %v2455
      %v2899 = vunpack.c.l.b16 %v2456
      %v2900 = vunpack.c.h.b16 %v2456
      %v2901 = vunpack.c.l.b16 %v2457
      %v2902 = vunpack.c.l.b16 %v2458
      %v2903 = vunpack.c.h.b16 %v2458
      %v2904 = vunpack.c.l.b16 %v2459
      %v2905 = vunpack.c.h.b16 %v2459
      %v2906 = vunpack.c.l.b16 %v2460
      %v2907 = vunpack.c.l.b16 %v2461
      %v2908 = vunpack.c.h.b16 %v2461
      %v2909 = vunpack.c.l.b16 %v2462
      %v2910 = vunpack.c.h.b16 %v2462
      %v2911 = vunpack.c.l.b16 %v2463
      %v2912 = vunpack.c.l.b16 %v2464
      %v2913 = vunpack.c.h.b16 %v2464
      %v2914 = vunpack.c.l.b16 %v2465
      %v2915 = vunpack.c.h.b16 %v2465
      %v2916 = vunpack.c.l.b16 %v2466
      %v2917 = vunpack.c.l.b16 %v2467
      %v2918 = vunpack.c.h.b16 %v2467
      %v2919 = vunpack.c.l.b16 %v2468
      %v2920 = vunpack.c.h.b16 %v2468
      %v2921 = vunpack.c.l.b16 %v2469
      %v2922 = vunpack.c.l.b16 %v2470
      %v2923 = vunpack.c.h.b16 %v2470
      %v2924 = vunpack.c.l.b16 %v2471
      %v2925 = vunpack.c.h.b16 %v2471
      %v2926 = vunpack.c.l.b16 %v2472
      %v2927 = vunpack.c.l.b16 %v2473
      %v2928 = vunpack.c.h.b16 %v2473
      %v2929 = vunpack.c.l.b16 %v2474
      %v2930 = vunpack.c.h.b16 %v2474
      %v2931 = vunpack.c.l.b16 %v2475
      %v2932 = vunpack.c.l.b16 %v2476
      %v2933 = vunpack.c.h.b16 %v2476
      %v2934 = vunpack.c.l.b16 %v2477
      %v2935 = vunpack.c.h.b16 %v2477
      %v2936 = vunpack.c.l.b16 %v2478
      %v2937 = vunpack.c.l.b16 %v2479
      %v2938 = vunpack.c.h.b16 %v2479
      %v2939 = vunpack.c.l.b16 %v2480
      %v2940 = vunpack.c.h.b16 %v2480
      %v2941 = vunpack.c.l.b16 %v2481
      %v2942 = vunpack.c.l.b16 %v2482
      %v2943 = vunpack.c.h.b16 %v2482
      %v2944 = vunpack.c.l.b16 %v2483
      %v2945 = vunpack.c.h.b16 %v2483
      %v2946 = vunpack.c.l.b16 %v2484
      %v2947 = vunpack.c.l.b16 %v2485
      %v2948 = vunpack.c.h.b16 %v2485
      %v2949 = vunpack.c.l.b16 %v2486
      %v2950 = vunpack.c.h.b16 %v2486
      %v2951 = vunpack.c.l.b16 %v2487
      %v2952 = vunpack.c.l.b16 %v2488
      %v2953 = vunpack.c.h.b16 %v2488
      %v2954 = vunpack.c.l.b16 %v2489
      %v2955 = vunpack.c.h.b16 %v2489
      %v2956 = vunpack.c.l.b16 %v2490
      %v2957 = vunpack.c.l.b16 %v2491
      %v2958 = vunpack.c.h.b16 %v2491
      %v2959 = vunpack.c.l.b16 %v2492
      %v2960 = vunpack.c.h.b16 %v2492
      %v2961 = vunpack.c.l.b16 %v2493
      %v2962 = vunpack.c.l.b16 %v2494
      %v2963 = vunpack.c.h.b16 %v2494
      %v2964 = vunpack.c.l.b16 %v2495
      %v2965 = vunpack.c.h.b16 %v2495
      %v2966 = vunpack.c.l.b16 %v2496
      %v2967 = vunpack.c.l.b16 %v2497
      %v2968 = vunpack.c.h.b16 %v2497
      %v2969 = vunpack.c.l.b16 %v2498
      %v2970 = vunpack.c.h.b16 %v2498
      %v2971 = vunpack.c.l.b16 %v2499
      %v2972 = vunpack.c.l.b16 %v2500
      %v2973 = vunpack.c.h.b16 %v2500
      %v2974 = vunpack.c.l.b16 %v2501
      %v2975 = vunpack.c.h.b16 %v2501
      %v2976 = vunpack.c.l.b16 %v2502
      %v2977 = vunpack.c.l.b16 %v2503
      %v2978 = vunpack.c.h.b16 %v2503
      %v2979 = vunpack.c.l.b16 %v2504
      %v2980 = vunpack.c.h.b16 %v2504
      %v2981 = vunpack.c.l.b16 %v2505
      %v2982 = vunpack.c.l.b16 %v2506
      %v2983 = vunpack.c.h.b16 %v2506
      %v2984 = vunpack.c.l.b16 %v2507
      %v2985 = vunpack.c.h.b16 %v2507
      %v2986 = vunpack.c.l.b16 %v2508
      %v2987 = vunpack.c.l.b16 %v2509
      %v2988 = vunpack.c.h.b16 %v2509
      %v2989 = vunpack.c.l.b16 %v2510
      %v2990 = vunpack.c.h.b16 %v2510
      %v2991 = vunpack.c.l.b16 %v2511
      %v2992 = vunpack.c.l.b16 %v2512
      %v2993 = vunpack.c.h.b16 %v2512
      %v2994 = vunpack.c.l.b16 %v2513
      %v2995 = vunpack.c.h.b16 %v2513
      %v2996 = vunpack.c.l.b16 %v2514
      %v2997 = vunpack.c.l.b16 %v2515
      %v2998 = vunpack.c.h.b16 %v2515
      %v2999 = vunpack.c.l.b16 %v2516
      %v3000 = vunpack.c.h.b16 %v2516
      %v3001 = vunpack.c.l.b16 %v2517
      %v3002 = vunpack.c.l.b16 %v2518
      %v3003 = vunpack.c.h.b16 %v2518
      %v3004 = vunpack.c.l.b16 %v2519
      %v3005 = vunpack.c.h.b16 %v2519
      %v3006 = vunpack.c.l.b16 %v2520
      %v3007 = vunpack.c.l.b16 %v2521
      %v3008 = vunpack.c.h.b16 %v2521
      %v3009 = vunpack.c.l.b16 %v2522
      %v3010 = vunpack.c.h.b16 %v2522
      %v3011 = vunpack.c.l.b16 %v2523
      %v3012 = vunpack.c.l.b16 %v2524
      %v3013 = vunpack.c.h.b16 %v2524
      %v3014 = vunpack.c.l.b16 %v2525
      %v3015 = vunpack.c.h.b16 %v2525
      %v3016 = vunpack.c.l.b16 %v2526
      %v3017 = vunpack.c.l.b16 %v2527
      %v3018 = vunpack.c.h.b16 %v2527
      %v3019 = vunpack.c.l.b16 %v2528
      %v3020 = vunpack.c.h.b16 %v2528
      %v3021 = vunpack.c.l.b16 %v2529
      %v3022 = vunpack.c.l.b16 %v2530
      %v3023 = vunpack.c.h.b16 %v2530
      %v3024 = vunpack.c.l.b16 %v2531
      %v3025 = vunpack.c.h.b16 %v2531
      %v3026 = vunpack.c.l.b16 %v2532
      %v3027 = vunpack.c.l.b16 %v2533
      %v3028 = vunpack.c.h.b16 %v2533
      %v3029 = vunpack.c.l.b16 %v2534
      %v3030 = vunpack.c.h.b16 %v2534
      %v3031 = vunpack.c.l.b16 %v2535
      %v3032 = vunpack.c.l.b16 %v2536
      %v3033 = vunpack.c.h.b16 %v2536
      %v3034 = vunpack.c.l.b16 %v2537
      %v3035 = vunpack.c.h.b16 %v2537
      %v3036 = vunpack.c.l.b16 %v2538
      %v3037 = vunpack.c.l.b16 %v2539
      %v3038 = vunpack.c.h.b16 %v2539
      %v3039 = vunpack.c.l.b16 %v2540
      %v3040 = vunpack.c.h.b16 %v2540
      %v3041 = vunpack.c.l.b16 %v2541
      %v3042 = vunpack.c.l.b16 %v2542
      %v3043 = vunpack.c.h.b16 %v2542
      %v3044 = vunpack.c.l.b16 %v2543
      %v3045 = vunpack.c.h.b16 %v2543
      %v3046 = vunpack.c.l.b16 %v2544
      %v3047 = vunpack.c.l.b16 %v2545
      %v3048 = vunpack.c.h.b16 %v2545
      %v3049 = vunpack.c.l.b16 %v2546
      %v3050 = vunpack.c.h.b16 %v2546
      %v3051 = vunpack.c.l.b16 %v2547
      %v3052 = vunpack.c.l.b16 %v2548
      %v3053 = vunpack.c.h.b16 %v2548
      %v3054 = vunpack.c.l.b16 %v2549
      %v3055 = vunpack.c.h.b16 %v2549
      %v3056 = vunpack.c.l.b16 %v2550
      %v3057 = vunpack.c.l.b16 %v2551
      %v3058 = vunpack.c.h.b16 %v2551
      %v3059 = vunpack.c.l.b16 %v2552
      %v3060 = vunpack.c.h.b16 %v2552
      %v3061 = vunpack.c.l.b16 %v2553
      %v3062 = vunpack.c.l.b16 %v2554
      %v3063 = vunpack.c.h.b16 %v2554
      %v3064 = vunpack.c.l.b16 %v2555
      %v3065 = vunpack.c.h.b16 %v2555
      %v3066 = vunpack.c.l.b16 %v2556
      %v3067 = vunpack.c.l.b16 %v2557
      %v3068 = vunpack.c.h.b16 %v2557
      %v3069 = vunpack.c.l.b16 %v2558
      %v3070 = vunpack.c.h.b16 %v2558
      %v3071 = vunpack.c.l.b16 %v2559
      %v3072 = vpack.c.b16 %v2757, %v2752
      %v3073 = vpack.c.b16 %v2758, %v2753
      %v3074 = vpack.c.b16 %v2759, %v2754
      %v3075 = vpack.c.b16 %v2760, %v2755
      %v3076 = vpack.c.b16 %v2761, %v2756
      %v3077 = vpack.c.b16 %v2767, %v2762
      %v3078 = vpack.c.b16 %v2768, %v2763
      %v3079 = vpack.c.b16 %v2769, %v2764
      %v3080 = vpack.c.b16 %v2770, %v2765
      %v3081 = vpack.c.b16 %v2771, %v2766
      %v3082 = vpack.c.b16 %v2777, %v2772
      %v3083 = vpack.c.b16 %v2778, %v2773
      %v3084 = vpack.c.b16 %v2779, %v2774
      %v3085 = vpack.c.b16 %v2780, %v2775
      %v3086 = vpack.c.b16 %v2781, %v2776
      %v3087 = vpack.c.b16 %v2787, %v2782
      %v3088 = vpack.c.b16 %v2788, %v2783
      %v3089 = vpack.c.b16 %v2789, %v2784
      %v3090 = vpack.c.b16 %v2790, %v2785
      %v3091 = vpack.c.b16 %v2791, %v2786
      %v3092 = vpack.c.b16 %v2797, %v2792
      %v3093 = vpack.c.b16 %v2798, %v2793
      %v3094 = vpack.c.b16 %v2799, %v2794
      %v3095 = vpack.c.b16 %v2800, %v2795
      %v3096 = vpack.c.b16 %v2801, %v2796
      %v3097 = vpack.c.b16 %v2807, %v2802
      %v3098 = vpack.c.b16 %v2808, %v2803
      %v3099 = vpack.c.b16 %v2809, %v2804
      %v3100 = vpack.c.b16 %v2810, %v2805
      %v3101 = vpack.c.b16 %v2811, %v2806
      %v3102 = vpack.c.b16 %v2817, %v2812
      %v3103 = vpack.c.b16 %v2818, %v2813
      %v3104 = vpack.c.b16 %v2819, %v2814
      %v3105 = vpack.c.b16 %v2820, %v2815
      %v3106 = vpack.c.b16 %v2821, %v2816
      %v3107 = vpack.c.b16 %v2827, %v2822
      %v3108 = vpack.c.b16 %v2828, %v2823
      %v3109 = vpack.c.b16 %v2829, %v2824
      %v3110 = vpack.c.b16 %v2830, %v2825
      %v3111 = vpack.c.b16 %v2831, %v2826
      %v3112 = vpack.c.b16 %v2837, %v2832
      %v3113 = vpack.c.b16 %v2838, %v2833
      %v3114 = vpack.c.b16 %v2839, %v2834
      %v3115 = vpack.c.b16 %v2840, %v2835
      %v3116 = vpack.c.b16 %v2841, %v2836
      %v3117 = vpack.c.b16 %v2847, %v2842
      %v3118 = vpack.c.b16 %v2848, %v2843
      %v3119 = vpack.c.b16 %v2849, %v2844
      %v3120 = vpack.c.b16 %v2850, %v2845
      %v3121 = vpack.c.b16 %v2851, %v2846
      %v3122 = vpack.c.b16 %v2857, %v2852
      %v3123 = vpack.c.b16 %v2858, %v2853
      %v3124 = vpack.c.b16 %v2859, %v2854
      %v3125 = vpack.c.b16 %v2860, %v2855
      %v3126 = vpack.c.b16 %v2861, %v2856
      %v3127 = vpack.c.b16 %v2867, %v2862
      %v3128 = vpack.c.b16 %v2868, %v2863
      %v3129 = vpack.c.b16 %v2869, %v2864
      %v3130 = vpack.c.b16 %v2870, %v2865
      %v3131 = vpack.c.b16 %v2871, %v2866
      %v3132 = vpack.c.b16 %v2877, %v2872
      %v3133 = vpack.c.b16 %v2878, %v2873
      %v3134 = vpack.c.b16 %v2879, %v2874
      %v3135 = vpack.c.b16 %v2880, %v2875
      %v3136 = vpack.c.b16 %v2881, %v2876
      %v3137 = vpack.c.b16 %v2887, %v2882
      %v3138 = vpack.c.b16 %v2888, %v2883
      %v3139 = vpack.c.b16 %v2889, %v2884
      %v3140 = vpack.c.b16 %v2890, %v2885
      %v3141 = vpack.c.b16 %v2891, %v2886
      %v3142 = vpack.c.b16 %v2897, %v2892
      %v3143 = vpack.c.b16 %v2898, %v2893
      %v3144 = vpack.c.b16 %v2899, %v2894
      %v3145 = vpack.c.b16 %v2900, %v2895
      %v3146 = vpack.c.b16 %v2901, %v2896
      %v3147 = vpack.c.b16 %v2907, %v2902
      %v3148 = vpack.c.b16 %v2908, %v2903
      %v3149 = vpack.c.b16 %v2909, %v2904
      %v3150 = vpack.c.b16 %v2910, %v2905
      %v3151 = vpack.c.b16 %v2911, %v2906
      %v3152 = vpack.c.b16 %v2917, %v2912
      %v3153 = vpack.c.b16 %v2918, %v2913
      %v3154 = vpack.c.b16 %v2919, %v2914
      %v3155 = vpack.c.b16 %v2920, %v2915
      %v3156 = vpack.c.b16 %v2921, %v2916
      %v3157 = vpack.c.b16 %v2927, %v2922
      %v3158 = vpack.c.b16 %v2928, %v2923
      %v3159 = vpack.c.b16 %v2929, %v2924
      %v3160 = vpack.c.b16 %v2930, %v2925
      %v3161 = vpack.c.b16 %v2931, %v2926
      %v3162 = vpack.c.b16 %v2937, %v2932
      %v3163 = vpack.c.b16 %v2938, %v2933
      %v3164 = vpack.c.b16 %v2939, %v2934
      %v3165 = vpack.c.b16 %v2940, %v2935
      %v3166 = vpack.c.b16 %v2941, %v2936
      %v3167 = vpack.c.b16 %v2947, %v2942
      %v3168 = vpack.c.b16 %v2948, %v2943
      %v3169 = vpack.c.b16 %v2949, %v2944
      %v3170 = vpack.c.b16 %v2950, %v2945
      %v3171 = vpack.c.b16 %v2951, %v2946
      %v3172 = vpack.c.b16 %v2957, %v2952
      %v3173 = vpack.c.b16 %v2958, %v2953
      %v3174 = vpack.c.b16 %v2959, %v2954
      %v3175 = vpack.c.b16 %v2960, %v2955
      %v3176 = vpack.c.b16 %v2961, %v2956
      %v3177 = vpack.c.b16 %v2967, %v2962
      %v3178 = vpack.c.b16 %v2968, %v2963
      %v3179 = vpack.c.b16 %v2969, %v2964
      %v3180 = vpack.c.b16 %v2970, %v2965
      %v3181 = vpack.c.b16 %v2971, %v2966
      %v3182 = vpack.c.b16 %v2977, %v2972
      %v3183 = vpack.c.b16 %v2978, %v2973
      %v3184 = vpack.c.b16 %v2979, %v2974
      %v3185 = vpack.c.b16 %v2980, %v2975
      %v3186 = vpack.c.b16 %v2981, %v2976
      %v3187 = vpack.c.b16 %v2987, %v2982
      %v3188 = vpack.c.b16 %v2988, %v2983
      %v3189 = vpack.c.b16 %v2989, %v2984
      %v3190 = vpack.c.b16 %v2990, %v2985
      %v3191 = vpack.c.b16 %v2991, %v2986
      %v3192 = vpack.c.b16 %v2997, %v2992
      %v3193 = vpack.c.b16 %v2998, %v2993
      %v3194 = vpack.c.b16 %v2999, %v2994
      %v3195 = vpack.c.b16 %v3000, %v2995
      %v3196 = vpack.c.b16 %v3001, %v2996
      %v3197 = vpack.c.b16 %v3007, %v3002
      %v3198 = vpack.c.b16 %v3008, %v3003
      %v3199 = vpack.c.b16 %v3009, %v3004
      %v3200 = vpack.c.b16 %v3010, %v3005
      %v3201 = vpack.c.b16 %v3011, %v3006
      %v3202 = vpack.c.b16 %v3017, %v3012
      %v3203 = vpack.c.b16 %v3018, %v3013
      %v3204 = vpack.c.b16 %v3019, %v3014
      %v3205 = vpack.c.b16 %v3020, %v3015
      %v3206 = vpack.c.b16 %v3021, %v3016
      %v3207 = vpack.c.b16 %v3027, %v3022
      %v3208 = vpack.c.b16 %v3028, %v3023
      %v3209 = vpack.c.b16 %v3029, %v3024
      %v3210 = vpack.c.b16 %v3030, %v3025
      %v3211 = vpack.c.b16 %v3031, %v3026
      %v3212 = vpack.c.b16 %v3037, %v3032
      %v3213 = vpack.c.b16 %v3038, %v3033
      %v3214 = vpack.c.b16 %v3039, %v3034
      %v3215 = vpack.c.b16 %v3040, %v3035
      %v3216 = vpack.c.b16 %v3041, %v3036
      %v3217 = vpack.c.b16 %v3047, %v3042
      %v3218 = vpack.c.b16 %v3048, %v3043
      %v3219 = vpack.c.b16 %v3049, %v3044
      %v3220 = vpack.c.b16 %v3050, %v3045
      %v3221 = vpack.c.b16 %v3051, %v3046
      %v3222 = vpack.c.b16 %v3057, %v3052
      %v3223 = vpack.c.b16 %v3058, %v3053
      %v3224 = vpack.c.b16 %v3059, %v3054
      %v3225 = vpack.c.b16 %v3060, %v3055
      %v3226 = vpack.c.b16 %v3061, %v3056
      %v3227 = vpack.c.b16 %v3067, %v3062
      %v3228 = vpack.c.b16 %v3068, %v3063
      %v3229 = vpack.c.b16 %v3069, %v3064
      %v3230 = vpack.c.b16 %v3070, %v3065
      %v3231 = vpack.c.b16 %v3071, %v3066
      %vm3360 = vcmask 261120
      %v3362 = vsel %vm3360, %v3076, 0
      %v3365 = vsel %vm3360, %v3081, 0
      %v3368 = vsel %vm3360, %v3086, 0
      %v3371 = vsel %vm3360, %v3091, 0
      %v3374 = vsel %vm3360, %v3096, 0
      %v3377 = vsel %vm3360, %v3101, 0
      %v3380 = vsel %vm3360, %v3106, 0
      %v3383 = vsel %vm3360, %v3111, 0
      %v3386 = vsel %vm3360, %v3116, 0
      %v3389 = vsel %vm3360, %v3121, 0
      %v3392 = vsel %vm3360, %v3126, 0
      %v3395 = vsel %vm3360, %v3131, 0
      %v3398 = vsel %vm3360, %v3136, 0
      %v3401 = vsel %vm3360, %v3141, 0
      %v3404 = vsel %vm3360, %v3146, 0
      %v3407 = vsel %vm3360, %v3151, 0
      %v3410 = vsel %vm3360, %v3156, 0
      %v3413 = vsel %vm3360, %v3161, 0
      %v3416 = vsel %vm3360, %v3166, 0
      %v3419 = vsel %vm3360, %v3171, 0
      %v3422 = vsel %vm3360, %v3176, 0
      %v3425 = vsel %vm3360, %v3181, 0
      %v3428 = vsel %vm3360, %v3186, 0
      %v3431 = vsel %vm3360, %v3191, 0
      %v3434 = vsel %vm3360, %v3196, 0
      %v3437 = vsel %vm3360, %v3201, 0
      %v3440 = vsel %vm3360, %v3206, 0
      %v3443 = vsel %vm3360, %v3211, 0
      %v3446 = vsel %vm3360, %v3216, 0
      %v3449 = vsel %vm3360, %v3221, 0
      %v3452 = vsel %vm3360, %v3226, 0
      %v3455 = vsel %vm3360, %v3231, 0
      %3457 = vmatprep.subr.bf16.mxu0 0
      %3458 = vmatpush1.bf16.msra.mxu0 %v2334
      %3459 = vmatprep.subr.bf16.mxu0 0
      %3460 = vmatpush1.bf16.msra.mxu0 %v2335
      %3461 = vmatprep.subr.bf16.mxu0 0
      %3462 = vmatpush1.bf16.msra.mxu0 %v2336
      %3463 = vmatprep.subr.bf16.mxu0 0
      %3464 = vmatpush1.bf16.msra.mxu0 %v2337
      %3465 = vmatprep.subr.bf16.mxu0 0
      %3466 = vmatpush1.bf16.msra.mxu0 %v2338
      %3467 = vmatprep.subr.bf16.mxu0 0
      %3468 = vmatpush1.bf16.msra.mxu0 %v2339
      %3469 = vmatprep.subr.bf16.mxu0 0
      %3470 = vmatpush1.bf16.msra.mxu0 %v2340
      %3471 = vmatprep.subr.bf16.mxu0 0
      %3472 = vmatpush1.bf16.msra.mxu0 %v2341
      %3473 = vmatprep.subr.bf16.mxu0 0
      %3474 = vmatpush1.bf16.msra.mxu0 %v2342
      %3475 = vmatprep.subr.bf16.mxu0 0
      %3476 = vmatpush1.bf16.msra.mxu0 %v2343
      %3477 = vmatprep.subr.bf16.mxu0 0
      %3478 = vmatpush1.bf16.msra.mxu0 %v2344
      %3479 = vmatprep.subr.bf16.mxu0 0
      %3480 = vmatpush1.bf16.msra.mxu0 %v2345
      %3481 = vmatprep.subr.bf16.mxu0 0
      %3482 = vmatpush1.bf16.msra.mxu0 %v2346
      %3483 = vmatprep.subr.bf16.mxu0 0
      %3484 = vmatpush1.bf16.msra.mxu0 %v2347
      %3485 = vmatprep.subr.bf16.mxu0 0
      %3486 = vmatpush1.bf16.msra.mxu0 %v2348
      %3487 = vmatprep.subr.bf16.mxu0 0
      %3488 = vmatpush1.bf16.msra.mxu0 %v2349
      %3489 = vmatprep.mubr.bf16.mxu0 %v3073
      %3490 = vmatmul.mubr.bf16.gmra.mrb[0].mxu0 %v3072
      %v3491 = vpop.f32.mrb[0].mxu0
      %v3492 = vadd.f32 0.0, %v3491
      %v3493 = vpop.f32.mrb[0].mxu0
      %v3494 = vpop.f32.mrb[0].mxu0
      %v3495 = vadd.f32 0.0, %v3494
      %v3496 = vpop.f32.mrb[0].mxu0
      %3497 = vmatprep.mubr.bf16.mxu0 %v3078
      %3498 = vmatmul.mubr.bf16.gmra.mrb[0].mxu0 %v3077
      %v3499 = vpop.f32.mrb[0].mxu0
      %v3500 = vadd.f32 0.0, %v3499
      %v3501 = vpop.f32.mrb[0].mxu0
      %v3502 = vpop.f32.mrb[0].mxu0
      %v3503 = vadd.f32 0.0, %v3502
      %v3504 = vpop.f32.mrb[0].mxu0
      %3505 = vmatprep.mubr.bf16.mxu0 %v3083
      %3506 = vmatmul.mubr.bf16.gmra.mrb[0].mxu0 %v3082
      %v3507 = vpop.f32.mrb[0].mxu0
      %v3508 = vadd.f32 0.0, %v3507
      %v3509 = vpop.f32.mrb[0].mxu0
      %v3510 = vpop.f32.mrb[0].mxu0
      %v3511 = vadd.f32 0.0, %v3510
      %v3512 = vpop.f32.mrb[0].mxu0
      %3513 = vmatprep.mubr.bf16.mxu0 %v3088
      %3514 = vmatmul.mubr.bf16.gmra.mrb[0].mxu0 %v3087
      %v3515 = vpop.f32.mrb[0].mxu0
      %v3516 = vadd.f32 0.0, %v3515
      %v3517 = vpop.f32.mrb[0].mxu0
      %v3518 = vpop.f32.mrb[0].mxu0
      %v3519 = vadd.f32 0.0, %v3518
      %v3520 = vpop.f32.mrb[0].mxu0
      %3521 = vmatprep.mubr.bf16.mxu0 %v3093
      %3522 = vmatmul.mubr.bf16.gmra.mrb[0].mxu0 %v3092
      %v3523 = vpop.f32.mrb[0].mxu0
      %v3524 = vadd.f32 0.0, %v3523
      %v3525 = vpop.f32.mrb[0].mxu0
      %v3526 = vpop.f32.mrb[0].mxu0
      %v3527 = vadd.f32 0.0, %v3526
      %v3528 = vpop.f32.mrb[0].mxu0
      %3529 = vmatprep.mubr.bf16.mxu0 %v3098
      %3530 = vmatmul.mubr.bf16.gmra.mrb[0].mxu0 %v3097
      %v3531 = vpop.f32.mrb[0].mxu0
      %v3532 = vadd.f32 0.0, %v3531
      %v3533 = vpop.f32.mrb[0].mxu0
      %v3534 = vpop.f32.mrb[0].mxu0
      %v3535 = vadd.f32 0.0, %v3534
      %v3536 = vpop.f32.mrb[0].mxu0
      %3537 = vmatprep.mubr.bf16.mxu0 %v3103
      %3538 = vmatmul.mubr.bf16.gmra.mrb[0].mxu0 %v3102
      %v3539 = vpop.f32.mrb[0].mxu0
      %v3540 = vadd.f32 0.0, %v3539
      %v3541 = vpop.f32.mrb[0].mxu0
      %v3542 = vpop.f32.mrb[0].mxu0
      %v3543 = vadd.f32 0.0, %v3542
      %v3544 = vpop.f32.mrb[0].mxu0
      %3545 = vmatprep.mubr.bf16.mxu0 %v3108
      %3546 = vmatmul.mubr.bf16.gmra.mrb[0].mxu0 %v3107
      %v3547 = vpop.f32.mrb[0].mxu0
      %v3548 = vadd.f32 0.0, %v3547
      %v3549 = vpop.f32.mrb[0].mxu0
      %v3550 = vpop.f32.mrb[0].mxu0
      %v3551 = vadd.f32 0.0, %v3550
      %v3552 = vpop.f32.mrb[0].mxu0
      %3553 = vmatprep.mubr.bf16.mxu0 %v3113
      %3554 = vmatmul.mubr.bf16.gmra.mrb[0].mxu0 %v3112
      %v3555 = vpop.f32.mrb[0].mxu0
      %v3556 = vadd.f32 0.0, %v3555
      %v3557 = vpop.f32.mrb[0].mxu0
      %v3558 = vpop.f32.mrb[0].mxu0
      %v3559 = vadd.f32 0.0, %v3558
      %v3560 = vpop.f32.mrb[0].mxu0
      %3561 = vmatprep.mubr.bf16.mxu0 %v3118
      %3562 = vmatmul.mubr.bf16.gmra.mrb[0].mxu0 %v3117
      %v3563 = vpop.f32.mrb[0].mxu0
      %v3564 = vadd.f32 0.0, %v3563
      %v3565 = vpop.f32.mrb[0].mxu0
      %v3566 = vpop.f32.mrb[0].mxu0
      %v3567 = vadd.f32 0.0, %v3566
      %v3568 = vpop.f32.mrb[0].mxu0
      %3569 = vmatprep.mubr.bf16.mxu0 %v3123
      %3570 = vmatmul.mubr.bf16.gmra.mrb[0].mxu0 %v3122
      %v3571 = vpop.f32.mrb[0].mxu0
      %v3572 = vadd.f32 0.0, %v3571
      %v3573 = vpop.f32.mrb[0].mxu0
      %v3574 = vpop.f32.mrb[0].mxu0
      %v3575 = vadd.f32 0.0, %v3574
      %v3576 = vpop.f32.mrb[0].mxu0
      %3577 = vmatprep.mubr.bf16.mxu0 %v3128
      %3578 = vmatmul.mubr.bf16.gmra.mrb[0].mxu0 %v3127
      %v3579 = vpop.f32.mrb[0].mxu0
      %v3580 = vadd.f32 0.0, %v3579
      %v3581 = vpop.f32.mrb[0].mxu0
      %v3582 = vpop.f32.mrb[0].mxu0
      %v3583 = vadd.f32 0.0, %v3582
      %v3584 = vpop.f32.mrb[0].mxu0
      %3585 = vmatprep.mubr.bf16.mxu0 %v3133
      %3586 = vmatmul.mubr.bf16.gmra.mrb[0].mxu0 %v3132
      %v3587 = vpop.f32.mrb[0].mxu0
      %v3588 = vadd.f32 0.0, %v3587
      %v3589 = vpop.f32.mrb[0].mxu0
      %v3590 = vpop.f32.mrb[0].mxu0
      %v3591 = vadd.f32 0.0, %v3590
      %v3592 = vpop.f32.mrb[0].mxu0
      %3593 = vmatprep.mubr.bf16.mxu0 %v3138
      %3594 = vmatmul.mubr.bf16.gmra.mrb[0].mxu0 %v3137
      %v3595 = vpop.f32.mrb[0].mxu0
      %v3596 = vadd.f32 0.0, %v3595
      %v3597 = vpop.f32.mrb[0].mxu0
      %v3598 = vpop.f32.mrb[0].mxu0
      %v3599 = vadd.f32 0.0, %v3598
      %v3600 = vpop.f32.mrb[0].mxu0
      %3601 = vmatprep.mubr.bf16.mxu0 %v3143
      %3602 = vmatmul.mubr.bf16.gmra.mrb[0].mxu0 %v3142
      %v3603 = vpop.f32.mrb[0].mxu0
      %v3604 = vadd.f32 0.0, %v3603
      %v3605 = vpop.f32.mrb[0].mxu0
      %v3606 = vpop.f32.mrb[0].mxu0
      %v3607 = vadd.f32 0.0, %v3606
      %v3608 = vpop.f32.mrb[0].mxu0
      %3609 = vmatprep.mubr.bf16.mxu0 %v3148
      %3610 = vmatmul.mubr.bf16.gmra.mrb[0].mxu0 %v3147
      %v3611 = vpop.f32.mrb[0].mxu0
      %v3612 = vadd.f32 0.0, %v3611
      %v3613 = vpop.f32.mrb[0].mxu0
      %v3614 = vpop.f32.mrb[0].mxu0
      %v3615 = vadd.f32 0.0, %v3614
      %v3616 = vpop.f32.mrb[0].mxu0
      %3617 = vmatprep.mubr.bf16.mxu0 %v3153
      %3618 = vmatmul.mubr.bf16.gmra.mrb[0].mxu0 %v3152
      %v3619 = vpop.f32.mrb[0].mxu0
      %v3620 = vadd.f32 0.0, %v3619
      %v3621 = vpop.f32.mrb[0].mxu0
      %v3622 = vpop.f32.mrb[0].mxu0
      %v3623 = vadd.f32 0.0, %v3622
      %v3624 = vpop.f32.mrb[0].mxu0
      %3625 = vmatprep.mubr.bf16.mxu0 %v3158
      %3626 = vmatmul.mubr.bf16.gmra.mrb[0].mxu0 %v3157
      %v3627 = vpop.f32.mrb[0].mxu0
      %v3628 = vadd.f32 0.0, %v3627
      %v3629 = vpop.f32.mrb[0].mxu0
      %v3630 = vpop.f32.mrb[0].mxu0
      %v3631 = vadd.f32 0.0, %v3630
      %v3632 = vpop.f32.mrb[0].mxu0
      %3633 = vmatprep.mubr.bf16.mxu0 %v3163
      %3634 = vmatmul.mubr.bf16.gmra.mrb[0].mxu0 %v3162
      %v3635 = vpop.f32.mrb[0].mxu0
      %v3636 = vadd.f32 0.0, %v3635
      %v3637 = vpop.f32.mrb[0].mxu0
      %v3638 = vpop.f32.mrb[0].mxu0
      %v3639 = vadd.f32 0.0, %v3638
      %v3640 = vpop.f32.mrb[0].mxu0
      %3641 = vmatprep.mubr.bf16.mxu0 %v3168
      %3642 = vmatmul.mubr.bf16.gmra.mrb[0].mxu0 %v3167
      %v3643 = vpop.f32.mrb[0].mxu0
      %v3644 = vadd.f32 0.0, %v3643
      %v3645 = vpop.f32.mrb[0].mxu0
      %v3646 = vpop.f32.mrb[0].mxu0
      %v3647 = vadd.f32 0.0, %v3646
      %v3648 = vpop.f32.mrb[0].mxu0
      %3649 = vmatprep.mubr.bf16.mxu0 %v3173
      %3650 = vmatmul.mubr.bf16.gmra.mrb[0].mxu0 %v3172
      %v3651 = vpop.f32.mrb[0].mxu0
      %v3652 = vadd.f32 0.0, %v3651
      %v3653 = vpop.f32.mrb[0].mxu0
      %v3654 = vpop.f32.mrb[0].mxu0
      %v3655 = vadd.f32 0.0, %v3654
      %v3656 = vpop.f32.mrb[0].mxu0
      %3657 = vmatprep.mubr.bf16.mxu0 %v3178
      %3658 = vmatmul.mubr.bf16.gmra.mrb[0].mxu0 %v3177
      %v3659 = vpop.f32.mrb[0].mxu0
      %v3660 = vadd.f32 0.0, %v3659
      %v3661 = vpop.f32.mrb[0].mxu0
      %v3662 = vpop.f32.mrb[0].mxu0
      %v3663 = vadd.f32 0.0, %v3662
      %v3664 = vpop.f32.mrb[0].mxu0
      %3665 = vmatprep.mubr.bf16.mxu0 %v3183
      %3666 = vmatmul.mubr.bf16.gmra.mrb[0].mxu0 %v3182
      %v3667 = vpop.f32.mrb[0].mxu0
      %v3668 = vadd.f32 0.0, %v3667
      %v3669 = vpop.f32.mrb[0].mxu0
      %v3670 = vpop.f32.mrb[0].mxu0
      %v3671 = vadd.f32 0.0, %v3670
      %v3672 = vpop.f32.mrb[0].mxu0
      %3673 = vmatprep.mubr.bf16.mxu0 %v3188
      %3674 = vmatmul.mubr.bf16.gmra.mrb[0].mxu0 %v3187
      %v3675 = vpop.f32.mrb[0].mxu0
      %v3676 = vadd.f32 0.0, %v3675
      %v3677 = vpop.f32.mrb[0].mxu0
      %v3678 = vpop.f32.mrb[0].mxu0
      %v3679 = vadd.f32 0.0, %v3678
      %v3680 = vpop.f32.mrb[0].mxu0
      %3681 = vmatprep.mubr.bf16.mxu0 %v3193
      %3682 = vmatmul.mubr.bf16.gmra.mrb[0].mxu0 %v3192
      %v3683 = vpop.f32.mrb[0].mxu0
      %v3684 = vadd.f32 0.0, %v3683
      %v3685 = vpop.f32.mrb[0].mxu0
      %v3686 = vpop.f32.mrb[0].mxu0
      %v3687 = vadd.f32 0.0, %v3686
      %v3688 = vpop.f32.mrb[0].mxu0
      %3689 = vmatprep.mubr.bf16.mxu0 %v3198
      %3690 = vmatmul.mubr.bf16.gmra.mrb[0].mxu0 %v3197
      %v3691 = vpop.f32.mrb[0].mxu0
      %v3692 = vadd.f32 0.0, %v3691
      %v3693 = vpop.f32.mrb[0].mxu0
      %v3694 = vpop.f32.mrb[0].mxu0
      %v3695 = vadd.f32 0.0, %v3694
      %v3696 = vpop.f32.mrb[0].mxu0
      %3697 = vmatprep.mubr.bf16.mxu0 %v3203
      %3698 = vmatmul.mubr.bf16.gmra.mrb[0].mxu0 %v3202
      %v3699 = vpop.f32.mrb[0].mxu0
      %v3700 = vadd.f32 0.0, %v3699
      %v3701 = vpop.f32.mrb[0].mxu0
      %v3702 = vpop.f32.mrb[0].mxu0
      %v3703 = vadd.f32 0.0, %v3702
      %v3704 = vpop.f32.mrb[0].mxu0
      %3705 = vmatprep.mubr.bf16.mxu0 %v3208
      %3706 = vmatmul.mubr.bf16.gmra.mrb[0].mxu0 %v3207
      %v3707 = vpop.f32.mrb[0].mxu0
      %v3708 = vadd.f32 0.0, %v3707
      %v3709 = vpop.f32.mrb[0].mxu0
      %v3710 = vpop.f32.mrb[0].mxu0
      %v3711 = vadd.f32 0.0, %v3710
      %v3712 = vpop.f32.mrb[0].mxu0
      %3713 = vmatprep.mubr.bf16.mxu0 %v3213
      %3714 = vmatmul.mubr.bf16.gmra.mrb[0].mxu0 %v3212
      %v3715 = vpop.f32.mrb[0].mxu0
      %v3716 = vadd.f32 0.0, %v3715
      %v3717 = vpop.f32.mrb[0].mxu0
      %v3718 = vpop.f32.mrb[0].mxu0
      %v3719 = vadd.f32 0.0, %v3718
      %v3720 = vpop.f32.mrb[0].mxu0
      %3721 = vmatprep.mubr.bf16.mxu0 %v3218
      %3722 = vmatmul.mubr.bf16.gmra.mrb[0].mxu0 %v3217
      %v3723 = vpop.f32.mrb[0].mxu0
      %v3724 = vadd.f32 0.0, %v3723
      %v3725 = vpop.f32.mrb[0].mxu0
      %v3726 = vpop.f32.mrb[0].mxu0
      %v3727 = vadd.f32 0.0, %v3726
      %v3728 = vpop.f32.mrb[0].mxu0
      %3729 = vmatprep.mubr.bf16.mxu0 %v3223
      %3730 = vmatmul.mubr.bf16.gmra.mrb[0].mxu0 %v3222
      %v3731 = vpop.f32.mrb[0].mxu0
      %v3732 = vadd.f32 0.0, %v3731
      %v3733 = vpop.f32.mrb[0].mxu0
      %v3734 = vpop.f32.mrb[0].mxu0
      %v3735 = vadd.f32 0.0, %v3734
      %v3736 = vpop.f32.mrb[0].mxu0
      %3737 = vmatprep.mubr.bf16.mxu0 %v3228
      %3738 = vmatmul.mubr.bf16.gmra.mrb[0].mxu0 %v3227
      %v3739 = vpop.f32.mrb[0].mxu0
      %v3740 = vadd.f32 0.0, %v3739
      %v3741 = vpop.f32.mrb[0].mxu0
      %v3742 = vpop.f32.mrb[0].mxu0
      %v3743 = vadd.f32 0.0, %v3742
      %v3744 = vpop.f32.mrb[0].mxu0
      %3745 = vdwg.mxu0
      %3746 = vmatprep.subr.bf16.mxu0 0
      %3747 = vmatpush1.bf16.msra.mxu0 %v2350
      %3748 = vmatprep.subr.bf16.mxu0 0
      %3749 = vmatpush1.bf16.msra.mxu0 %v2351
      %3750 = vmatprep.subr.bf16.mxu0 0
      %3751 = vmatpush1.bf16.msra.mxu0 %v2352
      %3752 = vmatprep.subr.bf16.mxu0 0
      %3753 = vmatpush1.bf16.msra.mxu0 %v2353
      %3754 = vmatprep.subr.bf16.mxu0 0
      %3755 = vmatpush1.bf16.msra.mxu0 %v2354
      %3756 = vmatprep.subr.bf16.mxu0 0
      %3757 = vmatpush1.bf16.msra.mxu0 %v2355
      %3758 = vmatprep.subr.bf16.mxu0 0
      %3759 = vmatpush1.bf16.msra.mxu0 %v2356
      %3760 = vmatprep.subr.bf16.mxu0 0
      %3761 = vmatpush1.bf16.msra.mxu0 %v2357
      %3762 = vmatprep.subr.bf16.mxu0 0
      %3763 = vmatpush1.bf16.msra.mxu0 %v2358
      %3764 = vmatprep.subr.bf16.mxu0 0
      %3765 = vmatpush1.bf16.msra.mxu0 %v2359
      %3766 = vmatprep.subr.bf16.mxu0 0
      %3767 = vmatpush1.bf16.msra.mxu0 %v2360
      %3768 = vmatprep.subr.bf16.mxu0 0
      %3769 = vmatpush1.bf16.msra.mxu0 %v2361
      %3770 = vmatprep.subr.bf16.mxu0 0
      %3771 = vmatpush1.bf16.msra.mxu0 %v2362
      %3772 = vmatprep.subr.bf16.mxu0 0
      %3773 = vmatpush1.bf16.msra.mxu0 %v2363
      %3774 = vmatprep.subr.bf16.mxu0 0
      %3775 = vmatpush1.bf16.msra.mxu0 %v2364
      %3776 = vmatprep.subr.bf16.mxu0 0
      %3777 = vmatpush1.bf16.msra.mxu0 %v2365
      %3778 = vmatprep.mubr.bf16.mxu0 %v3075
      %3779 = vmatmul.mubr.bf16.gmra.mrb[0].mxu0 %v3074
      %v3780 = vpop.f32.mrb[0].mxu0
      %v3781 = vadd.f32 %v3492, %v3780
      %v3782 = vpop.f32.mrb[0].mxu0
      %v3783 = vpop.f32.mrb[0].mxu0
      %v3784 = vadd.f32 %v3495, %v3783
      %v3785 = vpop.f32.mrb[0].mxu0
      %3786 = vmatprep.mubr.bf16.mxu0 %v3080
      %3787 = vmatmul.mubr.bf16.gmra.mrb[0].mxu0 %v3079
      %v3788 = vpop.f32.mrb[0].mxu0
      %v3789 = vadd.f32 %v3500, %v3788
      %v3790 = vpop.f32.mrb[0].mxu0
      %v3791 = vpop.f32.mrb[0].mxu0
      %v3792 = vadd.f32 %v3503, %v3791
      %v3793 = vpop.f32.mrb[0].mxu0
      %3794 = vmatprep.mubr.bf16.mxu0 %v3085
      %3795 = vmatmul.mubr.bf16.gmra.mrb[0].mxu0 %v3084
      %v3796 = vpop.f32.mrb[0].mxu0
      %v3797 = vadd.f32 %v3508, %v3796
      %v3798 = vpop.f32.mrb[0].mxu0
      %v3799 = vpop.f32.mrb[0].mxu0
      %v3800 = vadd.f32 %v3511, %v3799
      %v3801 = vpop.f32.mrb[0].mxu0
      %3802 = vmatprep.mubr.bf16.mxu0 %v3090
      %3803 = vmatmul.mubr.bf16.gmra.mrb[0].mxu0 %v3089
      %v3804 = vpop.f32.mrb[0].mxu0
      %v3805 = vadd.f32 %v3516, %v3804
      %v3806 = vpop.f32.mrb[0].mxu0
      %v3807 = vpop.f32.mrb[0].mxu0
      %v3808 = vadd.f32 %v3519, %v3807
      %v3809 = vpop.f32.mrb[0].mxu0
      %3810 = vmatprep.mubr.bf16.mxu0 %v3095
      %3811 = vmatmul.mubr.bf16.gmra.mrb[0].mxu0 %v3094
      %v3812 = vpop.f32.mrb[0].mxu0
      %v3813 = vadd.f32 %v3524, %v3812
      %v3814 = vpop.f32.mrb[0].mxu0
      %v3815 = vpop.f32.mrb[0].mxu0
      %v3816 = vadd.f32 %v3527, %v3815
      %v3817 = vpop.f32.mrb[0].mxu0
      %3818 = vmatprep.mubr.bf16.mxu0 %v3100
      %3819 = vmatmul.mubr.bf16.gmra.mrb[0].mxu0 %v3099
      %v3820 = vpop.f32.mrb[0].mxu0
      %v3821 = vadd.f32 %v3532, %v3820
      %v3822 = vpop.f32.mrb[0].mxu0
      %v3823 = vpop.f32.mrb[0].mxu0
      %v3824 = vadd.f32 %v3535, %v3823
      %v3825 = vpop.f32.mrb[0].mxu0
      %3826 = vmatprep.mubr.bf16.mxu0 %v3105
      %3827 = vmatmul.mubr.bf16.gmra.mrb[0].mxu0 %v3104
      %v3828 = vpop.f32.mrb[0].mxu0
      %v3829 = vadd.f32 %v3540, %v3828
      %v3830 = vpop.f32.mrb[0].mxu0
      %v3831 = vpop.f32.mrb[0].mxu0
      %v3832 = vadd.f32 %v3543, %v3831
      %v3833 = vpop.f32.mrb[0].mxu0
      %3834 = vmatprep.mubr.bf16.mxu0 %v3110
      %3835 = vmatmul.mubr.bf16.gmra.mrb[0].mxu0 %v3109
      %v3836 = vpop.f32.mrb[0].mxu0
      %v3837 = vadd.f32 %v3548, %v3836
      %v3838 = vpop.f32.mrb[0].mxu0
      %v3839 = vpop.f32.mrb[0].mxu0
      %v3840 = vadd.f32 %v3551, %v3839
      %v3841 = vpop.f32.mrb[0].mxu0
      %3842 = vmatprep.mubr.bf16.mxu0 %v3115
      %3843 = vmatmul.mubr.bf16.gmra.mrb[0].mxu0 %v3114
      %v3844 = vpop.f32.mrb[0].mxu0
      %v3845 = vadd.f32 %v3556, %v3844
      %v3846 = vpop.f32.mrb[0].mxu0
      %v3847 = vpop.f32.mrb[0].mxu0
      %v3848 = vadd.f32 %v3559, %v3847
      %v3849 = vpop.f32.mrb[0].mxu0
      %3850 = vmatprep.mubr.bf16.mxu0 %v3120
      %3851 = vmatmul.mubr.bf16.gmra.mrb[0].mxu0 %v3119
      %v3852 = vpop.f32.mrb[0].mxu0
      %v3853 = vadd.f32 %v3564, %v3852
      %v3854 = vpop.f32.mrb[0].mxu0
      %v3855 = vpop.f32.mrb[0].mxu0
      %v3856 = vadd.f32 %v3567, %v3855
      %v3857 = vpop.f32.mrb[0].mxu0
      %3858 = vmatprep.mubr.bf16.mxu0 %v3125
      %3859 = vmatmul.mubr.bf16.gmra.mrb[0].mxu0 %v3124
      %v3860 = vpop.f32.mrb[0].mxu0
      %v3861 = vadd.f32 %v3572, %v3860
      %v3862 = vpop.f32.mrb[0].mxu0
      %v3863 = vpop.f32.mrb[0].mxu0
      %v3864 = vadd.f32 %v3575, %v3863
      %v3865 = vpop.f32.mrb[0].mxu0
      %3866 = vmatprep.mubr.bf16.mxu0 %v3130
      %3867 = vmatmul.mubr.bf16.gmra.mrb[0].mxu0 %v3129
      %v3868 = vpop.f32.mrb[0].mxu0
      %v3869 = vadd.f32 %v3580, %v3868
      %v3870 = vpop.f32.mrb[0].mxu0
      %v3871 = vpop.f32.mrb[0].mxu0
      %v3872 = vadd.f32 %v3583, %v3871
      %v3873 = vpop.f32.mrb[0].mxu0
      %3874 = vmatprep.mubr.bf16.mxu0 %v3135
      %3875 = vmatmul.mubr.bf16.gmra.mrb[0].mxu0 %v3134
      %v3876 = vpop.f32.mrb[0].mxu0
      %v3877 = vadd.f32 %v3588, %v3876
      %v3878 = vpop.f32.mrb[0].mxu0
      %v3879 = vpop.f32.mrb[0].mxu0
      %v3880 = vadd.f32 %v3591, %v3879
      %v3881 = vpop.f32.mrb[0].mxu0
      %3882 = vmatprep.mubr.bf16.mxu0 %v3140
      %3883 = vmatmul.mubr.bf16.gmra.mrb[0].mxu0 %v3139
      %v3884 = vpop.f32.mrb[0].mxu0
      %v3885 = vadd.f32 %v3596, %v3884
      %v3886 = vpop.f32.mrb[0].mxu0
      %v3887 = vpop.f32.mrb[0].mxu0
      %v3888 = vadd.f32 %v3599, %v3887
      %v3889 = vpop.f32.mrb[0].mxu0
      %3890 = vmatprep.mubr.bf16.mxu0 %v3145
      %3891 = vmatmul.mubr.bf16.gmra.mrb[0].mxu0 %v3144
      %v3892 = vpop.f32.mrb[0].mxu0
      %v3893 = vadd.f32 %v3604, %v3892
      %v3894 = vpop.f32.mrb[0].mxu0
      %v3895 = vpop.f32.mrb[0].mxu0
      %v3896 = vadd.f32 %v3607, %v3895
      %v3897 = vpop.f32.mrb[0].mxu0
      %3898 = vmatprep.mubr.bf16.mxu0 %v3150
      %3899 = vmatmul.mubr.bf16.gmra.mrb[0].mxu0 %v3149
      %v3900 = vpop.f32.mrb[0].mxu0
      %v3901 = vadd.f32 %v3612, %v3900
      %v3902 = vpop.f32.mrb[0].mxu0
      %v3903 = vpop.f32.mrb[0].mxu0
      %v3904 = vadd.f32 %v3615, %v3903
      %v3905 = vpop.f32.mrb[0].mxu0
      %3906 = vmatprep.mubr.bf16.mxu0 %v3155
      %3907 = vmatmul.mubr.bf16.gmra.mrb[0].mxu0 %v3154
      %v3908 = vpop.f32.mrb[0].mxu0
      %v3909 = vadd.f32 %v3620, %v3908
      %v3910 = vpop.f32.mrb[0].mxu0
      %v3911 = vpop.f32.mrb[0].mxu0
      %v3912 = vadd.f32 %v3623, %v3911
      %v3913 = vpop.f32.mrb[0].mxu0
      %3914 = vmatprep.mubr.bf16.mxu0 %v3160
      %3915 = vmatmul.mubr.bf16.gmra.mrb[0].mxu0 %v3159
      %v3916 = vpop.f32.mrb[0].mxu0
      %v3917 = vadd.f32 %v3628, %v3916
      %v3918 = vpop.f32.mrb[0].mxu0
      %v3919 = vpop.f32.mrb[0].mxu0
      %v3920 = vadd.f32 %v3631, %v3919
      %v3921 = vpop.f32.mrb[0].mxu0
      %3922 = vmatprep.mubr.bf16.mxu0 %v3165
      %3923 = vmatmul.mubr.bf16.gmra.mrb[0].mxu0 %v3164
      %v3924 = vpop.f32.mrb[0].mxu0
      %v3925 = vadd.f32 %v3636, %v3924
      %v3926 = vpop.f32.mrb[0].mxu0
      %v3927 = vpop.f32.mrb[0].mxu0
      %v3928 = vadd.f32 %v3639, %v3927
      %v3929 = vpop.f32.mrb[0].mxu0
      %3930 = vmatprep.mubr.bf16.mxu0 %v3170
      %3931 = vmatmul.mubr.bf16.gmra.mrb[0].mxu0 %v3169
      %v3932 = vpop.f32.mrb[0].mxu0
      %v3933 = vadd.f32 %v3644, %v3932
      %v3934 = vpop.f32.mrb[0].mxu0
      %v3935 = vpop.f32.mrb[0].mxu0
      %v3936 = vadd.f32 %v3647, %v3935
      %v3937 = vpop.f32.mrb[0].mxu0
      %3938 = vmatprep.mubr.bf16.mxu0 %v3175
      %3939 = vmatmul.mubr.bf16.gmra.mrb[0].mxu0 %v3174
      %v3940 = vpop.f32.mrb[0].mxu0
      %v3941 = vadd.f32 %v3652, %v3940
      %v3942 = vpop.f32.mrb[0].mxu0
      %v3943 = vpop.f32.mrb[0].mxu0
      %v3944 = vadd.f32 %v3655, %v3943
      %v3945 = vpop.f32.mrb[0].mxu0
      %3946 = vmatprep.mubr.bf16.mxu0 %v3180
      %3947 = vmatmul.mubr.bf16.gmra.mrb[0].mxu0 %v3179
      %v3948 = vpop.f32.mrb[0].mxu0
      %v3949 = vadd.f32 %v3660, %v3948
      %v3950 = vpop.f32.mrb[0].mxu0
      %v3951 = vpop.f32.mrb[0].mxu0
      %v3952 = vadd.f32 %v3663, %v3951
      %v3953 = vpop.f32.mrb[0].mxu0
      %3954 = vmatprep.mubr.bf16.mxu0 %v3185
      %3955 = vmatmul.mubr.bf16.gmra.mrb[0].mxu0 %v3184
      %v3956 = vpop.f32.mrb[0].mxu0
      %v3957 = vadd.f32 %v3668, %v3956
      %v3958 = vpop.f32.mrb[0].mxu0
      %v3959 = vpop.f32.mrb[0].mxu0
      %v3960 = vadd.f32 %v3671, %v3959
      %v3961 = vpop.f32.mrb[0].mxu0
      %3962 = vmatprep.mubr.bf16.mxu0 %v3190
      %3963 = vmatmul.mubr.bf16.gmra.mrb[0].mxu0 %v3189
      %v3964 = vpop.f32.mrb[0].mxu0
      %v3965 = vadd.f32 %v3676, %v3964
      %v3966 = vpop.f32.mrb[0].mxu0
      %v3967 = vpop.f32.mrb[0].mxu0
      %v3968 = vadd.f32 %v3679, %v3967
      %v3969 = vpop.f32.mrb[0].mxu0
      %3970 = vmatprep.mubr.bf16.mxu0 %v3195
      %3971 = vmatmul.mubr.bf16.gmra.mrb[0].mxu0 %v3194
      %v3972 = vpop.f32.mrb[0].mxu0
      %v3973 = vadd.f32 %v3684, %v3972
      %v3974 = vpop.f32.mrb[0].mxu0
      %v3975 = vpop.f32.mrb[0].mxu0
      %v3976 = vadd.f32 %v3687, %v3975
      %v3977 = vpop.f32.mrb[0].mxu0
      %3978 = vmatprep.mubr.bf16.mxu0 %v3200
      %3979 = vmatmul.mubr.bf16.gmra.mrb[0].mxu0 %v3199
      %v3980 = vpop.f32.mrb[0].mxu0
      %v3981 = vadd.f32 %v3692, %v3980
      %v3982 = vpop.f32.mrb[0].mxu0
      %v3983 = vpop.f32.mrb[0].mxu0
      %v3984 = vadd.f32 %v3695, %v3983
      %v3985 = vpop.f32.mrb[0].mxu0
      %3986 = vmatprep.mubr.bf16.mxu0 %v3205
      %3987 = vmatmul.mubr.bf16.gmra.mrb[0].mxu0 %v3204
      %v3988 = vpop.f32.mrb[0].mxu0
      %v3989 = vadd.f32 %v3700, %v3988
      %v3990 = vpop.f32.mrb[0].mxu0
      %v3991 = vpop.f32.mrb[0].mxu0
      %v3992 = vadd.f32 %v3703, %v3991
      %v3993 = vpop.f32.mrb[0].mxu0
      %3994 = vmatprep.mubr.bf16.mxu0 %v3210
      %3995 = vmatmul.mubr.bf16.gmra.mrb[0].mxu0 %v3209
      %v3996 = vpop.f32.mrb[0].mxu0
      %v3997 = vadd.f32 %v3708, %v3996
      %v3998 = vpop.f32.mrb[0].mxu0
      %v3999 = vpop.f32.mrb[0].mxu0
      %v4000 = vadd.f32 %v3711, %v3999
      %v4001 = vpop.f32.mrb[0].mxu0
      %4002 = vmatprep.mubr.bf16.mxu0 %v3215
      %4003 = vmatmul.mubr.bf16.gmra.mrb[0].mxu0 %v3214
      %v4004 = vpop.f32.mrb[0].mxu0
      %v4005 = vadd.f32 %v3716, %v4004
      %v4006 = vpop.f32.mrb[0].mxu0
      %v4007 = vpop.f32.mrb[0].mxu0
      %v4008 = vadd.f32 %v3719, %v4007
      %v4009 = vpop.f32.mrb[0].mxu0
      %4010 = vmatprep.mubr.bf16.mxu0 %v3220
      %4011 = vmatmul.mubr.bf16.gmra.mrb[0].mxu0 %v3219
      %v4012 = vpop.f32.mrb[0].mxu0
      %v4013 = vadd.f32 %v3724, %v4012
      %v4014 = vpop.f32.mrb[0].mxu0
      %v4015 = vpop.f32.mrb[0].mxu0
      %v4016 = vadd.f32 %v3727, %v4015
      %v4017 = vpop.f32.mrb[0].mxu0
      %4018 = vmatprep.mubr.bf16.mxu0 %v3225
      %4019 = vmatmul.mubr.bf16.gmra.mrb[0].mxu0 %v3224
      %v4020 = vpop.f32.mrb[0].mxu0
      %v4021 = vadd.f32 %v3732, %v4020
      %v4022 = vpop.f32.mrb[0].mxu0
      %v4023 = vpop.f32.mrb[0].mxu0
      %v4024 = vadd.f32 %v3735, %v4023
      %v4025 = vpop.f32.mrb[0].mxu0
      %4026 = vmatprep.mubr.bf16.mxu0 %v3230
      %4027 = vmatmul.mubr.bf16.gmra.mrb[0].mxu0 %v3229
      %v4028 = vpop.f32.mrb[0].mxu0
      %v4029 = vadd.f32 %v3740, %v4028
      %v4030 = vpop.f32.mrb[0].mxu0
      %v4031 = vpop.f32.mrb[0].mxu0
      %v4032 = vadd.f32 %v3743, %v4031
      %v4033 = vpop.f32.mrb[0].mxu0
      %4034 = vdwg.mxu0
      %4035 = vmatprep.subr.bf16.mxu0 0
      %4036 = vmatpush1.bf16.msra.mxu0 %v2366
      %4037 = vmatprep.subr.bf16.mxu0 0
      %4038 = vmatpush1.bf16.msra.mxu0 %v2367
      %4039 = vmatprep.subr.bf16.mxu0 0
      %4040 = vmatpush1.bf16.msra.mxu0 0
      %4041 = vmatprep.subr.bf16.mxu0 0
      %4042 = vmatpush1.bf16.msra.mxu0 0
      %4043 = vmatprep.subr.bf16.mxu0 0
      %4044 = vmatpush1.bf16.msra.mxu0 0
      %4045 = vmatprep.subr.bf16.mxu0 0
      %4046 = vmatpush1.bf16.msra.mxu0 0
      %4047 = vmatprep.subr.bf16.mxu0 0
      %4048 = vmatpush1.bf16.msra.mxu0 0
      %4049 = vmatprep.subr.bf16.mxu0 0
      %4050 = vmatpush1.bf16.msra.mxu0 0
      %4051 = vmatprep.subr.bf16.mxu0 0
      %4052 = vmatpush1.bf16.msra.mxu0 0
      %4053 = vmatprep.subr.bf16.mxu0 0
      %4054 = vmatpush1.bf16.msra.mxu0 0
      %4055 = vmatprep.subr.bf16.mxu0 0
      %4056 = vmatpush1.bf16.msra.mxu0 0
      %4057 = vmatprep.subr.bf16.mxu0 0
      %4058 = vmatpush1.bf16.msra.mxu0 0
      %4059 = vmatprep.subr.bf16.mxu0 0
      %4060 = vmatpush1.bf16.msra.mxu0 0
      %4061 = vmatprep.subr.bf16.mxu0 0
      %4062 = vmatpush1.bf16.msra.mxu0 0
      %4063 = vmatprep.subr.bf16.mxu0 0
      %4064 = vmatpush1.bf16.msra.mxu0 0
      %4065 = vmatprep.subr.bf16.mxu0 0
      %4066 = vmatpush1.bf16.msra.mxu0 0
      %4067 = vmatprep.mubr.bf16.mxu0 0
      %4068 = vmatmul.mubr.bf16.gmra.mrb[0].mxu0 %v3362
      %v4069 = vpop.f32.mrb[0].mxu0
      %v4070 = vadd.f32 %v3781, %v4069
      %v4071 = vpop.f32.mrb[0].mxu0
      %v4072 = vpop.f32.mrb[0].mxu0
      %v4073 = vadd.f32 %v3784, %v4072
      %v4074 = vpop.f32.mrb[0].mxu0
      %4075 = vmatprep.mubr.bf16.mxu0 0
      %4076 = vmatmul.mubr.bf16.gmra.mrb[0].mxu0 %v3365
      %v4077 = vpop.f32.mrb[0].mxu0
      %v4078 = vadd.f32 %v3789, %v4077
      %v4079 = vpop.f32.mrb[0].mxu0
      %v4080 = vpop.f32.mrb[0].mxu0
      %v4081 = vadd.f32 %v3792, %v4080
      %v4082 = vpop.f32.mrb[0].mxu0
      %4083 = vmatprep.mubr.bf16.mxu0 0
      %4084 = vmatmul.mubr.bf16.gmra.mrb[0].mxu0 %v3368
      %v4085 = vpop.f32.mrb[0].mxu0
      %v4086 = vadd.f32 %v3797, %v4085
      %v4087 = vpop.f32.mrb[0].mxu0
      %v4088 = vpop.f32.mrb[0].mxu0
      %v4089 = vadd.f32 %v3800, %v4088
      %v4090 = vpop.f32.mrb[0].mxu0
      %4091 = vmatprep.mubr.bf16.mxu0 0
      %4092 = vmatmul.mubr.bf16.gmra.mrb[0].mxu0 %v3371
      %v4093 = vpop.f32.mrb[0].mxu0
      %v4094 = vadd.f32 %v3805, %v4093
      %v4095 = vpop.f32.mrb[0].mxu0
      %v4096 = vpop.f32.mrb[0].mxu0
      %v4097 = vadd.f32 %v3808, %v4096
      %v4098 = vpop.f32.mrb[0].mxu0
      %4099 = vmatprep.mubr.bf16.mxu0 0
      %4100 = vmatmul.mubr.bf16.gmra.mrb[0].mxu0 %v3374
      %v4101 = vpop.f32.mrb[0].mxu0
      %v4102 = vadd.f32 %v3813, %v4101
      %v4103 = vpop.f32.mrb[0].mxu0
      %v4104 = vpop.f32.mrb[0].mxu0
      %v4105 = vadd.f32 %v3816, %v4104
      %v4106 = vpop.f32.mrb[0].mxu0
      %4107 = vmatprep.mubr.bf16.mxu0 0
      %4108 = vmatmul.mubr.bf16.gmra.mrb[0].mxu0 %v3377
      %v4109 = vpop.f32.mrb[0].mxu0
      %v4110 = vadd.f32 %v3821, %v4109
      %v4111 = vpop.f32.mrb[0].mxu0
      %v4112 = vpop.f32.mrb[0].mxu0
      %v4113 = vadd.f32 %v3824, %v4112
      %v4114 = vpop.f32.mrb[0].mxu0
      %4115 = vmatprep.mubr.bf16.mxu0 0
      %4116 = vmatmul.mubr.bf16.gmra.mrb[0].mxu0 %v3380
      %v4117 = vpop.f32.mrb[0].mxu0
      %v4118 = vadd.f32 %v3829, %v4117
      %v4119 = vpop.f32.mrb[0].mxu0
      %v4120 = vpop.f32.mrb[0].mxu0
      %v4121 = vadd.f32 %v3832, %v4120
      %v4122 = vpop.f32.mrb[0].mxu0
      %4123 = vmatprep.mubr.bf16.mxu0 0
      %4124 = vmatmul.mubr.bf16.gmra.mrb[0].mxu0 %v3383
      %v4125 = vpop.f32.mrb[0].mxu0
      %v4126 = vadd.f32 %v3837, %v4125
      %v4127 = vpop.f32.mrb[0].mxu0
      %v4128 = vpop.f32.mrb[0].mxu0
      %v4129 = vadd.f32 %v3840, %v4128
      %v4130 = vpop.f32.mrb[0].mxu0
      %4131 = vmatprep.mubr.bf16.mxu0 0
      %4132 = vmatmul.mubr.bf16.gmra.mrb[0].mxu0 %v3386
      %v4133 = vpop.f32.mrb[0].mxu0
      %v4134 = vadd.f32 %v3845, %v4133
      %v4135 = vpop.f32.mrb[0].mxu0
      %v4136 = vpop.f32.mrb[0].mxu0
      %v4137 = vadd.f32 %v3848, %v4136
      %v4138 = vpop.f32.mrb[0].mxu0
      %4139 = vmatprep.mubr.bf16.mxu0 0
      %4140 = vmatmul.mubr.bf16.gmra.mrb[0].mxu0 %v3389
      %v4141 = vpop.f32.mrb[0].mxu0
      %v4142 = vadd.f32 %v3853, %v4141
      %v4143 = vpop.f32.mrb[0].mxu0
      %v4144 = vpop.f32.mrb[0].mxu0
      %v4145 = vadd.f32 %v3856, %v4144
      %v4146 = vpop.f32.mrb[0].mxu0
      %4147 = vmatprep.mubr.bf16.mxu0 0
      %4148 = vmatmul.mubr.bf16.gmra.mrb[0].mxu0 %v3392
      %v4149 = vpop.f32.mrb[0].mxu0
      %v4150 = vadd.f32 %v3861, %v4149
      %v4151 = vpop.f32.mrb[0].mxu0
      %v4152 = vpop.f32.mrb[0].mxu0
      %v4153 = vadd.f32 %v3864, %v4152
      %v4154 = vpop.f32.mrb[0].mxu0
      %4155 = vmatprep.mubr.bf16.mxu0 0
      %4156 = vmatmul.mubr.bf16.gmra.mrb[0].mxu0 %v3395
      %v4157 = vpop.f32.mrb[0].mxu0
      %v4158 = vadd.f32 %v3869, %v4157
      %v4159 = vpop.f32.mrb[0].mxu0
      %v4160 = vpop.f32.mrb[0].mxu0
      %v4161 = vadd.f32 %v3872, %v4160
      %v4162 = vpop.f32.mrb[0].mxu0
      %4163 = vmatprep.mubr.bf16.mxu0 0
      %4164 = vmatmul.mubr.bf16.gmra.mrb[0].mxu0 %v3398
      %v4165 = vpop.f32.mrb[0].mxu0
      %v4166 = vadd.f32 %v3877, %v4165
      %v4167 = vpop.f32.mrb[0].mxu0
      %v4168 = vpop.f32.mrb[0].mxu0
      %v4169 = vadd.f32 %v3880, %v4168
      %v4170 = vpop.f32.mrb[0].mxu0
      %4171 = vmatprep.mubr.bf16.mxu0 0
      %4172 = vmatmul.mubr.bf16.gmra.mrb[0].mxu0 %v3401
      %v4173 = vpop.f32.mrb[0].mxu0
      %v4174 = vadd.f32 %v3885, %v4173
      %v4175 = vpop.f32.mrb[0].mxu0
      %v4176 = vpop.f32.mrb[0].mxu0
      %v4177 = vadd.f32 %v3888, %v4176
      %v4178 = vpop.f32.mrb[0].mxu0
      %4179 = vmatprep.mubr.bf16.mxu0 0
      %4180 = vmatmul.mubr.bf16.gmra.mrb[0].mxu0 %v3404
      %v4181 = vpop.f32.mrb[0].mxu0
      %v4182 = vadd.f32 %v3893, %v4181
      %v4183 = vpop.f32.mrb[0].mxu0
      %v4184 = vpop.f32.mrb[0].mxu0
      %v4185 = vadd.f32 %v3896, %v4184
      %v4186 = vpop.f32.mrb[0].mxu0
      %4187 = vmatprep.mubr.bf16.mxu0 0
      %4188 = vmatmul.mubr.bf16.gmra.mrb[0].mxu0 %v3407
      %v4189 = vpop.f32.mrb[0].mxu0
      %v4190 = vadd.f32 %v3901, %v4189
      %v4191 = vpop.f32.mrb[0].mxu0
      %v4192 = vpop.f32.mrb[0].mxu0
      %v4193 = vadd.f32 %v3904, %v4192
      %v4194 = vpop.f32.mrb[0].mxu0
      %4195 = vmatprep.mubr.bf16.mxu0 0
      %4196 = vmatmul.mubr.bf16.gmra.mrb[0].mxu0 %v3410
      %v4197 = vpop.f32.mrb[0].mxu0
      %v4198 = vadd.f32 %v3909, %v4197
      %v4199 = vpop.f32.mrb[0].mxu0
      %v4200 = vpop.f32.mrb[0].mxu0
      %v4201 = vadd.f32 %v3912, %v4200
      %v4202 = vpop.f32.mrb[0].mxu0
      %4203 = vmatprep.mubr.bf16.mxu0 0
      %4204 = vmatmul.mubr.bf16.gmra.mrb[0].mxu0 %v3413
      %v4205 = vpop.f32.mrb[0].mxu0
      %v4206 = vadd.f32 %v3917, %v4205
      %v4207 = vpop.f32.mrb[0].mxu0
      %v4208 = vpop.f32.mrb[0].mxu0
      %v4209 = vadd.f32 %v3920, %v4208
      %v4210 = vpop.f32.mrb[0].mxu0
      %4211 = vmatprep.mubr.bf16.mxu0 0
      %4212 = vmatmul.mubr.bf16.gmra.mrb[0].mxu0 %v3416
      %v4213 = vpop.f32.mrb[0].mxu0
      %v4214 = vadd.f32 %v3925, %v4213
      %v4215 = vpop.f32.mrb[0].mxu0
      %v4216 = vpop.f32.mrb[0].mxu0
      %v4217 = vadd.f32 %v3928, %v4216
      %v4218 = vpop.f32.mrb[0].mxu0
      %4219 = vmatprep.mubr.bf16.mxu0 0
      %4220 = vmatmul.mubr.bf16.gmra.mrb[0].mxu0 %v3419
      %v4221 = vpop.f32.mrb[0].mxu0
      %v4222 = vadd.f32 %v3933, %v4221
      %v4223 = vpop.f32.mrb[0].mxu0
      %v4224 = vpop.f32.mrb[0].mxu0
      %v4225 = vadd.f32 %v3936, %v4224
      %v4226 = vpop.f32.mrb[0].mxu0
      %4227 = vmatprep.mubr.bf16.mxu0 0
      %4228 = vmatmul.mubr.bf16.gmra.mrb[0].mxu0 %v3422
      %v4229 = vpop.f32.mrb[0].mxu0
      %v4230 = vadd.f32 %v3941, %v4229
      %v4231 = vpop.f32.mrb[0].mxu0
      %v4232 = vpop.f32.mrb[0].mxu0
      %v4233 = vadd.f32 %v3944, %v4232
      %v4234 = vpop.f32.mrb[0].mxu0
      %4235 = vmatprep.mubr.bf16.mxu0 0
      %4236 = vmatmul.mubr.bf16.gmra.mrb[0].mxu0 %v3425
      %v4237 = vpop.f32.mrb[0].mxu0
      %v4238 = vadd.f32 %v3949, %v4237
      %v4239 = vpop.f32.mrb[0].mxu0
      %v4240 = vpop.f32.mrb[0].mxu0
      %v4241 = vadd.f32 %v3952, %v4240
      %v4242 = vpop.f32.mrb[0].mxu0
      %4243 = vmatprep.mubr.bf16.mxu0 0
      %4244 = vmatmul.mubr.bf16.gmra.mrb[0].mxu0 %v3428
      %v4245 = vpop.f32.mrb[0].mxu0
      %v4246 = vadd.f32 %v3957, %v4245
      %v4247 = vpop.f32.mrb[0].mxu0
      %v4248 = vpop.f32.mrb[0].mxu0
      %v4249 = vadd.f32 %v3960, %v4248
      %v4250 = vpop.f32.mrb[0].mxu0
      %4251 = vmatprep.mubr.bf16.mxu0 0
      %4252 = vmatmul.mubr.bf16.gmra.mrb[0].mxu0 %v3431
      %v4253 = vpop.f32.mrb[0].mxu0
      %v4254 = vadd.f32 %v3965, %v4253
      %v4255 = vpop.f32.mrb[0].mxu0
      %v4256 = vpop.f32.mrb[0].mxu0
      %v4257 = vadd.f32 %v3968, %v4256
      %v4258 = vpop.f32.mrb[0].mxu0
      %4259 = vmatprep.mubr.bf16.mxu0 0
      %4260 = vmatmul.mubr.bf16.gmra.mrb[0].mxu0 %v3434
      %v4261 = vpop.f32.mrb[0].mxu0
      %v4262 = vadd.f32 %v3973, %v4261
      %v4263 = vpop.f32.mrb[0].mxu0
      %v4264 = vpop.f32.mrb[0].mxu0
      %v4265 = vadd.f32 %v3976, %v4264
      %v4266 = vpop.f32.mrb[0].mxu0
      %4267 = vmatprep.mubr.bf16.mxu0 0
      %4268 = vmatmul.mubr.bf16.gmra.mrb[0].mxu0 %v3437
      %v4269 = vpop.f32.mrb[0].mxu0
      %v4270 = vadd.f32 %v3981, %v4269
      %v4271 = vpop.f32.mrb[0].mxu0
      %v4272 = vpop.f32.mrb[0].mxu0
      %v4273 = vadd.f32 %v3984, %v4272
      %v4274 = vpop.f32.mrb[0].mxu0
      %4275 = vmatprep.mubr.bf16.mxu0 0
      %4276 = vmatmul.mubr.bf16.gmra.mrb[0].mxu0 %v3440
      %v4277 = vpop.f32.mrb[0].mxu0
      %v4278 = vadd.f32 %v3989, %v4277
      %v4279 = vpop.f32.mrb[0].mxu0
      %v4280 = vpop.f32.mrb[0].mxu0
      %v4281 = vadd.f32 %v3992, %v4280
      %v4282 = vpop.f32.mrb[0].mxu0
      %4283 = vmatprep.mubr.bf16.mxu0 0
      %4284 = vmatmul.mubr.bf16.gmra.mrb[0].mxu0 %v3443
      %v4285 = vpop.f32.mrb[0].mxu0
      %v4286 = vadd.f32 %v3997, %v4285
      %v4287 = vpop.f32.mrb[0].mxu0
      %v4288 = vpop.f32.mrb[0].mxu0
      %v4289 = vadd.f32 %v4000, %v4288
      %v4290 = vpop.f32.mrb[0].mxu0
      %4291 = vmatprep.mubr.bf16.mxu0 0
      %4292 = vmatmul.mubr.bf16.gmra.mrb[0].mxu0 %v3446
      %v4293 = vpop.f32.mrb[0].mxu0
      %v4294 = vadd.f32 %v4005, %v4293
      %v4295 = vpop.f32.mrb[0].mxu0
      %v4296 = vpop.f32.mrb[0].mxu0
      %v4297 = vadd.f32 %v4008, %v4296
      %v4298 = vpop.f32.mrb[0].mxu0
      %4299 = vmatprep.mubr.bf16.mxu0 0
      %4300 = vmatmul.mubr.bf16.gmra.mrb[0].mxu0 %v3449
      %v4301 = vpop.f32.mrb[0].mxu0
      %v4302 = vadd.f32 %v4013, %v4301
      %v4303 = vpop.f32.mrb[0].mxu0
      %v4304 = vpop.f32.mrb[0].mxu0
      %v4305 = vadd.f32 %v4016, %v4304
      %v4306 = vpop.f32.mrb[0].mxu0
      %4307 = vmatprep.mubr.bf16.mxu0 0
      %4308 = vmatmul.mubr.bf16.gmra.mrb[0].mxu0 %v3452
      %v4309 = vpop.f32.mrb[0].mxu0
      %v4310 = vadd.f32 %v4021, %v4309
      %v4311 = vpop.f32.mrb[0].mxu0
      %v4312 = vpop.f32.mrb[0].mxu0
      %v4313 = vadd.f32 %v4024, %v4312
      %v4314 = vpop.f32.mrb[0].mxu0
      %4315 = vmatprep.mubr.bf16.mxu0 0
      %4316 = vmatmul.mubr.bf16.gmra.mrb[0].mxu0 %v3455
      %v4317 = vpop.f32.mrb[0].mxu0
      %v4318 = vadd.f32 %v4029, %v4317
      %v4319 = vpop.f32.mrb[0].mxu0
      %v4320 = vpop.f32.mrb[0].mxu0
      %v4321 = vadd.f32 %v4032, %v4320
      %v4322 = vpop.f32.mrb[0].mxu0
      %4323 = vdwg.mxu0
      %v4324 = vmax.f32 %v4070, 1e-05
      %v4325 = vmax.f32 %v4073, 1e-05
      %v4326 = vmax.f32 %v4078, 1e-05
      %v4327 = vmax.f32 %v4081, 1e-05
      %v4328 = vmax.f32 %v4086, 1e-05
      %v4329 = vmax.f32 %v4089, 1e-05
      %v4330 = vmax.f32 %v4094, 1e-05
      %v4331 = vmax.f32 %v4097, 1e-05
      %v4332 = vmax.f32 %v4102, 1e-05
      %v4333 = vmax.f32 %v4105, 1e-05
      %v4334 = vmax.f32 %v4110, 1e-05
      %v4335 = vmax.f32 %v4113, 1e-05
      %v4336 = vmax.f32 %v4118, 1e-05
      %v4337 = vmax.f32 %v4121, 1e-05
      %v4338 = vmax.f32 %v4126, 1e-05
      %v4339 = vmax.f32 %v4129, 1e-05
      %v4340 = vmax.f32 %v4134, 1e-05
      %v4341 = vmax.f32 %v4137, 1e-05
      %v4342 = vmax.f32 %v4142, 1e-05
      %v4343 = vmax.f32 %v4145, 1e-05
      %v4344 = vmax.f32 %v4150, 1e-05
      %v4345 = vmax.f32 %v4153, 1e-05
      %v4346 = vmax.f32 %v4158, 1e-05
      %v4347 = vmax.f32 %v4161, 1e-05
      %v4348 = vmax.f32 %v4166, 1e-05
      %v4349 = vmax.f32 %v4169, 1e-05
      %v4350 = vmax.f32 %v4174, 1e-05
      %v4351 = vmax.f32 %v4177, 1e-05
      %v4352 = vmax.f32 %v4182, 1e-05
      %v4353 = vmax.f32 %v4185, 1e-05
      %v4354 = vmax.f32 %v4190, 1e-05
      %v4355 = vmax.f32 %v4193, 1e-05
      %v4356 = vmax.f32 %v4198, 1e-05
      %v4357 = vmax.f32 %v4201, 1e-05
      %v4358 = vmax.f32 %v4206, 1e-05
      %v4359 = vmax.f32 %v4209, 1e-05
      %v4360 = vmax.f32 %v4214, 1e-05
      %v4361 = vmax.f32 %v4217, 1e-05
      %v4362 = vmax.f32 %v4222, 1e-05
      %v4363 = vmax.f32 %v4225, 1e-05
      %v4364 = vmax.f32 %v4230, 1e-05
      %v4365 = vmax.f32 %v4233, 1e-05
      %v4366 = vmax.f32 %v4238, 1e-05
      %v4367 = vmax.f32 %v4241, 1e-05
      %v4368 = vmax.f32 %v4246, 1e-05
      %v4369 = vmax.f32 %v4249, 1e-05
      %v4370 = vmax.f32 %v4254, 1e-05
      %v4371 = vmax.f32 %v4257, 1e-05
      %v4372 = vmax.f32 %v4262, 1e-05
      %v4373 = vmax.f32 %v4265, 1e-05
      %v4374 = vmax.f32 %v4270, 1e-05
      %v4375 = vmax.f32 %v4273, 1e-05
      %v4376 = vmax.f32 %v4278, 1e-05
      %v4377 = vmax.f32 %v4281, 1e-05
      %v4378 = vmax.f32 %v4286, 1e-05
      %v4379 = vmax.f32 %v4289, 1e-05
      %v4380 = vmax.f32 %v4294, 1e-05
      %v4381 = vmax.f32 %v4297, 1e-05
      %v4382 = vmax.f32 %v4302, 1e-05
      %v4383 = vmax.f32 %v4305, 1e-05
      %v4384 = vmax.f32 %v4310, 1e-05
      %v4385 = vmax.f32 %v4313, 1e-05
      %v4386 = vmax.f32 %v4318, 1e-05
      %v4387 = vmax.f32 %v4321, 1e-05
      %v4388 = vlog2.pop %v4324
      %v4389 = vmul.f32 %v4388, 0.6931472
      %v4390 = vlog2.pop %v4325
      %v4391 = vmul.f32 %v4390, 0.6931472
      %v4392 = vlog2.pop %v4326
      %v4393 = vmul.f32 %v4392, 0.6931472
      %v4394 = vlog2.pop %v4327
      %v4395 = vmul.f32 %v4394, 0.6931472
      %v4396 = vlog2.pop %v4328
      %v4397 = vmul.f32 %v4396, 0.6931472
      %v4398 = vlog2.pop %v4329
      %v4399 = vmul.f32 %v4398, 0.6931472
      %v4400 = vlog2.pop %v4330
      %v4401 = vmul.f32 %v4400, 0.6931472
      %v4402 = vlog2.pop %v4331
      %v4403 = vmul.f32 %v4402, 0.6931472
      %v4404 = vlog2.pop %v4332
      %v4405 = vmul.f32 %v4404, 0.6931472
      %v4406 = vlog2.pop %v4333
      %v4407 = vmul.f32 %v4406, 0.6931472
      %v4408 = vlog2.pop %v4334
      %v4409 = vmul.f32 %v4408, 0.6931472
      %v4410 = vlog2.pop %v4335
      %v4411 = vmul.f32 %v4410, 0.6931472
      %v4412 = vlog2.pop %v4336
      %v4413 = vmul.f32 %v4412, 0.6931472
      %v4414 = vlog2.pop %v4337
      %v4415 = vmul.f32 %v4414, 0.6931472
      %v4416 = vlog2.pop %v4338
      %v4417 = vmul.f32 %v4416, 0.6931472
      %v4418 = vlog2.pop %v4339
      %v4419 = vmul.f32 %v4418, 0.6931472
      %v4420 = vlog2.pop %v4340
      %v4421 = vmul.f32 %v4420, 0.6931472
      %v4422 = vlog2.pop %v4341
      %v4423 = vmul.f32 %v4422, 0.6931472
      %v4424 = vlog2.pop %v4342
      %v4425 = vmul.f32 %v4424, 0.6931472
      %v4426 = vlog2.pop %v4343
      %v4427 = vmul.f32 %v4426, 0.6931472
      %v4428 = vlog2.pop %v4344
      %v4429 = vmul.f32 %v4428, 0.6931472
      %v4430 = vlog2.pop %v4345
      %v4431 = vmul.f32 %v4430, 0.6931472
      %v4432 = vlog2.pop %v4346
      %v4433 = vmul.f32 %v4432, 0.6931472
      %v4434 = vlog2.pop %v4347
      %v4435 = vmul.f32 %v4434, 0.6931472
      %v4436 = vlog2.pop %v4348
      %v4437 = vmul.f32 %v4436, 0.6931472
      %v4438 = vlog2.pop %v4349
      %v4439 = vmul.f32 %v4438, 0.6931472
      %v4440 = vlog2.pop %v4350
      %v4441 = vmul.f32 %v4440, 0.6931472
      %v4442 = vlog2.pop %v4351
      %v4443 = vmul.f32 %v4442, 0.6931472
      %v4444 = vlog2.pop %v4352
      %v4445 = vmul.f32 %v4444, 0.6931472
      %v4446 = vlog2.pop %v4353
      %v4447 = vmul.f32 %v4446, 0.6931472
      %v4448 = vlog2.pop %v4354
      %v4449 = vmul.f32 %v4448, 0.6931472
      %v4450 = vlog2.pop %v4355
      %v4451 = vmul.f32 %v4450, 0.6931472
      %v4452 = vlog2.pop %v4356
      %v4453 = vmul.f32 %v4452, 0.6931472
      %v4454 = vlog2.pop %v4357
      %v4455 = vmul.f32 %v4454, 0.6931472
      %v4456 = vlog2.pop %v4358
      %v4457 = vmul.f32 %v4456, 0.6931472
      %v4458 = vlog2.pop %v4359
      %v4459 = vmul.f32 %v4458, 0.6931472
      %v4460 = vlog2.pop %v4360
      %v4461 = vmul.f32 %v4460, 0.6931472
      %v4462 = vlog2.pop %v4361
      %v4463 = vmul.f32 %v4462, 0.6931472
      %v4464 = vlog2.pop %v4362
      %v4465 = vmul.f32 %v4464, 0.6931472
      %v4466 = vlog2.pop %v4363
      %v4467 = vmul.f32 %v4466, 0.6931472
      %v4468 = vlog2.pop %v4364
      %v4469 = vmul.f32 %v4468, 0.6931472
      %v4470 = vlog2.pop %v4365
      %v4471 = vmul.f32 %v4470, 0.6931472
      %v4472 = vlog2.pop %v4366
      %v4473 = vmul.f32 %v4472, 0.6931472
      %v4474 = vlog2.pop %v4367
      %v4475 = vmul.f32 %v4474, 0.6931472
      %v4476 = vlog2.pop %v4368
      %v4477 = vmul.f32 %v4476, 0.6931472
      %v4478 = vlog2.pop %v4369
      %v4479 = vmul.f32 %v4478, 0.6931472
      %v4480 = vlog2.pop %v4370
      %v4481 = vmul.f32 %v4480, 0.6931472
      %v4482 = vlog2.pop %v4371
      %v4483 = vmul.f32 %v4482, 0.6931472
      %v4484 = vlog2.pop %v4372
      %v4485 = vmul.f32 %v4484, 0.6931472
      %v4486 = vlog2.pop %v4373
      %v4487 = vmul.f32 %v4486, 0.6931472
      %v4488 = vlog2.pop %v4374
      %v4489 = vmul.f32 %v4488, 0.6931472
      %v4490 = vlog2.pop %v4375
      %v4491 = vmul.f32 %v4490, 0.6931472
      %v4492 = vlog2.pop %v4376
      %v4493 = vmul.f32 %v4492, 0.6931472
      %v4494 = vlog2.pop %v4377
      %v4495 = vmul.f32 %v4494, 0.6931472
      %v4496 = vlog2.pop %v4378
      %v4497 = vmul.f32 %v4496, 0.6931472
      %v4498 = vlog2.pop %v4379
      %v4499 = vmul.f32 %v4498, 0.6931472
      %v4500 = vlog2.pop %v4380
      %v4501 = vmul.f32 %v4500, 0.6931472
      %v4502 = vlog2.pop %v4381
      %v4503 = vmul.f32 %v4502, 0.6931472
      %v4504 = vlog2.pop %v4382
      %v4505 = vmul.f32 %v4504, 0.6931472
      %v4506 = vlog2.pop %v4383
      %v4507 = vmul.f32 %v4506, 0.6931472
      %v4508 = vlog2.pop %v4384
      %v4509 = vmul.f32 %v4508, 0.6931472
      %v4510 = vlog2.pop %v4385
      %v4511 = vmul.f32 %v4510, 0.6931472
      %v4512 = vlog2.pop %v4386
      %v4513 = vmul.f32 %v4512, 0.6931472
      %v4514 = vlog2.pop %v4387
      %v4515 = vmul.f32 %v4514, 0.6931472
      %v4516 = vmul.f32 %v4389, 0.4342945
      %v4517 = vmul.f32 %v4391, 0.4342945
      %v4518 = vmul.f32 %v4393, 0.4342945
      %v4519 = vmul.f32 %v4395, 0.4342945
      %v4520 = vmul.f32 %v4397, 0.4342945
      %v4521 = vmul.f32 %v4399, 0.4342945
      %v4522 = vmul.f32 %v4401, 0.4342945
      %v4523 = vmul.f32 %v4403, 0.4342945
      %v4524 = vmul.f32 %v4405, 0.4342945
      %v4525 = vmul.f32 %v4407, 0.4342945
      %v4526 = vmul.f32 %v4409, 0.4342945
      %v4527 = vmul.f32 %v4411, 0.4342945
      %v4528 = vmul.f32 %v4413, 0.4342945
      %v4529 = vmul.f32 %v4415, 0.4342945
      %v4530 = vmul.f32 %v4417, 0.4342945
      %v4531 = vmul.f32 %v4419, 0.4342945
      %v4532 = vmul.f32 %v4421, 0.4342945
      %v4533 = vmul.f32 %v4423, 0.4342945
      %v4534 = vmul.f32 %v4425, 0.4342945
      %v4535 = vmul.f32 %v4427, 0.4342945
      %v4536 = vmul.f32 %v4429, 0.4342945
      %v4537 = vmul.f32 %v4431, 0.4342945
      %v4538 = vmul.f32 %v4433, 0.4342945
      %v4539 = vmul.f32 %v4435, 0.4342945
      %v4540 = vmul.f32 %v4437, 0.4342945
      %v4541 = vmul.f32 %v4439, 0.4342945
      %v4542 = vmul.f32 %v4441, 0.4342945
      %v4543 = vmul.f32 %v4443, 0.4342945
      %v4544 = vmul.f32 %v4445, 0.4342945
      %v4545 = vmul.f32 %v4447, 0.4342945
      %v4546 = vmul.f32 %v4449, 0.4342945
      %v4547 = vmul.f32 %v4451, 0.4342945
      %v4548 = vmul.f32 %v4453, 0.4342945
      %v4549 = vmul.f32 %v4455, 0.4342945
      %v4550 = vmul.f32 %v4457, 0.4342945
      %v4551 = vmul.f32 %v4459, 0.4342945
      %v4552 = vmul.f32 %v4461, 0.4342945
      %v4553 = vmul.f32 %v4463, 0.4342945
      %v4554 = vmul.f32 %v4465, 0.4342945
      %v4555 = vmul.f32 %v4467, 0.4342945
      %v4556 = vmul.f32 %v4469, 0.4342945
      %v4557 = vmul.f32 %v4471, 0.4342945
      %v4558 = vmul.f32 %v4473, 0.4342945
      %v4559 = vmul.f32 %v4475, 0.4342945
      %v4560 = vmul.f32 %v4477, 0.4342945
      %v4561 = vmul.f32 %v4479, 0.4342945
      %v4562 = vmul.f32 %v4481, 0.4342945
      %v4563 = vmul.f32 %v4483, 0.4342945
      %v4564 = vmul.f32 %v4485, 0.4342945
      %v4565 = vmul.f32 %v4487, 0.4342945
      %v4566 = vmul.f32 %v4489, 0.4342945
      %v4567 = vmul.f32 %v4491, 0.4342945
      %v4568 = vmul.f32 %v4493, 0.4342945
      %v4569 = vmul.f32 %v4495, 0.4342945
      %v4570 = vmul.f32 %v4497, 0.4342945
      %v4571 = vmul.f32 %v4499, 0.4342945
      %v4572 = vmul.f32 %v4501, 0.4342945
      %v4573 = vmul.f32 %v4503, 0.4342945
      %v4574 = vmul.f32 %v4505, 0.4342945
      %v4575 = vmul.f32 %v4507, 0.4342945
      %v4576 = vmul.f32 %v4509, 0.4342945
      %v4577 = vmul.f32 %v4511, 0.4342945
      %v4578 = vmul.f32 %v4513, 0.4342945
      %v4579 = vmul.f32 %v4515, 0.4342945
      %v4580 = vmax.f32 %v4516, %v4520
      %v4581 = vmax.f32 %v4517, %v4521
      %v4582 = vmax.f32 %v4518, %v4522
      %v4583 = vmax.f32 %v4519, %v4523
      %v4584 = vmax.f32 %v4580, %v4524
      %v4585 = vmax.f32 %v4581, %v4525
      %v4586 = vmax.f32 %v4582, %v4526
      %v4587 = vmax.f32 %v4583, %v4527
      %v4588 = vmax.f32 %v4584, %v4528
      %v4589 = vmax.f32 %v4585, %v4529
      %v4590 = vmax.f32 %v4586, %v4530
      %v4591 = vmax.f32 %v4587, %v4531
      %v4592 = vmax.f32 %v4588, %v4589
      %v4593 = vmax.f32 %v4590, %v4591
      %v4594 = vmax.f32 %v4592, %v4593
      %4595 = vmax.xlane.f32.xlu0 %v4594
      %v4596 = vpop.xlane.xlu0 %4595
      %v4597 = vrot.slane %v4596, 4
      %v4598 = vmax.f32 %v4596, %v4597
      %v4599 = vrot.slane %v4598, 2
      %v4600 = vmax.f32 %v4598, %v4599
      %v4601 = vrot.slane %v4600, 1
      %v4602 = vmax.f32 %v4600, %v4601
      %s4603 = vtos %v4602
      %v4604 = vmul.f32 %v4516, 0.125
      %v4605 = vmul.f32 %v4517, 0.125
      %v4606 = vmul.f32 %v4518, 0.125
      %v4607 = vmul.f32 %v4519, 0.125
      %v4608 = vmul.f32 %v4520, 0.125
      %v4609 = vmul.f32 %v4521, 0.125
      %v4610 = vmul.f32 %v4522, 0.125
      %v4611 = vmul.f32 %v4523, 0.125
      %v4612 = vmul.f32 %v4524, 0.125
      %v4613 = vmul.f32 %v4525, 0.125
      %v4614 = vmul.f32 %v4526, 0.125
      %v4615 = vmul.f32 %v4527, 0.125
      %v4616 = vmul.f32 %v4528, 0.125
      %v4617 = vmul.f32 %v4529, 0.125
      %v4618 = vmul.f32 %v4530, 0.125
      %v4619 = vmul.f32 %v4531, 0.125
      %s4620 = smul.f32 %s4603, 0.125
      %s4621 = ssub.f32 1.0, %s4620
      %v4622 = vstv %s4621
      %v4623 = vadd.f32 %v4604, %v4622
      %v4624 = vadd.f32 %v4605, %v4622
      %v4625 = vadd.f32 %v4606, %v4622
      %v4626 = vadd.f32 %v4607, %v4622
      %v4627 = vadd.f32 %v4608, %v4622
      %v4628 = vadd.f32 %v4609, %v4622
      %v4629 = vadd.f32 %v4610, %v4622
      %v4630 = vadd.f32 %v4611, %v4622
      %v4631 = vadd.f32 %v4612, %v4622
      %v4632 = vadd.f32 %v4613, %v4622
      %v4633 = vadd.f32 %v4614, %v4622
      %v4634 = vadd.f32 %v4615, %v4622
      %v4635 = vadd.f32 %v4616, %v4622
      %v4636 = vadd.f32 %v4617, %v4622
      %v4637 = vadd.f32 %v4618, %v4622
      %v4638 = vadd.f32 %v4619, %v4622
      %v4639 = vpack.c.bf16 %v4624, %v4623
      %v4640 = vpack.c.bf16 %v4626, %v4625
      %v4641 = vpack.c.bf16 %v4628, %v4627
      %v4642 = vpack.c.bf16 %v4630, %v4629
      %v4643 = vpack.c.bf16 %v4632, %v4631
      %v4644 = vpack.c.bf16 %v4634, %v4633
      %v4645 = vpack.c.bf16 %v4636, %v4635
      %v4646 = vpack.c.bf16 %v4638, %v4637
      %v4647 = vmax.f32 %v4532, %v4536
      %v4648 = vmax.f32 %v4533, %v4537
      %v4649 = vmax.f32 %v4534, %v4538
      %v4650 = vmax.f32 %v4535, %v4539
      %v4651 = vmax.f32 %v4647, %v4540
      %v4652 = vmax.f32 %v4648, %v4541
      %v4653 = vmax.f32 %v4649, %v4542
      %v4654 = vmax.f32 %v4650, %v4543
      %v4655 = vmax.f32 %v4651, %v4544
      %v4656 = vmax.f32 %v4652, %v4545
      %v4657 = vmax.f32 %v4653, %v4546
      %v4658 = vmax.f32 %v4654, %v4547
      %v4659 = vmax.f32 %v4655, %v4656
      %v4660 = vmax.f32 %v4657, %v4658
      %v4661 = vmax.f32 %v4659, %v4660
      %4662 = vmax.xlane.f32.xlu0 %v4661
      %v4663 = vpop.xlane.xlu0 %4662
      %v4664 = vrot.slane %v4663, 4
      %v4665 = vmax.f32 %v4663, %v4664
      %v4666 = vrot.slane %v4665, 2
      %v4667 = vmax.f32 %v4665, %v4666
      %v4668 = vrot.slane %v4667, 1
      %v4669 = vmax.f32 %v4667, %v4668
      %s4670 = vtos %v4669
      %v4671 = vmul.f32 %v4532, 0.125
      %v4672 = vmul.f32 %v4533, 0.125
      %v4673 = vmul.f32 %v4534, 0.125
      %v4674 = vmul.f32 %v4535, 0.125
      %v4675 = vmul.f32 %v4536, 0.125
      %v4676 = vmul.f32 %v4537, 0.125
      %v4677 = vmul.f32 %v4538, 0.125
      %v4678 = vmul.f32 %v4539, 0.125
      %v4679 = vmul.f32 %v4540, 0.125
      %v4680 = vmul.f32 %v4541, 0.125
      %v4681 = vmul.f32 %v4542, 0.125
      %v4682 = vmul.f32 %v4543, 0.125
      %v4683 = vmul.f32 %v4544, 0.125
      %v4684 = vmul.f32 %v4545, 0.125
      %v4685 = vmul.f32 %v4546, 0.125
      %v4686 = vmul.f32 %v4547, 0.125
      %s4687 = smul.f32 %s4670, 0.125
      %s4688 = ssub.f32 1.0, %s4687
      %v4689 = vstv %s4688
      %v4690 = vadd.f32 %v4671, %v4689
      %v4691 = vadd.f32 %v4672, %v4689
      %v4692 = vadd.f32 %v4673, %v4689
      %v4693 = vadd.f32 %v4674, %v4689
      %v4694 = vadd.f32 %v4675, %v4689
      %v4695 = vadd.f32 %v4676, %v4689
      %v4696 = vadd.f32 %v4677, %v4689
      %v4697 = vadd.f32 %v4678, %v4689
      %v4698 = vadd.f32 %v4679, %v4689
      %v4699 = vadd.f32 %v4680, %v4689
      %v4700 = vadd.f32 %v4681, %v4689
      %v4701 = vadd.f32 %v4682, %v4689
      %v4702 = vadd.f32 %v4683, %v4689
      %v4703 = vadd.f32 %v4684, %v4689
      %v4704 = vadd.f32 %v4685, %v4689
      %v4705 = vadd.f32 %v4686, %v4689
      %v4706 = vpack.c.bf16 %v4691, %v4690
      %v4707 = vpack.c.bf16 %v4693, %v4692
      %v4708 = vpack.c.bf16 %v4695, %v4694
      %v4709 = vpack.c.bf16 %v4697, %v4696
      %v4710 = vpack.c.bf16 %v4699, %v4698
      %v4711 = vpack.c.bf16 %v4701, %v4700
      %v4712 = vpack.c.bf16 %v4703, %v4702
      %v4713 = vpack.c.bf16 %v4705, %v4704
      %v4714 = vmax.f32 %v4548, %v4552
      %v4715 = vmax.f32 %v4549, %v4553
      %v4716 = vmax.f32 %v4550, %v4554
      %v4717 = vmax.f32 %v4551, %v4555
      %v4718 = vmax.f32 %v4714, %v4556
      %v4719 = vmax.f32 %v4715, %v4557
      %v4720 = vmax.f32 %v4716, %v4558
      %v4721 = vmax.f32 %v4717, %v4559
      %v4722 = vmax.f32 %v4718, %v4560
      %v4723 = vmax.f32 %v4719, %v4561
      %v4724 = vmax.f32 %v4720, %v4562
      %v4725 = vmax.f32 %v4721, %v4563
      %v4726 = vmax.f32 %v4722, %v4723
      %v4727 = vmax.f32 %v4724, %v4725
      %v4728 = vmax.f32 %v4726, %v4727
      %4729 = vmax.xlane.f32.xlu0 %v4728
      %v4730 = vpop.xlane.xlu0 %4729
      %v4731 = vrot.slane %v4730, 4
      %v4732 = vmax.f32 %v4730, %v4731
      %v4733 = vrot.slane %v4732, 2
      %v4734 = vmax.f32 %v4732, %v4733
      %v4735 = vrot.slane %v4734, 1
      %v4736 = vmax.f32 %v4734, %v4735
      %s4737 = vtos %v4736
      %v4738 = vmul.f32 %v4548, 0.125
      %v4739 = vmul.f32 %v4549, 0.125
      %v4740 = vmul.f32 %v4550, 0.125
      %v4741 = vmul.f32 %v4551, 0.125
      %v4742 = vmul.f32 %v4552, 0.125
      %v4743 = vmul.f32 %v4553, 0.125
      %v4744 = vmul.f32 %v4554, 0.125
      %v4745 = vmul.f32 %v4555, 0.125
      %v4746 = vmul.f32 %v4556, 0.125
      %v4747 = vmul.f32 %v4557, 0.125
      %v4748 = vmul.f32 %v4558, 0.125
      %v4749 = vmul.f32 %v4559, 0.125
      %v4750 = vmul.f32 %v4560, 0.125
      %v4751 = vmul.f32 %v4561, 0.125
      %v4752 = vmul.f32 %v4562, 0.125
      %v4753 = vmul.f32 %v4563, 0.125
      %s4754 = smul.f32 %s4737, 0.125
      %s4755 = ssub.f32 1.0, %s4754
      %v4756 = vstv %s4755
      %v4757 = vadd.f32 %v4738, %v4756
      %v4758 = vadd.f32 %v4739, %v4756
      %v4759 = vadd.f32 %v4740, %v4756
      %v4760 = vadd.f32 %v4741, %v4756
      %v4761 = vadd.f32 %v4742, %v4756
      %v4762 = vadd.f32 %v4743, %v4756
      %v4763 = vadd.f32 %v4744, %v4756
      %v4764 = vadd.f32 %v4745, %v4756
      %v4765 = vadd.f32 %v4746, %v4756
      %v4766 = vadd.f32 %v4747, %v4756
      %v4767 = vadd.f32 %v4748, %v4756
      %v4768 = vadd.f32 %v4749, %v4756
      %v4769 = vadd.f32 %v4750, %v4756
      %v4770 = vadd.f32 %v4751, %v4756
      %v4771 = vadd.f32 %v4752, %v4756
      %v4772 = vadd.f32 %v4753, %v4756
      %v4773 = vpack.c.bf16 %v4758, %v4757
      %v4774 = vpack.c.bf16 %v4760, %v4759
      %v4775 = vpack.c.bf16 %v4762, %v4761
      %v4776 = vpack.c.bf16 %v4764, %v4763
      %v4777 = vpack.c.bf16 %v4766, %v4765
      %v4778 = vpack.c.bf16 %v4768, %v4767
      %v4779 = vpack.c.bf16 %v4770, %v4769
      %v4780 = vpack.c.bf16 %v4772, %v4771
      %v4781 = vmax.f32 %v4564, %v4568
      %v4782 = vmax.f32 %v4565, %v4569
      %v4783 = vmax.f32 %v4566, %v4570
      %v4784 = vmax.f32 %v4567, %v4571
      %v4785 = vmax.f32 %v4781, %v4572
      %v4786 = vmax.f32 %v4782, %v4573
      %v4787 = vmax.f32 %v4783, %v4574
      %v4788 = vmax.f32 %v4784, %v4575
      %v4789 = vmax.f32 %v4785, %v4576
      %v4790 = vmax.f32 %v4786, %v4577
      %v4791 = vmax.f32 %v4787, %v4578
      %v4792 = vmax.f32 %v4788, %v4579
      %v4793 = vmax.f32 %v4789, %v4790
      %v4794 = vmax.f32 %v4791, %v4792
      %v4795 = vmax.f32 %v4793, %v4794
      %4796 = vmax.xlane.f32.xlu0 %v4795
      %v4797 = vpop.xlane.xlu0 %4796
      %v4798 = vrot.slane %v4797, 4
      %v4799 = vmax.f32 %v4797, %v4798
      %v4800 = vrot.slane %v4799, 2
      %v4801 = vmax.f32 %v4799, %v4800
      %v4802 = vrot.slane %v4801, 1
      %v4803 = vmax.f32 %v4801, %v4802
      %s4804 = vtos %v4803
      %v4805 = vmul.f32 %v4564, 0.125
      %v4806 = vmul.f32 %v4565, 0.125
      %v4807 = vmul.f32 %v4566, 0.125
      %v4808 = vmul.f32 %v4567, 0.125
      %v4809 = vmul.f32 %v4568, 0.125
      %v4810 = vmul.f32 %v4569, 0.125
      %v4811 = vmul.f32 %v4570, 0.125
      %v4812 = vmul.f32 %v4571, 0.125
      %v4813 = vmul.f32 %v4572, 0.125
      %v4814 = vmul.f32 %v4573, 0.125
      %v4815 = vmul.f32 %v4574, 0.125
      %v4816 = vmul.f32 %v4575, 0.125
      %v4817 = vmul.f32 %v4576, 0.125
      %v4818 = vmul.f32 %v4577, 0.125
      %v4819 = vmul.f32 %v4578, 0.125
      %v4820 = vmul.f32 %v4579, 0.125
      %s4821 = smul.f32 %s4804, 0.125
      %s4822 = ssub.f32 1.0, %s4821
      %v4823 = vstv %s4822
      %v4824 = vadd.f32 %v4805, %v4823
      %v4825 = vadd.f32 %v4806, %v4823
      %v4826 = vadd.f32 %v4807, %v4823
      %v4827 = vadd.f32 %v4808, %v4823
      %v4828 = vadd.f32 %v4809, %v4823
      %v4829 = vadd.f32 %v4810, %v4823
      %v4830 = vadd.f32 %v4811, %v4823
      %v4831 = vadd.f32 %v4812, %v4823
      %v4832 = vadd.f32 %v4813, %v4823
      %v4833 = vadd.f32 %v4814, %v4823
      %v4834 = vadd.f32 %v4815, %v4823
      %v4835 = vadd.f32 %v4816, %v4823
      %v4836 = vadd.f32 %v4817, %v4823
      %v4837 = vadd.f32 %v4818, %v4823
      %v4838 = vadd.f32 %v4819, %v4823
      %v4839 = vadd.f32 %v4820, %v4823
      %v4840 = vpack.c.bf16 %v4825, %v4824
      %v4841 = vpack.c.bf16 %v4827, %v4826
      %v4842 = vpack.c.bf16 %v4829, %v4828
      %v4843 = vpack.c.bf16 %v4831, %v4830
      %v4844 = vpack.c.bf16 %v4833, %v4832
      %v4845 = vpack.c.bf16 %v4835, %v4834
      %v4846 = vpack.c.bf16 %v4837, %v4836
      %v4847 = vpack.c.bf16 %v4839, %v4838
      %v4848 = vld [vmem:[%s5] sm:$0xf]
      %v4849 = vld [vmem:[%s5 + $0x4] sm:$0xf]
      %v4850 = vld [vmem:[%s5 + $0x8] sm:$0xf]
      %v4851 = vld [vmem:[%s5 + $0xc] sm:$0xf]
      %v4852 = vld [vmem:[%s5 + $0x10] sm:$0xf]
      %v4853 = vld [vmem:[%s5 + $0x14] sm:$0xf]
      %v4854 = vld [vmem:[%s5 + $0x18] sm:$0xf]
      %v4855 = vld [vmem:[%s5 + $0x1c] sm:$0xf]
      %v4856 = vld [vmem:[%s5 + $0x20] sm:$0xf]
      %v4857 = vld [vmem:[%s5 + $0x24] sm:$0xf]
      %v4858 = vld [vmem:[%s5 + $0x28] sm:$0xf]
      %v4859 = vld [vmem:[%s5 + $0x2c] sm:$0xf]
      %v4860 = vld [vmem:[%s5 + $0x30] sm:$0xf]
      %v4861 = vld [vmem:[%s5 + $0x34] sm:$0xf]
      %v4862 = vld [vmem:[%s5 + $0x38] sm:$0xf]
      %v4863 = vld [vmem:[%s5 + $0x3c] sm:$0xf]
      %v4880 = vunpack.c.l.b16 %v4848
      %v4881 = vunpack.c.l.b16 %v4849
      %v4882 = vunpack.c.l.b16 %v4850
      %v4883 = vunpack.c.l.b16 %v4851
      %v4884 = vunpack.c.l.b16 %v4852
      %v4885 = vunpack.c.l.b16 %v4853
      %v4886 = vunpack.c.l.b16 %v4854
      %v4887 = vunpack.c.l.b16 %v4855
      %v4888 = vunpack.c.l.b16 %v4856
      %v4889 = vunpack.c.l.b16 %v4857
      %v4890 = vunpack.c.l.b16 %v4858
      %v4891 = vunpack.c.l.b16 %v4859
      %v4892 = vunpack.c.l.b16 %v4860
      %v4893 = vunpack.c.l.b16 %v4861
      %v4894 = vunpack.c.l.b16 %v4862
      %v4895 = vunpack.c.l.b16 %v4863
      %v4896 = vpack.c.b16 %v4881, %v4880
      %v4897 = vpack.c.b16 %v4883, %v4882
      %v4898 = vpack.c.b16 %v4885, %v4884
      %v4899 = vpack.c.b16 %v4887, %v4886
      %v4900 = vpack.c.b16 %v4889, %v4888
      %v4901 = vpack.c.b16 %v4891, %v4890
      %v4902 = vpack.c.b16 %v4893, %v4892
      %v4903 = vpack.c.b16 %v4895, %v4894
      %4912 = vmatprep.subr.bf16.mxu0 0
      %4913 = vmatpush1.bf16.msra.mxu0 %v4896
      %4914 = vmatprep.subr.bf16.mxu0 0
      %4915 = vmatpush1.bf16.msra.mxu0 %v4897
      %4916 = vmatprep.subr.bf16.mxu0 0
      %4917 = vmatpush1.bf16.msra.mxu0 %v4898
      %4918 = vmatprep.subr.bf16.mxu0 0
      %4919 = vmatpush1.bf16.msra.mxu0 %v4899
      %4920 = vmatprep.subr.bf16.mxu0 0
      %4921 = vmatpush1.bf16.msra.mxu0 %v4900
      %4922 = vmatprep.subr.bf16.mxu0 0
      %4923 = vmatpush1.bf16.msra.mxu0 %v4901
      %4924 = vmatprep.subr.bf16.mxu0 0
      %4925 = vmatpush1.bf16.msra.mxu0 %v4902
      %4926 = vmatprep.subr.bf16.mxu0 0
      %4927 = vmatpush1.bf16.msra.mxu0 %v4903
      %4928 = vmatprep.subr.bf16.mxu0 0
      %4929 = vmatpush1.bf16.msra.mxu0 0
      %4930 = vmatprep.subr.bf16.mxu0 0
      %4931 = vmatpush1.bf16.msra.mxu0 0
      %4932 = vmatprep.subr.bf16.mxu0 0
      %4933 = vmatpush1.bf16.msra.mxu0 0
      %4934 = vmatprep.subr.bf16.mxu0 0
      %4935 = vmatpush1.bf16.msra.mxu0 0
      %4936 = vmatprep.subr.bf16.mxu0 0
      %4937 = vmatpush1.bf16.msra.mxu0 0
      %4938 = vmatprep.subr.bf16.mxu0 0
      %4939 = vmatpush1.bf16.msra.mxu0 0
      %4940 = vmatprep.subr.bf16.mxu0 0
      %4941 = vmatpush1.bf16.msra.mxu0 0
      %4942 = vmatprep.subr.bf16.mxu0 0
      %4943 = vmatpush1.bf16.msra.mxu0 0
      %4944 = vmatprep.mubr.bf16.mxu0 0
      %4945 = vmatmul.mubr.bf16.gmra.mrb[0].mxu0 %v4639
      %v4946 = vpop.f32.mrb[0].mxu0
      %v4947 = vadd.f32 0.0, %v4946
      %v4948 = vpop.f32.mrb[0].mxu0
      %v4949 = vpop.f32.mrb[0].mxu0
      %v4950 = vadd.f32 0.0, %v4949
      %v4951 = vpop.f32.mrb[0].mxu0
      %4952 = vmatprep.mubr.bf16.mxu0 0
      %4953 = vmatmul.mubr.bf16.gmra.mrb[0].mxu0 %v4640
      %v4954 = vpop.f32.mrb[0].mxu0
      %v4955 = vadd.f32 0.0, %v4954
      %v4956 = vpop.f32.mrb[0].mxu0
      %v4957 = vpop.f32.mrb[0].mxu0
      %v4958 = vadd.f32 0.0, %v4957
      %v4959 = vpop.f32.mrb[0].mxu0
      %4960 = vmatprep.mubr.bf16.mxu0 0
      %4961 = vmatmul.mubr.bf16.gmra.mrb[0].mxu0 %v4641
      %v4962 = vpop.f32.mrb[0].mxu0
      %v4963 = vadd.f32 0.0, %v4962
      %v4964 = vpop.f32.mrb[0].mxu0
      %v4965 = vpop.f32.mrb[0].mxu0
      %v4966 = vadd.f32 0.0, %v4965
      %v4967 = vpop.f32.mrb[0].mxu0
      %4968 = vmatprep.mubr.bf16.mxu0 0
      %4969 = vmatmul.mubr.bf16.gmra.mrb[0].mxu0 %v4642
      %v4970 = vpop.f32.mrb[0].mxu0
      %v4971 = vadd.f32 0.0, %v4970
      %v4972 = vpop.f32.mrb[0].mxu0
      %v4973 = vpop.f32.mrb[0].mxu0
      %v4974 = vadd.f32 0.0, %v4973
      %v4975 = vpop.f32.mrb[0].mxu0
      %4976 = vmatprep.mubr.bf16.mxu0 0
      %4977 = vmatmul.mubr.bf16.gmra.mrb[0].mxu0 %v4643
      %v4978 = vpop.f32.mrb[0].mxu0
      %v4979 = vadd.f32 0.0, %v4978
      %v4980 = vpop.f32.mrb[0].mxu0
      %v4981 = vpop.f32.mrb[0].mxu0
      %v4982 = vadd.f32 0.0, %v4981
      %v4983 = vpop.f32.mrb[0].mxu0
      %4984 = vmatprep.mubr.bf16.mxu0 0
      %4985 = vmatmul.mubr.bf16.gmra.mrb[0].mxu0 %v4644
      %v4986 = vpop.f32.mrb[0].mxu0
      %v4987 = vadd.f32 0.0, %v4986
      %v4988 = vpop.f32.mrb[0].mxu0
      %v4989 = vpop.f32.mrb[0].mxu0
      %v4990 = vadd.f32 0.0, %v4989
      %v4991 = vpop.f32.mrb[0].mxu0
      %4992 = vmatprep.mubr.bf16.mxu0 0
      %4993 = vmatmul.mubr.bf16.gmra.mrb[0].mxu0 %v4645
      %v4994 = vpop.f32.mrb[0].mxu0
      %v4995 = vadd.f32 0.0, %v4994
      %v4996 = vpop.f32.mrb[0].mxu0
      %v4997 = vpop.f32.mrb[0].mxu0
      %v4998 = vadd.f32 0.0, %v4997
      %v4999 = vpop.f32.mrb[0].mxu0
      %5000 = vmatprep.mubr.bf16.mxu0 0
      %5001 = vmatmul.mubr.bf16.gmra.mrb[0].mxu0 %v4646
      %v5002 = vpop.f32.mrb[0].mxu0
      %v5003 = vadd.f32 0.0, %v5002
      %v5004 = vpop.f32.mrb[0].mxu0
      %v5005 = vpop.f32.mrb[0].mxu0
      %v5006 = vadd.f32 0.0, %v5005
      %v5007 = vpop.f32.mrb[0].mxu0
      %5008 = vmatprep.mubr.bf16.mxu0 0
      %5009 = vmatmul.mubr.bf16.gmra.mrb[0].mxu0 %v4706
      %v5010 = vpop.f32.mrb[0].mxu0
      %v5011 = vadd.f32 0.0, %v5010
      %v5012 = vpop.f32.mrb[0].mxu0
      %v5013 = vpop.f32.mrb[0].mxu0
      %v5014 = vadd.f32 0.0, %v5013
      %v5015 = vpop.f32.mrb[0].mxu0
      %5016 = vmatprep.mubr.bf16.mxu0 0
      %5017 = vmatmul.mubr.bf16.gmra.mrb[0].mxu0 %v4707
      %v5018 = vpop.f32.mrb[0].mxu0
      %v5019 = vadd.f32 0.0, %v5018
      %v5020 = vpop.f32.mrb[0].mxu0
      %v5021 = vpop.f32.mrb[0].mxu0
      %v5022 = vadd.f32 0.0, %v5021
      %v5023 = vpop.f32.mrb[0].mxu0
      %5024 = vmatprep.mubr.bf16.mxu0 0
      %5025 = vmatmul.mubr.bf16.gmra.mrb[0].mxu0 %v4708
      %v5026 = vpop.f32.mrb[0].mxu0
      %v5027 = vadd.f32 0.0, %v5026
      %v5028 = vpop.f32.mrb[0].mxu0
      %v5029 = vpop.f32.mrb[0].mxu0
      %v5030 = vadd.f32 0.0, %v5029
      %v5031 = vpop.f32.mrb[0].mxu0
      %5032 = vmatprep.mubr.bf16.mxu0 0
      %5033 = vmatmul.mubr.bf16.gmra.mrb[0].mxu0 %v4709
      %v5034 = vpop.f32.mrb[0].mxu0
      %v5035 = vadd.f32 0.0, %v5034
      %v5036 = vpop.f32.mrb[0].mxu0
      %v5037 = vpop.f32.mrb[0].mxu0
      %v5038 = vadd.f32 0.0, %v5037
      %v5039 = vpop.f32.mrb[0].mxu0
      %5040 = vmatprep.mubr.bf16.mxu0 0
      %5041 = vmatmul.mubr.bf16.gmra.mrb[0].mxu0 %v4710
      %v5042 = vpop.f32.mrb[0].mxu0
      %v5043 = vadd.f32 0.0, %v5042
      %v5044 = vpop.f32.mrb[0].mxu0
      %v5045 = vpop.f32.mrb[0].mxu0
      %v5046 = vadd.f32 0.0, %v5045
      %v5047 = vpop.f32.mrb[0].mxu0
      %5048 = vmatprep.mubr.bf16.mxu0 0
      %5049 = vmatmul.mubr.bf16.gmra.mrb[0].mxu0 %v4711
      %v5050 = vpop.f32.mrb[0].mxu0
      %v5051 = vadd.f32 0.0, %v5050
      %v5052 = vpop.f32.mrb[0].mxu0
      %v5053 = vpop.f32.mrb[0].mxu0
      %v5054 = vadd.f32 0.0, %v5053
      %v5055 = vpop.f32.mrb[0].mxu0
      %5056 = vmatprep.mubr.bf16.mxu0 0
      %5057 = vmatmul.mubr.bf16.gmra.mrb[0].mxu0 %v4712
      %v5058 = vpop.f32.mrb[0].mxu0
      %v5059 = vadd.f32 0.0, %v5058
      %v5060 = vpop.f32.mrb[0].mxu0
      %v5061 = vpop.f32.mrb[0].mxu0
      %v5062 = vadd.f32 0.0, %v5061
      %v5063 = vpop.f32.mrb[0].mxu0
      %5064 = vmatprep.mubr.bf16.mxu0 0
      %5065 = vmatmul.mubr.bf16.gmra.mrb[0].mxu0 %v4713
      %v5066 = vpop.f32.mrb[0].mxu0
      %v5067 = vadd.f32 0.0, %v5066
      %v5068 = vpop.f32.mrb[0].mxu0
      %v5069 = vpop.f32.mrb[0].mxu0
      %v5070 = vadd.f32 0.0, %v5069
      %v5071 = vpop.f32.mrb[0].mxu0
      %5072 = vmatprep.mubr.bf16.mxu0 0
      %5073 = vmatmul.mubr.bf16.gmra.mrb[0].mxu0 %v4773
      %v5074 = vpop.f32.mrb[0].mxu0
      %v5075 = vadd.f32 0.0, %v5074
      %v5076 = vpop.f32.mrb[0].mxu0
      %v5077 = vpop.f32.mrb[0].mxu0
      %v5078 = vadd.f32 0.0, %v5077
      %v5079 = vpop.f32.mrb[0].mxu0
      %5080 = vmatprep.mubr.bf16.mxu0 0
      %5081 = vmatmul.mubr.bf16.gmra.mrb[0].mxu0 %v4774
      %v5082 = vpop.f32.mrb[0].mxu0
      %v5083 = vadd.f32 0.0, %v5082
      %v5084 = vpop.f32.mrb[0].mxu0
      %v5085 = vpop.f32.mrb[0].mxu0
      %v5086 = vadd.f32 0.0, %v5085
      %v5087 = vpop.f32.mrb[0].mxu0
      %5088 = vmatprep.mubr.bf16.mxu0 0
      %5089 = vmatmul.mubr.bf16.gmra.mrb[0].mxu0 %v4775
      %v5090 = vpop.f32.mrb[0].mxu0
      %v5091 = vadd.f32 0.0, %v5090
      %v5092 = vpop.f32.mrb[0].mxu0
      %v5093 = vpop.f32.mrb[0].mxu0
      %v5094 = vadd.f32 0.0, %v5093
      %v5095 = vpop.f32.mrb[0].mxu0
      %5096 = vmatprep.mubr.bf16.mxu0 0
      %5097 = vmatmul.mubr.bf16.gmra.mrb[0].mxu0 %v4776
      %v5098 = vpop.f32.mrb[0].mxu0
      %v5099 = vadd.f32 0.0, %v5098
      %v5100 = vpop.f32.mrb[0].mxu0
      %v5101 = vpop.f32.mrb[0].mxu0
      %v5102 = vadd.f32 0.0, %v5101
      %v5103 = vpop.f32.mrb[0].mxu0
      %5104 = vmatprep.mubr.bf16.mxu0 0
      %5105 = vmatmul.mubr.bf16.gmra.mrb[0].mxu0 %v4777
      %v5106 = vpop.f32.mrb[0].mxu0
      %v5107 = vadd.f32 0.0, %v5106
      %v5108 = vpop.f32.mrb[0].mxu0
      %v5109 = vpop.f32.mrb[0].mxu0
      %v5110 = vadd.f32 0.0, %v5109
      %v5111 = vpop.f32.mrb[0].mxu0
      %5112 = vmatprep.mubr.bf16.mxu0 0
      %5113 = vmatmul.mubr.bf16.gmra.mrb[0].mxu0 %v4778
      %v5114 = vpop.f32.mrb[0].mxu0
      %v5115 = vadd.f32 0.0, %v5114
      %v5116 = vpop.f32.mrb[0].mxu0
      %v5117 = vpop.f32.mrb[0].mxu0
      %v5118 = vadd.f32 0.0, %v5117
      %v5119 = vpop.f32.mrb[0].mxu0
      %5120 = vmatprep.mubr.bf16.mxu0 0
      %5121 = vmatmul.mubr.bf16.gmra.mrb[0].mxu0 %v4779
      %v5122 = vpop.f32.mrb[0].mxu0
      %v5123 = vadd.f32 0.0, %v5122
      %v5124 = vpop.f32.mrb[0].mxu0
      %v5125 = vpop.f32.mrb[0].mxu0
      %v5126 = vadd.f32 0.0, %v5125
      %v5127 = vpop.f32.mrb[0].mxu0
      %5128 = vmatprep.mubr.bf16.mxu0 0
      %5129 = vmatmul.mubr.bf16.gmra.mrb[0].mxu0 %v4780
      %v5130 = vpop.f32.mrb[0].mxu0
      %v5131 = vadd.f32 0.0, %v5130
      %v5132 = vpop.f32.mrb[0].mxu0
      %v5133 = vpop.f32.mrb[0].mxu0
      %v5134 = vadd.f32 0.0, %v5133
      %v5135 = vpop.f32.mrb[0].mxu0
      %5136 = vmatprep.mubr.bf16.mxu0 0
      %5137 = vmatmul.mubr.bf16.gmra.mrb[0].mxu0 %v4840
      %v5138 = vpop.f32.mrb[0].mxu0
      %v5139 = vadd.f32 0.0, %v5138
      %v5140 = vpop.f32.mrb[0].mxu0
      %v5141 = vpop.f32.mrb[0].mxu0
      %v5142 = vadd.f32 0.0, %v5141
      %v5143 = vpop.f32.mrb[0].mxu0
      %5144 = vmatprep.mubr.bf16.mxu0 0
      %5145 = vmatmul.mubr.bf16.gmra.mrb[0].mxu0 %v4841
      %v5146 = vpop.f32.mrb[0].mxu0
      %v5147 = vadd.f32 0.0, %v5146
      %v5148 = vpop.f32.mrb[0].mxu0
      %v5149 = vpop.f32.mrb[0].mxu0
      %v5150 = vadd.f32 0.0, %v5149
      %v5151 = vpop.f32.mrb[0].mxu0
      %5152 = vmatprep.mubr.bf16.mxu0 0
      %5153 = vmatmul.mubr.bf16.gmra.mrb[0].mxu0 %v4842
      %v5154 = vpop.f32.mrb[0].mxu0
      %v5155 = vadd.f32 0.0, %v5154
      %v5156 = vpop.f32.mrb[0].mxu0
      %v5157 = vpop.f32.mrb[0].mxu0
      %v5158 = vadd.f32 0.0, %v5157
      %v5159 = vpop.f32.mrb[0].mxu0
      %5160 = vmatprep.mubr.bf16.mxu0 0
      %5161 = vmatmul.mubr.bf16.gmra.mrb[0].mxu0 %v4843
      %v5162 = vpop.f32.mrb[0].mxu0
      %v5163 = vadd.f32 0.0, %v5162
      %v5164 = vpop.f32.mrb[0].mxu0
      %v5165 = vpop.f32.mrb[0].mxu0
      %v5166 = vadd.f32 0.0, %v5165
      %v5167 = vpop.f32.mrb[0].mxu0
      %5168 = vmatprep.mubr.bf16.mxu0 0
      %5169 = vmatmul.mubr.bf16.gmra.mrb[0].mxu0 %v4844
      %v5170 = vpop.f32.mrb[0].mxu0
      %v5171 = vadd.f32 0.0, %v5170
      %v5172 = vpop.f32.mrb[0].mxu0
      %v5173 = vpop.f32.mrb[0].mxu0
      %v5174 = vadd.f32 0.0, %v5173
      %v5175 = vpop.f32.mrb[0].mxu0
      %5176 = vmatprep.mubr.bf16.mxu0 0
      %5177 = vmatmul.mubr.bf16.gmra.mrb[0].mxu0 %v4845
      %v5178 = vpop.f32.mrb[0].mxu0
      %v5179 = vadd.f32 0.0, %v5178
      %v5180 = vpop.f32.mrb[0].mxu0
      %v5181 = vpop.f32.mrb[0].mxu0
      %v5182 = vadd.f32 0.0, %v5181
      %v5183 = vpop.f32.mrb[0].mxu0
      %5184 = vmatprep.mubr.bf16.mxu0 0
      %5185 = vmatmul.mubr.bf16.gmra.mrb[0].mxu0 %v4846
      %v5186 = vpop.f32.mrb[0].mxu0
      %v5187 = vadd.f32 0.0, %v5186
      %v5188 = vpop.f32.mrb[0].mxu0
      %v5189 = vpop.f32.mrb[0].mxu0
      %v5190 = vadd.f32 0.0, %v5189
      %v5191 = vpop.f32.mrb[0].mxu0
      %5192 = vmatprep.mubr.bf16.mxu0 0
      %5193 = vmatmul.mubr.bf16.gmra.mrb[0].mxu0 %v4847
      %v5194 = vpop.f32.mrb[0].mxu0
      %v5195 = vadd.f32 0.0, %v5194
      %v5196 = vpop.f32.mrb[0].mxu0
      %v5197 = vpop.f32.mrb[0].mxu0
      %v5198 = vadd.f32 0.0, %v5197
      %v5199 = vpop.f32.mrb[0].mxu0
      %5200 = vdwg.mxu0
      %v5201 = vld [vmem:[%s6] sm:$0xff]
      %v5202 = vld [vmem:[%s6 + $0x8] sm:$0xff]
      %v5203 = vld [vmem:[%s6 + $0x10] sm:$0xff]
      %v5204 = vld [vmem:[%s6 + $0x18] sm:$0xff]
      %v5205 = vld [vmem:[%s6 + $0x20] sm:$0xff]
      %v5206 = vld [vmem:[%s6 + $0x28] sm:$0xff]
      %v5207 = vld [vmem:[%s6 + $0x30] sm:$0xff]
      %v5208 = vld [vmem:[%s6 + $0x38] sm:$0xff]
      %v5209 = vld [vmem:[%s6 + $0x40] sm:$0xff]
      %v5210 = vld [vmem:[%s6 + $0x48] sm:$0xff]
      %v5211 = vld [vmem:[%s6 + $0x50] sm:$0xff]
      %v5212 = vld [vmem:[%s6 + $0x58] sm:$0xff]
      %v5213 = vld [vmem:[%s6 + $0x60] sm:$0xff]
      %v5214 = vld [vmem:[%s6 + $0x68] sm:$0xff]
      %v5215 = vld [vmem:[%s6 + $0x70] sm:$0xff]
      %v5216 = vld [vmem:[%s6 + $0x78] sm:$0xff]
      %v5217 = vld [vmem:[%s6 + $0x80] sm:$0xff]
      %v5218 = vld [vmem:[%s6 + $0x88] sm:$0xff]
      %v5219 = vld [vmem:[%s6 + $0x90] sm:$0xff]
      %v5220 = vld [vmem:[%s6 + $0x98] sm:$0xff]
      %v5221 = vld [vmem:[%s6 + $0xa0] sm:$0xff]
      %v5222 = vld [vmem:[%s6 + $0xa8] sm:$0xff]
      %v5223 = vld [vmem:[%s6 + $0xb0] sm:$0xff]
      %v5224 = vld [vmem:[%s6 + $0xb8] sm:$0xff]
      %v5225 = vld [vmem:[%s6 + $0xc0] sm:$0xff]
      %v5226 = vld [vmem:[%s6 + $0xc8] sm:$0xff]
      %v5227 = vld [vmem:[%s6 + $0xd0] sm:$0xff]
      %v5228 = vld [vmem:[%s6 + $0xd8] sm:$0xff]
      %v5229 = vld [vmem:[%s6 + $0xe0] sm:$0xff]
      %v5230 = vld [vmem:[%s6 + $0xe8] sm:$0xff]
      %v5231 = vld [vmem:[%s6 + $0xf0] sm:$0xff]
      %v5232 = vld [vmem:[%s6 + $0xf8] sm:$0xff]
      %v5233 = vld [vmem:[%s6 + $0x100] sm:$0xff]
      %v5234 = vld [vmem:[%s6 + $0x108] sm:$0xff]
      %v5235 = vld [vmem:[%s6 + $0x110] sm:$0xff]
      %v5236 = vld [vmem:[%s6 + $0x118] sm:$0xff]
      %v5237 = vld [vmem:[%s6 + $0x120] sm:$0xff]
      %v5238 = vld [vmem:[%s6 + $0x128] sm:$0xff]
      %v5239 = vld [vmem:[%s6 + $0x130] sm:$0xff]
      %v5240 = vld [vmem:[%s6 + $0x138] sm:$0xff]
      %v5241 = vld [vmem:[%s6 + $0x140] sm:$0xff]
      %v5242 = vld [vmem:[%s6 + $0x148] sm:$0xff]
      %v5243 = vld [vmem:[%s6 + $0x150] sm:$0xff]
      %v5244 = vld [vmem:[%s6 + $0x158] sm:$0xff]
      %v5245 = vld [vmem:[%s6 + $0x160] sm:$0xff]
      %v5246 = vld [vmem:[%s6 + $0x168] sm:$0xff]
      %v5247 = vld [vmem:[%s6 + $0x170] sm:$0xff]
      %v5248 = vld [vmem:[%s6 + $0x178] sm:$0xff]
      %v5249 = vld [vmem:[%s6 + $0x180] sm:$0xff]
      %v5250 = vld [vmem:[%s6 + $0x188] sm:$0xff]
      %v5251 = vld [vmem:[%s6 + $0x190] sm:$0xff]
      %v5252 = vld [vmem:[%s6 + $0x198] sm:$0xff]
      %v5253 = vld [vmem:[%s6 + $0x1a0] sm:$0xff]
      %v5254 = vld [vmem:[%s6 + $0x1a8] sm:$0xff]
      %v5255 = vld [vmem:[%s6 + $0x1b0] sm:$0xff]
      %v5256 = vld [vmem:[%s6 + $0x1b8] sm:$0xff]
      %v5257 = vld [vmem:[%s6 + $0x1c0] sm:$0xff]
      %v5258 = vld [vmem:[%s6 + $0x1c8] sm:$0xff]
      %v5259 = vld [vmem:[%s6 + $0x1d0] sm:$0xff]
      %v5260 = vld [vmem:[%s6 + $0x1d8] sm:$0xff]
      %v5261 = vld [vmem:[%s6 + $0x1e0] sm:$0xff]
      %v5262 = vld [vmem:[%s6 + $0x1e8] sm:$0xff]
      %v5263 = vld [vmem:[%s6 + $0x1f0] sm:$0xff]
      %v5264 = vld [vmem:[%s6 + $0x1f8] sm:$0xff]
      %v5265 = vld [vmem:[%s6 + $0x200] sm:$0xff]
      %v5266 = vld [vmem:[%s6 + $0x208] sm:$0xff]
      %v5267 = vld [vmem:[%s6 + $0x210] sm:$0xff]
      %v5268 = vld [vmem:[%s6 + $0x218] sm:$0xff]
      %v5269 = vld [vmem:[%s6 + $0x220] sm:$0xff]
      %v5270 = vld [vmem:[%s6 + $0x228] sm:$0xff]
      %v5271 = vld [vmem:[%s6 + $0x230] sm:$0xff]
      %v5272 = vld [vmem:[%s6 + $0x238] sm:$0xff]
      %v5273 = vld [vmem:[%s6 + $0x240] sm:$0xff]
      %v5274 = vld [vmem:[%s6 + $0x248] sm:$0xff]
      %v5275 = vld [vmem:[%s6 + $0x250] sm:$0xff]
      %v5276 = vld [vmem:[%s6 + $0x258] sm:$0xff]
      %v5277 = vld [vmem:[%s6 + $0x260] sm:$0xff]
      %v5278 = vld [vmem:[%s6 + $0x268] sm:$0xff]
      %v5279 = vld [vmem:[%s6 + $0x270] sm:$0xff]
      %v5280 = vld [vmem:[%s6 + $0x278] sm:$0xff]
      %v5281 = vld [vmem:[%s6 + $0x280] sm:$0xff]
      %v5282 = vld [vmem:[%s6 + $0x288] sm:$0xff]
      %v5283 = vld [vmem:[%s6 + $0x290] sm:$0xff]
      %v5284 = vld [vmem:[%s6 + $0x298] sm:$0xff]
      %v5285 = vld [vmem:[%s6 + $0x2a0] sm:$0xff]
      %v5286 = vld [vmem:[%s6 + $0x2a8] sm:$0xff]
      %v5287 = vld [vmem:[%s6 + $0x2b0] sm:$0xff]
      %v5288 = vld [vmem:[%s6 + $0x2b8] sm:$0xff]
      %v5289 = vld [vmem:[%s6 + $0x2c0] sm:$0xff]
      %v5290 = vld [vmem:[%s6 + $0x2c8] sm:$0xff]
      %v5291 = vld [vmem:[%s6 + $0x2d0] sm:$0xff]
      %v5292 = vld [vmem:[%s6 + $0x2d8] sm:$0xff]
      %v5293 = vld [vmem:[%s6 + $0x2e0] sm:$0xff]
      %v5294 = vld [vmem:[%s6 + $0x2e8] sm:$0xff]
      %v5295 = vld [vmem:[%s6 + $0x2f0] sm:$0xff]
      %v5296 = vld [vmem:[%s6 + $0x2f8] sm:$0xff]
      %v5297 = vld [vmem:[%s6 + $0x300] sm:$0xff]
      %v5298 = vld [vmem:[%s6 + $0x308] sm:$0xff]
      %v5299 = vld [vmem:[%s6 + $0x310] sm:$0xff]
      %v5300 = vld [vmem:[%s6 + $0x318] sm:$0xff]
      %v5301 = vld [vmem:[%s6 + $0x320] sm:$0xff]
      %v5302 = vld [vmem:[%s6 + $0x328] sm:$0xff]
      %v5303 = vld [vmem:[%s6 + $0x330] sm:$0xff]
      %v5304 = vld [vmem:[%s6 + $0x338] sm:$0xff]
      %v5305 = vld [vmem:[%s6 + $0x340] sm:$0xff]
      %v5306 = vld [vmem:[%s6 + $0x348] sm:$0xff]
      %v5307 = vld [vmem:[%s6 + $0x350] sm:$0xff]
      %v5308 = vld [vmem:[%s6 + $0x358] sm:$0xff]
      %v5309 = vld [vmem:[%s6 + $0x360] sm:$0xff]
      %v5310 = vld [vmem:[%s6 + $0x368] sm:$0xff]
      %v5311 = vld [vmem:[%s6 + $0x370] sm:$0xff]
      %v5312 = vld [vmem:[%s6 + $0x378] sm:$0xff]
      %v5313 = vld [vmem:[%s6 + $0x380] sm:$0xff]
      %v5314 = vld [vmem:[%s6 + $0x388] sm:$0xff]
      %v5315 = vld [vmem:[%s6 + $0x390] sm:$0xff]
      %v5316 = vld [vmem:[%s6 + $0x398] sm:$0xff]
      %v5317 = vld [vmem:[%s6 + $0x3a0] sm:$0xff]
      %v5318 = vld [vmem:[%s6 + $0x3a8] sm:$0xff]
      %v5319 = vld [vmem:[%s6 + $0x3b0] sm:$0xff]
      %v5320 = vld [vmem:[%s6 + $0x3b8] sm:$0xff]
      %v5321 = vld [vmem:[%s6 + $0x3c0] sm:$0xff]
      %v5322 = vld [vmem:[%s6 + $0x3c8] sm:$0xff]
      %v5323 = vld [vmem:[%s6 + $0x3d0] sm:$0xff]
      %v5324 = vld [vmem:[%s6 + $0x3d8] sm:$0xff]
      %v5325 = vld [vmem:[%s6 + $0x3e0] sm:$0xff]
      %v5326 = vld [vmem:[%s6 + $0x3e8] sm:$0xff]
      %v5327 = vld [vmem:[%s6 + $0x3f0] sm:$0xff]
      %v5328 = vld [vmem:[%s6 + $0x3f8] sm:$0xff]
      %v5329 = vld [vmem:[%s6 + $0x400] sm:$0xff]
      %v5330 = vld [vmem:[%s6 + $0x408] sm:$0xff]
      %v5331 = vld [vmem:[%s6 + $0x410] sm:$0xff]
      %v5332 = vld [vmem:[%s6 + $0x418] sm:$0xff]
      %v5333 = vld [vmem:[%s6 + $0x420] sm:$0xff]
      %v5334 = vld [vmem:[%s6 + $0x428] sm:$0xff]
      %v5335 = vld [vmem:[%s6 + $0x430] sm:$0xff]
      %v5336 = vld [vmem:[%s6 + $0x438] sm:$0xff]
      %v5337 = vld [vmem:[%s6 + $0x440] sm:$0xff]
      %v5338 = vld [vmem:[%s6 + $0x448] sm:$0xff]
      %v5339 = vld [vmem:[%s6 + $0x450] sm:$0xff]
      %v5340 = vld [vmem:[%s6 + $0x458] sm:$0xff]
      %v5341 = vld [vmem:[%s6 + $0x460] sm:$0xff]
      %v5342 = vld [vmem:[%s6 + $0x468] sm:$0xff]
      %v5343 = vld [vmem:[%s6 + $0x470] sm:$0xff]
      %v5344 = vld [vmem:[%s6 + $0x478] sm:$0xff]
      %v5345 = vld [vmem:[%s6 + $0x480] sm:$0xff]
      %v5346 = vld [vmem:[%s6 + $0x488] sm:$0xff]
      %v5347 = vld [vmem:[%s6 + $0x490] sm:$0xff]
      %v5348 = vld [vmem:[%s6 + $0x498] sm:$0xff]
      %v5349 = vld [vmem:[%s6 + $0x4a0] sm:$0xff]
      %v5350 = vld [vmem:[%s6 + $0x4a8] sm:$0xff]
      %v5351 = vld [vmem:[%s6 + $0x4b0] sm:$0xff]
      %v5352 = vld [vmem:[%s6 + $0x4b8] sm:$0xff]
      %v5353 = vld [vmem:[%s6 + $0x4c0] sm:$0xff]
      %v5354 = vld [vmem:[%s6 + $0x4c8] sm:$0xff]
      %v5355 = vld [vmem:[%s6 + $0x4d0] sm:$0xff]
      %v5356 = vld [vmem:[%s6 + $0x4d8] sm:$0xff]
      %v5357 = vld [vmem:[%s6 + $0x4e0] sm:$0xff]
      %v5358 = vld [vmem:[%s6 + $0x4e8] sm:$0xff]
      %v5359 = vld [vmem:[%s6 + $0x4f0] sm:$0xff]
      %v5360 = vld [vmem:[%s6 + $0x4f8] sm:$0xff]
      %v5361 = vld [vmem:[%s6 + $0x500] sm:$0xff]
      %v5362 = vld [vmem:[%s6 + $0x508] sm:$0xff]
      %v5363 = vld [vmem:[%s6 + $0x510] sm:$0xff]
      %v5364 = vld [vmem:[%s6 + $0x518] sm:$0xff]
      %v5365 = vld [vmem:[%s6 + $0x520] sm:$0xff]
      %v5366 = vld [vmem:[%s6 + $0x528] sm:$0xff]
      %v5367 = vld [vmem:[%s6 + $0x530] sm:$0xff]
      %v5368 = vld [vmem:[%s6 + $0x538] sm:$0xff]
      %v5369 = vld [vmem:[%s6 + $0x540] sm:$0xff]
      %v5370 = vld [vmem:[%s6 + $0x548] sm:$0xff]
      %v5371 = vld [vmem:[%s6 + $0x550] sm:$0xff]
      %v5372 = vld [vmem:[%s6 + $0x558] sm:$0xff]
      %v5373 = vld [vmem:[%s6 + $0x560] sm:$0xff]
      %v5374 = vld [vmem:[%s6 + $0x568] sm:$0xff]
      %v5375 = vld [vmem:[%s6 + $0x570] sm:$0xff]
      %v5376 = vld [vmem:[%s6 + $0x578] sm:$0xff]
      %v5377 = vld [vmem:[%s6 + $0x580] sm:$0xff]
      %v5378 = vld [vmem:[%s6 + $0x588] sm:$0xff]
      %v5379 = vld [vmem:[%s6 + $0x590] sm:$0xff]
      %v5380 = vld [vmem:[%s6 + $0x598] sm:$0xff]
      %v5381 = vld [vmem:[%s6 + $0x5a0] sm:$0xff]
      %v5382 = vld [vmem:[%s6 + $0x5a8] sm:$0xff]
      %v5383 = vld [vmem:[%s6 + $0x5b0] sm:$0xff]
      %v5384 = vld [vmem:[%s6 + $0x5b8] sm:$0xff]
      %v5385 = vld [vmem:[%s6 + $0x5c0] sm:$0xff]
      %v5386 = vld [vmem:[%s6 + $0x5c8] sm:$0xff]
      %v5387 = vld [vmem:[%s6 + $0x5d0] sm:$0xff]
      %v5388 = vld [vmem:[%s6 + $0x5d8] sm:$0xff]
      %v5389 = vld [vmem:[%s6 + $0x5e0] sm:$0xff]
      %v5390 = vld [vmem:[%s6 + $0x5e8] sm:$0xff]
      %v5391 = vld [vmem:[%s6 + $0x5f0] sm:$0xff]
      %v5392 = vld [vmem:[%s6 + $0x5f8] sm:$0xff]
      %v5393 = vpack.c.bf16 %v4950, %v4947
      %v5394 = vpack.c.bf16 %v4958, %v4955
      %v5395 = vpack.c.bf16 %v4966, %v4963
      %v5396 = vpack.c.bf16 %v4974, %v4971
      %v5397 = vpack.c.bf16 %v4982, %v4979
      %v5398 = vpack.c.bf16 %v4990, %v4987
      %v5399 = vpack.c.bf16 %v4998, %v4995
      %v5400 = vpack.c.bf16 %v5006, %v5003
      %v5401 = vpack.c.bf16 %v5014, %v5011
      %v5402 = vpack.c.bf16 %v5022, %v5019
      %v5403 = vpack.c.bf16 %v5030, %v5027
      %v5404 = vpack.c.bf16 %v5038, %v5035
      %v5405 = vpack.c.bf16 %v5046, %v5043
      %v5406 = vpack.c.bf16 %v5054, %v5051
      %v5407 = vpack.c.bf16 %v5062, %v5059
      %v5408 = vpack.c.bf16 %v5070, %v5067
      %v5409 = vpack.c.bf16 %v5078, %v5075
      %v5410 = vpack.c.bf16 %v5086, %v5083
      %v5411 = vpack.c.bf16 %v5094, %v5091
      %v5412 = vpack.c.bf16 %v5102, %v5099
      %v5413 = vpack.c.bf16 %v5110, %v5107
      %v5414 = vpack.c.bf16 %v5118, %v5115
      %v5415 = vpack.c.bf16 %v5126, %v5123
      %v5416 = vpack.c.bf16 %v5134, %v5131
      %v5417 = vpack.c.bf16 %v5142, %v5139
      %v5418 = vpack.c.bf16 %v5150, %v5147
      %v5419 = vpack.c.bf16 %v5158, %v5155
      %v5420 = vpack.c.bf16 %v5166, %v5163
      %v5421 = vpack.c.bf16 %v5174, %v5171
      %v5422 = vpack.c.bf16 %v5182, %v5179
      %v5423 = vpack.c.bf16 %v5190, %v5187
      %v5424 = vpack.c.bf16 %v5198, %v5195
      %v5617 = vunpack.c.l.b16 %v5201
      %v5618 = vunpack.c.h.b16 %v5201
      %v5619 = vunpack.c.l.b16 %v5202
      %v5620 = vunpack.c.h.b16 %v5202
      %v5621 = vunpack.c.l.b16 %v5203
      %v5622 = vunpack.c.h.b16 %v5203
      %v5623 = vunpack.c.l.b16 %v5204
      %v5624 = vunpack.c.h.b16 %v5204
      %v5625 = vunpack.c.l.b16 %v5205
      %v5626 = vunpack.c.h.b16 %v5205
      %v5627 = vunpack.c.l.b16 %v5206
      %v5628 = vunpack.c.h.b16 %v5206
      %v5629 = vunpack.c.l.b16 %v5207
      %v5630 = vunpack.c.h.b16 %v5207
      %v5631 = vunpack.c.l.b16 %v5208
      %v5632 = vunpack.c.h.b16 %v5208
      %v5633 = vunpack.c.l.b16 %v5209
      %v5634 = vunpack.c.h.b16 %v5209
      %v5635 = vunpack.c.l.b16 %v5210
      %v5636 = vunpack.c.h.b16 %v5210
      %v5637 = vunpack.c.l.b16 %v5211
      %v5638 = vunpack.c.h.b16 %v5211
      %v5639 = vunpack.c.l.b16 %v5212
      %v5640 = vunpack.c.h.b16 %v5212
      %v5641 = vunpack.c.l.b16 %v5213
      %v5642 = vunpack.c.h.b16 %v5213
      %v5643 = vunpack.c.l.b16 %v5214
      %v5644 = vunpack.c.h.b16 %v5214
      %v5645 = vunpack.c.l.b16 %v5215
      %v5646 = vunpack.c.h.b16 %v5215
      %v5647 = vunpack.c.l.b16 %v5216
      %v5648 = vunpack.c.h.b16 %v5216
      %v5649 = vunpack.c.l.b16 %v5217
      %v5650 = vunpack.c.h.b16 %v5217
      %v5651 = vunpack.c.l.b16 %v5218
      %v5652 = vunpack.c.h.b16 %v5218
      %v5653 = vunpack.c.l.b16 %v5219
      %v5654 = vunpack.c.h.b16 %v5219
      %v5655 = vunpack.c.l.b16 %v5220
      %v5656 = vunpack.c.h.b16 %v5220
      %v5657 = vunpack.c.l.b16 %v5221
      %v5658 = vunpack.c.h.b16 %v5221
      %v5659 = vunpack.c.l.b16 %v5222
      %v5660 = vunpack.c.h.b16 %v5222
      %v5661 = vunpack.c.l.b16 %v5223
      %v5662 = vunpack.c.h.b16 %v5223
      %v5663 = vunpack.c.l.b16 %v5224
      %v5664 = vunpack.c.h.b16 %v5224
      %v5665 = vunpack.c.l.b16 %v5225
      %v5666 = vunpack.c.h.b16 %v5225
      %v5667 = vunpack.c.l.b16 %v5226
      %v5668 = vunpack.c.h.b16 %v5226
      %v5669 = vunpack.c.l.b16 %v5227
      %v5670 = vunpack.c.h.b16 %v5227
      %v5671 = vunpack.c.l.b16 %v5228
      %v5672 = vunpack.c.h.b16 %v5228
      %v5673 = vunpack.c.l.b16 %v5229
      %v5674 = vunpack.c.h.b16 %v5229
      %v5675 = vunpack.c.l.b16 %v5230
      %v5676 = vunpack.c.h.b16 %v5230
      %v5677 = vunpack.c.l.b16 %v5231
      %v5678 = vunpack.c.h.b16 %v5231
      %v5679 = vunpack.c.l.b16 %v5232
      %v5680 = vunpack.c.h.b16 %v5232
      %v5681 = vunpack.c.l.b16 %v5233
      %v5682 = vunpack.c.h.b16 %v5233
      %v5683 = vunpack.c.l.b16 %v5234
      %v5684 = vunpack.c.h.b16 %v5234
      %v5685 = vunpack.c.l.b16 %v5235
      %v5686 = vunpack.c.h.b16 %v5235
      %v5687 = vunpack.c.l.b16 %v5236
      %v5688 = vunpack.c.h.b16 %v5236
      %v5689 = vunpack.c.l.b16 %v5237
      %v5690 = vunpack.c.h.b16 %v5237
      %v5691 = vunpack.c.l.b16 %v5238
      %v5692 = vunpack.c.h.b16 %v5238
      %v5693 = vunpack.c.l.b16 %v5239
      %v5694 = vunpack.c.h.b16 %v5239
      %v5695 = vunpack.c.l.b16 %v5240
      %v5696 = vunpack.c.h.b16 %v5240
      %v5697 = vunpack.c.l.b16 %v5241
      %v5698 = vunpack.c.h.b16 %v5241
      %v5699 = vunpack.c.l.b16 %v5242
      %v5700 = vunpack.c.h.b16 %v5242
      %v5701 = vunpack.c.l.b16 %v5243
      %v5702 = vunpack.c.h.b16 %v5243
      %v5703 = vunpack.c.l.b16 %v5244
      %v5704 = vunpack.c.h.b16 %v5244
      %v5705 = vunpack.c.l.b16 %v5245
      %v5706 = vunpack.c.h.b16 %v5245
      %v5707 = vunpack.c.l.b16 %v5246
      %v5708 = vunpack.c.h.b16 %v5246
      %v5709 = vunpack.c.l.b16 %v5247
      %v5710 = vunpack.c.h.b16 %v5247
      %v5711 = vunpack.c.l.b16 %v5248
      %v5712 = vunpack.c.h.b16 %v5248
      %v5713 = vunpack.c.l.b16 %v5249
      %v5714 = vunpack.c.h.b16 %v5249
      %v5715 = vunpack.c.l.b16 %v5250
      %v5716 = vunpack.c.h.b16 %v5250
      %v5717 = vunpack.c.l.b16 %v5251
      %v5718 = vunpack.c.h.b16 %v5251
      %v5719 = vunpack.c.l.b16 %v5252
      %v5720 = vunpack.c.h.b16 %v5252
      %v5721 = vunpack.c.l.b16 %v5253
      %v5722 = vunpack.c.h.b16 %v5253
      %v5723 = vunpack.c.l.b16 %v5254
      %v5724 = vunpack.c.h.b16 %v5254
      %v5725 = vunpack.c.l.b16 %v5255
      %v5726 = vunpack.c.h.b16 %v5255
      %v5727 = vunpack.c.l.b16 %v5256
      %v5728 = vunpack.c.h.b16 %v5256
      %v5729 = vunpack.c.l.b16 %v5257
      %v5730 = vunpack.c.h.b16 %v5257
      %v5731 = vunpack.c.l.b16 %v5258
      %v5732 = vunpack.c.h.b16 %v5258
      %v5733 = vunpack.c.l.b16 %v5259
      %v5734 = vunpack.c.h.b16 %v5259
      %v5735 = vunpack.c.l.b16 %v5260
      %v5736 = vunpack.c.h.b16 %v5260
      %v5737 = vunpack.c.l.b16 %v5261
      %v5738 = vunpack.c.h.b16 %v5261
      %v5739 = vunpack.c.l.b16 %v5262
      %v5740 = vunpack.c.h.b16 %v5262
      %v5741 = vunpack.c.l.b16 %v5263
      %v5742 = vunpack.c.h.b16 %v5263
      %v5743 = vunpack.c.l.b16 %v5264
      %v5744 = vunpack.c.h.b16 %v5264
      %v5745 = vunpack.c.l.b16 %v5265
      %v5746 = vunpack.c.h.b16 %v5265
      %v5747 = vunpack.c.l.b16 %v5266
      %v5748 = vunpack.c.h.b16 %v5266
      %v5749 = vunpack.c.l.b16 %v5267
      %v5750 = vunpack.c.h.b16 %v5267
      %v5751 = vunpack.c.l.b16 %v5268
      %v5752 = vunpack.c.h.b16 %v5268
      %v5753 = vunpack.c.l.b16 %v5269
      %v5754 = vunpack.c.h.b16 %v5269
      %v5755 = vunpack.c.l.b16 %v5270
      %v5756 = vunpack.c.h.b16 %v5270
      %v5757 = vunpack.c.l.b16 %v5271
      %v5758 = vunpack.c.h.b16 %v5271
      %v5759 = vunpack.c.l.b16 %v5272
      %v5760 = vunpack.c.h.b16 %v5272
      %v5761 = vunpack.c.l.b16 %v5273
      %v5762 = vunpack.c.h.b16 %v5273
      %v5763 = vunpack.c.l.b16 %v5274
      %v5764 = vunpack.c.h.b16 %v5274
      %v5765 = vunpack.c.l.b16 %v5275
      %v5766 = vunpack.c.h.b16 %v5275
      %v5767 = vunpack.c.l.b16 %v5276
      %v5768 = vunpack.c.h.b16 %v5276
      %v5769 = vunpack.c.l.b16 %v5277
      %v5770 = vunpack.c.h.b16 %v5277
      %v5771 = vunpack.c.l.b16 %v5278
      %v5772 = vunpack.c.h.b16 %v5278
      %v5773 = vunpack.c.l.b16 %v5279
      %v5774 = vunpack.c.h.b16 %v5279
      %v5775 = vunpack.c.l.b16 %v5280
      %v5776 = vunpack.c.h.b16 %v5280
      %v5777 = vunpack.c.l.b16 %v5281
      %v5778 = vunpack.c.h.b16 %v5281
      %v5779 = vunpack.c.l.b16 %v5282
      %v5780 = vunpack.c.h.b16 %v5282
      %v5781 = vunpack.c.l.b16 %v5283
      %v5782 = vunpack.c.h.b16 %v5283
      %v5783 = vunpack.c.l.b16 %v5284
      %v5784 = vunpack.c.h.b16 %v5284
      %v5785 = vunpack.c.l.b16 %v5285
      %v5786 = vunpack.c.h.b16 %v5285
      %v5787 = vunpack.c.l.b16 %v5286
      %v5788 = vunpack.c.h.b16 %v5286
      %v5789 = vunpack.c.l.b16 %v5287
      %v5790 = vunpack.c.h.b16 %v5287
      %v5791 = vunpack.c.l.b16 %v5288
      %v5792 = vunpack.c.h.b16 %v5288
      %v5793 = vunpack.c.l.b16 %v5289
      %v5794 = vunpack.c.h.b16 %v5289
      %v5795 = vunpack.c.l.b16 %v5290
      %v5796 = vunpack.c.h.b16 %v5290
      %v5797 = vunpack.c.l.b16 %v5291
      %v5798 = vunpack.c.h.b16 %v5291
      %v5799 = vunpack.c.l.b16 %v5292
      %v5800 = vunpack.c.h.b16 %v5292
      %v5801 = vunpack.c.l.b16 %v5293
      %v5802 = vunpack.c.h.b16 %v5293
      %v5803 = vunpack.c.l.b16 %v5294
      %v5804 = vunpack.c.h.b16 %v5294
      %v5805 = vunpack.c.l.b16 %v5295
      %v5806 = vunpack.c.h.b16 %v5295
      %v5807 = vunpack.c.l.b16 %v5296
      %v5808 = vunpack.c.h.b16 %v5296
      %v5809 = vunpack.c.l.b16 %v5297
      %v5810 = vunpack.c.h.b16 %v5297
      %v5811 = vunpack.c.l.b16 %v5298
      %v5812 = vunpack.c.h.b16 %v5298
      %v5813 = vunpack.c.l.b16 %v5299
      %v5814 = vunpack.c.h.b16 %v5299
      %v5815 = vunpack.c.l.b16 %v5300
      %v5816 = vunpack.c.h.b16 %v5300
      %v5817 = vunpack.c.l.b16 %v5301
      %v5818 = vunpack.c.h.b16 %v5301
      %v5819 = vunpack.c.l.b16 %v5302
      %v5820 = vunpack.c.h.b16 %v5302
      %v5821 = vunpack.c.l.b16 %v5303
      %v5822 = vunpack.c.h.b16 %v5303
      %v5823 = vunpack.c.l.b16 %v5304
      %v5824 = vunpack.c.h.b16 %v5304
      %v5825 = vunpack.c.l.b16 %v5305
      %v5826 = vunpack.c.h.b16 %v5305
      %v5827 = vunpack.c.l.b16 %v5306
      %v5828 = vunpack.c.h.b16 %v5306
      %v5829 = vunpack.c.l.b16 %v5307
      %v5830 = vunpack.c.h.b16 %v5307
      %v5831 = vunpack.c.l.b16 %v5308
      %v5832 = vunpack.c.h.b16 %v5308
      %v5833 = vunpack.c.l.b16 %v5309
      %v5834 = vunpack.c.h.b16 %v5309
      %v5835 = vunpack.c.l.b16 %v5310
      %v5836 = vunpack.c.h.b16 %v5310
      %v5837 = vunpack.c.l.b16 %v5311
      %v5838 = vunpack.c.h.b16 %v5311
      %v5839 = vunpack.c.l.b16 %v5312
      %v5840 = vunpack.c.h.b16 %v5312
      %v5841 = vunpack.c.l.b16 %v5313
      %v5842 = vunpack.c.h.b16 %v5313
      %v5843 = vunpack.c.l.b16 %v5314
      %v5844 = vunpack.c.h.b16 %v5314
      %v5845 = vunpack.c.l.b16 %v5315
      %v5846 = vunpack.c.h.b16 %v5315
      %v5847 = vunpack.c.l.b16 %v5316
      %v5848 = vunpack.c.h.b16 %v5316
      %v5849 = vunpack.c.l.b16 %v5317
      %v5850 = vunpack.c.h.b16 %v5317
      %v5851 = vunpack.c.l.b16 %v5318
      %v5852 = vunpack.c.h.b16 %v5318
      %v5853 = vunpack.c.l.b16 %v5319
      %v5854 = vunpack.c.h.b16 %v5319
      %v5855 = vunpack.c.l.b16 %v5320
      %v5856 = vunpack.c.h.b16 %v5320
      %v5857 = vunpack.c.l.b16 %v5321
      %v5858 = vunpack.c.h.b16 %v5321
      %v5859 = vunpack.c.l.b16 %v5322
      %v5860 = vunpack.c.h.b16 %v5322
      %v5861 = vunpack.c.l.b16 %v5323
      %v5862 = vunpack.c.h.b16 %v5323
      %v5863 = vunpack.c.l.b16 %v5324
      %v5864 = vunpack.c.h.b16 %v5324
      %v5865 = vunpack.c.l.b16 %v5325
      %v5866 = vunpack.c.h.b16 %v5325
      %v5867 = vunpack.c.l.b16 %v5326
      %v5868 = vunpack.c.h.b16 %v5326
      %v5869 = vunpack.c.l.b16 %v5327
      %v5870 = vunpack.c.h.b16 %v5327
      %v5871 = vunpack.c.l.b16 %v5328
      %v5872 = vunpack.c.h.b16 %v5328
      %v5873 = vunpack.c.l.b16 %v5329
      %v5874 = vunpack.c.h.b16 %v5329
      %v5875 = vunpack.c.l.b16 %v5330
      %v5876 = vunpack.c.h.b16 %v5330
      %v5877 = vunpack.c.l.b16 %v5331
      %v5878 = vunpack.c.h.b16 %v5331
      %v5879 = vunpack.c.l.b16 %v5332
      %v5880 = vunpack.c.h.b16 %v5332
      %v5881 = vunpack.c.l.b16 %v5333
      %v5882 = vunpack.c.h.b16 %v5333
      %v5883 = vunpack.c.l.b16 %v5334
      %v5884 = vunpack.c.h.b16 %v5334
      %v5885 = vunpack.c.l.b16 %v5335
      %v5886 = vunpack.c.h.b16 %v5335
      %v5887 = vunpack.c.l.b16 %v5336
      %v5888 = vunpack.c.h.b16 %v5336
      %v5889 = vunpack.c.l.b16 %v5337
      %v5890 = vunpack.c.h.b16 %v5337
      %v5891 = vunpack.c.l.b16 %v5338
      %v5892 = vunpack.c.h.b16 %v5338
      %v5893 = vunpack.c.l.b16 %v5339
      %v5894 = vunpack.c.h.b16 %v5339
      %v5895 = vunpack.c.l.b16 %v5340
      %v5896 = vunpack.c.h.b16 %v5340
      %v5897 = vunpack.c.l.b16 %v5341
      %v5898 = vunpack.c.h.b16 %v5341
      %v5899 = vunpack.c.l.b16 %v5342
      %v5900 = vunpack.c.h.b16 %v5342
      %v5901 = vunpack.c.l.b16 %v5343
      %v5902 = vunpack.c.h.b16 %v5343
      %v5903 = vunpack.c.l.b16 %v5344
      %v5904 = vunpack.c.h.b16 %v5344
      %v5905 = vunpack.c.l.b16 %v5345
      %v5906 = vunpack.c.h.b16 %v5345
      %v5907 = vunpack.c.l.b16 %v5346
      %v5908 = vunpack.c.h.b16 %v5346
      %v5909 = vunpack.c.l.b16 %v5347
      %v5910 = vunpack.c.h.b16 %v5347
      %v5911 = vunpack.c.l.b16 %v5348
      %v5912 = vunpack.c.h.b16 %v5348
      %v5913 = vunpack.c.l.b16 %v5349
      %v5914 = vunpack.c.h.b16 %v5349
      %v5915 = vunpack.c.l.b16 %v5350
      %v5916 = vunpack.c.h.b16 %v5350
      %v5917 = vunpack.c.l.b16 %v5351
      %v5918 = vunpack.c.h.b16 %v5351
      %v5919 = vunpack.c.l.b16 %v5352
      %v5920 = vunpack.c.h.b16 %v5352
      %v5921 = vunpack.c.l.b16 %v5353
      %v5922 = vunpack.c.h.b16 %v5353
      %v5923 = vunpack.c.l.b16 %v5354
      %v5924 = vunpack.c.h.b16 %v5354
      %v5925 = vunpack.c.l.b16 %v5355
      %v5926 = vunpack.c.h.b16 %v5355
      %v5927 = vunpack.c.l.b16 %v5356
      %v5928 = vunpack.c.h.b16 %v5356
      %v5929 = vunpack.c.l.b16 %v5357
      %v5930 = vunpack.c.h.b16 %v5357
      %v5931 = vunpack.c.l.b16 %v5358
      %v5932 = vunpack.c.h.b16 %v5358
      %v5933 = vunpack.c.l.b16 %v5359
      %v5934 = vunpack.c.h.b16 %v5359
      %v5935 = vunpack.c.l.b16 %v5360
      %v5936 = vunpack.c.h.b16 %v5360
      %v5937 = vunpack.c.l.b16 %v5361
      %v5938 = vunpack.c.h.b16 %v5361
      %v5939 = vunpack.c.l.b16 %v5362
      %v5940 = vunpack.c.h.b16 %v5362
      %v5941 = vunpack.c.l.b16 %v5363
      %v5942 = vunpack.c.h.b16 %v5363
      %v5943 = vunpack.c.l.b16 %v5364
      %v5944 = vunpack.c.h.b16 %v5364
      %v5945 = vunpack.c.l.b16 %v5365
      %v5946 = vunpack.c.h.b16 %v5365
      %v5947 = vunpack.c.l.b16 %v5366
      %v5948 = vunpack.c.h.b16 %v5366
      %v5949 = vunpack.c.l.b16 %v5367
      %v5950 = vunpack.c.h.b16 %v5367
      %v5951 = vunpack.c.l.b16 %v5368
      %v5952 = vunpack.c.h.b16 %v5368
      %v5953 = vunpack.c.l.b16 %v5369
      %v5954 = vunpack.c.h.b16 %v5369
      %v5955 = vunpack.c.l.b16 %v5370
      %v5956 = vunpack.c.h.b16 %v5370
      %v5957 = vunpack.c.l.b16 %v5371
      %v5958 = vunpack.c.h.b16 %v5371
      %v5959 = vunpack.c.l.b16 %v5372
      %v5960 = vunpack.c.h.b16 %v5372
      %v5961 = vunpack.c.l.b16 %v5373
      %v5962 = vunpack.c.h.b16 %v5373
      %v5963 = vunpack.c.l.b16 %v5374
      %v5964 = vunpack.c.h.b16 %v5374
      %v5965 = vunpack.c.l.b16 %v5375
      %v5966 = vunpack.c.h.b16 %v5375
      %v5967 = vunpack.c.l.b16 %v5376
      %v5968 = vunpack.c.h.b16 %v5376
      %v5969 = vunpack.c.l.b16 %v5377
      %v5970 = vunpack.c.h.b16 %v5377
      %v5971 = vunpack.c.l.b16 %v5378
      %v5972 = vunpack.c.h.b16 %v5378
      %v5973 = vunpack.c.l.b16 %v5379
      %v5974 = vunpack.c.h.b16 %v5379
      %v5975 = vunpack.c.l.b16 %v5380
      %v5976 = vunpack.c.h.b16 %v5380
      %v5977 = vunpack.c.l.b16 %v5381
      %v5978 = vunpack.c.h.b16 %v5381
      %v5979 = vunpack.c.l.b16 %v5382
      %v5980 = vunpack.c.h.b16 %v5382
      %v5981 = vunpack.c.l.b16 %v5383
      %v5982 = vunpack.c.h.b16 %v5383
      %v5983 = vunpack.c.l.b16 %v5384
      %v5984 = vunpack.c.h.b16 %v5384
      %v5985 = vunpack.c.l.b16 %v5385
      %v5986 = vunpack.c.h.b16 %v5385
      %v5987 = vunpack.c.l.b16 %v5386
      %v5988 = vunpack.c.h.b16 %v5386
      %v5989 = vunpack.c.l.b16 %v5387
      %v5990 = vunpack.c.h.b16 %v5387
      %v5991 = vunpack.c.l.b16 %v5388
      %v5992 = vunpack.c.h.b16 %v5388
      %v5993 = vunpack.c.l.b16 %v5389
      %v5994 = vunpack.c.h.b16 %v5389
      %v5995 = vunpack.c.l.b16 %v5390
      %v5996 = vunpack.c.h.b16 %v5390
      %v5997 = vunpack.c.l.b16 %v5391
      %v5998 = vunpack.c.h.b16 %v5391
      %v5999 = vunpack.c.l.b16 %v5392
      %v6000 = vunpack.c.h.b16 %v5392
      %v6001 = vpack.c.b16 %v5621, %v5617
      %v6002 = vpack.c.b16 %v5622, %v5618
      %v6003 = vpack.c.b16 %v5623, %v5619
      %v6004 = vpack.c.b16 %v5624, %v5620
      %v6005 = vpack.c.b16 %v5629, %v5625
      %v6006 = vpack.c.b16 %v5630, %v5626
      %v6007 = vpack.c.b16 %v5631, %v5627
      %v6008 = vpack.c.b16 %v5632, %v5628
      %v6009 = vpack.c.b16 %v5637, %v5633
      %v6010 = vpack.c.b16 %v5638, %v5634
      %v6011 = vpack.c.b16 %v5639, %v5635
      %v6012 = vpack.c.b16 %v5640, %v5636
      %v6013 = vpack.c.b16 %v5645, %v5641
      %v6014 = vpack.c.b16 %v5646, %v5642
      %v6015 = vpack.c.b16 %v5647, %v5643
      %v6016 = vpack.c.b16 %v5648, %v5644
      %v6017 = vpack.c.b16 %v5653, %v5649
      %v6018 = vpack.c.b16 %v5654, %v5650
      %v6019 = vpack.c.b16 %v5655, %v5651
      %v6020 = vpack.c.b16 %v5656, %v5652
      %v6021 = vpack.c.b16 %v5661, %v5657
      %v6022 = vpack.c.b16 %v5662, %v5658
      %v6023 = vpack.c.b16 %v5663, %v5659
      %v6024 = vpack.c.b16 %v5664, %v5660
      %v6025 = vpack.c.b16 %v5669, %v5665
      %v6026 = vpack.c.b16 %v5670, %v5666
      %v6027 = vpack.c.b16 %v5671, %v5667
      %v6028 = vpack.c.b16 %v5672, %v5668
      %v6029 = vpack.c.b16 %v5677, %v5673
      %v6030 = vpack.c.b16 %v5678, %v5674
      %v6031 = vpack.c.b16 %v5679, %v5675
      %v6032 = vpack.c.b16 %v5680, %v5676
      %v6033 = vpack.c.b16 %v5685, %v5681
      %v6034 = vpack.c.b16 %v5686, %v5682
      %v6035 = vpack.c.b16 %v5687, %v5683
      %v6036 = vpack.c.b16 %v5688, %v5684
      %v6037 = vpack.c.b16 %v5693, %v5689
      %v6038 = vpack.c.b16 %v5694, %v5690
      %v6039 = vpack.c.b16 %v5695, %v5691
      %v6040 = vpack.c.b16 %v5696, %v5692
      %v6041 = vpack.c.b16 %v5701, %v5697
      %v6042 = vpack.c.b16 %v5702, %v5698
      %v6043 = vpack.c.b16 %v5703, %v5699
      %v6044 = vpack.c.b16 %v5704, %v5700
      %v6045 = vpack.c.b16 %v5709, %v5705
      %v6046 = vpack.c.b16 %v5710, %v5706
      %v6047 = vpack.c.b16 %v5711, %v5707
      %v6048 = vpack.c.b16 %v5712, %v5708
      %v6049 = vpack.c.b16 %v5717, %v5713
      %v6050 = vpack.c.b16 %v5718, %v5714
      %v6051 = vpack.c.b16 %v5719, %v5715
      %v6052 = vpack.c.b16 %v5720, %v5716
      %v6053 = vpack.c.b16 %v5725, %v5721
      %v6054 = vpack.c.b16 %v5726, %v5722
      %v6055 = vpack.c.b16 %v5727, %v5723
      %v6056 = vpack.c.b16 %v5728, %v5724
      %v6057 = vpack.c.b16 %v5733, %v5729
      %v6058 = vpack.c.b16 %v5734, %v5730
      %v6059 = vpack.c.b16 %v5735, %v5731
      %v6060 = vpack.c.b16 %v5736, %v5732
      %v6061 = vpack.c.b16 %v5741, %v5737
      %v6062 = vpack.c.b16 %v5742, %v5738
      %v6063 = vpack.c.b16 %v5743, %v5739
      %v6064 = vpack.c.b16 %v5744, %v5740
      %v6065 = vpack.c.b16 %v5749, %v5745
      %v6066 = vpack.c.b16 %v5750, %v5746
      %v6067 = vpack.c.b16 %v5751, %v5747
      %v6068 = vpack.c.b16 %v5752, %v5748
      %v6069 = vpack.c.b16 %v5757, %v5753
      %v6070 = vpack.c.b16 %v5758, %v5754
      %v6071 = vpack.c.b16 %v5759, %v5755
      %v6072 = vpack.c.b16 %v5760, %v5756
      %v6073 = vpack.c.b16 %v5765, %v5761
      %v6074 = vpack.c.b16 %v5766, %v5762
      %v6075 = vpack.c.b16 %v5767, %v5763
      %v6076 = vpack.c.b16 %v5768, %v5764
      %v6077 = vpack.c.b16 %v5773, %v5769
      %v6078 = vpack.c.b16 %v5774, %v5770
      %v6079 = vpack.c.b16 %v5775, %v5771
      %v6080 = vpack.c.b16 %v5776, %v5772
      %v6081 = vpack.c.b16 %v5781, %v5777
      %v6082 = vpack.c.b16 %v5782, %v5778
      %v6083 = vpack.c.b16 %v5783, %v5779
      %v6084 = vpack.c.b16 %v5784, %v5780
      %v6085 = vpack.c.b16 %v5789, %v5785
      %v6086 = vpack.c.b16 %v5790, %v5786
      %v6087 = vpack.c.b16 %v5791, %v5787
      %v6088 = vpack.c.b16 %v5792, %v5788
      %v6089 = vpack.c.b16 %v5797, %v5793
      %v6090 = vpack.c.b16 %v5798, %v5794
      %v6091 = vpack.c.b16 %v5799, %v5795
      %v6092 = vpack.c.b16 %v5800, %v5796
      %v6093 = vpack.c.b16 %v5805, %v5801
      %v6094 = vpack.c.b16 %v5806, %v5802
      %v6095 = vpack.c.b16 %v5807, %v5803
      %v6096 = vpack.c.b16 %v5808, %v5804
      %v6097 = vpack.c.b16 %v5813, %v5809
      %v6098 = vpack.c.b16 %v5814, %v5810
      %v6099 = vpack.c.b16 %v5815, %v5811
      %v6100 = vpack.c.b16 %v5816, %v5812
      %v6101 = vpack.c.b16 %v5821, %v5817
      %v6102 = vpack.c.b16 %v5822, %v5818
      %v6103 = vpack.c.b16 %v5823, %v5819
      %v6104 = vpack.c.b16 %v5824, %v5820
      %v6105 = vpack.c.b16 %v5829, %v5825
      %v6106 = vpack.c.b16 %v5830, %v5826
      %v6107 = vpack.c.b16 %v5831, %v5827
      %v6108 = vpack.c.b16 %v5832, %v5828
      %v6109 = vpack.c.b16 %v5837, %v5833
      %v6110 = vpack.c.b16 %v5838, %v5834
      %v6111 = vpack.c.b16 %v5839, %v5835
      %v6112 = vpack.c.b16 %v5840, %v5836
      %v6113 = vpack.c.b16 %v5845, %v5841
      %v6114 = vpack.c.b16 %v5846, %v5842
      %v6115 = vpack.c.b16 %v5847, %v5843
      %v6116 = vpack.c.b16 %v5848, %v5844
      %v6117 = vpack.c.b16 %v5853, %v5849
      %v6118 = vpack.c.b16 %v5854, %v5850
      %v6119 = vpack.c.b16 %v5855, %v5851
      %v6120 = vpack.c.b16 %v5856, %v5852
      %v6121 = vpack.c.b16 %v5861, %v5857
      %v6122 = vpack.c.b16 %v5862, %v5858
      %v6123 = vpack.c.b16 %v5863, %v5859
      %v6124 = vpack.c.b16 %v5864, %v5860
      %v6125 = vpack.c.b16 %v5869, %v5865
      %v6126 = vpack.c.b16 %v5870, %v5866
      %v6127 = vpack.c.b16 %v5871, %v5867
      %v6128 = vpack.c.b16 %v5872, %v5868
      %v6129 = vpack.c.b16 %v5877, %v5873
      %v6130 = vpack.c.b16 %v5878, %v5874
      %v6131 = vpack.c.b16 %v5879, %v5875
      %v6132 = vpack.c.b16 %v5880, %v5876
      %v6133 = vpack.c.b16 %v5885, %v5881
      %v6134 = vpack.c.b16 %v5886, %v5882
      %v6135 = vpack.c.b16 %v5887, %v5883
      %v6136 = vpack.c.b16 %v5888, %v5884
      %v6137 = vpack.c.b16 %v5893, %v5889
      %v6138 = vpack.c.b16 %v5894, %v5890
      %v6139 = vpack.c.b16 %v5895, %v5891
      %v6140 = vpack.c.b16 %v5896, %v5892
      %v6141 = vpack.c.b16 %v5901, %v5897
      %v6142 = vpack.c.b16 %v5902, %v5898
      %v6143 = vpack.c.b16 %v5903, %v5899
      %v6144 = vpack.c.b16 %v5904, %v5900
      %v6145 = vpack.c.b16 %v5909, %v5905
      %v6146 = vpack.c.b16 %v5910, %v5906
      %v6147 = vpack.c.b16 %v5911, %v5907
      %v6148 = vpack.c.b16 %v5912, %v5908
      %v6149 = vpack.c.b16 %v5917, %v5913
      %v6150 = vpack.c.b16 %v5918, %v5914
      %v6151 = vpack.c.b16 %v5919, %v5915
      %v6152 = vpack.c.b16 %v5920, %v5916
      %v6153 = vpack.c.b16 %v5925, %v5921
      %v6154 = vpack.c.b16 %v5926, %v5922
      %v6155 = vpack.c.b16 %v5927, %v5923
      %v6156 = vpack.c.b16 %v5928, %v5924
      %v6157 = vpack.c.b16 %v5933, %v5929
      %v6158 = vpack.c.b16 %v5934, %v5930
      %v6159 = vpack.c.b16 %v5935, %v5931
      %v6160 = vpack.c.b16 %v5936, %v5932
      %v6161 = vpack.c.b16 %v5941, %v5937
      %v6162 = vpack.c.b16 %v5942, %v5938
      %v6163 = vpack.c.b16 %v5943, %v5939
      %v6164 = vpack.c.b16 %v5944, %v5940
      %v6165 = vpack.c.b16 %v5949, %v5945
      %v6166 = vpack.c.b16 %v5950, %v5946
      %v6167 = vpack.c.b16 %v5951, %v5947
      %v6168 = vpack.c.b16 %v5952, %v5948
      %v6169 = vpack.c.b16 %v5957, %v5953
      %v6170 = vpack.c.b16 %v5958, %v5954
      %v6171 = vpack.c.b16 %v5959, %v5955
      %v6172 = vpack.c.b16 %v5960, %v5956
      %v6173 = vpack.c.b16 %v5965, %v5961
      %v6174 = vpack.c.b16 %v5966, %v5962
      %v6175 = vpack.c.b16 %v5967, %v5963
      %v6176 = vpack.c.b16 %v5968, %v5964
      %v6177 = vpack.c.b16 %v5973, %v5969
      %v6178 = vpack.c.b16 %v5974, %v5970
      %v6179 = vpack.c.b16 %v5975, %v5971
      %v6180 = vpack.c.b16 %v5976, %v5972
      %v6181 = vpack.c.b16 %v5981, %v5977
      %v6182 = vpack.c.b16 %v5982, %v5978
      %v6183 = vpack.c.b16 %v5983, %v5979
      %v6184 = vpack.c.b16 %v5984, %v5980
      %v6185 = vpack.c.b16 %v5989, %v5985
      %v6186 = vpack.c.b16 %v5990, %v5986
      %v6187 = vpack.c.b16 %v5991, %v5987
      %v6188 = vpack.c.b16 %v5992, %v5988
      %v6189 = vpack.c.b16 %v5997, %v5993
      %v6190 = vpack.c.b16 %v5998, %v5994
      %v6191 = vpack.c.b16 %v5999, %v5995
      %v6192 = vpack.c.b16 %v6000, %v5996
      %6385 = vmatprep.subr.bf16.mxu0 0
      %6386 = vmatpush1.bf16.msra.mxu0 %v5393
      %6387 = vmatprep.subr.bf16.mxu0 0
      %6388 = vmatpush1.bf16.msra.mxu0 %v5394
      %6389 = vmatprep.subr.bf16.mxu0 0
      %6390 = vmatpush1.bf16.msra.mxu0 %v5395
      %6391 = vmatprep.subr.bf16.mxu0 0
      %6392 = vmatpush1.bf16.msra.mxu0 %v5396
      %6393 = vmatprep.subr.bf16.mxu0 0
      %6394 = vmatpush1.bf16.msra.mxu0 %v5397
      %6395 = vmatprep.subr.bf16.mxu0 0
      %6396 = vmatpush1.bf16.msra.mxu0 %v5398
      %6397 = vmatprep.subr.bf16.mxu0 0
      %6398 = vmatpush1.bf16.msra.mxu0 %v5399
      %6399 = vmatprep.subr.bf16.mxu0 0
      %6400 = vmatpush1.bf16.msra.mxu0 %v5400
      %6401 = vmatprep.subr.bf16.mxu0 0
      %6402 = vmatpush1.bf16.msra.mxu0 %v5401
      %6403 = vmatprep.subr.bf16.mxu0 0
      %6404 = vmatpush1.bf16.msra.mxu0 %v5402
      %6405 = vmatprep.subr.bf16.mxu0 0
      %6406 = vmatpush1.bf16.msra.mxu0 %v5403
      %6407 = vmatprep.subr.bf16.mxu0 0
      %6408 = vmatpush1.bf16.msra.mxu0 %v5404
      %6409 = vmatprep.subr.bf16.mxu0 0
      %6410 = vmatpush1.bf16.msra.mxu0 %v5405
      %6411 = vmatprep.subr.bf16.mxu0 0
      %6412 = vmatpush1.bf16.msra.mxu0 %v5406
      %6413 = vmatprep.subr.bf16.mxu0 0
      %6414 = vmatpush1.bf16.msra.mxu0 %v5407
      %6415 = vmatprep.subr.bf16.mxu0 0
      %6416 = vmatpush1.bf16.msra.mxu0 %v5408
      %6417 = vmatprep.mubr.bf16.mxu0 %v6002
      %6418 = vmatmul.mubr.bf16.gmra.mrb[0].mxu0 %v6001
      %v6419 = vpop.f32.mrb[0].mxu0
      %v6420 = vadd.f32 0.0, %v6419
      %v6421 = vpop.f32.mrb[0].mxu0
      %v6422 = vpop.f32.mrb[0].mxu0
      %v6423 = vadd.f32 0.0, %v6422
      %v6424 = vpop.f32.mrb[0].mxu0
      %6425 = vmatprep.mubr.bf16.mxu0 %v6006
      %6426 = vmatmul.mubr.bf16.gmra.mrb[0].mxu0 %v6005
      %v6427 = vpop.f32.mrb[0].mxu0
      %v6428 = vadd.f32 0.0, %v6427
      %v6429 = vpop.f32.mrb[0].mxu0
      %v6430 = vpop.f32.mrb[0].mxu0
      %v6431 = vadd.f32 0.0, %v6430
      %v6432 = vpop.f32.mrb[0].mxu0
      %6433 = vmatprep.mubr.bf16.mxu0 %v6010
      %6434 = vmatmul.mubr.bf16.gmra.mrb[0].mxu0 %v6009
      %v6435 = vpop.f32.mrb[0].mxu0
      %v6436 = vadd.f32 0.0, %v6435
      %v6437 = vpop.f32.mrb[0].mxu0
      %v6438 = vpop.f32.mrb[0].mxu0
      %v6439 = vadd.f32 0.0, %v6438
      %v6440 = vpop.f32.mrb[0].mxu0
      %6441 = vmatprep.mubr.bf16.mxu0 %v6014
      %6442 = vmatmul.mubr.bf16.gmra.mrb[0].mxu0 %v6013
      %v6443 = vpop.f32.mrb[0].mxu0
      %v6444 = vadd.f32 0.0, %v6443
      %v6445 = vpop.f32.mrb[0].mxu0
      %v6446 = vpop.f32.mrb[0].mxu0
      %v6447 = vadd.f32 0.0, %v6446
      %v6448 = vpop.f32.mrb[0].mxu0
      %6449 = vmatprep.mubr.bf16.mxu0 %v6018
      %6450 = vmatmul.mubr.bf16.gmra.mrb[0].mxu0 %v6017
      %v6451 = vpop.f32.mrb[0].mxu0
      %v6452 = vadd.f32 0.0, %v6451
      %v6453 = vpop.f32.mrb[0].mxu0
      %v6454 = vpop.f32.mrb[0].mxu0
      %v6455 = vadd.f32 0.0, %v6454
      %v6456 = vpop.f32.mrb[0].mxu0
      %6457 = vmatprep.mubr.bf16.mxu0 %v6022
      %6458 = vmatmul.mubr.bf16.gmra.mrb[0].mxu0 %v6021
      %v6459 = vpop.f32.mrb[0].mxu0
      %v6460 = vadd.f32 0.0, %v6459
      %v6461 = vpop.f32.mrb[0].mxu0
      %v6462 = vpop.f32.mrb[0].mxu0
      %v6463 = vadd.f32 0.0, %v6462
      %v6464 = vpop.f32.mrb[0].mxu0
      %6465 = vmatprep.mubr.bf16.mxu0 %v6026
      %6466 = vmatmul.mubr.bf16.gmra.mrb[0].mxu0 %v6025
      %v6467 = vpop.f32.mrb[0].mxu0
      %v6468 = vadd.f32 0.0, %v6467
      %v6469 = vpop.f32.mrb[0].mxu0
      %v6470 = vpop.f32.mrb[0].mxu0
      %v6471 = vadd.f32 0.0, %v6470
      %v6472 = vpop.f32.mrb[0].mxu0
      %6473 = vmatprep.mubr.bf16.mxu0 %v6030
      %6474 = vmatmul.mubr.bf16.gmra.mrb[0].mxu0 %v6029
      %v6475 = vpop.f32.mrb[0].mxu0
      %v6476 = vadd.f32 0.0, %v6475
      %v6477 = vpop.f32.mrb[0].mxu0
      %v6478 = vpop.f32.mrb[0].mxu0
      %v6479 = vadd.f32 0.0, %v6478
      %v6480 = vpop.f32.mrb[0].mxu0
      %6481 = vmatprep.mubr.bf16.mxu0 %v6034
      %6482 = vmatmul.mubr.bf16.gmra.mrb[0].mxu0 %v6033
      %v6483 = vpop.f32.mrb[0].mxu0
      %v6484 = vadd.f32 0.0, %v6483
      %v6485 = vpop.f32.mrb[0].mxu0
      %v6486 = vpop.f32.mrb[0].mxu0
      %v6487 = vadd.f32 0.0, %v6486
      %v6488 = vpop.f32.mrb[0].mxu0
      %6489 = vmatprep.mubr.bf16.mxu0 %v6038
      %6490 = vmatmul.mubr.bf16.gmra.mrb[0].mxu0 %v6037
      %v6491 = vpop.f32.mrb[0].mxu0
      %v6492 = vadd.f32 0.0, %v6491
      %v6493 = vpop.f32.mrb[0].mxu0
      %v6494 = vpop.f32.mrb[0].mxu0
      %v6495 = vadd.f32 0.0, %v6494
      %v6496 = vpop.f32.mrb[0].mxu0
      %6497 = vmatprep.mubr.bf16.mxu0 %v6042
      %6498 = vmatmul.mubr.bf16.gmra.mrb[0].mxu0 %v6041
      %v6499 = vpop.f32.mrb[0].mxu0
      %v6500 = vadd.f32 0.0, %v6499
      %v6501 = vpop.f32.mrb[0].mxu0
      %v6502 = vpop.f32.mrb[0].mxu0
      %v6503 = vadd.f32 0.0, %v6502
      %v6504 = vpop.f32.mrb[0].mxu0
      %6505 = vmatprep.mubr.bf16.mxu0 %v6046
      %6506 = vmatmul.mubr.bf16.gmra.mrb[0].mxu0 %v6045
      %v6507 = vpop.f32.mrb[0].mxu0
      %v6508 = vadd.f32 0.0, %v6507
      %v6509 = vpop.f32.mrb[0].mxu0
      %v6510 = vpop.f32.mrb[0].mxu0
      %v6511 = vadd.f32 0.0, %v6510
      %v6512 = vpop.f32.mrb[0].mxu0
      %6513 = vmatprep.mubr.bf16.mxu0 %v6050
      %6514 = vmatmul.mubr.bf16.gmra.mrb[0].mxu0 %v6049
      %v6515 = vpop.f32.mrb[0].mxu0
      %v6516 = vadd.f32 0.0, %v6515
      %v6517 = vpop.f32.mrb[0].mxu0
      %v6518 = vpop.f32.mrb[0].mxu0
      %v6519 = vadd.f32 0.0, %v6518
      %v6520 = vpop.f32.mrb[0].mxu0
      %6521 = vmatprep.mubr.bf16.mxu0 %v6054
      %6522 = vmatmul.mubr.bf16.gmra.mrb[0].mxu0 %v6053
      %v6523 = vpop.f32.mrb[0].mxu0
      %v6524 = vadd.f32 0.0, %v6523
      %v6525 = vpop.f32.mrb[0].mxu0
      %v6526 = vpop.f32.mrb[0].mxu0
      %v6527 = vadd.f32 0.0, %v6526
      %v6528 = vpop.f32.mrb[0].mxu0
      %6529 = vmatprep.mubr.bf16.mxu0 %v6058
      %6530 = vmatmul.mubr.bf16.gmra.mrb[0].mxu0 %v6057
      %v6531 = vpop.f32.mrb[0].mxu0
      %v6532 = vadd.f32 0.0, %v6531
      %v6533 = vpop.f32.mrb[0].mxu0
      %v6534 = vpop.f32.mrb[0].mxu0
      %v6535 = vadd.f32 0.0, %v6534
      %v6536 = vpop.f32.mrb[0].mxu0
      %6537 = vmatprep.mubr.bf16.mxu0 %v6062
      %6538 = vmatmul.mubr.bf16.gmra.mrb[0].mxu0 %v6061
      %v6539 = vpop.f32.mrb[0].mxu0
      %v6540 = vadd.f32 0.0, %v6539
      %v6541 = vpop.f32.mrb[0].mxu0
      %v6542 = vpop.f32.mrb[0].mxu0
      %v6543 = vadd.f32 0.0, %v6542
      %v6544 = vpop.f32.mrb[0].mxu0
      %6545 = vmatprep.mubr.bf16.mxu0 %v6066
      %6546 = vmatmul.mubr.bf16.gmra.mrb[0].mxu0 %v6065
      %v6547 = vpop.f32.mrb[0].mxu0
      %v6548 = vadd.f32 0.0, %v6547
      %v6549 = vpop.f32.mrb[0].mxu0
      %v6550 = vpop.f32.mrb[0].mxu0
      %v6551 = vadd.f32 0.0, %v6550
      %v6552 = vpop.f32.mrb[0].mxu0
      %6553 = vmatprep.mubr.bf16.mxu0 %v6070
      %6554 = vmatmul.mubr.bf16.gmra.mrb[0].mxu0 %v6069
      %v6555 = vpop.f32.mrb[0].mxu0
      %v6556 = vadd.f32 0.0, %v6555
      %v6557 = vpop.f32.mrb[0].mxu0
      %v6558 = vpop.f32.mrb[0].mxu0
      %v6559 = vadd.f32 0.0, %v6558
      %v6560 = vpop.f32.mrb[0].mxu0
      %6561 = vmatprep.mubr.bf16.mxu0 %v6074
      %6562 = vmatmul.mubr.bf16.gmra.mrb[0].mxu0 %v6073
      %v6563 = vpop.f32.mrb[0].mxu0
      %v6564 = vadd.f32 0.0, %v6563
      %v6565 = vpop.f32.mrb[0].mxu0
      %v6566 = vpop.f32.mrb[0].mxu0
      %v6567 = vadd.f32 0.0, %v6566
      %v6568 = vpop.f32.mrb[0].mxu0
      %6569 = vmatprep.mubr.bf16.mxu0 %v6078
      %6570 = vmatmul.mubr.bf16.gmra.mrb[0].mxu0 %v6077
      %v6571 = vpop.f32.mrb[0].mxu0
      %v6572 = vadd.f32 0.0, %v6571
      %v6573 = vpop.f32.mrb[0].mxu0
      %v6574 = vpop.f32.mrb[0].mxu0
      %v6575 = vadd.f32 0.0, %v6574
      %v6576 = vpop.f32.mrb[0].mxu0
      %6577 = vmatprep.mubr.bf16.mxu0 %v6082
      %6578 = vmatmul.mubr.bf16.gmra.mrb[0].mxu0 %v6081
      %v6579 = vpop.f32.mrb[0].mxu0
      %v6580 = vadd.f32 0.0, %v6579
      %v6581 = vpop.f32.mrb[0].mxu0
      %v6582 = vpop.f32.mrb[0].mxu0
      %v6583 = vadd.f32 0.0, %v6582
      %v6584 = vpop.f32.mrb[0].mxu0
      %6585 = vmatprep.mubr.bf16.mxu0 %v6086
      %6586 = vmatmul.mubr.bf16.gmra.mrb[0].mxu0 %v6085
      %v6587 = vpop.f32.mrb[0].mxu0
      %v6588 = vadd.f32 0.0, %v6587
      %v6589 = vpop.f32.mrb[0].mxu0
      %v6590 = vpop.f32.mrb[0].mxu0
      %v6591 = vadd.f32 0.0, %v6590
      %v6592 = vpop.f32.mrb[0].mxu0
      %6593 = vmatprep.mubr.bf16.mxu0 %v6090
      %6594 = vmatmul.mubr.bf16.gmra.mrb[0].mxu0 %v6089
      %v6595 = vpop.f32.mrb[0].mxu0
      %v6596 = vadd.f32 0.0, %v6595
      %v6597 = vpop.f32.mrb[0].mxu0
      %v6598 = vpop.f32.mrb[0].mxu0
      %v6599 = vadd.f32 0.0, %v6598
      %v6600 = vpop.f32.mrb[0].mxu0
      %6601 = vmatprep.mubr.bf16.mxu0 %v6094
      %6602 = vmatmul.mubr.bf16.gmra.mrb[0].mxu0 %v6093
      %v6603 = vpop.f32.mrb[0].mxu0
      %v6604 = vadd.f32 0.0, %v6603
      %v6605 = vpop.f32.mrb[0].mxu0
      %v6606 = vpop.f32.mrb[0].mxu0
      %v6607 = vadd.f32 0.0, %v6606
      %v6608 = vpop.f32.mrb[0].mxu0
      %6609 = vmatprep.mubr.bf16.mxu0 %v6098
      %6610 = vmatmul.mubr.bf16.gmra.mrb[0].mxu0 %v6097
      %v6611 = vpop.f32.mrb[0].mxu0
      %v6612 = vadd.f32 0.0, %v6611
      %v6613 = vpop.f32.mrb[0].mxu0
      %v6614 = vpop.f32.mrb[0].mxu0
      %v6615 = vadd.f32 0.0, %v6614
      %v6616 = vpop.f32.mrb[0].mxu0
      %6617 = vmatprep.mubr.bf16.mxu0 %v6102
      %6618 = vmatmul.mubr.bf16.gmra.mrb[0].mxu0 %v6101
      %v6619 = vpop.f32.mrb[0].mxu0
      %v6620 = vadd.f32 0.0, %v6619
      %v6621 = vpop.f32.mrb[0].mxu0
      %v6622 = vpop.f32.mrb[0].mxu0
      %v6623 = vadd.f32 0.0, %v6622
      %v6624 = vpop.f32.mrb[0].mxu0
      %6625 = vmatprep.mubr.bf16.mxu0 %v6106
      %6626 = vmatmul.mubr.bf16.gmra.mrb[0].mxu0 %v6105
      %v6627 = vpop.f32.mrb[0].mxu0
      %v6628 = vadd.f32 0.0, %v6627
      %v6629 = vpop.f32.mrb[0].mxu0
      %v6630 = vpop.f32.mrb[0].mxu0
      %v6631 = vadd.f32 0.0, %v6630
      %v6632 = vpop.f32.mrb[0].mxu0
      %6633 = vmatprep.mubr.bf16.mxu0 %v6110
      %6634 = vmatmul.mubr.bf16.gmra.mrb[0].mxu0 %v6109
      %v6635 = vpop.f32.mrb[0].mxu0
      %v6636 = vadd.f32 0.0, %v6635
      %v6637 = vpop.f32.mrb[0].mxu0
      %v6638 = vpop.f32.mrb[0].mxu0
      %v6639 = vadd.f32 0.0, %v6638
      %v6640 = vpop.f32.mrb[0].mxu0
      %6641 = vmatprep.mubr.bf16.mxu0 %v6114
      %6642 = vmatmul.mubr.bf16.gmra.mrb[0].mxu0 %v6113
      %v6643 = vpop.f32.mrb[0].mxu0
      %v6644 = vadd.f32 0.0, %v6643
      %v6645 = vpop.f32.mrb[0].mxu0
      %v6646 = vpop.f32.mrb[0].mxu0
      %v6647 = vadd.f32 0.0, %v6646
      %v6648 = vpop.f32.mrb[0].mxu0
      %6649 = vmatprep.mubr.bf16.mxu0 %v6118
      %6650 = vmatmul.mubr.bf16.gmra.mrb[0].mxu0 %v6117
      %v6651 = vpop.f32.mrb[0].mxu0
      %v6652 = vadd.f32 0.0, %v6651
      %v6653 = vpop.f32.mrb[0].mxu0
      %v6654 = vpop.f32.mrb[0].mxu0
      %v6655 = vadd.f32 0.0, %v6654
      %v6656 = vpop.f32.mrb[0].mxu0
      %6657 = vmatprep.mubr.bf16.mxu0 %v6122
      %6658 = vmatmul.mubr.bf16.gmra.mrb[0].mxu0 %v6121
      %v6659 = vpop.f32.mrb[0].mxu0
      %v6660 = vadd.f32 0.0, %v6659
      %v6661 = vpop.f32.mrb[0].mxu0
      %v6662 = vpop.f32.mrb[0].mxu0
      %v6663 = vadd.f32 0.0, %v6662
      %v6664 = vpop.f32.mrb[0].mxu0
      %6665 = vmatprep.mubr.bf16.mxu0 %v6126
      %6666 = vmatmul.mubr.bf16.gmra.mrb[0].mxu0 %v6125
      %v6667 = vpop.f32.mrb[0].mxu0
      %v6668 = vadd.f32 0.0, %v6667
      %v6669 = vpop.f32.mrb[0].mxu0
      %v6670 = vpop.f32.mrb[0].mxu0
      %v6671 = vadd.f32 0.0, %v6670
      %v6672 = vpop.f32.mrb[0].mxu0
      %6673 = vmatprep.mubr.bf16.mxu0 %v6130
      %6674 = vmatmul.mubr.bf16.gmra.mrb[0].mxu0 %v6129
      %v6675 = vpop.f32.mrb[0].mxu0
      %v6676 = vadd.f32 0.0, %v6675
      %v6677 = vpop.f32.mrb[0].mxu0
      %v6678 = vpop.f32.mrb[0].mxu0
      %v6679 = vadd.f32 0.0, %v6678
      %v6680 = vpop.f32.mrb[0].mxu0
      %6681 = vmatprep.mubr.bf16.mxu0 %v6134
      %6682 = vmatmul.mubr.bf16.gmra.mrb[0].mxu0 %v6133
      %v6683 = vpop.f32.mrb[0].mxu0
      %v6684 = vadd.f32 0.0, %v6683
      %v6685 = vpop.f32.mrb[0].mxu0
      %v6686 = vpop.f32.mrb[0].mxu0
      %v6687 = vadd.f32 0.0, %v6686
      %v6688 = vpop.f32.mrb[0].mxu0
      %6689 = vmatprep.mubr.bf16.mxu0 %v6138
      %6690 = vmatmul.mubr.bf16.gmra.mrb[0].mxu0 %v6137
      %v6691 = vpop.f32.mrb[0].mxu0
      %v6692 = vadd.f32 0.0, %v6691
      %v6693 = vpop.f32.mrb[0].mxu0
      %v6694 = vpop.f32.mrb[0].mxu0
      %v6695 = vadd.f32 0.0, %v6694
      %v6696 = vpop.f32.mrb[0].mxu0
      %6697 = vmatprep.mubr.bf16.mxu0 %v6142
      %6698 = vmatmul.mubr.bf16.gmra.mrb[0].mxu0 %v6141
      %v6699 = vpop.f32.mrb[0].mxu0
      %v6700 = vadd.f32 0.0, %v6699
      %v6701 = vpop.f32.mrb[0].mxu0
      %v6702 = vpop.f32.mrb[0].mxu0
      %v6703 = vadd.f32 0.0, %v6702
      %v6704 = vpop.f32.mrb[0].mxu0
      %6705 = vmatprep.mubr.bf16.mxu0 %v6146
      %6706 = vmatmul.mubr.bf16.gmra.mrb[0].mxu0 %v6145
      %v6707 = vpop.f32.mrb[0].mxu0
      %v6708 = vadd.f32 0.0, %v6707
      %v6709 = vpop.f32.mrb[0].mxu0
      %v6710 = vpop.f32.mrb[0].mxu0
      %v6711 = vadd.f32 0.0, %v6710
      %v6712 = vpop.f32.mrb[0].mxu0
      %6713 = vmatprep.mubr.bf16.mxu0 %v6150
      %6714 = vmatmul.mubr.bf16.gmra.mrb[0].mxu0 %v6149
      %v6715 = vpop.f32.mrb[0].mxu0
      %v6716 = vadd.f32 0.0, %v6715
      %v6717 = vpop.f32.mrb[0].mxu0
      %v6718 = vpop.f32.mrb[0].mxu0
      %v6719 = vadd.f32 0.0, %v6718
      %v6720 = vpop.f32.mrb[0].mxu0
      %6721 = vmatprep.mubr.bf16.mxu0 %v6154
      %6722 = vmatmul.mubr.bf16.gmra.mrb[0].mxu0 %v6153
      %v6723 = vpop.f32.mrb[0].mxu0
      %v6724 = vadd.f32 0.0, %v6723
      %v6725 = vpop.f32.mrb[0].mxu0
      %v6726 = vpop.f32.mrb[0].mxu0
      %v6727 = vadd.f32 0.0, %v6726
      %v6728 = vpop.f32.mrb[0].mxu0
      %6729 = vmatprep.mubr.bf16.mxu0 %v6158
      %6730 = vmatmul.mubr.bf16.gmra.mrb[0].mxu0 %v6157
      %v6731 = vpop.f32.mrb[0].mxu0
      %v6732 = vadd.f32 0.0, %v6731
      %v6733 = vpop.f32.mrb[0].mxu0
      %v6734 = vpop.f32.mrb[0].mxu0
      %v6735 = vadd.f32 0.0, %v6734
      %v6736 = vpop.f32.mrb[0].mxu0
      %6737 = vmatprep.mubr.bf16.mxu0 %v6162
      %6738 = vmatmul.mubr.bf16.gmra.mrb[0].mxu0 %v6161
      %v6739 = vpop.f32.mrb[0].mxu0
      %v6740 = vadd.f32 0.0, %v6739
      %v6741 = vpop.f32.mrb[0].mxu0
      %v6742 = vpop.f32.mrb[0].mxu0
      %v6743 = vadd.f32 0.0, %v6742
      %v6744 = vpop.f32.mrb[0].mxu0
      %6745 = vmatprep.mubr.bf16.mxu0 %v6166
      %6746 = vmatmul.mubr.bf16.gmra.mrb[0].mxu0 %v6165
      %v6747 = vpop.f32.mrb[0].mxu0
      %v6748 = vadd.f32 0.0, %v6747
      %v6749 = vpop.f32.mrb[0].mxu0
      %v6750 = vpop.f32.mrb[0].mxu0
      %v6751 = vadd.f32 0.0, %v6750
      %v6752 = vpop.f32.mrb[0].mxu0
      %6753 = vmatprep.mubr.bf16.mxu0 %v6170
      %6754 = vmatmul.mubr.bf16.gmra.mrb[0].mxu0 %v6169
      %v6755 = vpop.f32.mrb[0].mxu0
      %v6756 = vadd.f32 0.0, %v6755
      %v6757 = vpop.f32.mrb[0].mxu0
      %v6758 = vpop.f32.mrb[0].mxu0
      %v6759 = vadd.f32 0.0, %v6758
      %v6760 = vpop.f32.mrb[0].mxu0
      %6761 = vmatprep.mubr.bf16.mxu0 %v6174
      %6762 = vmatmul.mubr.bf16.gmra.mrb[0].mxu0 %v6173
      %v6763 = vpop.f32.mrb[0].mxu0
      %v6764 = vadd.f32 0.0, %v6763
      %v6765 = vpop.f32.mrb[0].mxu0
      %v6766 = vpop.f32.mrb[0].mxu0
      %v6767 = vadd.f32 0.0, %v6766
      %v6768 = vpop.f32.mrb[0].mxu0
      %6769 = vmatprep.mubr.bf16.mxu0 %v6178
      %6770 = vmatmul.mubr.bf16.gmra.mrb[0].mxu0 %v6177
      %v6771 = vpop.f32.mrb[0].mxu0
      %v6772 = vadd.f32 0.0, %v6771
      %v6773 = vpop.f32.mrb[0].mxu0
      %v6774 = vpop.f32.mrb[0].mxu0
      %v6775 = vadd.f32 0.0, %v6774
      %v6776 = vpop.f32.mrb[0].mxu0
      %6777 = vmatprep.mubr.bf16.mxu0 %v6182
      %6778 = vmatmul.mubr.bf16.gmra.mrb[0].mxu0 %v6181
      %v6779 = vpop.f32.mrb[0].mxu0
      %v6780 = vadd.f32 0.0, %v6779
      %v6781 = vpop.f32.mrb[0].mxu0
      %v6782 = vpop.f32.mrb[0].mxu0
      %v6783 = vadd.f32 0.0, %v6782
      %v6784 = vpop.f32.mrb[0].mxu0
      %6785 = vmatprep.mubr.bf16.mxu0 %v6186
      %6786 = vmatmul.mubr.bf16.gmra.mrb[0].mxu0 %v6185
      %v6787 = vpop.f32.mrb[0].mxu0
      %v6788 = vadd.f32 0.0, %v6787
      %v6789 = vpop.f32.mrb[0].mxu0
      %v6790 = vpop.f32.mrb[0].mxu0
      %v6791 = vadd.f32 0.0, %v6790
      %v6792 = vpop.f32.mrb[0].mxu0
      %6793 = vmatprep.mubr.bf16.mxu0 %v6190
      %6794 = vmatmul.mubr.bf16.gmra.mrb[0].mxu0 %v6189
      %v6795 = vpop.f32.mrb[0].mxu0
      %v6796 = vadd.f32 0.0, %v6795
      %v6797 = vpop.f32.mrb[0].mxu0
      %v6798 = vpop.f32.mrb[0].mxu0
      %v6799 = vadd.f32 0.0, %v6798
      %v6800 = vpop.f32.mrb[0].mxu0
      %6801 = vdwg.mxu0
      %6802 = vmatprep.subr.bf16.mxu0 0
      %6803 = vmatpush1.bf16.msra.mxu0 %v5409
      %6804 = vmatprep.subr.bf16.mxu0 0
      %6805 = vmatpush1.bf16.msra.mxu0 %v5410
      %6806 = vmatprep.subr.bf16.mxu0 0
      %6807 = vmatpush1.bf16.msra.mxu0 %v5411
      %6808 = vmatprep.subr.bf16.mxu0 0
      %6809 = vmatpush1.bf16.msra.mxu0 %v5412
      %6810 = vmatprep.subr.bf16.mxu0 0
      %6811 = vmatpush1.bf16.msra.mxu0 %v5413
      %6812 = vmatprep.subr.bf16.mxu0 0
      %6813 = vmatpush1.bf16.msra.mxu0 %v5414
      %6814 = vmatprep.subr.bf16.mxu0 0
      %6815 = vmatpush1.bf16.msra.mxu0 %v5415
      %6816 = vmatprep.subr.bf16.mxu0 0
      %6817 = vmatpush1.bf16.msra.mxu0 %v5416
      %6818 = vmatprep.subr.bf16.mxu0 0
      %6819 = vmatpush1.bf16.msra.mxu0 %v5417
      %6820 = vmatprep.subr.bf16.mxu0 0
      %6821 = vmatpush1.bf16.msra.mxu0 %v5418
      %6822 = vmatprep.subr.bf16.mxu0 0
      %6823 = vmatpush1.bf16.msra.mxu0 %v5419
      %6824 = vmatprep.subr.bf16.mxu0 0
      %6825 = vmatpush1.bf16.msra.mxu0 %v5420
      %6826 = vmatprep.subr.bf16.mxu0 0
      %6827 = vmatpush1.bf16.msra.mxu0 %v5421
      %6828 = vmatprep.subr.bf16.mxu0 0
      %6829 = vmatpush1.bf16.msra.mxu0 %v5422
      %6830 = vmatprep.subr.bf16.mxu0 0
      %6831 = vmatpush1.bf16.msra.mxu0 %v5423
      %6832 = vmatprep.subr.bf16.mxu0 0
      %6833 = vmatpush1.bf16.msra.mxu0 %v5424
      %6834 = vmatprep.mubr.bf16.mxu0 %v6004
      %6835 = vmatmul.mubr.bf16.gmra.mrb[0].mxu0 %v6003
      %v6836 = vpop.f32.mrb[0].mxu0
      %v6837 = vadd.f32 %v6420, %v6836
      %v6838 = vpop.f32.mrb[0].mxu0
      %v6839 = vpop.f32.mrb[0].mxu0
      %v6840 = vadd.f32 %v6423, %v6839
      %v6841 = vpop.f32.mrb[0].mxu0
      %6842 = vmatprep.mubr.bf16.mxu0 %v6008
      %6843 = vmatmul.mubr.bf16.gmra.mrb[0].mxu0 %v6007
      %v6844 = vpop.f32.mrb[0].mxu0
      %v6845 = vadd.f32 %v6428, %v6844
      %v6846 = vpop.f32.mrb[0].mxu0
      %v6847 = vpop.f32.mrb[0].mxu0
      %v6848 = vadd.f32 %v6431, %v6847
      %v6849 = vpop.f32.mrb[0].mxu0
      %6850 = vmatprep.mubr.bf16.mxu0 %v6012
      %6851 = vmatmul.mubr.bf16.gmra.mrb[0].mxu0 %v6011
      %v6852 = vpop.f32.mrb[0].mxu0
      %v6853 = vadd.f32 %v6436, %v6852
      %v6854 = vpop.f32.mrb[0].mxu0
      %v6855 = vpop.f32.mrb[0].mxu0
      %v6856 = vadd.f32 %v6439, %v6855
      %v6857 = vpop.f32.mrb[0].mxu0
      %6858 = vmatprep.mubr.bf16.mxu0 %v6016
      %6859 = vmatmul.mubr.bf16.gmra.mrb[0].mxu0 %v6015
      %v6860 = vpop.f32.mrb[0].mxu0
      %v6861 = vadd.f32 %v6444, %v6860
      %v6862 = vpop.f32.mrb[0].mxu0
      %v6863 = vpop.f32.mrb[0].mxu0
      %v6864 = vadd.f32 %v6447, %v6863
      %v6865 = vpop.f32.mrb[0].mxu0
      %6866 = vmatprep.mubr.bf16.mxu0 %v6020
      %6867 = vmatmul.mubr.bf16.gmra.mrb[0].mxu0 %v6019
      %v6868 = vpop.f32.mrb[0].mxu0
      %v6869 = vadd.f32 %v6452, %v6868
      %v6870 = vpop.f32.mrb[0].mxu0
      %v6871 = vpop.f32.mrb[0].mxu0
      %v6872 = vadd.f32 %v6455, %v6871
      %v6873 = vpop.f32.mrb[0].mxu0
      %6874 = vmatprep.mubr.bf16.mxu0 %v6024
      %6875 = vmatmul.mubr.bf16.gmra.mrb[0].mxu0 %v6023
      %v6876 = vpop.f32.mrb[0].mxu0
      %v6877 = vadd.f32 %v6460, %v6876
      %v6878 = vpop.f32.mrb[0].mxu0
      %v6879 = vpop.f32.mrb[0].mxu0
      %v6880 = vadd.f32 %v6463, %v6879
      %v6881 = vpop.f32.mrb[0].mxu0
      %6882 = vmatprep.mubr.bf16.mxu0 %v6028
      %6883 = vmatmul.mubr.bf16.gmra.mrb[0].mxu0 %v6027
      %v6884 = vpop.f32.mrb[0].mxu0
      %v6885 = vadd.f32 %v6468, %v6884
      %v6886 = vpop.f32.mrb[0].mxu0
      %v6887 = vpop.f32.mrb[0].mxu0
      %v6888 = vadd.f32 %v6471, %v6887
      %v6889 = vpop.f32.mrb[0].mxu0
      %6890 = vmatprep.mubr.bf16.mxu0 %v6032
      %6891 = vmatmul.mubr.bf16.gmra.mrb[0].mxu0 %v6031
      %v6892 = vpop.f32.mrb[0].mxu0
      %v6893 = vadd.f32 %v6476, %v6892
      %v6894 = vpop.f32.mrb[0].mxu0
      %v6895 = vpop.f32.mrb[0].mxu0
      %v6896 = vadd.f32 %v6479, %v6895
      %v6897 = vpop.f32.mrb[0].mxu0
      %6898 = vmatprep.mubr.bf16.mxu0 %v6036
      %6899 = vmatmul.mubr.bf16.gmra.mrb[0].mxu0 %v6035
      %v6900 = vpop.f32.mrb[0].mxu0
      %v6901 = vadd.f32 %v6484, %v6900
      %v6902 = vpop.f32.mrb[0].mxu0
      %v6903 = vpop.f32.mrb[0].mxu0
      %v6904 = vadd.f32 %v6487, %v6903
      %v6905 = vpop.f32.mrb[0].mxu0
      %6906 = vmatprep.mubr.bf16.mxu0 %v6040
      %6907 = vmatmul.mubr.bf16.gmra.mrb[0].mxu0 %v6039
      %v6908 = vpop.f32.mrb[0].mxu0
      %v6909 = vadd.f32 %v6492, %v6908
      %v6910 = vpop.f32.mrb[0].mxu0
      %v6911 = vpop.f32.mrb[0].mxu0
      %v6912 = vadd.f32 %v6495, %v6911
      %v6913 = vpop.f32.mrb[0].mxu0
      %6914 = vmatprep.mubr.bf16.mxu0 %v6044
      %6915 = vmatmul.mubr.bf16.gmra.mrb[0].mxu0 %v6043
      %v6916 = vpop.f32.mrb[0].mxu0
      %v6917 = vadd.f32 %v6500, %v6916
      %v6918 = vpop.f32.mrb[0].mxu0
      %v6919 = vpop.f32.mrb[0].mxu0
      %v6920 = vadd.f32 %v6503, %v6919
      %v6921 = vpop.f32.mrb[0].mxu0
      %6922 = vmatprep.mubr.bf16.mxu0 %v6048
      %6923 = vmatmul.mubr.bf16.gmra.mrb[0].mxu0 %v6047
      %v6924 = vpop.f32.mrb[0].mxu0
      %v6925 = vadd.f32 %v6508, %v6924
      %v6926 = vpop.f32.mrb[0].mxu0
      %v6927 = vpop.f32.mrb[0].mxu0
      %v6928 = vadd.f32 %v6511, %v6927
      %v6929 = vpop.f32.mrb[0].mxu0
      %6930 = vmatprep.mubr.bf16.mxu0 %v6052
      %6931 = vmatmul.mubr.bf16.gmra.mrb[0].mxu0 %v6051
      %v6932 = vpop.f32.mrb[0].mxu0
      %v6933 = vadd.f32 %v6516, %v6932
      %v6934 = vpop.f32.mrb[0].mxu0
      %v6935 = vpop.f32.mrb[0].mxu0
      %v6936 = vadd.f32 %v6519, %v6935
      %v6937 = vpop.f32.mrb[0].mxu0
      %6938 = vmatprep.mubr.bf16.mxu0 %v6056
      %6939 = vmatmul.mubr.bf16.gmra.mrb[0].mxu0 %v6055
      %v6940 = vpop.f32.mrb[0].mxu0
      %v6941 = vadd.f32 %v6524, %v6940
      %v6942 = vpop.f32.mrb[0].mxu0
      %v6943 = vpop.f32.mrb[0].mxu0
      %v6944 = vadd.f32 %v6527, %v6943
      %v6945 = vpop.f32.mrb[0].mxu0
      %6946 = vmatprep.mubr.bf16.mxu0 %v6060
      %6947 = vmatmul.mubr.bf16.gmra.mrb[0].mxu0 %v6059
      %v6948 = vpop.f32.mrb[0].mxu0
      %v6949 = vadd.f32 %v6532, %v6948
      %v6950 = vpop.f32.mrb[0].mxu0
      %v6951 = vpop.f32.mrb[0].mxu0
      %v6952 = vadd.f32 %v6535, %v6951
      %v6953 = vpop.f32.mrb[0].mxu0
      %6954 = vmatprep.mubr.bf16.mxu0 %v6064
      %6955 = vmatmul.mubr.bf16.gmra.mrb[0].mxu0 %v6063
      %v6956 = vpop.f32.mrb[0].mxu0
      %v6957 = vadd.f32 %v6540, %v6956
      %v6958 = vpop.f32.mrb[0].mxu0
      %v6959 = vpop.f32.mrb[0].mxu0
      %v6960 = vadd.f32 %v6543, %v6959
      %v6961 = vpop.f32.mrb[0].mxu0
      %6962 = vmatprep.mubr.bf16.mxu0 %v6068
      %6963 = vmatmul.mubr.bf16.gmra.mrb[0].mxu0 %v6067
      %v6964 = vpop.f32.mrb[0].mxu0
      %v6965 = vadd.f32 %v6548, %v6964
      %v6966 = vpop.f32.mrb[0].mxu0
      %v6967 = vpop.f32.mrb[0].mxu0
      %v6968 = vadd.f32 %v6551, %v6967
      %v6969 = vpop.f32.mrb[0].mxu0
      %6970 = vmatprep.mubr.bf16.mxu0 %v6072
      %6971 = vmatmul.mubr.bf16.gmra.mrb[0].mxu0 %v6071
      %v6972 = vpop.f32.mrb[0].mxu0
      %v6973 = vadd.f32 %v6556, %v6972
      %v6974 = vpop.f32.mrb[0].mxu0
      %v6975 = vpop.f32.mrb[0].mxu0
      %v6976 = vadd.f32 %v6559, %v6975
      %v6977 = vpop.f32.mrb[0].mxu0
      %6978 = vmatprep.mubr.bf16.mxu0 %v6076
      %6979 = vmatmul.mubr.bf16.gmra.mrb[0].mxu0 %v6075
      %v6980 = vpop.f32.mrb[0].mxu0
      %v6981 = vadd.f32 %v6564, %v6980
      %v6982 = vpop.f32.mrb[0].mxu0
      %v6983 = vpop.f32.mrb[0].mxu0
      %v6984 = vadd.f32 %v6567, %v6983
      %v6985 = vpop.f32.mrb[0].mxu0
      %6986 = vmatprep.mubr.bf16.mxu0 %v6080
      %6987 = vmatmul.mubr.bf16.gmra.mrb[0].mxu0 %v6079
      %v6988 = vpop.f32.mrb[0].mxu0
      %v6989 = vadd.f32 %v6572, %v6988
      %v6990 = vpop.f32.mrb[0].mxu0
      %v6991 = vpop.f32.mrb[0].mxu0
      %v6992 = vadd.f32 %v6575, %v6991
      %v6993 = vpop.f32.mrb[0].mxu0
      %6994 = vmatprep.mubr.bf16.mxu0 %v6084
      %6995 = vmatmul.mubr.bf16.gmra.mrb[0].mxu0 %v6083
      %v6996 = vpop.f32.mrb[0].mxu0
      %v6997 = vadd.f32 %v6580, %v6996
      %v6998 = vpop.f32.mrb[0].mxu0
      %v6999 = vpop.f32.mrb[0].mxu0
      %v7000 = vadd.f32 %v6583, %v6999
      %v7001 = vpop.f32.mrb[0].mxu0
      %7002 = vmatprep.mubr.bf16.mxu0 %v6088
      %7003 = vmatmul.mubr.bf16.gmra.mrb[0].mxu0 %v6087
      %v7004 = vpop.f32.mrb[0].mxu0
      %v7005 = vadd.f32 %v6588, %v7004
      %v7006 = vpop.f32.mrb[0].mxu0
      %v7007 = vpop.f32.mrb[0].mxu0
      %v7008 = vadd.f32 %v6591, %v7007
      %v7009 = vpop.f32.mrb[0].mxu0
      %7010 = vmatprep.mubr.bf16.mxu0 %v6092
      %7011 = vmatmul.mubr.bf16.gmra.mrb[0].mxu0 %v6091
      %v7012 = vpop.f32.mrb[0].mxu0
      %v7013 = vadd.f32 %v6596, %v7012
      %v7014 = vpop.f32.mrb[0].mxu0
      %v7015 = vpop.f32.mrb[0].mxu0
      %v7016 = vadd.f32 %v6599, %v7015
      %v7017 = vpop.f32.mrb[0].mxu0
      %7018 = vmatprep.mubr.bf16.mxu0 %v6096
      %7019 = vmatmul.mubr.bf16.gmra.mrb[0].mxu0 %v6095
      %v7020 = vpop.f32.mrb[0].mxu0
      %v7021 = vadd.f32 %v6604, %v7020
      %v7022 = vpop.f32.mrb[0].mxu0
      %v7023 = vpop.f32.mrb[0].mxu0
      %v7024 = vadd.f32 %v6607, %v7023
      %v7025 = vpop.f32.mrb[0].mxu0
      %7026 = vmatprep.mubr.bf16.mxu0 %v6100
      %7027 = vmatmul.mubr.bf16.gmra.mrb[0].mxu0 %v6099
      %v7028 = vpop.f32.mrb[0].mxu0
      %v7029 = vadd.f32 %v6612, %v7028
      %v7030 = vpop.f32.mrb[0].mxu0
      %v7031 = vpop.f32.mrb[0].mxu0
      %v7032 = vadd.f32 %v6615, %v7031
      %v7033 = vpop.f32.mrb[0].mxu0
      %7034 = vmatprep.mubr.bf16.mxu0 %v6104
      %7035 = vmatmul.mubr.bf16.gmra.mrb[0].mxu0 %v6103
      %v7036 = vpop.f32.mrb[0].mxu0
      %v7037 = vadd.f32 %v6620, %v7036
      %v7038 = vpop.f32.mrb[0].mxu0
      %v7039 = vpop.f32.mrb[0].mxu0
      %v7040 = vadd.f32 %v6623, %v7039
      %v7041 = vpop.f32.mrb[0].mxu0
      %7042 = vmatprep.mubr.bf16.mxu0 %v6108
      %7043 = vmatmul.mubr.bf16.gmra.mrb[0].mxu0 %v6107
      %v7044 = vpop.f32.mrb[0].mxu0
      %v7045 = vadd.f32 %v6628, %v7044
      %v7046 = vpop.f32.mrb[0].mxu0
      %v7047 = vpop.f32.mrb[0].mxu0
      %v7048 = vadd.f32 %v6631, %v7047
      %v7049 = vpop.f32.mrb[0].mxu0
      %7050 = vmatprep.mubr.bf16.mxu0 %v6112
      %7051 = vmatmul.mubr.bf16.gmra.mrb[0].mxu0 %v6111
      %v7052 = vpop.f32.mrb[0].mxu0
      %v7053 = vadd.f32 %v6636, %v7052
      %v7054 = vpop.f32.mrb[0].mxu0
      %v7055 = vpop.f32.mrb[0].mxu0
      %v7056 = vadd.f32 %v6639, %v7055
      %v7057 = vpop.f32.mrb[0].mxu0
      %7058 = vmatprep.mubr.bf16.mxu0 %v6116
      %7059 = vmatmul.mubr.bf16.gmra.mrb[0].mxu0 %v6115
      %v7060 = vpop.f32.mrb[0].mxu0
      %v7061 = vadd.f32 %v6644, %v7060
      %v7062 = vpop.f32.mrb[0].mxu0
      %v7063 = vpop.f32.mrb[0].mxu0
      %v7064 = vadd.f32 %v6647, %v7063
      %v7065 = vpop.f32.mrb[0].mxu0
      %7066 = vmatprep.mubr.bf16.mxu0 %v6120
      %7067 = vmatmul.mubr.bf16.gmra.mrb[0].mxu0 %v6119
      %v7068 = vpop.f32.mrb[0].mxu0
      %v7069 = vadd.f32 %v6652, %v7068
      %v7070 = vpop.f32.mrb[0].mxu0
      %v7071 = vpop.f32.mrb[0].mxu0
      %v7072 = vadd.f32 %v6655, %v7071
      %v7073 = vpop.f32.mrb[0].mxu0
      %7074 = vmatprep.mubr.bf16.mxu0 %v6124
      %7075 = vmatmul.mubr.bf16.gmra.mrb[0].mxu0 %v6123
      %v7076 = vpop.f32.mrb[0].mxu0
      %v7077 = vadd.f32 %v6660, %v7076
      %v7078 = vpop.f32.mrb[0].mxu0
      %v7079 = vpop.f32.mrb[0].mxu0
      %v7080 = vadd.f32 %v6663, %v7079
      %v7081 = vpop.f32.mrb[0].mxu0
      %7082 = vmatprep.mubr.bf16.mxu0 %v6128
      %7083 = vmatmul.mubr.bf16.gmra.mrb[0].mxu0 %v6127
      %v7084 = vpop.f32.mrb[0].mxu0
      %v7085 = vadd.f32 %v6668, %v7084
      %v7086 = vpop.f32.mrb[0].mxu0
      %v7087 = vpop.f32.mrb[0].mxu0
      %v7088 = vadd.f32 %v6671, %v7087
      %v7089 = vpop.f32.mrb[0].mxu0
      %7090 = vmatprep.mubr.bf16.mxu0 %v6132
      %7091 = vmatmul.mubr.bf16.gmra.mrb[0].mxu0 %v6131
      %v7092 = vpop.f32.mrb[0].mxu0
      %v7093 = vadd.f32 %v6676, %v7092
      %v7094 = vpop.f32.mrb[0].mxu0
      %v7095 = vpop.f32.mrb[0].mxu0
      %v7096 = vadd.f32 %v6679, %v7095
      %v7097 = vpop.f32.mrb[0].mxu0
      %7098 = vmatprep.mubr.bf16.mxu0 %v6136
      %7099 = vmatmul.mubr.bf16.gmra.mrb[0].mxu0 %v6135
      %v7100 = vpop.f32.mrb[0].mxu0
      %v7101 = vadd.f32 %v6684, %v7100
      %v7102 = vpop.f32.mrb[0].mxu0
      %v7103 = vpop.f32.mrb[0].mxu0
      %v7104 = vadd.f32 %v6687, %v7103
      %v7105 = vpop.f32.mrb[0].mxu0
      %7106 = vmatprep.mubr.bf16.mxu0 %v6140
      %7107 = vmatmul.mubr.bf16.gmra.mrb[0].mxu0 %v6139
      %v7108 = vpop.f32.mrb[0].mxu0
      %v7109 = vadd.f32 %v6692, %v7108
      %v7110 = vpop.f32.mrb[0].mxu0
      %v7111 = vpop.f32.mrb[0].mxu0
      %v7112 = vadd.f32 %v6695, %v7111
      %v7113 = vpop.f32.mrb[0].mxu0
      %7114 = vmatprep.mubr.bf16.mxu0 %v6144
      %7115 = vmatmul.mubr.bf16.gmra.mrb[0].mxu0 %v6143
      %v7116 = vpop.f32.mrb[0].mxu0
      %v7117 = vadd.f32 %v6700, %v7116
      %v7118 = vpop.f32.mrb[0].mxu0
      %v7119 = vpop.f32.mrb[0].mxu0
      %v7120 = vadd.f32 %v6703, %v7119
      %v7121 = vpop.f32.mrb[0].mxu0
      %7122 = vmatprep.mubr.bf16.mxu0 %v6148
      %7123 = vmatmul.mubr.bf16.gmra.mrb[0].mxu0 %v6147
      %v7124 = vpop.f32.mrb[0].mxu0
      %v7125 = vadd.f32 %v6708, %v7124
      %v7126 = vpop.f32.mrb[0].mxu0
      %v7127 = vpop.f32.mrb[0].mxu0
      %v7128 = vadd.f32 %v6711, %v7127
      %v7129 = vpop.f32.mrb[0].mxu0
      %7130 = vmatprep.mubr.bf16.mxu0 %v6152
      %7131 = vmatmul.mubr.bf16.gmra.mrb[0].mxu0 %v6151
      %v7132 = vpop.f32.mrb[0].mxu0
      %v7133 = vadd.f32 %v6716, %v7132
      %v7134 = vpop.f32.mrb[0].mxu0
      %v7135 = vpop.f32.mrb[0].mxu0
      %v7136 = vadd.f32 %v6719, %v7135
      %v7137 = vpop.f32.mrb[0].mxu0
      %7138 = vmatprep.mubr.bf16.mxu0 %v6156
      %7139 = vmatmul.mubr.bf16.gmra.mrb[0].mxu0 %v6155
      %v7140 = vpop.f32.mrb[0].mxu0
      %v7141 = vadd.f32 %v6724, %v7140
      %v7142 = vpop.f32.mrb[0].mxu0
      %v7143 = vpop.f32.mrb[0].mxu0
      %v7144 = vadd.f32 %v6727, %v7143
      %v7145 = vpop.f32.mrb[0].mxu0
      %7146 = vmatprep.mubr.bf16.mxu0 %v6160
      %7147 = vmatmul.mubr.bf16.gmra.mrb[0].mxu0 %v6159
      %v7148 = vpop.f32.mrb[0].mxu0
      %v7149 = vadd.f32 %v6732, %v7148
      %v7150 = vpop.f32.mrb[0].mxu0
      %v7151 = vpop.f32.mrb[0].mxu0
      %v7152 = vadd.f32 %v6735, %v7151
      %v7153 = vpop.f32.mrb[0].mxu0
      %7154 = vmatprep.mubr.bf16.mxu0 %v6164
      %7155 = vmatmul.mubr.bf16.gmra.mrb[0].mxu0 %v6163
      %v7156 = vpop.f32.mrb[0].mxu0
      %v7157 = vadd.f32 %v6740, %v7156
      %v7158 = vpop.f32.mrb[0].mxu0
      %v7159 = vpop.f32.mrb[0].mxu0
      %v7160 = vadd.f32 %v6743, %v7159
      %v7161 = vpop.f32.mrb[0].mxu0
      %7162 = vmatprep.mubr.bf16.mxu0 %v6168
      %7163 = vmatmul.mubr.bf16.gmra.mrb[0].mxu0 %v6167
      %v7164 = vpop.f32.mrb[0].mxu0
      %v7165 = vadd.f32 %v6748, %v7164
      %v7166 = vpop.f32.mrb[0].mxu0
      %v7167 = vpop.f32.mrb[0].mxu0
      %v7168 = vadd.f32 %v6751, %v7167
      %v7169 = vpop.f32.mrb[0].mxu0
      %7170 = vmatprep.mubr.bf16.mxu0 %v6172
      %7171 = vmatmul.mubr.bf16.gmra.mrb[0].mxu0 %v6171
      %v7172 = vpop.f32.mrb[0].mxu0
      %v7173 = vadd.f32 %v6756, %v7172
      %v7174 = vpop.f32.mrb[0].mxu0
      %v7175 = vpop.f32.mrb[0].mxu0
      %v7176 = vadd.f32 %v6759, %v7175
      %v7177 = vpop.f32.mrb[0].mxu0
      %7178 = vmatprep.mubr.bf16.mxu0 %v6176
      %7179 = vmatmul.mubr.bf16.gmra.mrb[0].mxu0 %v6175
      %v7180 = vpop.f32.mrb[0].mxu0
      %v7181 = vadd.f32 %v6764, %v7180
      %v7182 = vpop.f32.mrb[0].mxu0
      %v7183 = vpop.f32.mrb[0].mxu0
      %v7184 = vadd.f32 %v6767, %v7183
      %v7185 = vpop.f32.mrb[0].mxu0
      %7186 = vmatprep.mubr.bf16.mxu0 %v6180
      %7187 = vmatmul.mubr.bf16.gmra.mrb[0].mxu0 %v6179
      %v7188 = vpop.f32.mrb[0].mxu0
      %v7189 = vadd.f32 %v6772, %v7188
      %v7190 = vpop.f32.mrb[0].mxu0
      %v7191 = vpop.f32.mrb[0].mxu0
      %v7192 = vadd.f32 %v6775, %v7191
      %v7193 = vpop.f32.mrb[0].mxu0
      %7194 = vmatprep.mubr.bf16.mxu0 %v6184
      %7195 = vmatmul.mubr.bf16.gmra.mrb[0].mxu0 %v6183
      %v7196 = vpop.f32.mrb[0].mxu0
      %v7197 = vadd.f32 %v6780, %v7196
      %v7198 = vpop.f32.mrb[0].mxu0
      %v7199 = vpop.f32.mrb[0].mxu0
      %v7200 = vadd.f32 %v6783, %v7199
      %v7201 = vpop.f32.mrb[0].mxu0
      %7202 = vmatprep.mubr.bf16.mxu0 %v6188
      %7203 = vmatmul.mubr.bf16.gmra.mrb[0].mxu0 %v6187
      %v7204 = vpop.f32.mrb[0].mxu0
      %v7205 = vadd.f32 %v6788, %v7204
      %v7206 = vpop.f32.mrb[0].mxu0
      %v7207 = vpop.f32.mrb[0].mxu0
      %v7208 = vadd.f32 %v6791, %v7207
      %v7209 = vpop.f32.mrb[0].mxu0
      %7210 = vmatprep.mubr.bf16.mxu0 %v6192
      %7211 = vmatmul.mubr.bf16.gmra.mrb[0].mxu0 %v6191
      %v7212 = vpop.f32.mrb[0].mxu0
      %v7213 = vadd.f32 %v6796, %v7212
      %v7214 = vpop.f32.mrb[0].mxu0
      %v7215 = vpop.f32.mrb[0].mxu0
      %v7216 = vadd.f32 %v6799, %v7215
      %v7217 = vpop.f32.mrb[0].mxu0
      %7218 = vdwg.mxu0
      %v7219 = vpack.c.bf16 %v6840, %v6837
      %v7220 = vpack.c.bf16 %v6848, %v6845
      %v7221 = vpack.c.bf16 %v6856, %v6853
      %v7222 = vpack.c.bf16 %v6864, %v6861
      %v7223 = vpack.c.bf16 %v6872, %v6869
      %v7224 = vpack.c.bf16 %v6880, %v6877
      %v7225 = vpack.c.bf16 %v6888, %v6885
      %v7226 = vpack.c.bf16 %v6896, %v6893
      %v7227 = vpack.c.bf16 %v6904, %v6901
      %v7228 = vpack.c.bf16 %v6912, %v6909
      %v7229 = vpack.c.bf16 %v6920, %v6917
      %v7230 = vpack.c.bf16 %v6928, %v6925
      %v7231 = vpack.c.bf16 %v6936, %v6933
      %v7232 = vpack.c.bf16 %v6944, %v6941
      %v7233 = vpack.c.bf16 %v6952, %v6949
      %v7234 = vpack.c.bf16 %v6960, %v6957
      %v7235 = vpack.c.bf16 %v6968, %v6965
      %v7236 = vpack.c.bf16 %v6976, %v6973
      %v7237 = vpack.c.bf16 %v6984, %v6981
      %v7238 = vpack.c.bf16 %v6992, %v6989
      %v7239 = vpack.c.bf16 %v7000, %v6997
      %v7240 = vpack.c.bf16 %v7008, %v7005
      %v7241 = vpack.c.bf16 %v7016, %v7013
      %v7242 = vpack.c.bf16 %v7024, %v7021
      %v7243 = vpack.c.bf16 %v7032, %v7029
      %v7244 = vpack.c.bf16 %v7040, %v7037
      %v7245 = vpack.c.bf16 %v7048, %v7045
      %v7246 = vpack.c.bf16 %v7056, %v7053
      %v7247 = vpack.c.bf16 %v7064, %v7061
      %v7248 = vpack.c.bf16 %v7072, %v7069
      %v7249 = vpack.c.bf16 %v7080, %v7077
      %v7250 = vpack.c.bf16 %v7088, %v7085
      %v7251 = vpack.c.bf16 %v7096, %v7093
      %v7252 = vpack.c.bf16 %v7104, %v7101
      %v7253 = vpack.c.bf16 %v7112, %v7109
      %v7254 = vpack.c.bf16 %v7120, %v7117
      %v7255 = vpack.c.bf16 %v7128, %v7125
      %v7256 = vpack.c.bf16 %v7136, %v7133
      %v7257 = vpack.c.bf16 %v7144, %v7141
      %v7258 = vpack.c.bf16 %v7152, %v7149
      %v7259 = vpack.c.bf16 %v7160, %v7157
      %v7260 = vpack.c.bf16 %v7168, %v7165
      %v7261 = vpack.c.bf16 %v7176, %v7173
      %v7262 = vpack.c.bf16 %v7184, %v7181
      %v7263 = vpack.c.bf16 %v7192, %v7189
      %v7264 = vpack.c.bf16 %v7200, %v7197
      %v7265 = vpack.c.bf16 %v7208, %v7205
      %v7266 = vpack.c.bf16 %v7216, %v7213
      %v7267 = vld [vmem:[%s7] sm:$0xff]
      %v7268 = vld [vmem:[%s7 + $0x8] sm:$0xff]
      %v7269 = vld [vmem:[%s7 + $0x10] sm:$0xff]
      %v7270 = vld [vmem:[%s7 + $0x18] sm:$0xff]
      %v7271 = vld [vmem:[%s7 + $0x20] sm:$0xff]
      %v7272 = vld [vmem:[%s7 + $0x28] sm:$0xff]
      %v7273 = vld [vmem:[%s7 + $0x30] sm:$0xff]
      %v7274 = vld [vmem:[%s7 + $0x38] sm:$0xff]
      %v7275 = vld [vmem:[%s7 + $0x40] sm:$0xff]
      %v7276 = vld [vmem:[%s7 + $0x48] sm:$0xff]
      %v7277 = vld [vmem:[%s7 + $0x50] sm:$0xff]
      %v7278 = vld [vmem:[%s7 + $0x58] sm:$0xff]
      %v7279 = vld [vmem:[%s7 + $0x60] sm:$0xff]
      %v7280 = vld [vmem:[%s7 + $0x68] sm:$0xff]
      %v7281 = vld [vmem:[%s7 + $0x70] sm:$0xff]
      %v7282 = vld [vmem:[%s7 + $0x78] sm:$0xff]
      %v7283 = vld [vmem:[%s7 + $0x80] sm:$0xff]
      %v7284 = vld [vmem:[%s7 + $0x88] sm:$0xff]
      %v7285 = vld [vmem:[%s7 + $0x90] sm:$0xff]
      %v7286 = vld [vmem:[%s7 + $0x98] sm:$0xff]
      %v7287 = vld [vmem:[%s7 + $0xa0] sm:$0xff]
      %v7288 = vld [vmem:[%s7 + $0xa8] sm:$0xff]
      %v7289 = vld [vmem:[%s7 + $0xb0] sm:$0xff]
      %v7290 = vld [vmem:[%s7 + $0xb8] sm:$0xff]
      %v7291 = vld [vmem:[%s7 + $0xc0] sm:$0xff]
      %v7292 = vld [vmem:[%s7 + $0xc8] sm:$0xff]
      %v7293 = vld [vmem:[%s7 + $0xd0] sm:$0xff]
      %v7294 = vld [vmem:[%s7 + $0xd8] sm:$0xff]
      %v7295 = vld [vmem:[%s7 + $0xe0] sm:$0xff]
      %v7296 = vld [vmem:[%s7 + $0xe8] sm:$0xff]
      %v7297 = vld [vmem:[%s7 + $0xf0] sm:$0xff]
      %v7298 = vld [vmem:[%s7 + $0xf8] sm:$0xff]
      %v7299 = vld [vmem:[%s7 + $0x100] sm:$0xff]
      %v7300 = vld [vmem:[%s7 + $0x108] sm:$0xff]
      %v7301 = vld [vmem:[%s7 + $0x110] sm:$0xff]
      %v7302 = vld [vmem:[%s7 + $0x118] sm:$0xff]
      %v7303 = vld [vmem:[%s7 + $0x120] sm:$0xff]
      %v7304 = vld [vmem:[%s7 + $0x128] sm:$0xff]
      %v7305 = vld [vmem:[%s7 + $0x130] sm:$0xff]
      %v7306 = vld [vmem:[%s7 + $0x138] sm:$0xff]
      %v7307 = vld [vmem:[%s7 + $0x140] sm:$0xff]
      %v7308 = vld [vmem:[%s7 + $0x148] sm:$0xff]
      %v7309 = vld [vmem:[%s7 + $0x150] sm:$0xff]
      %v7310 = vld [vmem:[%s7 + $0x158] sm:$0xff]
      %v7311 = vld [vmem:[%s7 + $0x160] sm:$0xff]
      %v7312 = vld [vmem:[%s7 + $0x168] sm:$0xff]
      %v7313 = vld [vmem:[%s7 + $0x170] sm:$0xff]
      %v7314 = vld [vmem:[%s7 + $0x178] sm:$0xff]
      %v7315 = vld [vmem:[%s7 + $0x180] sm:$0xff]
      %v7316 = vld [vmem:[%s7 + $0x188] sm:$0xff]
      %v7317 = vld [vmem:[%s7 + $0x190] sm:$0xff]
      %v7318 = vld [vmem:[%s7 + $0x198] sm:$0xff]
      %v7319 = vld [vmem:[%s7 + $0x1a0] sm:$0xff]
      %v7320 = vld [vmem:[%s7 + $0x1a8] sm:$0xff]
      %v7321 = vld [vmem:[%s7 + $0x1b0] sm:$0xff]
      %v7322 = vld [vmem:[%s7 + $0x1b8] sm:$0xff]
      %v7323 = vld [vmem:[%s7 + $0x1c0] sm:$0xff]
      %v7324 = vld [vmem:[%s7 + $0x1c8] sm:$0xff]
      %v7325 = vld [vmem:[%s7 + $0x1d0] sm:$0xff]
      %v7326 = vld [vmem:[%s7 + $0x1d8] sm:$0xff]
      %v7327 = vld [vmem:[%s7 + $0x1e0] sm:$0xff]
      %v7328 = vld [vmem:[%s7 + $0x1e8] sm:$0xff]
      %v7329 = vld [vmem:[%s7 + $0x1f0] sm:$0xff]
      %v7330 = vld [vmem:[%s7 + $0x1f8] sm:$0xff]
      %v7331 = vld [vmem:[%s7 + $0x200] sm:$0xff]
      %v7332 = vld [vmem:[%s7 + $0x208] sm:$0xff]
      %v7333 = vld [vmem:[%s7 + $0x210] sm:$0xff]
      %v7334 = vld [vmem:[%s7 + $0x218] sm:$0xff]
      %v7335 = vld [vmem:[%s7 + $0x220] sm:$0xff]
      %v7336 = vld [vmem:[%s7 + $0x228] sm:$0xff]
      %v7337 = vld [vmem:[%s7 + $0x230] sm:$0xff]
      %v7338 = vld [vmem:[%s7 + $0x238] sm:$0xff]
      %v7339 = vld [vmem:[%s7 + $0x240] sm:$0xff]
      %v7340 = vld [vmem:[%s7 + $0x248] sm:$0xff]
      %v7341 = vld [vmem:[%s7 + $0x250] sm:$0xff]
      %v7342 = vld [vmem:[%s7 + $0x258] sm:$0xff]
      %v7343 = vld [vmem:[%s7 + $0x260] sm:$0xff]
      %v7344 = vld [vmem:[%s7 + $0x268] sm:$0xff]
      %v7345 = vld [vmem:[%s7 + $0x270] sm:$0xff]
      %v7346 = vld [vmem:[%s7 + $0x278] sm:$0xff]
      %v7347 = vld [vmem:[%s7 + $0x280] sm:$0xff]
      %v7348 = vld [vmem:[%s7 + $0x288] sm:$0xff]
      %v7349 = vld [vmem:[%s7 + $0x290] sm:$0xff]
      %v7350 = vld [vmem:[%s7 + $0x298] sm:$0xff]
      %v7351 = vld [vmem:[%s7 + $0x2a0] sm:$0xff]
      %v7352 = vld [vmem:[%s7 + $0x2a8] sm:$0xff]
      %v7353 = vld [vmem:[%s7 + $0x2b0] sm:$0xff]
      %v7354 = vld [vmem:[%s7 + $0x2b8] sm:$0xff]
      %v7355 = vld [vmem:[%s7 + $0x2c0] sm:$0xff]
      %v7356 = vld [vmem:[%s7 + $0x2c8] sm:$0xff]
      %v7357 = vld [vmem:[%s7 + $0x2d0] sm:$0xff]
      %v7358 = vld [vmem:[%s7 + $0x2d8] sm:$0xff]
      %v7359 = vld [vmem:[%s7 + $0x2e0] sm:$0xff]
      %v7360 = vld [vmem:[%s7 + $0x2e8] sm:$0xff]
      %v7361 = vld [vmem:[%s7 + $0x2f0] sm:$0xff]
      %v7362 = vld [vmem:[%s7 + $0x2f8] sm:$0xff]
      %v7363 = vld [vmem:[%s7 + $0x300] sm:$0xff]
      %v7364 = vld [vmem:[%s7 + $0x308] sm:$0xff]
      %v7365 = vld [vmem:[%s7 + $0x310] sm:$0xff]
      %v7366 = vld [vmem:[%s7 + $0x318] sm:$0xff]
      %v7367 = vld [vmem:[%s7 + $0x320] sm:$0xff]
      %v7368 = vld [vmem:[%s7 + $0x328] sm:$0xff]
      %v7369 = vld [vmem:[%s7 + $0x330] sm:$0xff]
      %v7370 = vld [vmem:[%s7 + $0x338] sm:$0xff]
      %v7371 = vld [vmem:[%s7 + $0x340] sm:$0xff]
      %v7372 = vld [vmem:[%s7 + $0x348] sm:$0xff]
      %v7373 = vld [vmem:[%s7 + $0x350] sm:$0xff]
      %v7374 = vld [vmem:[%s7 + $0x358] sm:$0xff]
      %v7375 = vld [vmem:[%s7 + $0x360] sm:$0xff]
      %v7376 = vld [vmem:[%s7 + $0x368] sm:$0xff]
      %v7377 = vld [vmem:[%s7 + $0x370] sm:$0xff]
      %v7378 = vld [vmem:[%s7 + $0x378] sm:$0xff]
      %v7379 = vld [vmem:[%s7 + $0x380] sm:$0xff]
      %v7380 = vld [vmem:[%s7 + $0x388] sm:$0xff]
      %v7381 = vld [vmem:[%s7 + $0x390] sm:$0xff]
      %v7382 = vld [vmem:[%s7 + $0x398] sm:$0xff]
      %v7383 = vld [vmem:[%s7 + $0x3a0] sm:$0xff]
      %v7384 = vld [vmem:[%s7 + $0x3a8] sm:$0xff]
      %v7385 = vld [vmem:[%s7 + $0x3b0] sm:$0xff]
      %v7386 = vld [vmem:[%s7 + $0x3b8] sm:$0xff]
      %v7387 = vld [vmem:[%s7 + $0x3c0] sm:$0xff]
      %v7388 = vld [vmem:[%s7 + $0x3c8] sm:$0xff]
      %v7389 = vld [vmem:[%s7 + $0x3d0] sm:$0xff]
      %v7390 = vld [vmem:[%s7 + $0x3d8] sm:$0xff]
      %v7391 = vld [vmem:[%s7 + $0x3e0] sm:$0xff]
      %v7392 = vld [vmem:[%s7 + $0x3e8] sm:$0xff]
      %v7393 = vld [vmem:[%s7 + $0x3f0] sm:$0xff]
      %v7394 = vld [vmem:[%s7 + $0x3f8] sm:$0xff]
      %v7395 = vld [vmem:[%s7 + $0x400] sm:$0xff]
      %v7396 = vld [vmem:[%s7 + $0x408] sm:$0xff]
      %v7397 = vld [vmem:[%s7 + $0x410] sm:$0xff]
      %v7398 = vld [vmem:[%s7 + $0x418] sm:$0xff]
      %v7399 = vld [vmem:[%s7 + $0x420] sm:$0xff]
      %v7400 = vld [vmem:[%s7 + $0x428] sm:$0xff]
      %v7401 = vld [vmem:[%s7 + $0x430] sm:$0xff]
      %v7402 = vld [vmem:[%s7 + $0x438] sm:$0xff]
      %v7403 = vld [vmem:[%s7 + $0x440] sm:$0xff]
      %v7404 = vld [vmem:[%s7 + $0x448] sm:$0xff]
      %v7405 = vld [vmem:[%s7 + $0x450] sm:$0xff]
      %v7406 = vld [vmem:[%s7 + $0x458] sm:$0xff]
      %v7407 = vld [vmem:[%s7 + $0x460] sm:$0xff]
      %v7408 = vld [vmem:[%s7 + $0x468] sm:$0xff]
      %v7409 = vld [vmem:[%s7 + $0x470] sm:$0xff]
      %v7410 = vld [vmem:[%s7 + $0x478] sm:$0xff]
      %v7411 = vld [vmem:[%s7 + $0x480] sm:$0xff]
      %v7412 = vld [vmem:[%s7 + $0x488] sm:$0xff]
      %v7413 = vld [vmem:[%s7 + $0x490] sm:$0xff]
      %v7414 = vld [vmem:[%s7 + $0x498] sm:$0xff]
      %v7415 = vld [vmem:[%s7 + $0x4a0] sm:$0xff]
      %v7416 = vld [vmem:[%s7 + $0x4a8] sm:$0xff]
      %v7417 = vld [vmem:[%s7 + $0x4b0] sm:$0xff]
      %v7418 = vld [vmem:[%s7 + $0x4b8] sm:$0xff]
      %v7419 = vld [vmem:[%s7 + $0x4c0] sm:$0xff]
      %v7420 = vld [vmem:[%s7 + $0x4c8] sm:$0xff]
      %v7421 = vld [vmem:[%s7 + $0x4d0] sm:$0xff]
      %v7422 = vld [vmem:[%s7 + $0x4d8] sm:$0xff]
      %v7423 = vld [vmem:[%s7 + $0x4e0] sm:$0xff]
      %v7424 = vld [vmem:[%s7 + $0x4e8] sm:$0xff]
      %v7425 = vld [vmem:[%s7 + $0x4f0] sm:$0xff]
      %v7426 = vld [vmem:[%s7 + $0x4f8] sm:$0xff]
      %v7427 = vld [vmem:[%s7 + $0x500] sm:$0xff]
      %v7428 = vld [vmem:[%s7 + $0x508] sm:$0xff]
      %v7429 = vld [vmem:[%s7 + $0x510] sm:$0xff]
      %v7430 = vld [vmem:[%s7 + $0x518] sm:$0xff]
      %v7431 = vld [vmem:[%s7 + $0x520] sm:$0xff]
      %v7432 = vld [vmem:[%s7 + $0x528] sm:$0xff]
      %v7433 = vld [vmem:[%s7 + $0x530] sm:$0xff]
      %v7434 = vld [vmem:[%s7 + $0x538] sm:$0xff]
      %v7435 = vld [vmem:[%s7 + $0x540] sm:$0xff]
      %v7436 = vld [vmem:[%s7 + $0x548] sm:$0xff]
      %v7437 = vld [vmem:[%s7 + $0x550] sm:$0xff]
      %v7438 = vld [vmem:[%s7 + $0x558] sm:$0xff]
      %v7439 = vld [vmem:[%s7 + $0x560] sm:$0xff]
      %v7440 = vld [vmem:[%s7 + $0x568] sm:$0xff]
      %v7441 = vld [vmem:[%s7 + $0x570] sm:$0xff]
      %v7442 = vld [vmem:[%s7 + $0x578] sm:$0xff]
      %v7443 = vld [vmem:[%s7 + $0x580] sm:$0xff]
      %v7444 = vld [vmem:[%s7 + $0x588] sm:$0xff]
      %v7445 = vld [vmem:[%s7 + $0x590] sm:$0xff]
      %v7446 = vld [vmem:[%s7 + $0x598] sm:$0xff]
      %v7447 = vld [vmem:[%s7 + $0x5a0] sm:$0xff]
      %v7448 = vld [vmem:[%s7 + $0x5a8] sm:$0xff]
      %v7449 = vld [vmem:[%s7 + $0x5b0] sm:$0xff]
      %v7450 = vld [vmem:[%s7 + $0x5b8] sm:$0xff]
      %v7451 = vld [vmem:[%s7 + $0x5c0] sm:$0xff]
      %v7452 = vld [vmem:[%s7 + $0x5c8] sm:$0xff]
      %v7453 = vld [vmem:[%s7 + $0x5d0] sm:$0xff]
      %v7454 = vld [vmem:[%s7 + $0x5d8] sm:$0xff]
      %v7455 = vld [vmem:[%s7 + $0x5e0] sm:$0xff]
      %v7456 = vld [vmem:[%s7 + $0x5e8] sm:$0xff]
      %v7457 = vld [vmem:[%s7 + $0x5f0] sm:$0xff]
      %v7458 = vld [vmem:[%s7 + $0x5f8] sm:$0xff]
      %v7459 = vld [vmem:[%s8] sm:$0xff]
      %v7461 = vlaneseq
      %v7462 = vshrl.u32 %v7461, 7
      %v7463 = vsub.s32 0, %v7462
      %v7464 = vrot.slane %v7459, %v7463
      %v7465 = vlaneseq
      %v7466 = vshrl.u32 %v7465, 7
      %v7467 = vsub.s32 1, %v7466
      %v7468 = vrot.slane %v7459, %v7467
      %v7469 = vlaneseq
      %v7470 = vshrl.u32 %v7469, 7
      %v7471 = vsub.s32 2, %v7470
      %v7472 = vrot.slane %v7459, %v7471
      %v7473 = vlaneseq
      %v7474 = vshrl.u32 %v7473, 7
      %v7475 = vsub.s32 3, %v7474
      %v7476 = vrot.slane %v7459, %v7475
      %v7477 = vlaneseq
      %v7478 = vshrl.u32 %v7477, 7
      %v7479 = vsub.s32 4, %v7478
      %v7480 = vrot.slane %v7459, %v7479
      %v7481 = vlaneseq
      %v7482 = vshrl.u32 %v7481, 7
      %v7483 = vsub.s32 5, %v7482
      %v7484 = vrot.slane %v7459, %v7483
      %v7485 = vlaneseq
      %v7486 = vshrl.u32 %v7485, 7
      %v7487 = vsub.s32 6, %v7486
      %v7488 = vrot.slane %v7459, %v7487
      %v7489 = vlaneseq
      %v7490 = vshrl.u32 %v7489, 7
      %v7491 = vsub.s32 7, %v7490
      %v7492 = vrot.slane %v7459, %v7491
      %v7693 = vunpack.c.l.b16 %v7267
      %v7694 = vunpack.c.h.b16 %v7267
      %v7695 = vunpack.c.l.b16 %v7268
      %v7696 = vunpack.c.h.b16 %v7268
      %v7697 = vunpack.c.l.b16 %v7269
      %v7698 = vunpack.c.h.b16 %v7269
      %v7699 = vunpack.c.l.b16 %v7270
      %v7700 = vunpack.c.h.b16 %v7270
      %v7701 = vunpack.c.l.b16 %v7271
      %v7702 = vunpack.c.h.b16 %v7271
      %v7703 = vunpack.c.l.b16 %v7272
      %v7704 = vunpack.c.h.b16 %v7272
      %v7705 = vunpack.c.l.b16 %v7273
      %v7706 = vunpack.c.h.b16 %v7273
      %v7707 = vunpack.c.l.b16 %v7274
      %v7708 = vunpack.c.h.b16 %v7274
      %v7709 = vunpack.c.l.b16 %v7275
      %v7710 = vunpack.c.h.b16 %v7275
      %v7711 = vunpack.c.l.b16 %v7276
      %v7712 = vunpack.c.h.b16 %v7276
      %v7713 = vunpack.c.l.b16 %v7277
      %v7714 = vunpack.c.h.b16 %v7277
      %v7715 = vunpack.c.l.b16 %v7278
      %v7716 = vunpack.c.h.b16 %v7278
      %v7717 = vunpack.c.l.b16 %v7279
      %v7718 = vunpack.c.h.b16 %v7279
      %v7719 = vunpack.c.l.b16 %v7280
      %v7720 = vunpack.c.h.b16 %v7280
      %v7721 = vunpack.c.l.b16 %v7281
      %v7722 = vunpack.c.h.b16 %v7281
      %v7723 = vunpack.c.l.b16 %v7282
      %v7724 = vunpack.c.h.b16 %v7282
      %v7725 = vunpack.c.l.b16 %v7283
      %v7726 = vunpack.c.h.b16 %v7283
      %v7727 = vunpack.c.l.b16 %v7284
      %v7728 = vunpack.c.h.b16 %v7284
      %v7729 = vunpack.c.l.b16 %v7285
      %v7730 = vunpack.c.h.b16 %v7285
      %v7731 = vunpack.c.l.b16 %v7286
      %v7732 = vunpack.c.h.b16 %v7286
      %v7733 = vunpack.c.l.b16 %v7287
      %v7734 = vunpack.c.h.b16 %v7287
      %v7735 = vunpack.c.l.b16 %v7288
      %v7736 = vunpack.c.h.b16 %v7288
      %v7737 = vunpack.c.l.b16 %v7289
      %v7738 = vunpack.c.h.b16 %v7289
      %v7739 = vunpack.c.l.b16 %v7290
      %v7740 = vunpack.c.h.b16 %v7290
      %v7741 = vunpack.c.l.b16 %v7291
      %v7742 = vunpack.c.h.b16 %v7291
      %v7743 = vunpack.c.l.b16 %v7292
      %v7744 = vunpack.c.h.b16 %v7292
      %v7745 = vunpack.c.l.b16 %v7293
      %v7746 = vunpack.c.h.b16 %v7293
      %v7747 = vunpack.c.l.b16 %v7294
      %v7748 = vunpack.c.h.b16 %v7294
      %v7749 = vunpack.c.l.b16 %v7295
      %v7750 = vunpack.c.h.b16 %v7295
      %v7751 = vunpack.c.l.b16 %v7296
      %v7752 = vunpack.c.h.b16 %v7296
      %v7753 = vunpack.c.l.b16 %v7297
      %v7754 = vunpack.c.h.b16 %v7297
      %v7755 = vunpack.c.l.b16 %v7298
      %v7756 = vunpack.c.h.b16 %v7298
      %v7757 = vunpack.c.l.b16 %v7299
      %v7758 = vunpack.c.h.b16 %v7299
      %v7759 = vunpack.c.l.b16 %v7300
      %v7760 = vunpack.c.h.b16 %v7300
      %v7761 = vunpack.c.l.b16 %v7301
      %v7762 = vunpack.c.h.b16 %v7301
      %v7763 = vunpack.c.l.b16 %v7302
      %v7764 = vunpack.c.h.b16 %v7302
      %v7765 = vunpack.c.l.b16 %v7303
      %v7766 = vunpack.c.h.b16 %v7303
      %v7767 = vunpack.c.l.b16 %v7304
      %v7768 = vunpack.c.h.b16 %v7304
      %v7769 = vunpack.c.l.b16 %v7305
      %v7770 = vunpack.c.h.b16 %v7305
      %v7771 = vunpack.c.l.b16 %v7306
      %v7772 = vunpack.c.h.b16 %v7306
      %v7773 = vunpack.c.l.b16 %v7307
      %v7774 = vunpack.c.h.b16 %v7307
      %v7775 = vunpack.c.l.b16 %v7308
      %v7776 = vunpack.c.h.b16 %v7308
      %v7777 = vunpack.c.l.b16 %v7309
      %v7778 = vunpack.c.h.b16 %v7309
      %v7779 = vunpack.c.l.b16 %v7310
      %v7780 = vunpack.c.h.b16 %v7310
      %v7781 = vunpack.c.l.b16 %v7311
      %v7782 = vunpack.c.h.b16 %v7311
      %v7783 = vunpack.c.l.b16 %v7312
      %v7784 = vunpack.c.h.b16 %v7312
      %v7785 = vunpack.c.l.b16 %v7313
      %v7786 = vunpack.c.h.b16 %v7313
      %v7787 = vunpack.c.l.b16 %v7314
      %v7788 = vunpack.c.h.b16 %v7314
      %v7789 = vunpack.c.l.b16 %v7315
      %v7790 = vunpack.c.h.b16 %v7315
      %v7791 = vunpack.c.l.b16 %v7316
      %v7792 = vunpack.c.h.b16 %v7316
      %v7793 = vunpack.c.l.b16 %v7317
      %v7794 = vunpack.c.h.b16 %v7317
      %v7795 = vunpack.c.l.b16 %v7318
      %v7796 = vunpack.c.h.b16 %v7318
      %v7797 = vunpack.c.l.b16 %v7319
      %v7798 = vunpack.c.h.b16 %v7319
      %v7799 = vunpack.c.l.b16 %v7320
      %v7800 = vunpack.c.h.b16 %v7320
      %v7801 = vunpack.c.l.b16 %v7321
      %v7802 = vunpack.c.h.b16 %v7321
      %v7803 = vunpack.c.l.b16 %v7322
      %v7804 = vunpack.c.h.b16 %v7322
      %v7805 = vunpack.c.l.b16 %v7323
      %v7806 = vunpack.c.h.b16 %v7323
      %v7807 = vunpack.c.l.b16 %v7324
      %v7808 = vunpack.c.h.b16 %v7324
      %v7809 = vunpack.c.l.b16 %v7325
      %v7810 = vunpack.c.h.b16 %v7325
      %v7811 = vunpack.c.l.b16 %v7326
      %v7812 = vunpack.c.h.b16 %v7326
      %v7813 = vunpack.c.l.b16 %v7327
      %v7814 = vunpack.c.h.b16 %v7327
      %v7815 = vunpack.c.l.b16 %v7328
      %v7816 = vunpack.c.h.b16 %v7328
      %v7817 = vunpack.c.l.b16 %v7329
      %v7818 = vunpack.c.h.b16 %v7329
      %v7819 = vunpack.c.l.b16 %v7330
      %v7820 = vunpack.c.h.b16 %v7330
      %v7821 = vunpack.c.l.b16 %v7331
      %v7822 = vunpack.c.h.b16 %v7331
      %v7823 = vunpack.c.l.b16 %v7332
      %v7824 = vunpack.c.h.b16 %v7332
      %v7825 = vunpack.c.l.b16 %v7333
      %v7826 = vunpack.c.h.b16 %v7333
      %v7827 = vunpack.c.l.b16 %v7334
      %v7828 = vunpack.c.h.b16 %v7334
      %v7829 = vunpack.c.l.b16 %v7335
      %v7830 = vunpack.c.h.b16 %v7335
      %v7831 = vunpack.c.l.b16 %v7336
      %v7832 = vunpack.c.h.b16 %v7336
      %v7833 = vunpack.c.l.b16 %v7337
      %v7834 = vunpack.c.h.b16 %v7337
      %v7835 = vunpack.c.l.b16 %v7338
      %v7836 = vunpack.c.h.b16 %v7338
      %v7837 = vunpack.c.l.b16 %v7339
      %v7838 = vunpack.c.h.b16 %v7339
      %v7839 = vunpack.c.l.b16 %v7340
      %v7840 = vunpack.c.h.b16 %v7340
      %v7841 = vunpack.c.l.b16 %v7341
      %v7842 = vunpack.c.h.b16 %v7341
      %v7843 = vunpack.c.l.b16 %v7342
      %v7844 = vunpack.c.h.b16 %v7342
      %v7845 = vunpack.c.l.b16 %v7343
      %v7846 = vunpack.c.h.b16 %v7343
      %v7847 = vunpack.c.l.b16 %v7344
      %v7848 = vunpack.c.h.b16 %v7344
      %v7849 = vunpack.c.l.b16 %v7345
      %v7850 = vunpack.c.h.b16 %v7345
      %v7851 = vunpack.c.l.b16 %v7346
      %v7852 = vunpack.c.h.b16 %v7346
      %v7853 = vunpack.c.l.b16 %v7347
      %v7854 = vunpack.c.h.b16 %v7347
      %v7855 = vunpack.c.l.b16 %v7348
      %v7856 = vunpack.c.h.b16 %v7348
      %v7857 = vunpack.c.l.b16 %v7349
      %v7858 = vunpack.c.h.b16 %v7349
      %v7859 = vunpack.c.l.b16 %v7350
      %v7860 = vunpack.c.h.b16 %v7350
      %v7861 = vunpack.c.l.b16 %v7351
      %v7862 = vunpack.c.h.b16 %v7351
      %v7863 = vunpack.c.l.b16 %v7352
      %v7864 = vunpack.c.h.b16 %v7352
      %v7865 = vunpack.c.l.b16 %v7353
      %v7866 = vunpack.c.h.b16 %v7353
      %v7867 = vunpack.c.l.b16 %v7354
      %v7868 = vunpack.c.h.b16 %v7354
      %v7869 = vunpack.c.l.b16 %v7355
      %v7870 = vunpack.c.h.b16 %v7355
      %v7871 = vunpack.c.l.b16 %v7356
      %v7872 = vunpack.c.h.b16 %v7356
      %v7873 = vunpack.c.l.b16 %v7357
      %v7874 = vunpack.c.h.b16 %v7357
      %v7875 = vunpack.c.l.b16 %v7358
      %v7876 = vunpack.c.h.b16 %v7358
      %v7877 = vunpack.c.l.b16 %v7359
      %v7878 = vunpack.c.h.b16 %v7359
      %v7879 = vunpack.c.l.b16 %v7360
      %v7880 = vunpack.c.h.b16 %v7360
      %v7881 = vunpack.c.l.b16 %v7361
      %v7882 = vunpack.c.h.b16 %v7361
      %v7883 = vunpack.c.l.b16 %v7362
      %v7884 = vunpack.c.h.b16 %v7362
      %v7885 = vunpack.c.l.b16 %v7363
      %v7886 = vunpack.c.h.b16 %v7363
      %v7887 = vunpack.c.l.b16 %v7364
      %v7888 = vunpack.c.h.b16 %v7364
      %v7889 = vunpack.c.l.b16 %v7365
      %v7890 = vunpack.c.h.b16 %v7365
      %v7891 = vunpack.c.l.b16 %v7366
      %v7892 = vunpack.c.h.b16 %v7366
      %v7893 = vunpack.c.l.b16 %v7367
      %v7894 = vunpack.c.h.b16 %v7367
      %v7895 = vunpack.c.l.b16 %v7368
      %v7896 = vunpack.c.h.b16 %v7368
      %v7897 = vunpack.c.l.b16 %v7369
      %v7898 = vunpack.c.h.b16 %v7369
      %v7899 = vunpack.c.l.b16 %v7370
      %v7900 = vunpack.c.h.b16 %v7370
      %v7901 = vunpack.c.l.b16 %v7371
      %v7902 = vunpack.c.h.b16 %v7371
      %v7903 = vunpack.c.l.b16 %v7372
      %v7904 = vunpack.c.h.b16 %v7372
      %v7905 = vunpack.c.l.b16 %v7373
      %v7906 = vunpack.c.h.b16 %v7373
      %v7907 = vunpack.c.l.b16 %v7374
      %v7908 = vunpack.c.h.b16 %v7374
      %v7909 = vunpack.c.l.b16 %v7375
      %v7910 = vunpack.c.h.b16 %v7375
      %v7911 = vunpack.c.l.b16 %v7376
      %v7912 = vunpack.c.h.b16 %v7376
      %v7913 = vunpack.c.l.b16 %v7377
      %v7914 = vunpack.c.h.b16 %v7377
      %v7915 = vunpack.c.l.b16 %v7378
      %v7916 = vunpack.c.h.b16 %v7378
      %v7917 = vunpack.c.l.b16 %v7379
      %v7918 = vunpack.c.h.b16 %v7379
      %v7919 = vunpack.c.l.b16 %v7380
      %v7920 = vunpack.c.h.b16 %v7380
      %v7921 = vunpack.c.l.b16 %v7381
      %v7922 = vunpack.c.h.b16 %v7381
      %v7923 = vunpack.c.l.b16 %v7382
      %v7924 = vunpack.c.h.b16 %v7382
      %v7925 = vunpack.c.l.b16 %v7383
      %v7926 = vunpack.c.h.b16 %v7383
      %v7927 = vunpack.c.l.b16 %v7384
      %v7928 = vunpack.c.h.b16 %v7384
      %v7929 = vunpack.c.l.b16 %v7385
      %v7930 = vunpack.c.h.b16 %v7385
      %v7931 = vunpack.c.l.b16 %v7386
      %v7932 = vunpack.c.h.b16 %v7386
      %v7933 = vunpack.c.l.b16 %v7387
      %v7934 = vunpack.c.h.b16 %v7387
      %v7935 = vunpack.c.l.b16 %v7388
      %v7936 = vunpack.c.h.b16 %v7388
      %v7937 = vunpack.c.l.b16 %v7389
      %v7938 = vunpack.c.h.b16 %v7389
      %v7939 = vunpack.c.l.b16 %v7390
      %v7940 = vunpack.c.h.b16 %v7390
      %v7941 = vunpack.c.l.b16 %v7391
      %v7942 = vunpack.c.h.b16 %v7391
      %v7943 = vunpack.c.l.b16 %v7392
      %v7944 = vunpack.c.h.b16 %v7392
      %v7945 = vunpack.c.l.b16 %v7393
      %v7946 = vunpack.c.h.b16 %v7393
      %v7947 = vunpack.c.l.b16 %v7394
      %v7948 = vunpack.c.h.b16 %v7394
      %v7949 = vunpack.c.l.b16 %v7395
      %v7950 = vunpack.c.h.b16 %v7395
      %v7951 = vunpack.c.l.b16 %v7396
      %v7952 = vunpack.c.h.b16 %v7396
      %v7953 = vunpack.c.l.b16 %v7397
      %v7954 = vunpack.c.h.b16 %v7397
      %v7955 = vunpack.c.l.b16 %v7398
      %v7956 = vunpack.c.h.b16 %v7398
      %v7957 = vunpack.c.l.b16 %v7399
      %v7958 = vunpack.c.h.b16 %v7399
      %v7959 = vunpack.c.l.b16 %v7400
      %v7960 = vunpack.c.h.b16 %v7400
      %v7961 = vunpack.c.l.b16 %v7401
      %v7962 = vunpack.c.h.b16 %v7401
      %v7963 = vunpack.c.l.b16 %v7402
      %v7964 = vunpack.c.h.b16 %v7402
      %v7965 = vunpack.c.l.b16 %v7403
      %v7966 = vunpack.c.h.b16 %v7403
      %v7967 = vunpack.c.l.b16 %v7404
      %v7968 = vunpack.c.h.b16 %v7404
      %v7969 = vunpack.c.l.b16 %v7405
      %v7970 = vunpack.c.h.b16 %v7405
      %v7971 = vunpack.c.l.b16 %v7406
      %v7972 = vunpack.c.h.b16 %v7406
      %v7973 = vunpack.c.l.b16 %v7407
      %v7974 = vunpack.c.h.b16 %v7407
      %v7975 = vunpack.c.l.b16 %v7408
      %v7976 = vunpack.c.h.b16 %v7408
      %v7977 = vunpack.c.l.b16 %v7409
      %v7978 = vunpack.c.h.b16 %v7409
      %v7979 = vunpack.c.l.b16 %v7410
      %v7980 = vunpack.c.h.b16 %v7410
      %v7981 = vunpack.c.l.b16 %v7411
      %v7982 = vunpack.c.h.b16 %v7411
      %v7983 = vunpack.c.l.b16 %v7412
      %v7984 = vunpack.c.h.b16 %v7412
      %v7985 = vunpack.c.l.b16 %v7413
      %v7986 = vunpack.c.h.b16 %v7413
      %v7987 = vunpack.c.l.b16 %v7414
      %v7988 = vunpack.c.h.b16 %v7414
      %v7989 = vunpack.c.l.b16 %v7415
      %v7990 = vunpack.c.h.b16 %v7415
      %v7991 = vunpack.c.l.b16 %v7416
      %v7992 = vunpack.c.h.b16 %v7416
      %v7993 = vunpack.c.l.b16 %v7417
      %v7994 = vunpack.c.h.b16 %v7417
      %v7995 = vunpack.c.l.b16 %v7418
      %v7996 = vunpack.c.h.b16 %v7418
      %v7997 = vunpack.c.l.b16 %v7419
      %v7998 = vunpack.c.h.b16 %v7419
      %v7999 = vunpack.c.l.b16 %v7420
      %v8000 = vunpack.c.h.b16 %v7420
      %v8001 = vunpack.c.l.b16 %v7421
      %v8002 = vunpack.c.h.b16 %v7421
      %v8003 = vunpack.c.l.b16 %v7422
      %v8004 = vunpack.c.h.b16 %v7422
      %v8005 = vunpack.c.l.b16 %v7423
      %v8006 = vunpack.c.h.b16 %v7423
      %v8007 = vunpack.c.l.b16 %v7424
      %v8008 = vunpack.c.h.b16 %v7424
      %v8009 = vunpack.c.l.b16 %v7425
      %v8010 = vunpack.c.h.b16 %v7425
      %v8011 = vunpack.c.l.b16 %v7426
      %v8012 = vunpack.c.h.b16 %v7426
      %v8013 = vunpack.c.l.b16 %v7427
      %v8014 = vunpack.c.h.b16 %v7427
      %v8015 = vunpack.c.l.b16 %v7428
      %v8016 = vunpack.c.h.b16 %v7428
      %v8017 = vunpack.c.l.b16 %v7429
      %v8018 = vunpack.c.h.b16 %v7429
      %v8019 = vunpack.c.l.b16 %v7430
      %v8020 = vunpack.c.h.b16 %v7430
      %v8021 = vunpack.c.l.b16 %v7431
      %v8022 = vunpack.c.h.b16 %v7431
      %v8023 = vunpack.c.l.b16 %v7432
      %v8024 = vunpack.c.h.b16 %v7432
      %v8025 = vunpack.c.l.b16 %v7433
      %v8026 = vunpack.c.h.b16 %v7433
      %v8027 = vunpack.c.l.b16 %v7434
      %v8028 = vunpack.c.h.b16 %v7434
      %v8029 = vunpack.c.l.b16 %v7435
      %v8030 = vunpack.c.h.b16 %v7435
      %v8031 = vunpack.c.l.b16 %v7436
      %v8032 = vunpack.c.h.b16 %v7436
      %v8033 = vunpack.c.l.b16 %v7437
      %v8034 = vunpack.c.h.b16 %v7437
      %v8035 = vunpack.c.l.b16 %v7438
      %v8036 = vunpack.c.h.b16 %v7438
      %v8037 = vunpack.c.l.b16 %v7439
      %v8038 = vunpack.c.h.b16 %v7439
      %v8039 = vunpack.c.l.b16 %v7440
      %v8040 = vunpack.c.h.b16 %v7440
      %v8041 = vunpack.c.l.b16 %v7441
      %v8042 = vunpack.c.h.b16 %v7441
      %v8043 = vunpack.c.l.b16 %v7442
      %v8044 = vunpack.c.h.b16 %v7442
      %v8045 = vunpack.c.l.b16 %v7443
      %v8046 = vunpack.c.h.b16 %v7443
      %v8047 = vunpack.c.l.b16 %v7444
      %v8048 = vunpack.c.h.b16 %v7444
      %v8049 = vunpack.c.l.b16 %v7445
      %v8050 = vunpack.c.h.b16 %v7445
      %v8051 = vunpack.c.l.b16 %v7446
      %v8052 = vunpack.c.h.b16 %v7446
      %v8053 = vunpack.c.l.b16 %v7447
      %v8054 = vunpack.c.h.b16 %v7447
      %v8055 = vunpack.c.l.b16 %v7448
      %v8056 = vunpack.c.h.b16 %v7448
      %v8057 = vunpack.c.l.b16 %v7449
      %v8058 = vunpack.c.h.b16 %v7449
      %v8059 = vunpack.c.l.b16 %v7450
      %v8060 = vunpack.c.h.b16 %v7450
      %v8061 = vunpack.c.l.b16 %v7451
      %v8062 = vunpack.c.h.b16 %v7451
      %v8063 = vunpack.c.l.b16 %v7452
      %v8064 = vunpack.c.h.b16 %v7452
      %v8065 = vunpack.c.l.b16 %v7453
      %v8066 = vunpack.c.h.b16 %v7453
      %v8067 = vunpack.c.l.b16 %v7454
      %v8068 = vunpack.c.h.b16 %v7454
      %v8069 = vunpack.c.l.b16 %v7455
      %v8070 = vunpack.c.h.b16 %v7455
      %v8071 = vunpack.c.l.b16 %v7456
      %v8072 = vunpack.c.h.b16 %v7456
      %v8073 = vunpack.c.l.b16 %v7457
      %v8074 = vunpack.c.h.b16 %v7457
      %v8075 = vunpack.c.l.b16 %v7458
      %v8076 = vunpack.c.h.b16 %v7458
      %v8077 = vpack.c.b16 %v7701, %v7693
      %v8078 = vpack.c.b16 %v7702, %v7694
      %v8079 = vpack.c.b16 %v7703, %v7695
      %v8080 = vpack.c.b16 %v7704, %v7696
      %v8081 = vpack.c.b16 %v7705, %v7697
      %v8082 = vpack.c.b16 %v7706, %v7698
      %v8083 = vpack.c.b16 %v7707, %v7699
      %v8084 = vpack.c.b16 %v7708, %v7700
      %v8085 = vpack.c.b16 %v7717, %v7709
      %v8086 = vpack.c.b16 %v7718, %v7710
      %v8087 = vpack.c.b16 %v7719, %v7711
      %v8088 = vpack.c.b16 %v7720, %v7712
      %v8089 = vpack.c.b16 %v7721, %v7713
      %v8090 = vpack.c.b16 %v7722, %v7714
      %v8091 = vpack.c.b16 %v7723, %v7715
      %v8092 = vpack.c.b16 %v7724, %v7716
      %v8093 = vpack.c.b16 %v7733, %v7725
      %v8094 = vpack.c.b16 %v7734, %v7726
      %v8095 = vpack.c.b16 %v7735, %v7727
      %v8096 = vpack.c.b16 %v7736, %v7728
      %v8097 = vpack.c.b16 %v7737, %v7729
      %v8098 = vpack.c.b16 %v7738, %v7730
      %v8099 = vpack.c.b16 %v7739, %v7731
      %v8100 = vpack.c.b16 %v7740, %v7732
      %v8101 = vpack.c.b16 %v7749, %v7741
      %v8102 = vpack.c.b16 %v7750, %v7742
      %v8103 = vpack.c.b16 %v7751, %v7743
      %v8104 = vpack.c.b16 %v7752, %v7744
      %v8105 = vpack.c.b16 %v7753, %v7745
      %v8106 = vpack.c.b16 %v7754, %v7746
      %v8107 = vpack.c.b16 %v7755, %v7747
      %v8108 = vpack.c.b16 %v7756, %v7748
      %v8109 = vpack.c.b16 %v7765, %v7757
      %v8110 = vpack.c.b16 %v7766, %v7758
      %v8111 = vpack.c.b16 %v7767, %v7759
      %v8112 = vpack.c.b16 %v7768, %v7760
      %v8113 = vpack.c.b16 %v7769, %v7761
      %v8114 = vpack.c.b16 %v7770, %v7762
      %v8115 = vpack.c.b16 %v7771, %v7763
      %v8116 = vpack.c.b16 %v7772, %v7764
      %v8117 = vpack.c.b16 %v7781, %v7773
      %v8118 = vpack.c.b16 %v7782, %v7774
      %v8119 = vpack.c.b16 %v7783, %v7775
      %v8120 = vpack.c.b16 %v7784, %v7776
      %v8121 = vpack.c.b16 %v7785, %v7777
      %v8122 = vpack.c.b16 %v7786, %v7778
      %v8123 = vpack.c.b16 %v7787, %v7779
      %v8124 = vpack.c.b16 %v7788, %v7780
      %v8125 = vpack.c.b16 %v7797, %v7789
      %v8126 = vpack.c.b16 %v7798, %v7790
      %v8127 = vpack.c.b16 %v7799, %v7791
      %v8128 = vpack.c.b16 %v7800, %v7792
      %v8129 = vpack.c.b16 %v7801, %v7793
      %v8130 = vpack.c.b16 %v7802, %v7794
      %v8131 = vpack.c.b16 %v7803, %v7795
      %v8132 = vpack.c.b16 %v7804, %v7796
      %v8133 = vpack.c.b16 %v7813, %v7805
      %v8134 = vpack.c.b16 %v7814, %v7806
      %v8135 = vpack.c.b16 %v7815, %v7807
      %v8136 = vpack.c.b16 %v7816, %v7808
      %v8137 = vpack.c.b16 %v7817, %v7809
      %v8138 = vpack.c.b16 %v7818, %v7810
      %v8139 = vpack.c.b16 %v7819, %v7811
      %v8140 = vpack.c.b16 %v7820, %v7812
      %v8141 = vpack.c.b16 %v7829, %v7821
      %v8142 = vpack.c.b16 %v7830, %v7822
      %v8143 = vpack.c.b16 %v7831, %v7823
      %v8144 = vpack.c.b16 %v7832, %v7824
      %v8145 = vpack.c.b16 %v7833, %v7825
      %v8146 = vpack.c.b16 %v7834, %v7826
      %v8147 = vpack.c.b16 %v7835, %v7827
      %v8148 = vpack.c.b16 %v7836, %v7828
      %v8149 = vpack.c.b16 %v7845, %v7837
      %v8150 = vpack.c.b16 %v7846, %v7838
      %v8151 = vpack.c.b16 %v7847, %v7839
      %v8152 = vpack.c.b16 %v7848, %v7840
      %v8153 = vpack.c.b16 %v7849, %v7841
      %v8154 = vpack.c.b16 %v7850, %v7842
      %v8155 = vpack.c.b16 %v7851, %v7843
      %v8156 = vpack.c.b16 %v7852, %v7844
      %v8157 = vpack.c.b16 %v7861, %v7853
      %v8158 = vpack.c.b16 %v7862, %v7854
      %v8159 = vpack.c.b16 %v7863, %v7855
      %v8160 = vpack.c.b16 %v7864, %v7856
      %v8161 = vpack.c.b16 %v7865, %v7857
      %v8162 = vpack.c.b16 %v7866, %v7858
      %v8163 = vpack.c.b16 %v7867, %v7859
      %v8164 = vpack.c.b16 %v7868, %v7860
      %v8165 = vpack.c.b16 %v7877, %v7869
      %v8166 = vpack.c.b16 %v7878, %v7870
      %v8167 = vpack.c.b16 %v7879, %v7871
      %v8168 = vpack.c.b16 %v7880, %v7872
      %v8169 = vpack.c.b16 %v7881, %v7873
      %v8170 = vpack.c.b16 %v7882, %v7874
      %v8171 = vpack.c.b16 %v7883, %v7875
      %v8172 = vpack.c.b16 %v7884, %v7876
      %v8173 = vpack.c.b16 %v7893, %v7885
      %v8174 = vpack.c.b16 %v7894, %v7886
      %v8175 = vpack.c.b16 %v7895, %v7887
      %v8176 = vpack.c.b16 %v7896, %v7888
      %v8177 = vpack.c.b16 %v7897, %v7889
      %v8178 = vpack.c.b16 %v7898, %v7890
      %v8179 = vpack.c.b16 %v7899, %v7891
      %v8180 = vpack.c.b16 %v7900, %v7892
      %v8181 = vpack.c.b16 %v7909, %v7901
      %v8182 = vpack.c.b16 %v7910, %v7902
      %v8183 = vpack.c.b16 %v7911, %v7903
      %v8184 = vpack.c.b16 %v7912, %v7904
      %v8185 = vpack.c.b16 %v7913, %v7905
      %v8186 = vpack.c.b16 %v7914, %v7906
      %v8187 = vpack.c.b16 %v7915, %v7907
      %v8188 = vpack.c.b16 %v7916, %v7908
      %v8189 = vpack.c.b16 %v7925, %v7917
      %v8190 = vpack.c.b16 %v7926, %v7918
      %v8191 = vpack.c.b16 %v7927, %v7919
      %v8192 = vpack.c.b16 %v7928, %v7920
      %v8193 = vpack.c.b16 %v7929, %v7921
      %v8194 = vpack.c.b16 %v7930, %v7922
      %v8195 = vpack.c.b16 %v7931, %v7923
      %v8196 = vpack.c.b16 %v7932, %v7924
      %v8197 = vpack.c.b16 %v7941, %v7933
      %v8198 = vpack.c.b16 %v7942, %v7934
      %v8199 = vpack.c.b16 %v7943, %v7935
      %v8200 = vpack.c.b16 %v7944, %v7936
      %v8201 = vpack.c.b16 %v7945, %v7937
      %v8202 = vpack.c.b16 %v7946, %v7938
      %v8203 = vpack.c.b16 %v7947, %v7939
      %v8204 = vpack.c.b16 %v7948, %v7940
      %v8205 = vpack.c.b16 %v7957, %v7949
      %v8206 = vpack.c.b16 %v7958, %v7950
      %v8207 = vpack.c.b16 %v7959, %v7951
      %v8208 = vpack.c.b16 %v7960, %v7952
      %v8209 = vpack.c.b16 %v7961, %v7953
      %v8210 = vpack.c.b16 %v7962, %v7954
      %v8211 = vpack.c.b16 %v7963, %v7955
      %v8212 = vpack.c.b16 %v7964, %v7956
      %v8213 = vpack.c.b16 %v7973, %v7965
      %v8214 = vpack.c.b16 %v7974, %v7966
      %v8215 = vpack.c.b16 %v7975, %v7967
      %v8216 = vpack.c.b16 %v7976, %v7968
      %v8217 = vpack.c.b16 %v7977, %v7969
      %v8218 = vpack.c.b16 %v7978, %v7970
      %v8219 = vpack.c.b16 %v7979, %v7971
      %v8220 = vpack.c.b16 %v7980, %v7972
      %v8221 = vpack.c.b16 %v7989, %v7981
      %v8222 = vpack.c.b16 %v7990, %v7982
      %v8223 = vpack.c.b16 %v7991, %v7983
      %v8224 = vpack.c.b16 %v7992, %v7984
      %v8225 = vpack.c.b16 %v7993, %v7985
      %v8226 = vpack.c.b16 %v7994, %v7986
      %v8227 = vpack.c.b16 %v7995, %v7987
      %v8228 = vpack.c.b16 %v7996, %v7988
      %v8229 = vpack.c.b16 %v8005, %v7997
      %v8230 = vpack.c.b16 %v8006, %v7998
      %v8231 = vpack.c.b16 %v8007, %v7999
      %v8232 = vpack.c.b16 %v8008, %v8000
      %v8233 = vpack.c.b16 %v8009, %v8001
      %v8234 = vpack.c.b16 %v8010, %v8002
      %v8235 = vpack.c.b16 %v8011, %v8003
      %v8236 = vpack.c.b16 %v8012, %v8004
      %v8237 = vpack.c.b16 %v8021, %v8013
      %v8238 = vpack.c.b16 %v8022, %v8014
      %v8239 = vpack.c.b16 %v8023, %v8015
      %v8240 = vpack.c.b16 %v8024, %v8016
      %v8241 = vpack.c.b16 %v8025, %v8017
      %v8242 = vpack.c.b16 %v8026, %v8018
      %v8243 = vpack.c.b16 %v8027, %v8019
      %v8244 = vpack.c.b16 %v8028, %v8020
      %v8245 = vpack.c.b16 %v8037, %v8029
      %v8246 = vpack.c.b16 %v8038, %v8030
      %v8247 = vpack.c.b16 %v8039, %v8031
      %v8248 = vpack.c.b16 %v8040, %v8032
      %v8249 = vpack.c.b16 %v8041, %v8033
      %v8250 = vpack.c.b16 %v8042, %v8034
      %v8251 = vpack.c.b16 %v8043, %v8035
      %v8252 = vpack.c.b16 %v8044, %v8036
      %v8253 = vpack.c.b16 %v8053, %v8045
      %v8254 = vpack.c.b16 %v8054, %v8046
      %v8255 = vpack.c.b16 %v8055, %v8047
      %v8256 = vpack.c.b16 %v8056, %v8048
      %v8257 = vpack.c.b16 %v8057, %v8049
      %v8258 = vpack.c.b16 %v8058, %v8050
      %v8259 = vpack.c.b16 %v8059, %v8051
      %v8260 = vpack.c.b16 %v8060, %v8052
      %v8261 = vpack.c.b16 %v8069, %v8061
      %v8262 = vpack.c.b16 %v8070, %v8062
      %v8263 = vpack.c.b16 %v8071, %v8063
      %v8264 = vpack.c.b16 %v8072, %v8064
      %v8265 = vpack.c.b16 %v8073, %v8065
      %v8266 = vpack.c.b16 %v8074, %v8066
      %v8267 = vpack.c.b16 %v8075, %v8067
      %v8268 = vpack.c.b16 %v8076, %v8068
      %8461 = vmatprep.subr.bf16.mxu0 %v8078
      %8462 = vmatpush1.bf16.msra.mxu0 %v8077
      %8463 = vmatprep.subr.bf16.mxu0 %v8086
      %8464 = vmatpush1.bf16.msra.mxu0 %v8085
      %8465 = vmatprep.subr.bf16.mxu0 %v8094
      %8466 = vmatpush1.bf16.msra.mxu0 %v8093
      %8467 = vmatprep.subr.bf16.mxu0 %v8102
      %8468 = vmatpush1.bf16.msra.mxu0 %v8101
      %8469 = vmatprep.subr.bf16.mxu0 %v8110
      %8470 = vmatpush1.bf16.msra.mxu0 %v8109
      %8471 = vmatprep.subr.bf16.mxu0 %v8118
      %8472 = vmatpush1.bf16.msra.mxu0 %v8117
      %8473 = vmatprep.subr.bf16.mxu0 %v8126
      %8474 = vmatpush1.bf16.msra.mxu0 %v8125
      %8475 = vmatprep.subr.bf16.mxu0 %v8134
      %8476 = vmatpush1.bf16.msra.mxu0 %v8133
      %8477 = vmatprep.subr.bf16.mxu0 %v8142
      %8478 = vmatpush1.bf16.msra.mxu0 %v8141
      %8479 = vmatprep.subr.bf16.mxu0 %v8150
      %8480 = vmatpush1.bf16.msra.mxu0 %v8149
      %8481 = vmatprep.subr.bf16.mxu0 %v8158
      %8482 = vmatpush1.bf16.msra.mxu0 %v8157
      %8483 = vmatprep.subr.bf16.mxu0 %v8166
      %8484 = vmatpush1.bf16.msra.mxu0 %v8165
      %8485 = vmatprep.subr.bf16.mxu0 %v8174
      %8486 = vmatpush1.bf16.msra.mxu0 %v8173
      %8487 = vmatprep.subr.bf16.mxu0 %v8182
      %8488 = vmatpush1.bf16.msra.mxu0 %v8181
      %8489 = vmatprep.subr.bf16.mxu0 %v8190
      %8490 = vmatpush1.bf16.msra.mxu0 %v8189
      %8491 = vmatprep.subr.bf16.mxu0 %v8198
      %8492 = vmatpush1.bf16.msra.mxu0 %v8197
      %8493 = vmatprep.mubr.bf16.mxu0 %v7235
      %8494 = vmatmul.mubr.bf16.gmra.mrb[0].mxu0 %v7219
      %v8495 = vpop.f32.mrb[0].mxu0
      %v8496 = vadd.f32 %v7464, %v8495
      %v8497 = vpop.f32.mrb[0].mxu0
      %v8498 = vadd.f32 %v7468, %v8497
      %v8499 = vpop.f32.mrb[0].mxu0
      %v8500 = vadd.f32 %v7464, %v8499
      %v8501 = vpop.f32.mrb[0].mxu0
      %v8502 = vadd.f32 %v7468, %v8501
      %8503 = vmatprep.mubr.bf16.mxu0 %v7236
      %8504 = vmatmul.mubr.bf16.gmra.mrb[0].mxu0 %v7220
      %v8505 = vpop.f32.mrb[0].mxu0
      %v8506 = vadd.f32 %v7464, %v8505
      %v8507 = vpop.f32.mrb[0].mxu0
      %v8508 = vadd.f32 %v7468, %v8507
      %v8509 = vpop.f32.mrb[0].mxu0
      %v8510 = vadd.f32 %v7464, %v8509
      %v8511 = vpop.f32.mrb[0].mxu0
      %v8512 = vadd.f32 %v7468, %v8511
      %8513 = vmatprep.mubr.bf16.mxu0 %v7237
      %8514 = vmatmul.mubr.bf16.gmra.mrb[0].mxu0 %v7221
      %v8515 = vpop.f32.mrb[0].mxu0
      %v8516 = vadd.f32 %v7464, %v8515
      %v8517 = vpop.f32.mrb[0].mxu0
      %v8518 = vadd.f32 %v7468, %v8517
      %v8519 = vpop.f32.mrb[0].mxu0
      %v8520 = vadd.f32 %v7464, %v8519
      %v8521 = vpop.f32.mrb[0].mxu0
      %v8522 = vadd.f32 %v7468, %v8521
      %8523 = vmatprep.mubr.bf16.mxu0 %v7238
      %8524 = vmatmul.mubr.bf16.gmra.mrb[0].mxu0 %v7222
      %v8525 = vpop.f32.mrb[0].mxu0
      %v8526 = vadd.f32 %v7464, %v8525
      %v8527 = vpop.f32.mrb[0].mxu0
      %v8528 = vadd.f32 %v7468, %v8527
      %v8529 = vpop.f32.mrb[0].mxu0
      %v8530 = vadd.f32 %v7464, %v8529
      %v8531 = vpop.f32.mrb[0].mxu0
      %v8532 = vadd.f32 %v7468, %v8531
      %8533 = vmatprep.mubr.bf16.mxu0 %v7239
      %8534 = vmatmul.mubr.bf16.gmra.mrb[0].mxu0 %v7223
      %v8535 = vpop.f32.mrb[0].mxu0
      %v8536 = vadd.f32 %v7464, %v8535
      %v8537 = vpop.f32.mrb[0].mxu0
      %v8538 = vadd.f32 %v7468, %v8537
      %v8539 = vpop.f32.mrb[0].mxu0
      %v8540 = vadd.f32 %v7464, %v8539
      %v8541 = vpop.f32.mrb[0].mxu0
      %v8542 = vadd.f32 %v7468, %v8541
      %8543 = vmatprep.mubr.bf16.mxu0 %v7240
      %8544 = vmatmul.mubr.bf16.gmra.mrb[0].mxu0 %v7224
      %v8545 = vpop.f32.mrb[0].mxu0
      %v8546 = vadd.f32 %v7464, %v8545
      %v8547 = vpop.f32.mrb[0].mxu0
      %v8548 = vadd.f32 %v7468, %v8547
      %v8549 = vpop.f32.mrb[0].mxu0
      %v8550 = vadd.f32 %v7464, %v8549
      %v8551 = vpop.f32.mrb[0].mxu0
      %v8552 = vadd.f32 %v7468, %v8551
      %8553 = vmatprep.mubr.bf16.mxu0 %v7241
      %8554 = vmatmul.mubr.bf16.gmra.mrb[0].mxu0 %v7225
      %v8555 = vpop.f32.mrb[0].mxu0
      %v8556 = vadd.f32 %v7464, %v8555
      %v8557 = vpop.f32.mrb[0].mxu0
      %v8558 = vadd.f32 %v7468, %v8557
      %v8559 = vpop.f32.mrb[0].mxu0
      %v8560 = vadd.f32 %v7464, %v8559
      %v8561 = vpop.f32.mrb[0].mxu0
      %v8562 = vadd.f32 %v7468, %v8561
      %8563 = vmatprep.mubr.bf16.mxu0 %v7242
      %8564 = vmatmul.mubr.bf16.gmra.mrb[0].mxu0 %v7226
      %v8565 = vpop.f32.mrb[0].mxu0
      %v8566 = vadd.f32 %v7464, %v8565
      %v8567 = vpop.f32.mrb[0].mxu0
      %v8568 = vadd.f32 %v7468, %v8567
      %v8569 = vpop.f32.mrb[0].mxu0
      %v8570 = vadd.f32 %v7464, %v8569
      %v8571 = vpop.f32.mrb[0].mxu0
      %v8572 = vadd.f32 %v7468, %v8571
      %8573 = vmatprep.mubr.bf16.mxu0 %v7243
      %8574 = vmatmul.mubr.bf16.gmra.mrb[0].mxu0 %v7227
      %v8575 = vpop.f32.mrb[0].mxu0
      %v8576 = vadd.f32 %v7464, %v8575
      %v8577 = vpop.f32.mrb[0].mxu0
      %v8578 = vadd.f32 %v7468, %v8577
      %v8579 = vpop.f32.mrb[0].mxu0
      %v8580 = vadd.f32 %v7464, %v8579
      %v8581 = vpop.f32.mrb[0].mxu0
      %v8582 = vadd.f32 %v7468, %v8581
      %8583 = vmatprep.mubr.bf16.mxu0 %v7244
      %8584 = vmatmul.mubr.bf16.gmra.mrb[0].mxu0 %v7228
      %v8585 = vpop.f32.mrb[0].mxu0
      %v8586 = vadd.f32 %v7464, %v8585
      %v8587 = vpop.f32.mrb[0].mxu0
      %v8588 = vadd.f32 %v7468, %v8587
      %v8589 = vpop.f32.mrb[0].mxu0
      %v8590 = vadd.f32 %v7464, %v8589
      %v8591 = vpop.f32.mrb[0].mxu0
      %v8592 = vadd.f32 %v7468, %v8591
      %8593 = vmatprep.mubr.bf16.mxu0 %v7245
      %8594 = vmatmul.mubr.bf16.gmra.mrb[0].mxu0 %v7229
      %v8595 = vpop.f32.mrb[0].mxu0
      %v8596 = vadd.f32 %v7464, %v8595
      %v8597 = vpop.f32.mrb[0].mxu0
      %v8598 = vadd.f32 %v7468, %v8597
      %v8599 = vpop.f32.mrb[0].mxu0
      %v8600 = vadd.f32 %v7464, %v8599
      %v8601 = vpop.f32.mrb[0].mxu0
      %v8602 = vadd.f32 %v7468, %v8601
      %8603 = vmatprep.mubr.bf16.mxu0 %v7246
      %8604 = vmatmul.mubr.bf16.gmra.mrb[0].mxu0 %v7230
      %v8605 = vpop.f32.mrb[0].mxu0
      %v8606 = vadd.f32 %v7464, %v8605
      %v8607 = vpop.f32.mrb[0].mxu0
      %v8608 = vadd.f32 %v7468, %v8607
      %v8609 = vpop.f32.mrb[0].mxu0
      %v8610 = vadd.f32 %v7464, %v8609
      %v8611 = vpop.f32.mrb[0].mxu0
      %v8612 = vadd.f32 %v7468, %v8611
      %8613 = vmatprep.mubr.bf16.mxu0 %v7247
      %8614 = vmatmul.mubr.bf16.gmra.mrb[0].mxu0 %v7231
      %v8615 = vpop.f32.mrb[0].mxu0
      %v8616 = vadd.f32 %v7464, %v8615
      %v8617 = vpop.f32.mrb[0].mxu0
      %v8618 = vadd.f32 %v7468, %v8617
      %v8619 = vpop.f32.mrb[0].mxu0
      %v8620 = vadd.f32 %v7464, %v8619
      %v8621 = vpop.f32.mrb[0].mxu0
      %v8622 = vadd.f32 %v7468, %v8621
      %8623 = vmatprep.mubr.bf16.mxu0 %v7248
      %8624 = vmatmul.mubr.bf16.gmra.mrb[0].mxu0 %v7232
      %v8625 = vpop.f32.mrb[0].mxu0
      %v8626 = vadd.f32 %v7464, %v8625
      %v8627 = vpop.f32.mrb[0].mxu0
      %v8628 = vadd.f32 %v7468, %v8627
      %v8629 = vpop.f32.mrb[0].mxu0
      %v8630 = vadd.f32 %v7464, %v8629
      %v8631 = vpop.f32.mrb[0].mxu0
      %v8632 = vadd.f32 %v7468, %v8631
      %8633 = vmatprep.mubr.bf16.mxu0 %v7249
      %8634 = vmatmul.mubr.bf16.gmra.mrb[0].mxu0 %v7233
      %v8635 = vpop.f32.mrb[0].mxu0
      %v8636 = vadd.f32 %v7464, %v8635
      %v8637 = vpop.f32.mrb[0].mxu0
      %v8638 = vadd.f32 %v7468, %v8637
      %v8639 = vpop.f32.mrb[0].mxu0
      %v8640 = vadd.f32 %v7464, %v8639
      %v8641 = vpop.f32.mrb[0].mxu0
      %v8642 = vadd.f32 %v7468, %v8641
      %8643 = vmatprep.mubr.bf16.mxu0 %v7250
      %8644 = vmatmul.mubr.bf16.gmra.mrb[0].mxu0 %v7234
      %v8645 = vpop.f32.mrb[0].mxu0
      %v8646 = vadd.f32 %v7464, %v8645
      %v8647 = vpop.f32.mrb[0].mxu0
      %v8648 = vadd.f32 %v7468, %v8647
      %v8649 = vpop.f32.mrb[0].mxu0
      %v8650 = vadd.f32 %v7464, %v8649
      %v8651 = vpop.f32.mrb[0].mxu0
      %v8652 = vadd.f32 %v7468, %v8651
      %8653 = vdwg.mxu0
      %8654 = vmatprep.subr.bf16.mxu0 %v8206
      %8655 = vmatpush1.bf16.msra.mxu0 %v8205
      %8656 = vmatprep.subr.bf16.mxu0 %v8214
      %8657 = vmatpush1.bf16.msra.mxu0 %v8213
      %8658 = vmatprep.subr.bf16.mxu0 %v8222
      %8659 = vmatpush1.bf16.msra.mxu0 %v8221
      %8660 = vmatprep.subr.bf16.mxu0 %v8230
      %8661 = vmatpush1.bf16.msra.mxu0 %v8229
      %8662 = vmatprep.subr.bf16.mxu0 %v8238
      %8663 = vmatpush1.bf16.msra.mxu0 %v8237
      %8664 = vmatprep.subr.bf16.mxu0 %v8246
      %8665 = vmatpush1.bf16.msra.mxu0 %v8245
      %8666 = vmatprep.subr.bf16.mxu0 %v8254
      %8667 = vmatpush1.bf16.msra.mxu0 %v8253
      %8668 = vmatprep.subr.bf16.mxu0 %v8262
      %8669 = vmatpush1.bf16.msra.mxu0 %v8261
      %8670 = vmatprep.subr.bf16.mxu0 0
      %8671 = vmatpush1.bf16.msra.mxu0 0
      %8672 = vmatprep.subr.bf16.mxu0 0
      %8673 = vmatpush1.bf16.msra.mxu0 0
      %8674 = vmatprep.subr.bf16.mxu0 0
      %8675 = vmatpush1.bf16.msra.mxu0 0
      %8676 = vmatprep.subr.bf16.mxu0 0
      %8677 = vmatpush1.bf16.msra.mxu0 0
      %8678 = vmatprep.subr.bf16.mxu0 0
      %8679 = vmatpush1.bf16.msra.mxu0 0
      %8680 = vmatprep.subr.bf16.mxu0 0
      %8681 = vmatpush1.bf16.msra.mxu0 0
      %8682 = vmatprep.subr.bf16.mxu0 0
      %8683 = vmatpush1.bf16.msra.mxu0 0
      %8684 = vmatprep.subr.bf16.mxu0 0
      %8685 = vmatpush1.bf16.msra.mxu0 0
      %8686 = vmatprep.mubr.bf16.mxu0 0
      %8687 = vmatmul.mubr.bf16.gmra.mrb[0].mxu0 %v7251
      %v8688 = vpop.f32.mrb[0].mxu0
      %v8689 = vadd.f32 %v8496, %v8688
      %v8690 = vpop.f32.mrb[0].mxu0
      %v8691 = vadd.f32 %v8498, %v8690
      %v8692 = vpop.f32.mrb[0].mxu0
      %v8693 = vadd.f32 %v8500, %v8692
      %v8694 = vpop.f32.mrb[0].mxu0
      %v8695 = vadd.f32 %v8502, %v8694
      %8696 = vmatprep.mubr.bf16.mxu0 0
      %8697 = vmatmul.mubr.bf16.gmra.mrb[0].mxu0 %v7252
      %v8698 = vpop.f32.mrb[0].mxu0
      %v8699 = vadd.f32 %v8506, %v8698
      %v8700 = vpop.f32.mrb[0].mxu0
      %v8701 = vadd.f32 %v8508, %v8700
      %v8702 = vpop.f32.mrb[0].mxu0
      %v8703 = vadd.f32 %v8510, %v8702
      %v8704 = vpop.f32.mrb[0].mxu0
      %v8705 = vadd.f32 %v8512, %v8704
      %8706 = vmatprep.mubr.bf16.mxu0 0
      %8707 = vmatmul.mubr.bf16.gmra.mrb[0].mxu0 %v7253
      %v8708 = vpop.f32.mrb[0].mxu0
      %v8709 = vadd.f32 %v8516, %v8708
      %v8710 = vpop.f32.mrb[0].mxu0
      %v8711 = vadd.f32 %v8518, %v8710
      %v8712 = vpop.f32.mrb[0].mxu0
      %v8713 = vadd.f32 %v8520, %v8712
      %v8714 = vpop.f32.mrb[0].mxu0
      %v8715 = vadd.f32 %v8522, %v8714
      %8716 = vmatprep.mubr.bf16.mxu0 0
      %8717 = vmatmul.mubr.bf16.gmra.mrb[0].mxu0 %v7254
      %v8718 = vpop.f32.mrb[0].mxu0
      %v8719 = vadd.f32 %v8526, %v8718
      %v8720 = vpop.f32.mrb[0].mxu0
      %v8721 = vadd.f32 %v8528, %v8720
      %v8722 = vpop.f32.mrb[0].mxu0
      %v8723 = vadd.f32 %v8530, %v8722
      %v8724 = vpop.f32.mrb[0].mxu0
      %v8725 = vadd.f32 %v8532, %v8724
      %8726 = vmatprep.mubr.bf16.mxu0 0
      %8727 = vmatmul.mubr.bf16.gmra.mrb[0].mxu0 %v7255
      %v8728 = vpop.f32.mrb[0].mxu0
      %v8729 = vadd.f32 %v8536, %v8728
      %v8730 = vpop.f32.mrb[0].mxu0
      %v8731 = vadd.f32 %v8538, %v8730
      %v8732 = vpop.f32.mrb[0].mxu0
      %v8733 = vadd.f32 %v8540, %v8732
      %v8734 = vpop.f32.mrb[0].mxu0
      %v8735 = vadd.f32 %v8542, %v8734
      %8736 = vmatprep.mubr.bf16.mxu0 0
      %8737 = vmatmul.mubr.bf16.gmra.mrb[0].mxu0 %v7256
      %v8738 = vpop.f32.mrb[0].mxu0
      %v8739 = vadd.f32 %v8546, %v8738
      %v8740 = vpop.f32.mrb[0].mxu0
      %v8741 = vadd.f32 %v8548, %v8740
      %v8742 = vpop.f32.mrb[0].mxu0
      %v8743 = vadd.f32 %v8550, %v8742
      %v8744 = vpop.f32.mrb[0].mxu0
      %v8745 = vadd.f32 %v8552, %v8744
      %8746 = vmatprep.mubr.bf16.mxu0 0
      %8747 = vmatmul.mubr.bf16.gmra.mrb[0].mxu0 %v7257
      %v8748 = vpop.f32.mrb[0].mxu0
      %v8749 = vadd.f32 %v8556, %v8748
      %v8750 = vpop.f32.mrb[0].mxu0
      %v8751 = vadd.f32 %v8558, %v8750
      %v8752 = vpop.f32.mrb[0].mxu0
      %v8753 = vadd.f32 %v8560, %v8752
      %v8754 = vpop.f32.mrb[0].mxu0
      %v8755 = vadd.f32 %v8562, %v8754
      %8756 = vmatprep.mubr.bf16.mxu0 0
      %8757 = vmatmul.mubr.bf16.gmra.mrb[0].mxu0 %v7258
      %v8758 = vpop.f32.mrb[0].mxu0
      %v8759 = vadd.f32 %v8566, %v8758
      %v8760 = vpop.f32.mrb[0].mxu0
      %v8761 = vadd.f32 %v8568, %v8760
      %v8762 = vpop.f32.mrb[0].mxu0
      %v8763 = vadd.f32 %v8570, %v8762
      %v8764 = vpop.f32.mrb[0].mxu0
      %v8765 = vadd.f32 %v8572, %v8764
      %8766 = vmatprep.mubr.bf16.mxu0 0
      %8767 = vmatmul.mubr.bf16.gmra.mrb[0].mxu0 %v7259
      %v8768 = vpop.f32.mrb[0].mxu0
      %v8769 = vadd.f32 %v8576, %v8768
      %v8770 = vpop.f32.mrb[0].mxu0
      %v8771 = vadd.f32 %v8578, %v8770
      %v8772 = vpop.f32.mrb[0].mxu0
      %v8773 = vadd.f32 %v8580, %v8772
      %v8774 = vpop.f32.mrb[0].mxu0
      %v8775 = vadd.f32 %v8582, %v8774
      %8776 = vmatprep.mubr.bf16.mxu0 0
      %8777 = vmatmul.mubr.bf16.gmra.mrb[0].mxu0 %v7260
      %v8778 = vpop.f32.mrb[0].mxu0
      %v8779 = vadd.f32 %v8586, %v8778
      %v8780 = vpop.f32.mrb[0].mxu0
      %v8781 = vadd.f32 %v8588, %v8780
      %v8782 = vpop.f32.mrb[0].mxu0
      %v8783 = vadd.f32 %v8590, %v8782
      %v8784 = vpop.f32.mrb[0].mxu0
      %v8785 = vadd.f32 %v8592, %v8784
      %8786 = vmatprep.mubr.bf16.mxu0 0
      %8787 = vmatmul.mubr.bf16.gmra.mrb[0].mxu0 %v7261
      %v8788 = vpop.f32.mrb[0].mxu0
      %v8789 = vadd.f32 %v8596, %v8788
      %v8790 = vpop.f32.mrb[0].mxu0
      %v8791 = vadd.f32 %v8598, %v8790
      %v8792 = vpop.f32.mrb[0].mxu0
      %v8793 = vadd.f32 %v8600, %v8792
      %v8794 = vpop.f32.mrb[0].mxu0
      %v8795 = vadd.f32 %v8602, %v8794
      %8796 = vmatprep.mubr.bf16.mxu0 0
      %8797 = vmatmul.mubr.bf16.gmra.mrb[0].mxu0 %v7262
      %v8798 = vpop.f32.mrb[0].mxu0
      %v8799 = vadd.f32 %v8606, %v8798
      %v8800 = vpop.f32.mrb[0].mxu0
      %v8801 = vadd.f32 %v8608, %v8800
      %v8802 = vpop.f32.mrb[0].mxu0
      %v8803 = vadd.f32 %v8610, %v8802
      %v8804 = vpop.f32.mrb[0].mxu0
      %v8805 = vadd.f32 %v8612, %v8804
      %8806 = vmatprep.mubr.bf16.mxu0 0
      %8807 = vmatmul.mubr.bf16.gmra.mrb[0].mxu0 %v7263
      %v8808 = vpop.f32.mrb[0].mxu0
      %v8809 = vadd.f32 %v8616, %v8808
      %v8810 = vpop.f32.mrb[0].mxu0
      %v8811 = vadd.f32 %v8618, %v8810
      %v8812 = vpop.f32.mrb[0].mxu0
      %v8813 = vadd.f32 %v8620, %v8812
      %v8814 = vpop.f32.mrb[0].mxu0
      %v8815 = vadd.f32 %v8622, %v8814
      %8816 = vmatprep.mubr.bf16.mxu0 0
      %8817 = vmatmul.mubr.bf16.gmra.mrb[0].mxu0 %v7264
      %v8818 = vpop.f32.mrb[0].mxu0
      %v8819 = vadd.f32 %v8626, %v8818
      %v8820 = vpop.f32.mrb[0].mxu0
      %v8821 = vadd.f32 %v8628, %v8820
      %v8822 = vpop.f32.mrb[0].mxu0
      %v8823 = vadd.f32 %v8630, %v8822
      %v8824 = vpop.f32.mrb[0].mxu0
      %v8825 = vadd.f32 %v8632, %v8824
      %8826 = vmatprep.mubr.bf16.mxu0 0
      %8827 = vmatmul.mubr.bf16.gmra.mrb[0].mxu0 %v7265
      %v8828 = vpop.f32.mrb[0].mxu0
      %v8829 = vadd.f32 %v8636, %v8828
      %v8830 = vpop.f32.mrb[0].mxu0
      %v8831 = vadd.f32 %v8638, %v8830
      %v8832 = vpop.f32.mrb[0].mxu0
      %v8833 = vadd.f32 %v8640, %v8832
      %v8834 = vpop.f32.mrb[0].mxu0
      %v8835 = vadd.f32 %v8642, %v8834
      %8836 = vmatprep.mubr.bf16.mxu0 0
      %8837 = vmatmul.mubr.bf16.gmra.mrb[0].mxu0 %v7266
      %v8838 = vpop.f32.mrb[0].mxu0
      %v8839 = vadd.f32 %v8646, %v8838
      %v8840 = vpop.f32.mrb[0].mxu0
      %v8841 = vadd.f32 %v8648, %v8840
      %v8842 = vpop.f32.mrb[0].mxu0
      %v8843 = vadd.f32 %v8650, %v8842
      %v8844 = vpop.f32.mrb[0].mxu0
      %v8845 = vadd.f32 %v8652, %v8844
      %8846 = vdwg.mxu0
      %8847 = vmatprep.subr.bf16.mxu0 %v8080
      %8848 = vmatpush1.bf16.msra.mxu0 %v8079
      %8849 = vmatprep.subr.bf16.mxu0 %v8088
      %8850 = vmatpush1.bf16.msra.mxu0 %v8087
      %8851 = vmatprep.subr.bf16.mxu0 %v8096
      %8852 = vmatpush1.bf16.msra.mxu0 %v8095
      %8853 = vmatprep.subr.bf16.mxu0 %v8104
      %8854 = vmatpush1.bf16.msra.mxu0 %v8103
      %8855 = vmatprep.subr.bf16.mxu0 %v8112
      %8856 = vmatpush1.bf16.msra.mxu0 %v8111
      %8857 = vmatprep.subr.bf16.mxu0 %v8120
      %8858 = vmatpush1.bf16.msra.mxu0 %v8119
      %8859 = vmatprep.subr.bf16.mxu0 %v8128
      %8860 = vmatpush1.bf16.msra.mxu0 %v8127
      %8861 = vmatprep.subr.bf16.mxu0 %v8136
      %8862 = vmatpush1.bf16.msra.mxu0 %v8135
      %8863 = vmatprep.subr.bf16.mxu0 %v8144
      %8864 = vmatpush1.bf16.msra.mxu0 %v8143
      %8865 = vmatprep.subr.bf16.mxu0 %v8152
      %8866 = vmatpush1.bf16.msra.mxu0 %v8151
      %8867 = vmatprep.subr.bf16.mxu0 %v8160
      %8868 = vmatpush1.bf16.msra.mxu0 %v8159
      %8869 = vmatprep.subr.bf16.mxu0 %v8168
      %8870 = vmatpush1.bf16.msra.mxu0 %v8167
      %8871 = vmatprep.subr.bf16.mxu0 %v8176
      %8872 = vmatpush1.bf16.msra.mxu0 %v8175
      %8873 = vmatprep.subr.bf16.mxu0 %v8184
      %8874 = vmatpush1.bf16.msra.mxu0 %v8183
      %8875 = vmatprep.subr.bf16.mxu0 %v8192
      %8876 = vmatpush1.bf16.msra.mxu0 %v8191
      %8877 = vmatprep.subr.bf16.mxu0 %v8200
      %8878 = vmatpush1.bf16.msra.mxu0 %v8199
      %8879 = vmatprep.mubr.bf16.mxu0 %v7235
      %8880 = vmatmul.mubr.bf16.gmra.mrb[0].mxu0 %v7219
      %v8881 = vpop.f32.mrb[0].mxu0
      %v8882 = vadd.f32 %v7472, %v8881
      %v8883 = vpop.f32.mrb[0].mxu0
      %v8884 = vadd.f32 %v7476, %v8883
      %v8885 = vpop.f32.mrb[0].mxu0
      %v8886 = vadd.f32 %v7472, %v8885
      %v8887 = vpop.f32.mrb[0].mxu0
      %v8888 = vadd.f32 %v7476, %v8887
      %8889 = vmatprep.mubr.bf16.mxu0 %v7236
      %8890 = vmatmul.mubr.bf16.gmra.mrb[0].mxu0 %v7220
      %v8891 = vpop.f32.mrb[0].mxu0
      %v8892 = vadd.f32 %v7472, %v8891
      %v8893 = vpop.f32.mrb[0].mxu0
      %v8894 = vadd.f32 %v7476, %v8893
      %v8895 = vpop.f32.mrb[0].mxu0
      %v8896 = vadd.f32 %v7472, %v8895
      %v8897 = vpop.f32.mrb[0].mxu0
      %v8898 = vadd.f32 %v7476, %v8897
      %8899 = vmatprep.mubr.bf16.mxu0 %v7237
      %8900 = vmatmul.mubr.bf16.gmra.mrb[0].mxu0 %v7221
      %v8901 = vpop.f32.mrb[0].mxu0
      %v8902 = vadd.f32 %v7472, %v8901
      %v8903 = vpop.f32.mrb[0].mxu0
      %v8904 = vadd.f32 %v7476, %v8903
      %v8905 = vpop.f32.mrb[0].mxu0
      %v8906 = vadd.f32 %v7472, %v8905
      %v8907 = vpop.f32.mrb[0].mxu0
      %v8908 = vadd.f32 %v7476, %v8907
      %8909 = vmatprep.mubr.bf16.mxu0 %v7238
      %8910 = vmatmul.mubr.bf16.gmra.mrb[0].mxu0 %v7222
      %v8911 = vpop.f32.mrb[0].mxu0
      %v8912 = vadd.f32 %v7472, %v8911
      %v8913 = vpop.f32.mrb[0].mxu0
      %v8914 = vadd.f32 %v7476, %v8913
      %v8915 = vpop.f32.mrb[0].mxu0
      %v8916 = vadd.f32 %v7472, %v8915
      %v8917 = vpop.f32.mrb[0].mxu0
      %v8918 = vadd.f32 %v7476, %v8917
      %8919 = vmatprep.mubr.bf16.mxu0 %v7239
      %8920 = vmatmul.mubr.bf16.gmra.mrb[0].mxu0 %v7223
      %v8921 = vpop.f32.mrb[0].mxu0
      %v8922 = vadd.f32 %v7472, %v8921
      %v8923 = vpop.f32.mrb[0].mxu0
      %v8924 = vadd.f32 %v7476, %v8923
      %v8925 = vpop.f32.mrb[0].mxu0
      %v8926 = vadd.f32 %v7472, %v8925
      %v8927 = vpop.f32.mrb[0].mxu0
      %v8928 = vadd.f32 %v7476, %v8927
      %8929 = vmatprep.mubr.bf16.mxu0 %v7240
      %8930 = vmatmul.mubr.bf16.gmra.mrb[0].mxu0 %v7224
      %v8931 = vpop.f32.mrb[0].mxu0
      %v8932 = vadd.f32 %v7472, %v8931
      %v8933 = vpop.f32.mrb[0].mxu0
      %v8934 = vadd.f32 %v7476, %v8933
      %v8935 = vpop.f32.mrb[0].mxu0
      %v8936 = vadd.f32 %v7472, %v8935
      %v8937 = vpop.f32.mrb[0].mxu0
      %v8938 = vadd.f32 %v7476, %v8937
      %8939 = vmatprep.mubr.bf16.mxu0 %v7241
      %8940 = vmatmul.mubr.bf16.gmra.mrb[0].mxu0 %v7225
      %v8941 = vpop.f32.mrb[0].mxu0
      %v8942 = vadd.f32 %v7472, %v8941
      %v8943 = vpop.f32.mrb[0].mxu0
      %v8944 = vadd.f32 %v7476, %v8943
      %v8945 = vpop.f32.mrb[0].mxu0
      %v8946 = vadd.f32 %v7472, %v8945
      %v8947 = vpop.f32.mrb[0].mxu0
      %v8948 = vadd.f32 %v7476, %v8947
      %8949 = vmatprep.mubr.bf16.mxu0 %v7242
      %8950 = vmatmul.mubr.bf16.gmra.mrb[0].mxu0 %v7226
      %v8951 = vpop.f32.mrb[0].mxu0
      %v8952 = vadd.f32 %v7472, %v8951
      %v8953 = vpop.f32.mrb[0].mxu0
      %v8954 = vadd.f32 %v7476, %v8953
      %v8955 = vpop.f32.mrb[0].mxu0
      %v8956 = vadd.f32 %v7472, %v8955
      %v8957 = vpop.f32.mrb[0].mxu0
      %v8958 = vadd.f32 %v7476, %v8957
      %8959 = vmatprep.mubr.bf16.mxu0 %v7243
      %8960 = vmatmul.mubr.bf16.gmra.mrb[0].mxu0 %v7227
      %v8961 = vpop.f32.mrb[0].mxu0
      %v8962 = vadd.f32 %v7472, %v8961
      %v8963 = vpop.f32.mrb[0].mxu0
      %v8964 = vadd.f32 %v7476, %v8963
      %v8965 = vpop.f32.mrb[0].mxu0
      %v8966 = vadd.f32 %v7472, %v8965
      %v8967 = vpop.f32.mrb[0].mxu0
      %v8968 = vadd.f32 %v7476, %v8967
      %8969 = vmatprep.mubr.bf16.mxu0 %v7244
      %8970 = vmatmul.mubr.bf16.gmra.mrb[0].mxu0 %v7228
      %v8971 = vpop.f32.mrb[0].mxu0
      %v8972 = vadd.f32 %v7472, %v8971
      %v8973 = vpop.f32.mrb[0].mxu0
      %v8974 = vadd.f32 %v7476, %v8973
      %v8975 = vpop.f32.mrb[0].mxu0
      %v8976 = vadd.f32 %v7472, %v8975
      %v8977 = vpop.f32.mrb[0].mxu0
      %v8978 = vadd.f32 %v7476, %v8977
      %8979 = vmatprep.mubr.bf16.mxu0 %v7245
      %8980 = vmatmul.mubr.bf16.gmra.mrb[0].mxu0 %v7229
      %v8981 = vpop.f32.mrb[0].mxu0
      %v8982 = vadd.f32 %v7472, %v8981
      %v8983 = vpop.f32.mrb[0].mxu0
      %v8984 = vadd.f32 %v7476, %v8983
      %v8985 = vpop.f32.mrb[0].mxu0
      %v8986 = vadd.f32 %v7472, %v8985
      %v8987 = vpop.f32.mrb[0].mxu0
      %v8988 = vadd.f32 %v7476, %v8987
      %8989 = vmatprep.mubr.bf16.mxu0 %v7246
      %8990 = vmatmul.mubr.bf16.gmra.mrb[0].mxu0 %v7230
      %v8991 = vpop.f32.mrb[0].mxu0
      %v8992 = vadd.f32 %v7472, %v8991
      %v8993 = vpop.f32.mrb[0].mxu0
      %v8994 = vadd.f32 %v7476, %v8993
      %v8995 = vpop.f32.mrb[0].mxu0
      %v8996 = vadd.f32 %v7472, %v8995
      %v8997 = vpop.f32.mrb[0].mxu0
      %v8998 = vadd.f32 %v7476, %v8997
      %8999 = vmatprep.mubr.bf16.mxu0 %v7247
      %9000 = vmatmul.mubr.bf16.gmra.mrb[0].mxu0 %v7231
      %v9001 = vpop.f32.mrb[0].mxu0
      %v9002 = vadd.f32 %v7472, %v9001
      %v9003 = vpop.f32.mrb[0].mxu0
      %v9004 = vadd.f32 %v7476, %v9003
      %v9005 = vpop.f32.mrb[0].mxu0
      %v9006 = vadd.f32 %v7472, %v9005
      %v9007 = vpop.f32.mrb[0].mxu0
      %v9008 = vadd.f32 %v7476, %v9007
      %9009 = vmatprep.mubr.bf16.mxu0 %v7248
      %9010 = vmatmul.mubr.bf16.gmra.mrb[0].mxu0 %v7232
      %v9011 = vpop.f32.mrb[0].mxu0
      %v9012 = vadd.f32 %v7472, %v9011
      %v9013 = vpop.f32.mrb[0].mxu0
      %v9014 = vadd.f32 %v7476, %v9013
      %v9015 = vpop.f32.mrb[0].mxu0
      %v9016 = vadd.f32 %v7472, %v9015
      %v9017 = vpop.f32.mrb[0].mxu0
      %v9018 = vadd.f32 %v7476, %v9017
      %9019 = vmatprep.mubr.bf16.mxu0 %v7249
      %9020 = vmatmul.mubr.bf16.gmra.mrb[0].mxu0 %v7233
      %v9021 = vpop.f32.mrb[0].mxu0
      %v9022 = vadd.f32 %v7472, %v9021
      %v9023 = vpop.f32.mrb[0].mxu0
      %v9024 = vadd.f32 %v7476, %v9023
      %v9025 = vpop.f32.mrb[0].mxu0
      %v9026 = vadd.f32 %v7472, %v9025
      %v9027 = vpop.f32.mrb[0].mxu0
      %v9028 = vadd.f32 %v7476, %v9027
      %9029 = vmatprep.mubr.bf16.mxu0 %v7250
      %9030 = vmatmul.mubr.bf16.gmra.mrb[0].mxu0 %v7234
      %v9031 = vpop.f32.mrb[0].mxu0
      %v9032 = vadd.f32 %v7472, %v9031
      %v9033 = vpop.f32.mrb[0].mxu0
      %v9034 = vadd.f32 %v7476, %v9033
      %v9035 = vpop.f32.mrb[0].mxu0
      %v9036 = vadd.f32 %v7472, %v9035
      %v9037 = vpop.f32.mrb[0].mxu0
      %v9038 = vadd.f32 %v7476, %v9037
      %9039 = vdwg.mxu0
      %9040 = vmatprep.subr.bf16.mxu0 %v8208
      %9041 = vmatpush1.bf16.msra.mxu0 %v8207
      %9042 = vmatprep.subr.bf16.mxu0 %v8216
      %9043 = vmatpush1.bf16.msra.mxu0 %v8215
      %9044 = vmatprep.subr.bf16.mxu0 %v8224
      %9045 = vmatpush1.bf16.msra.mxu0 %v8223
      %9046 = vmatprep.subr.bf16.mxu0 %v8232
      %9047 = vmatpush1.bf16.msra.mxu0 %v8231
      %9048 = vmatprep.subr.bf16.mxu0 %v8240
      %9049 = vmatpush1.bf16.msra.mxu0 %v8239
      %9050 = vmatprep.subr.bf16.mxu0 %v8248
      %9051 = vmatpush1.bf16.msra.mxu0 %v8247
      %9052 = vmatprep.subr.bf16.mxu0 %v8256
      %9053 = vmatpush1.bf16.msra.mxu0 %v8255
      %9054 = vmatprep.subr.bf16.mxu0 %v8264
      %9055 = vmatpush1.bf16.msra.mxu0 %v8263
      %9056 = vmatprep.subr.bf16.mxu0 0
      %9057 = vmatpush1.bf16.msra.mxu0 0
      %9058 = vmatprep.subr.bf16.mxu0 0
      %9059 = vmatpush1.bf16.msra.mxu0 0
      %9060 = vmatprep.subr.bf16.mxu0 0
      %9061 = vmatpush1.bf16.msra.mxu0 0
      %9062 = vmatprep.subr.bf16.mxu0 0
      %9063 = vmatpush1.bf16.msra.mxu0 0
      %9064 = vmatprep.subr.bf16.mxu0 0
      %9065 = vmatpush1.bf16.msra.mxu0 0
      %9066 = vmatprep.subr.bf16.mxu0 0
      %9067 = vmatpush1.bf16.msra.mxu0 0
      %9068 = vmatprep.subr.bf16.mxu0 0
      %9069 = vmatpush1.bf16.msra.mxu0 0
      %9070 = vmatprep.subr.bf16.mxu0 0
      %9071 = vmatpush1.bf16.msra.mxu0 0
      %9072 = vmatprep.mubr.bf16.mxu0 0
      %9073 = vmatmul.mubr.bf16.gmra.mrb[0].mxu0 %v7251
      %v9074 = vpop.f32.mrb[0].mxu0
      %v9075 = vadd.f32 %v8882, %v9074
      %v9076 = vpop.f32.mrb[0].mxu0
      %v9077 = vadd.f32 %v8884, %v9076
      %v9078 = vpop.f32.mrb[0].mxu0
      %v9079 = vadd.f32 %v8886, %v9078
      %v9080 = vpop.f32.mrb[0].mxu0
      %v9081 = vadd.f32 %v8888, %v9080
      %9082 = vmatprep.mubr.bf16.mxu0 0
      %9083 = vmatmul.mubr.bf16.gmra.mrb[0].mxu0 %v7252
      %v9084 = vpop.f32.mrb[0].mxu0
      %v9085 = vadd.f32 %v8892, %v9084
      %v9086 = vpop.f32.mrb[0].mxu0
      %v9087 = vadd.f32 %v8894, %v9086
      %v9088 = vpop.f32.mrb[0].mxu0
      %v9089 = vadd.f32 %v8896, %v9088
      %v9090 = vpop.f32.mrb[0].mxu0
      %v9091 = vadd.f32 %v8898, %v9090
      %9092 = vmatprep.mubr.bf16.mxu0 0
      %9093 = vmatmul.mubr.bf16.gmra.mrb[0].mxu0 %v7253
      %v9094 = vpop.f32.mrb[0].mxu0
      %v9095 = vadd.f32 %v8902, %v9094
      %v9096 = vpop.f32.mrb[0].mxu0
      %v9097 = vadd.f32 %v8904, %v9096
      %v9098 = vpop.f32.mrb[0].mxu0
      %v9099 = vadd.f32 %v8906, %v9098
      %v9100 = vpop.f32.mrb[0].mxu0
      %v9101 = vadd.f32 %v8908, %v9100
      %9102 = vmatprep.mubr.bf16.mxu0 0
      %9103 = vmatmul.mubr.bf16.gmra.mrb[0].mxu0 %v7254
      %v9104 = vpop.f32.mrb[0].mxu0
      %v9105 = vadd.f32 %v8912, %v9104
      %v9106 = vpop.f32.mrb[0].mxu0
      %v9107 = vadd.f32 %v8914, %v9106
      %v9108 = vpop.f32.mrb[0].mxu0
      %v9109 = vadd.f32 %v8916, %v9108
      %v9110 = vpop.f32.mrb[0].mxu0
      %v9111 = vadd.f32 %v8918, %v9110
      %9112 = vmatprep.mubr.bf16.mxu0 0
      %9113 = vmatmul.mubr.bf16.gmra.mrb[0].mxu0 %v7255
      %v9114 = vpop.f32.mrb[0].mxu0
      %v9115 = vadd.f32 %v8922, %v9114
      %v9116 = vpop.f32.mrb[0].mxu0
      %v9117 = vadd.f32 %v8924, %v9116
      %v9118 = vpop.f32.mrb[0].mxu0
      %v9119 = vadd.f32 %v8926, %v9118
      %v9120 = vpop.f32.mrb[0].mxu0
      %v9121 = vadd.f32 %v8928, %v9120
      %9122 = vmatprep.mubr.bf16.mxu0 0
      %9123 = vmatmul.mubr.bf16.gmra.mrb[0].mxu0 %v7256
      %v9124 = vpop.f32.mrb[0].mxu0
      %v9125 = vadd.f32 %v8932, %v9124
      %v9126 = vpop.f32.mrb[0].mxu0
      %v9127 = vadd.f32 %v8934, %v9126
      %v9128 = vpop.f32.mrb[0].mxu0
      %v9129 = vadd.f32 %v8936, %v9128
      %v9130 = vpop.f32.mrb[0].mxu0
      %v9131 = vadd.f32 %v8938, %v9130
      %9132 = vmatprep.mubr.bf16.mxu0 0
      %9133 = vmatmul.mubr.bf16.gmra.mrb[0].mxu0 %v7257
      %v9134 = vpop.f32.mrb[0].mxu0
      %v9135 = vadd.f32 %v8942, %v9134
      %v9136 = vpop.f32.mrb[0].mxu0
      %v9137 = vadd.f32 %v8944, %v9136
      %v9138 = vpop.f32.mrb[0].mxu0
      %v9139 = vadd.f32 %v8946, %v9138
      %v9140 = vpop.f32.mrb[0].mxu0
      %v9141 = vadd.f32 %v8948, %v9140
      %9142 = vmatprep.mubr.bf16.mxu0 0
      %9143 = vmatmul.mubr.bf16.gmra.mrb[0].mxu0 %v7258
      %v9144 = vpop.f32.mrb[0].mxu0
      %v9145 = vadd.f32 %v8952, %v9144
      %v9146 = vpop.f32.mrb[0].mxu0
      %v9147 = vadd.f32 %v8954, %v9146
      %v9148 = vpop.f32.mrb[0].mxu0
      %v9149 = vadd.f32 %v8956, %v9148
      %v9150 = vpop.f32.mrb[0].mxu0
      %v9151 = vadd.f32 %v8958, %v9150
      %9152 = vmatprep.mubr.bf16.mxu0 0
      %9153 = vmatmul.mubr.bf16.gmra.mrb[0].mxu0 %v7259
      %v9154 = vpop.f32.mrb[0].mxu0
      %v9155 = vadd.f32 %v8962, %v9154
      %v9156 = vpop.f32.mrb[0].mxu0
      %v9157 = vadd.f32 %v8964, %v9156
      %v9158 = vpop.f32.mrb[0].mxu0
      %v9159 = vadd.f32 %v8966, %v9158
      %v9160 = vpop.f32.mrb[0].mxu0
      %v9161 = vadd.f32 %v8968, %v9160
      %9162 = vmatprep.mubr.bf16.mxu0 0
      %9163 = vmatmul.mubr.bf16.gmra.mrb[0].mxu0 %v7260
      %v9164 = vpop.f32.mrb[0].mxu0
      %v9165 = vadd.f32 %v8972, %v9164
      %v9166 = vpop.f32.mrb[0].mxu0
      %v9167 = vadd.f32 %v8974, %v9166
      %v9168 = vpop.f32.mrb[0].mxu0
      %v9169 = vadd.f32 %v8976, %v9168
      %v9170 = vpop.f32.mrb[0].mxu0
      %v9171 = vadd.f32 %v8978, %v9170
      %9172 = vmatprep.mubr.bf16.mxu0 0
      %9173 = vmatmul.mubr.bf16.gmra.mrb[0].mxu0 %v7261
      %v9174 = vpop.f32.mrb[0].mxu0
      %v9175 = vadd.f32 %v8982, %v9174
      %v9176 = vpop.f32.mrb[0].mxu0
      %v9177 = vadd.f32 %v8984, %v9176
      %v9178 = vpop.f32.mrb[0].mxu0
      %v9179 = vadd.f32 %v8986, %v9178
      %v9180 = vpop.f32.mrb[0].mxu0
      %v9181 = vadd.f32 %v8988, %v9180
      %9182 = vmatprep.mubr.bf16.mxu0 0
      %9183 = vmatmul.mubr.bf16.gmra.mrb[0].mxu0 %v7262
      %v9184 = vpop.f32.mrb[0].mxu0
      %v9185 = vadd.f32 %v8992, %v9184
      %v9186 = vpop.f32.mrb[0].mxu0
      %v9187 = vadd.f32 %v8994, %v9186
      %v9188 = vpop.f32.mrb[0].mxu0
      %v9189 = vadd.f32 %v8996, %v9188
      %v9190 = vpop.f32.mrb[0].mxu0
      %v9191 = vadd.f32 %v8998, %v9190
      %9192 = vmatprep.mubr.bf16.mxu0 0
      %9193 = vmatmul.mubr.bf16.gmra.mrb[0].mxu0 %v7263
      %v9194 = vpop.f32.mrb[0].mxu0
      %v9195 = vadd.f32 %v9002, %v9194
      %v9196 = vpop.f32.mrb[0].mxu0
      %v9197 = vadd.f32 %v9004, %v9196
      %v9198 = vpop.f32.mrb[0].mxu0
      %v9199 = vadd.f32 %v9006, %v9198
      %v9200 = vpop.f32.mrb[0].mxu0
      %v9201 = vadd.f32 %v9008, %v9200
      %9202 = vmatprep.mubr.bf16.mxu0 0
      %9203 = vmatmul.mubr.bf16.gmra.mrb[0].mxu0 %v7264
      %v9204 = vpop.f32.mrb[0].mxu0
      %v9205 = vadd.f32 %v9012, %v9204
      %v9206 = vpop.f32.mrb[0].mxu0
      %v9207 = vadd.f32 %v9014, %v9206
      %v9208 = vpop.f32.mrb[0].mxu0
      %v9209 = vadd.f32 %v9016, %v9208
      %v9210 = vpop.f32.mrb[0].mxu0
      %v9211 = vadd.f32 %v9018, %v9210
      %9212 = vmatprep.mubr.bf16.mxu0 0
      %9213 = vmatmul.mubr.bf16.gmra.mrb[0].mxu0 %v7265
      %v9214 = vpop.f32.mrb[0].mxu0
      %v9215 = vadd.f32 %v9022, %v9214
      %v9216 = vpop.f32.mrb[0].mxu0
      %v9217 = vadd.f32 %v9024, %v9216
      %v9218 = vpop.f32.mrb[0].mxu0
      %v9219 = vadd.f32 %v9026, %v9218
      %v9220 = vpop.f32.mrb[0].mxu0
      %v9221 = vadd.f32 %v9028, %v9220
      %9222 = vmatprep.mubr.bf16.mxu0 0
      %9223 = vmatmul.mubr.bf16.gmra.mrb[0].mxu0 %v7266
      %v9224 = vpop.f32.mrb[0].mxu0
      %v9225 = vadd.f32 %v9032, %v9224
      %v9226 = vpop.f32.mrb[0].mxu0
      %v9227 = vadd.f32 %v9034, %v9226
      %v9228 = vpop.f32.mrb[0].mxu0
      %v9229 = vadd.f32 %v9036, %v9228
      %v9230 = vpop.f32.mrb[0].mxu0
      %v9231 = vadd.f32 %v9038, %v9230
      %9232 = vdwg.mxu0
      %9233 = vmatprep.subr.bf16.mxu0 %v8082
      %9234 = vmatpush1.bf16.msra.mxu0 %v8081
      %9235 = vmatprep.subr.bf16.mxu0 %v8090
      %9236 = vmatpush1.bf16.msra.mxu0 %v8089
      %9237 = vmatprep.subr.bf16.mxu0 %v8098
      %9238 = vmatpush1.bf16.msra.mxu0 %v8097
      %9239 = vmatprep.subr.bf16.mxu0 %v8106
      %9240 = vmatpush1.bf16.msra.mxu0 %v8105
      %9241 = vmatprep.subr.bf16.mxu0 %v8114
      %9242 = vmatpush1.bf16.msra.mxu0 %v8113
      %9243 = vmatprep.subr.bf16.mxu0 %v8122
      %9244 = vmatpush1.bf16.msra.mxu0 %v8121
      %9245 = vmatprep.subr.bf16.mxu0 %v8130
      %9246 = vmatpush1.bf16.msra.mxu0 %v8129
      %9247 = vmatprep.subr.bf16.mxu0 %v8138
      %9248 = vmatpush1.bf16.msra.mxu0 %v8137
      %9249 = vmatprep.subr.bf16.mxu0 %v8146
      %9250 = vmatpush1.bf16.msra.mxu0 %v8145
      %9251 = vmatprep.subr.bf16.mxu0 %v8154
      %9252 = vmatpush1.bf16.msra.mxu0 %v8153
      %9253 = vmatprep.subr.bf16.mxu0 %v8162
      %9254 = vmatpush1.bf16.msra.mxu0 %v8161
      %9255 = vmatprep.subr.bf16.mxu0 %v8170
      %9256 = vmatpush1.bf16.msra.mxu0 %v8169
      %9257 = vmatprep.subr.bf16.mxu0 %v8178
      %9258 = vmatpush1.bf16.msra.mxu0 %v8177
      %9259 = vmatprep.subr.bf16.mxu0 %v8186
      %9260 = vmatpush1.bf16.msra.mxu0 %v8185
      %9261 = vmatprep.subr.bf16.mxu0 %v8194
      %9262 = vmatpush1.bf16.msra.mxu0 %v8193
      %9263 = vmatprep.subr.bf16.mxu0 %v8202
      %9264 = vmatpush1.bf16.msra.mxu0 %v8201
      %9265 = vmatprep.mubr.bf16.mxu0 %v7235
      %9266 = vmatmul.mubr.bf16.gmra.mrb[0].mxu0 %v7219
      %v9267 = vpop.f32.mrb[0].mxu0
      %v9268 = vadd.f32 %v7480, %v9267
      %v9269 = vpop.f32.mrb[0].mxu0
      %v9270 = vadd.f32 %v7484, %v9269
      %v9271 = vpop.f32.mrb[0].mxu0
      %v9272 = vadd.f32 %v7480, %v9271
      %v9273 = vpop.f32.mrb[0].mxu0
      %v9274 = vadd.f32 %v7484, %v9273
      %9275 = vmatprep.mubr.bf16.mxu0 %v7236
      %9276 = vmatmul.mubr.bf16.gmra.mrb[0].mxu0 %v7220
      %v9277 = vpop.f32.mrb[0].mxu0
      %v9278 = vadd.f32 %v7480, %v9277
      %v9279 = vpop.f32.mrb[0].mxu0
      %v9280 = vadd.f32 %v7484, %v9279
      %v9281 = vpop.f32.mrb[0].mxu0
      %v9282 = vadd.f32 %v7480, %v9281
      %v9283 = vpop.f32.mrb[0].mxu0
      %v9284 = vadd.f32 %v7484, %v9283
      %9285 = vmatprep.mubr.bf16.mxu0 %v7237
      %9286 = vmatmul.mubr.bf16.gmra.mrb[0].mxu0 %v7221
      %v9287 = vpop.f32.mrb[0].mxu0
      %v9288 = vadd.f32 %v7480, %v9287
      %v9289 = vpop.f32.mrb[0].mxu0
      %v9290 = vadd.f32 %v7484, %v9289
      %v9291 = vpop.f32.mrb[0].mxu0
      %v9292 = vadd.f32 %v7480, %v9291
      %v9293 = vpop.f32.mrb[0].mxu0
      %v9294 = vadd.f32 %v7484, %v9293
      %9295 = vmatprep.mubr.bf16.mxu0 %v7238
      %9296 = vmatmul.mubr.bf16.gmra.mrb[0].mxu0 %v7222
      %v9297 = vpop.f32.mrb[0].mxu0
      %v9298 = vadd.f32 %v7480, %v9297
      %v9299 = vpop.f32.mrb[0].mxu0
      %v9300 = vadd.f32 %v7484, %v9299
      %v9301 = vpop.f32.mrb[0].mxu0
      %v9302 = vadd.f32 %v7480, %v9301
      %v9303 = vpop.f32.mrb[0].mxu0
      %v9304 = vadd.f32 %v7484, %v9303
      %9305 = vmatprep.mubr.bf16.mxu0 %v7239
      %9306 = vmatmul.mubr.bf16.gmra.mrb[0].mxu0 %v7223
      %v9307 = vpop.f32.mrb[0].mxu0
      %v9308 = vadd.f32 %v7480, %v9307
      %v9309 = vpop.f32.mrb[0].mxu0
      %v9310 = vadd.f32 %v7484, %v9309
      %v9311 = vpop.f32.mrb[0].mxu0
      %v9312 = vadd.f32 %v7480, %v9311
      %v9313 = vpop.f32.mrb[0].mxu0
      %v9314 = vadd.f32 %v7484, %v9313
      %9315 = vmatprep.mubr.bf16.mxu0 %v7240
      %9316 = vmatmul.mubr.bf16.gmra.mrb[0].mxu0 %v7224
      %v9317 = vpop.f32.mrb[0].mxu0
      %v9318 = vadd.f32 %v7480, %v9317
      %v9319 = vpop.f32.mrb[0].mxu0
      %v9320 = vadd.f32 %v7484, %v9319
      %v9321 = vpop.f32.mrb[0].mxu0
      %v9322 = vadd.f32 %v7480, %v9321
      %v9323 = vpop.f32.mrb[0].mxu0
      %v9324 = vadd.f32 %v7484, %v9323
      %9325 = vmatprep.mubr.bf16.mxu0 %v7241
      %9326 = vmatmul.mubr.bf16.gmra.mrb[0].mxu0 %v7225
      %v9327 = vpop.f32.mrb[0].mxu0
      %v9328 = vadd.f32 %v7480, %v9327
      %v9329 = vpop.f32.mrb[0].mxu0
      %v9330 = vadd.f32 %v7484, %v9329
      %v9331 = vpop.f32.mrb[0].mxu0
      %v9332 = vadd.f32 %v7480, %v9331
      %v9333 = vpop.f32.mrb[0].mxu0
      %v9334 = vadd.f32 %v7484, %v9333
      %9335 = vmatprep.mubr.bf16.mxu0 %v7242
      %9336 = vmatmul.mubr.bf16.gmra.mrb[0].mxu0 %v7226
      %v9337 = vpop.f32.mrb[0].mxu0
      %v9338 = vadd.f32 %v7480, %v9337
      %v9339 = vpop.f32.mrb[0].mxu0
      %v9340 = vadd.f32 %v7484, %v9339
      %v9341 = vpop.f32.mrb[0].mxu0
      %v9342 = vadd.f32 %v7480, %v9341
      %v9343 = vpop.f32.mrb[0].mxu0
      %v9344 = vadd.f32 %v7484, %v9343
      %9345 = vmatprep.mubr.bf16.mxu0 %v7243
      %9346 = vmatmul.mubr.bf16.gmra.mrb[0].mxu0 %v7227
      %v9347 = vpop.f32.mrb[0].mxu0
      %v9348 = vadd.f32 %v7480, %v9347
      %v9349 = vpop.f32.mrb[0].mxu0
      %v9350 = vadd.f32 %v7484, %v9349
      %v9351 = vpop.f32.mrb[0].mxu0
      %v9352 = vadd.f32 %v7480, %v9351
      %v9353 = vpop.f32.mrb[0].mxu0
      %v9354 = vadd.f32 %v7484, %v9353
      %9355 = vmatprep.mubr.bf16.mxu0 %v7244
      %9356 = vmatmul.mubr.bf16.gmra.mrb[0].mxu0 %v7228
      %v9357 = vpop.f32.mrb[0].mxu0
      %v9358 = vadd.f32 %v7480, %v9357
      %v9359 = vpop.f32.mrb[0].mxu0
      %v9360 = vadd.f32 %v7484, %v9359
      %v9361 = vpop.f32.mrb[0].mxu0
      %v9362 = vadd.f32 %v7480, %v9361
      %v9363 = vpop.f32.mrb[0].mxu0
      %v9364 = vadd.f32 %v7484, %v9363
      %9365 = vmatprep.mubr.bf16.mxu0 %v7245
      %9366 = vmatmul.mubr.bf16.gmra.mrb[0].mxu0 %v7229
      %v9367 = vpop.f32.mrb[0].mxu0
      %v9368 = vadd.f32 %v7480, %v9367
      %v9369 = vpop.f32.mrb[0].mxu0
      %v9370 = vadd.f32 %v7484, %v9369
      %v9371 = vpop.f32.mrb[0].mxu0
      %v9372 = vadd.f32 %v7480, %v9371
      %v9373 = vpop.f32.mrb[0].mxu0
      %v9374 = vadd.f32 %v7484, %v9373
      %9375 = vmatprep.mubr.bf16.mxu0 %v7246
      %9376 = vmatmul.mubr.bf16.gmra.mrb[0].mxu0 %v7230
      %v9377 = vpop.f32.mrb[0].mxu0
      %v9378 = vadd.f32 %v7480, %v9377
      %v9379 = vpop.f32.mrb[0].mxu0
      %v9380 = vadd.f32 %v7484, %v9379
      %v9381 = vpop.f32.mrb[0].mxu0
      %v9382 = vadd.f32 %v7480, %v9381
      %v9383 = vpop.f32.mrb[0].mxu0
      %v9384 = vadd.f32 %v7484, %v9383
      %9385 = vmatprep.mubr.bf16.mxu0 %v7247
      %9386 = vmatmul.mubr.bf16.gmra.mrb[0].mxu0 %v7231
      %v9387 = vpop.f32.mrb[0].mxu0
      %v9388 = vadd.f32 %v7480, %v9387
      %v9389 = vpop.f32.mrb[0].mxu0
      %v9390 = vadd.f32 %v7484, %v9389
      %v9391 = vpop.f32.mrb[0].mxu0
      %v9392 = vadd.f32 %v7480, %v9391
      %v9393 = vpop.f32.mrb[0].mxu0
      %v9394 = vadd.f32 %v7484, %v9393
      %9395 = vmatprep.mubr.bf16.mxu0 %v7248
      %9396 = vmatmul.mubr.bf16.gmra.mrb[0].mxu0 %v7232
      %v9397 = vpop.f32.mrb[0].mxu0
      %v9398 = vadd.f32 %v7480, %v9397
      %v9399 = vpop.f32.mrb[0].mxu0
      %v9400 = vadd.f32 %v7484, %v9399
      %v9401 = vpop.f32.mrb[0].mxu0
      %v9402 = vadd.f32 %v7480, %v9401
      %v9403 = vpop.f32.mrb[0].mxu0
      %v9404 = vadd.f32 %v7484, %v9403
      %9405 = vmatprep.mubr.bf16.mxu0 %v7249
      %9406 = vmatmul.mubr.bf16.gmra.mrb[0].mxu0 %v7233
      %v9407 = vpop.f32.mrb[0].mxu0
      %v9408 = vadd.f32 %v7480, %v9407
      %v9409 = vpop.f32.mrb[0].mxu0
      %v9410 = vadd.f32 %v7484, %v9409
      %v9411 = vpop.f32.mrb[0].mxu0
      %v9412 = vadd.f32 %v7480, %v9411
      %v9413 = vpop.f32.mrb[0].mxu0
      %v9414 = vadd.f32 %v7484, %v9413
      %9415 = vmatprep.mubr.bf16.mxu0 %v7250
      %9416 = vmatmul.mubr.bf16.gmra.mrb[0].mxu0 %v7234
      %v9417 = vpop.f32.mrb[0].mxu0
      %v9418 = vadd.f32 %v7480, %v9417
      %v9419 = vpop.f32.mrb[0].mxu0
      %v9420 = vadd.f32 %v7484, %v9419
      %v9421 = vpop.f32.mrb[0].mxu0
      %v9422 = vadd.f32 %v7480, %v9421
      %v9423 = vpop.f32.mrb[0].mxu0
      %v9424 = vadd.f32 %v7484, %v9423
      %9425 = vdwg.mxu0
      %9426 = vmatprep.subr.bf16.mxu0 %v8210
      %9427 = vmatpush1.bf16.msra.mxu0 %v8209
      %9428 = vmatprep.subr.bf16.mxu0 %v8218
      %9429 = vmatpush1.bf16.msra.mxu0 %v8217
      %9430 = vmatprep.subr.bf16.mxu0 %v8226
      %9431 = vmatpush1.bf16.msra.mxu0 %v8225
      %9432 = vmatprep.subr.bf16.mxu0 %v8234
      %9433 = vmatpush1.bf16.msra.mxu0 %v8233
      %9434 = vmatprep.subr.bf16.mxu0 %v8242
      %9435 = vmatpush1.bf16.msra.mxu0 %v8241
      %9436 = vmatprep.subr.bf16.mxu0 %v8250
      %9437 = vmatpush1.bf16.msra.mxu0 %v8249
      %9438 = vmatprep.subr.bf16.mxu0 %v8258
      %9439 = vmatpush1.bf16.msra.mxu0 %v8257
      %9440 = vmatprep.subr.bf16.mxu0 %v8266
      %9441 = vmatpush1.bf16.msra.mxu0 %v8265
      %9442 = vmatprep.subr.bf16.mxu0 0
      %9443 = vmatpush1.bf16.msra.mxu0 0
      %9444 = vmatprep.subr.bf16.mxu0 0
      %9445 = vmatpush1.bf16.msra.mxu0 0
      %9446 = vmatprep.subr.bf16.mxu0 0
      %9447 = vmatpush1.bf16.msra.mxu0 0
      %9448 = vmatprep.subr.bf16.mxu0 0
      %9449 = vmatpush1.bf16.msra.mxu0 0
      %9450 = vmatprep.subr.bf16.mxu0 0
      %9451 = vmatpush1.bf16.msra.mxu0 0
      %9452 = vmatprep.subr.bf16.mxu0 0
      %9453 = vmatpush1.bf16.msra.mxu0 0
      %9454 = vmatprep.subr.bf16.mxu0 0
      %9455 = vmatpush1.bf16.msra.mxu0 0
      %9456 = vmatprep.subr.bf16.mxu0 0
      %9457 = vmatpush1.bf16.msra.mxu0 0
      %9458 = vmatprep.mubr.bf16.mxu0 0
      %9459 = vmatmul.mubr.bf16.gmra.mrb[0].mxu0 %v7251
      %v9460 = vpop.f32.mrb[0].mxu0
      %v9461 = vadd.f32 %v9268, %v9460
      %v9462 = vpop.f32.mrb[0].mxu0
      %v9463 = vadd.f32 %v9270, %v9462
      %v9464 = vpop.f32.mrb[0].mxu0
      %v9465 = vadd.f32 %v9272, %v9464
      %v9466 = vpop.f32.mrb[0].mxu0
      %v9467 = vadd.f32 %v9274, %v9466
      %9468 = vmatprep.mubr.bf16.mxu0 0
      %9469 = vmatmul.mubr.bf16.gmra.mrb[0].mxu0 %v7252
      %v9470 = vpop.f32.mrb[0].mxu0
      %v9471 = vadd.f32 %v9278, %v9470
      %v9472 = vpop.f32.mrb[0].mxu0
      %v9473 = vadd.f32 %v9280, %v9472
      %v9474 = vpop.f32.mrb[0].mxu0
      %v9475 = vadd.f32 %v9282, %v9474
      %v9476 = vpop.f32.mrb[0].mxu0
      %v9477 = vadd.f32 %v9284, %v9476
      %9478 = vmatprep.mubr.bf16.mxu0 0
      %9479 = vmatmul.mubr.bf16.gmra.mrb[0].mxu0 %v7253
      %v9480 = vpop.f32.mrb[0].mxu0
      %v9481 = vadd.f32 %v9288, %v9480
      %v9482 = vpop.f32.mrb[0].mxu0
      %v9483 = vadd.f32 %v9290, %v9482
      %v9484 = vpop.f32.mrb[0].mxu0
      %v9485 = vadd.f32 %v9292, %v9484
      %v9486 = vpop.f32.mrb[0].mxu0
      %v9487 = vadd.f32 %v9294, %v9486
      %9488 = vmatprep.mubr.bf16.mxu0 0
      %9489 = vmatmul.mubr.bf16.gmra.mrb[0].mxu0 %v7254
      %v9490 = vpop.f32.mrb[0].mxu0
      %v9491 = vadd.f32 %v9298, %v9490
      %v9492 = vpop.f32.mrb[0].mxu0
      %v9493 = vadd.f32 %v9300, %v9492
      %v9494 = vpop.f32.mrb[0].mxu0
      %v9495 = vadd.f32 %v9302, %v9494
      %v9496 = vpop.f32.mrb[0].mxu0
      %v9497 = vadd.f32 %v9304, %v9496
      %9498 = vmatprep.mubr.bf16.mxu0 0
      %9499 = vmatmul.mubr.bf16.gmra.mrb[0].mxu0 %v7255
      %v9500 = vpop.f32.mrb[0].mxu0
      %v9501 = vadd.f32 %v9308, %v9500
      %v9502 = vpop.f32.mrb[0].mxu0
      %v9503 = vadd.f32 %v9310, %v9502
      %v9504 = vpop.f32.mrb[0].mxu0
      %v9505 = vadd.f32 %v9312, %v9504
      %v9506 = vpop.f32.mrb[0].mxu0
      %v9507 = vadd.f32 %v9314, %v9506
      %9508 = vmatprep.mubr.bf16.mxu0 0
      %9509 = vmatmul.mubr.bf16.gmra.mrb[0].mxu0 %v7256
      %v9510 = vpop.f32.mrb[0].mxu0
      %v9511 = vadd.f32 %v9318, %v9510
      %v9512 = vpop.f32.mrb[0].mxu0
      %v9513 = vadd.f32 %v9320, %v9512
      %v9514 = vpop.f32.mrb[0].mxu0
      %v9515 = vadd.f32 %v9322, %v9514
      %v9516 = vpop.f32.mrb[0].mxu0
      %v9517 = vadd.f32 %v9324, %v9516
      %9518 = vmatprep.mubr.bf16.mxu0 0
      %9519 = vmatmul.mubr.bf16.gmra.mrb[0].mxu0 %v7257
      %v9520 = vpop.f32.mrb[0].mxu0
      %v9521 = vadd.f32 %v9328, %v9520
      %v9522 = vpop.f32.mrb[0].mxu0
      %v9523 = vadd.f32 %v9330, %v9522
      %v9524 = vpop.f32.mrb[0].mxu0
      %v9525 = vadd.f32 %v9332, %v9524
      %v9526 = vpop.f32.mrb[0].mxu0
      %v9527 = vadd.f32 %v9334, %v9526
      %9528 = vmatprep.mubr.bf16.mxu0 0
      %9529 = vmatmul.mubr.bf16.gmra.mrb[0].mxu0 %v7258
      %v9530 = vpop.f32.mrb[0].mxu0
      %v9531 = vadd.f32 %v9338, %v9530
      %v9532 = vpop.f32.mrb[0].mxu0
      %v9533 = vadd.f32 %v9340, %v9532
      %v9534 = vpop.f32.mrb[0].mxu0
      %v9535 = vadd.f32 %v9342, %v9534
      %v9536 = vpop.f32.mrb[0].mxu0
      %v9537 = vadd.f32 %v9344, %v9536
      %9538 = vmatprep.mubr.bf16.mxu0 0
      %9539 = vmatmul.mubr.bf16.gmra.mrb[0].mxu0 %v7259
      %v9540 = vpop.f32.mrb[0].mxu0
      %v9541 = vadd.f32 %v9348, %v9540
      %v9542 = vpop.f32.mrb[0].mxu0
      %v9543 = vadd.f32 %v9350, %v9542
      %v9544 = vpop.f32.mrb[0].mxu0
      %v9545 = vadd.f32 %v9352, %v9544
      %v9546 = vpop.f32.mrb[0].mxu0
      %v9547 = vadd.f32 %v9354, %v9546
      %9548 = vmatprep.mubr.bf16.mxu0 0
      %9549 = vmatmul.mubr.bf16.gmra.mrb[0].mxu0 %v7260
      %v9550 = vpop.f32.mrb[0].mxu0
      %v9551 = vadd.f32 %v9358, %v9550
      %v9552 = vpop.f32.mrb[0].mxu0
      %v9553 = vadd.f32 %v9360, %v9552
      %v9554 = vpop.f32.mrb[0].mxu0
      %v9555 = vadd.f32 %v9362, %v9554
      %v9556 = vpop.f32.mrb[0].mxu0
      %v9557 = vadd.f32 %v9364, %v9556
      %9558 = vmatprep.mubr.bf16.mxu0 0
      %9559 = vmatmul.mubr.bf16.gmra.mrb[0].mxu0 %v7261
      %v9560 = vpop.f32.mrb[0].mxu0
      %v9561 = vadd.f32 %v9368, %v9560
      %v9562 = vpop.f32.mrb[0].mxu0
      %v9563 = vadd.f32 %v9370, %v9562
      %v9564 = vpop.f32.mrb[0].mxu0
      %v9565 = vadd.f32 %v9372, %v9564
      %v9566 = vpop.f32.mrb[0].mxu0
      %v9567 = vadd.f32 %v9374, %v9566
      %9568 = vmatprep.mubr.bf16.mxu0 0
      %9569 = vmatmul.mubr.bf16.gmra.mrb[0].mxu0 %v7262
      %v9570 = vpop.f32.mrb[0].mxu0
      %v9571 = vadd.f32 %v9378, %v9570
      %v9572 = vpop.f32.mrb[0].mxu0
      %v9573 = vadd.f32 %v9380, %v9572
      %v9574 = vpop.f32.mrb[0].mxu0
      %v9575 = vadd.f32 %v9382, %v9574
      %v9576 = vpop.f32.mrb[0].mxu0
      %v9577 = vadd.f32 %v9384, %v9576
      %9578 = vmatprep.mubr.bf16.mxu0 0
      %9579 = vmatmul.mubr.bf16.gmra.mrb[0].mxu0 %v7263
      %v9580 = vpop.f32.mrb[0].mxu0
      %v9581 = vadd.f32 %v9388, %v9580
      %v9582 = vpop.f32.mrb[0].mxu0
      %v9583 = vadd.f32 %v9390, %v9582
      %v9584 = vpop.f32.mrb[0].mxu0
      %v9585 = vadd.f32 %v9392, %v9584
      %v9586 = vpop.f32.mrb[0].mxu0
      %v9587 = vadd.f32 %v9394, %v9586
      %9588 = vmatprep.mubr.bf16.mxu0 0
      %9589 = vmatmul.mubr.bf16.gmra.mrb[0].mxu0 %v7264
      %v9590 = vpop.f32.mrb[0].mxu0
      %v9591 = vadd.f32 %v9398, %v9590
      %v9592 = vpop.f32.mrb[0].mxu0
      %v9593 = vadd.f32 %v9400, %v9592
      %v9594 = vpop.f32.mrb[0].mxu0
      %v9595 = vadd.f32 %v9402, %v9594
      %v9596 = vpop.f32.mrb[0].mxu0
      %v9597 = vadd.f32 %v9404, %v9596
      %9598 = vmatprep.mubr.bf16.mxu0 0
      %9599 = vmatmul.mubr.bf16.gmra.mrb[0].mxu0 %v7265
      %v9600 = vpop.f32.mrb[0].mxu0
      %v9601 = vadd.f32 %v9408, %v9600
      %v9602 = vpop.f32.mrb[0].mxu0
      %v9603 = vadd.f32 %v9410, %v9602
      %v9604 = vpop.f32.mrb[0].mxu0
      %v9605 = vadd.f32 %v9412, %v9604
      %v9606 = vpop.f32.mrb[0].mxu0
      %v9607 = vadd.f32 %v9414, %v9606
      %9608 = vmatprep.mubr.bf16.mxu0 0
      %9609 = vmatmul.mubr.bf16.gmra.mrb[0].mxu0 %v7266
      %v9610 = vpop.f32.mrb[0].mxu0
      %v9611 = vadd.f32 %v9418, %v9610
      %v9612 = vpop.f32.mrb[0].mxu0
      %v9613 = vadd.f32 %v9420, %v9612
      %v9614 = vpop.f32.mrb[0].mxu0
      %v9615 = vadd.f32 %v9422, %v9614
      %v9616 = vpop.f32.mrb[0].mxu0
      %v9617 = vadd.f32 %v9424, %v9616
      %9618 = vdwg.mxu0
      %9619 = vmatprep.subr.bf16.mxu0 %v8084
      %9620 = vmatpush1.bf16.msra.mxu0 %v8083
      %9621 = vmatprep.subr.bf16.mxu0 %v8092
      %9622 = vmatpush1.bf16.msra.mxu0 %v8091
      %9623 = vmatprep.subr.bf16.mxu0 %v8100
      %9624 = vmatpush1.bf16.msra.mxu0 %v8099
      %9625 = vmatprep.subr.bf16.mxu0 %v8108
      %9626 = vmatpush1.bf16.msra.mxu0 %v8107
      %9627 = vmatprep.subr.bf16.mxu0 %v8116
      %9628 = vmatpush1.bf16.msra.mxu0 %v8115
      %9629 = vmatprep.subr.bf16.mxu0 %v8124
      %9630 = vmatpush1.bf16.msra.mxu0 %v8123
      %9631 = vmatprep.subr.bf16.mxu0 %v8132
      %9632 = vmatpush1.bf16.msra.mxu0 %v8131
      %9633 = vmatprep.subr.bf16.mxu0 %v8140
      %9634 = vmatpush1.bf16.msra.mxu0 %v8139
      %9635 = vmatprep.subr.bf16.mxu0 %v8148
      %9636 = vmatpush1.bf16.msra.mxu0 %v8147
      %9637 = vmatprep.subr.bf16.mxu0 %v8156
      %9638 = vmatpush1.bf16.msra.mxu0 %v8155
      %9639 = vmatprep.subr.bf16.mxu0 %v8164
      %9640 = vmatpush1.bf16.msra.mxu0 %v8163
      %9641 = vmatprep.subr.bf16.mxu0 %v8172
      %9642 = vmatpush1.bf16.msra.mxu0 %v8171
      %9643 = vmatprep.subr.bf16.mxu0 %v8180
      %9644 = vmatpush1.bf16.msra.mxu0 %v8179
      %9645 = vmatprep.subr.bf16.mxu0 %v8188
      %9646 = vmatpush1.bf16.msra.mxu0 %v8187
      %9647 = vmatprep.subr.bf16.mxu0 %v8196
      %9648 = vmatpush1.bf16.msra.mxu0 %v8195
      %9649 = vmatprep.subr.bf16.mxu0 %v8204
      %9650 = vmatpush1.bf16.msra.mxu0 %v8203
      %9651 = vmatprep.mubr.bf16.mxu0 %v7235
      %9652 = vmatmul.mubr.bf16.gmra.mrb[0].mxu0 %v7219
      %v9653 = vpop.f32.mrb[0].mxu0
      %v9654 = vadd.f32 %v7488, %v9653
      %v9655 = vpop.f32.mrb[0].mxu0
      %v9656 = vadd.f32 %v7492, %v9655
      %v9657 = vpop.f32.mrb[0].mxu0
      %v9658 = vadd.f32 %v7488, %v9657
      %v9659 = vpop.f32.mrb[0].mxu0
      %v9660 = vadd.f32 %v7492, %v9659
      %9661 = vmatprep.mubr.bf16.mxu0 %v7236
      %9662 = vmatmul.mubr.bf16.gmra.mrb[0].mxu0 %v7220
      %v9663 = vpop.f32.mrb[0].mxu0
      %v9664 = vadd.f32 %v7488, %v9663
      %v9665 = vpop.f32.mrb[0].mxu0
      %v9666 = vadd.f32 %v7492, %v9665
      %v9667 = vpop.f32.mrb[0].mxu0
      %v9668 = vadd.f32 %v7488, %v9667
      %v9669 = vpop.f32.mrb[0].mxu0
      %v9670 = vadd.f32 %v7492, %v9669
      %9671 = vmatprep.mubr.bf16.mxu0 %v7237
      %9672 = vmatmul.mubr.bf16.gmra.mrb[0].mxu0 %v7221
      %v9673 = vpop.f32.mrb[0].mxu0
      %v9674 = vadd.f32 %v7488, %v9673
      %v9675 = vpop.f32.mrb[0].mxu0
      %v9676 = vadd.f32 %v7492, %v9675
      %v9677 = vpop.f32.mrb[0].mxu0
      %v9678 = vadd.f32 %v7488, %v9677
      %v9679 = vpop.f32.mrb[0].mxu0
      %v9680 = vadd.f32 %v7492, %v9679
      %9681 = vmatprep.mubr.bf16.mxu0 %v7238
      %9682 = vmatmul.mubr.bf16.gmra.mrb[0].mxu0 %v7222
      %v9683 = vpop.f32.mrb[0].mxu0
      %v9684 = vadd.f32 %v7488, %v9683
      %v9685 = vpop.f32.mrb[0].mxu0
      %v9686 = vadd.f32 %v7492, %v9685
      %v9687 = vpop.f32.mrb[0].mxu0
      %v9688 = vadd.f32 %v7488, %v9687
      %v9689 = vpop.f32.mrb[0].mxu0
      %v9690 = vadd.f32 %v7492, %v9689
      %9691 = vmatprep.mubr.bf16.mxu0 %v7239
      %9692 = vmatmul.mubr.bf16.gmra.mrb[0].mxu0 %v7223
      %v9693 = vpop.f32.mrb[0].mxu0
      %v9694 = vadd.f32 %v7488, %v9693
      %v9695 = vpop.f32.mrb[0].mxu0
      %v9696 = vadd.f32 %v7492, %v9695
      %v9697 = vpop.f32.mrb[0].mxu0
      %v9698 = vadd.f32 %v7488, %v9697
      %v9699 = vpop.f32.mrb[0].mxu0
      %v9700 = vadd.f32 %v7492, %v9699
      %9701 = vmatprep.mubr.bf16.mxu0 %v7240
      %9702 = vmatmul.mubr.bf16.gmra.mrb[0].mxu0 %v7224
      %v9703 = vpop.f32.mrb[0].mxu0
      %v9704 = vadd.f32 %v7488, %v9703
      %v9705 = vpop.f32.mrb[0].mxu0
      %v9706 = vadd.f32 %v7492, %v9705
      %v9707 = vpop.f32.mrb[0].mxu0
      %v9708 = vadd.f32 %v7488, %v9707
      %v9709 = vpop.f32.mrb[0].mxu0
      %v9710 = vadd.f32 %v7492, %v9709
      %9711 = vmatprep.mubr.bf16.mxu0 %v7241
      %9712 = vmatmul.mubr.bf16.gmra.mrb[0].mxu0 %v7225
      %v9713 = vpop.f32.mrb[0].mxu0
      %v9714 = vadd.f32 %v7488, %v9713
      %v9715 = vpop.f32.mrb[0].mxu0
      %v9716 = vadd.f32 %v7492, %v9715
      %v9717 = vpop.f32.mrb[0].mxu0
      %v9718 = vadd.f32 %v7488, %v9717
      %v9719 = vpop.f32.mrb[0].mxu0
      %v9720 = vadd.f32 %v7492, %v9719
      %9721 = vmatprep.mubr.bf16.mxu0 %v7242
      %9722 = vmatmul.mubr.bf16.gmra.mrb[0].mxu0 %v7226
      %v9723 = vpop.f32.mrb[0].mxu0
      %v9724 = vadd.f32 %v7488, %v9723
      %v9725 = vpop.f32.mrb[0].mxu0
      %v9726 = vadd.f32 %v7492, %v9725
      %v9727 = vpop.f32.mrb[0].mxu0
      %v9728 = vadd.f32 %v7488, %v9727
      %v9729 = vpop.f32.mrb[0].mxu0
      %v9730 = vadd.f32 %v7492, %v9729
      %9731 = vmatprep.mubr.bf16.mxu0 %v7243
      %9732 = vmatmul.mubr.bf16.gmra.mrb[0].mxu0 %v7227
      %v9733 = vpop.f32.mrb[0].mxu0
      %v9734 = vadd.f32 %v7488, %v9733
      %v9735 = vpop.f32.mrb[0].mxu0
      %v9736 = vadd.f32 %v7492, %v9735
      %v9737 = vpop.f32.mrb[0].mxu0
      %v9738 = vadd.f32 %v7488, %v9737
      %v9739 = vpop.f32.mrb[0].mxu0
      %v9740 = vadd.f32 %v7492, %v9739
      %9741 = vmatprep.mubr.bf16.mxu0 %v7244
      %9742 = vmatmul.mubr.bf16.gmra.mrb[0].mxu0 %v7228
      %v9743 = vpop.f32.mrb[0].mxu0
      %v9744 = vadd.f32 %v7488, %v9743
      %v9745 = vpop.f32.mrb[0].mxu0
      %v9746 = vadd.f32 %v7492, %v9745
      %v9747 = vpop.f32.mrb[0].mxu0
      %v9748 = vadd.f32 %v7488, %v9747
      %v9749 = vpop.f32.mrb[0].mxu0
      %v9750 = vadd.f32 %v7492, %v9749
      %9751 = vmatprep.mubr.bf16.mxu0 %v7245
      %9752 = vmatmul.mubr.bf16.gmra.mrb[0].mxu0 %v7229
      %v9753 = vpop.f32.mrb[0].mxu0
      %v9754 = vadd.f32 %v7488, %v9753
      %v9755 = vpop.f32.mrb[0].mxu0
      %v9756 = vadd.f32 %v7492, %v9755
      %v9757 = vpop.f32.mrb[0].mxu0
      %v9758 = vadd.f32 %v7488, %v9757
      %v9759 = vpop.f32.mrb[0].mxu0
      %v9760 = vadd.f32 %v7492, %v9759
      %9761 = vmatprep.mubr.bf16.mxu0 %v7246
      %9762 = vmatmul.mubr.bf16.gmra.mrb[0].mxu0 %v7230
      %v9763 = vpop.f32.mrb[0].mxu0
      %v9764 = vadd.f32 %v7488, %v9763
      %v9765 = vpop.f32.mrb[0].mxu0
      %v9766 = vadd.f32 %v7492, %v9765
      %v9767 = vpop.f32.mrb[0].mxu0
      %v9768 = vadd.f32 %v7488, %v9767
      %v9769 = vpop.f32.mrb[0].mxu0
      %v9770 = vadd.f32 %v7492, %v9769
      %9771 = vmatprep.mubr.bf16.mxu0 %v7247
      %9772 = vmatmul.mubr.bf16.gmra.mrb[0].mxu0 %v7231
      %v9773 = vpop.f32.mrb[0].mxu0
      %v9774 = vadd.f32 %v7488, %v9773
      %v9775 = vpop.f32.mrb[0].mxu0
      %v9776 = vadd.f32 %v7492, %v9775
      %v9777 = vpop.f32.mrb[0].mxu0
      %v9778 = vadd.f32 %v7488, %v9777
      %v9779 = vpop.f32.mrb[0].mxu0
      %v9780 = vadd.f32 %v7492, %v9779
      %9781 = vmatprep.mubr.bf16.mxu0 %v7248
      %9782 = vmatmul.mubr.bf16.gmra.mrb[0].mxu0 %v7232
      %v9783 = vpop.f32.mrb[0].mxu0
      %v9784 = vadd.f32 %v7488, %v9783
      %v9785 = vpop.f32.mrb[0].mxu0
      %v9786 = vadd.f32 %v7492, %v9785
      %v9787 = vpop.f32.mrb[0].mxu0
      %v9788 = vadd.f32 %v7488, %v9787
      %v9789 = vpop.f32.mrb[0].mxu0
      %v9790 = vadd.f32 %v7492, %v9789
      %9791 = vmatprep.mubr.bf16.mxu0 %v7249
      %9792 = vmatmul.mubr.bf16.gmra.mrb[0].mxu0 %v7233
      %v9793 = vpop.f32.mrb[0].mxu0
      %v9794 = vadd.f32 %v7488, %v9793
      %v9795 = vpop.f32.mrb[0].mxu0
      %v9796 = vadd.f32 %v7492, %v9795
      %v9797 = vpop.f32.mrb[0].mxu0
      %v9798 = vadd.f32 %v7488, %v9797
      %v9799 = vpop.f32.mrb[0].mxu0
      %v9800 = vadd.f32 %v7492, %v9799
      %9801 = vmatprep.mubr.bf16.mxu0 %v7250
      %9802 = vmatmul.mubr.bf16.gmra.mrb[0].mxu0 %v7234
      %v9803 = vpop.f32.mrb[0].mxu0
      %v9804 = vadd.f32 %v7488, %v9803
      %v9805 = vpop.f32.mrb[0].mxu0
      %v9806 = vadd.f32 %v7492, %v9805
      %v9807 = vpop.f32.mrb[0].mxu0
      %v9808 = vadd.f32 %v7488, %v9807
      %v9809 = vpop.f32.mrb[0].mxu0
      %v9810 = vadd.f32 %v7492, %v9809
      %9811 = vdwg.mxu0
      %9812 = vmatprep.subr.bf16.mxu0 %v8212
      %9813 = vmatpush1.bf16.msra.mxu0 %v8211
      %9814 = vmatprep.subr.bf16.mxu0 %v8220
      %9815 = vmatpush1.bf16.msra.mxu0 %v8219
      %9816 = vmatprep.subr.bf16.mxu0 %v8228
      %9817 = vmatpush1.bf16.msra.mxu0 %v8227
      %9818 = vmatprep.subr.bf16.mxu0 %v8236
      %9819 = vmatpush1.bf16.msra.mxu0 %v8235
      %9820 = vmatprep.subr.bf16.mxu0 %v8244
      %9821 = vmatpush1.bf16.msra.mxu0 %v8243
      %9822 = vmatprep.subr.bf16.mxu0 %v8252
      %9823 = vmatpush1.bf16.msra.mxu0 %v8251
      %9824 = vmatprep.subr.bf16.mxu0 %v8260
      %9825 = vmatpush1.bf16.msra.mxu0 %v8259
      %9826 = vmatprep.subr.bf16.mxu0 %v8268
      %9827 = vmatpush1.bf16.msra.mxu0 %v8267
      %9828 = vmatprep.subr.bf16.mxu0 0
      %9829 = vmatpush1.bf16.msra.mxu0 0
      %9830 = vmatprep.subr.bf16.mxu0 0
      %9831 = vmatpush1.bf16.msra.mxu0 0
      %9832 = vmatprep.subr.bf16.mxu0 0
      %9833 = vmatpush1.bf16.msra.mxu0 0
      %9834 = vmatprep.subr.bf16.mxu0 0
      %9835 = vmatpush1.bf16.msra.mxu0 0
      %9836 = vmatprep.subr.bf16.mxu0 0
      %9837 = vmatpush1.bf16.msra.mxu0 0
      %9838 = vmatprep.subr.bf16.mxu0 0
      %9839 = vmatpush1.bf16.msra.mxu0 0
      %9840 = vmatprep.subr.bf16.mxu0 0
      %9841 = vmatpush1.bf16.msra.mxu0 0
      %9842 = vmatprep.subr.bf16.mxu0 0
      %9843 = vmatpush1.bf16.msra.mxu0 0
      %9844 = vmatprep.mubr.bf16.mxu0 0
      %9845 = vmatmul.mubr.bf16.gmra.mrb[0].mxu0 %v7251
      %v9846 = vpop.f32.mrb[0].mxu0
      %v9847 = vadd.f32 %v9654, %v9846
      %v9848 = vpop.f32.mrb[0].mxu0
      %v9849 = vadd.f32 %v9656, %v9848
      %v9850 = vpop.f32.mrb[0].mxu0
      %v9851 = vadd.f32 %v9658, %v9850
      %v9852 = vpop.f32.mrb[0].mxu0
      %v9853 = vadd.f32 %v9660, %v9852
      %9854 = vmatprep.mubr.bf16.mxu0 0
      %9855 = vmatmul.mubr.bf16.gmra.mrb[0].mxu0 %v7252
      %v9856 = vpop.f32.mrb[0].mxu0
      %v9857 = vadd.f32 %v9664, %v9856
      %v9858 = vpop.f32.mrb[0].mxu0
      %v9859 = vadd.f32 %v9666, %v9858
      %v9860 = vpop.f32.mrb[0].mxu0
      %v9861 = vadd.f32 %v9668, %v9860
      %v9862 = vpop.f32.mrb[0].mxu0
      %v9863 = vadd.f32 %v9670, %v9862
      %9864 = vmatprep.mubr.bf16.mxu0 0
      %9865 = vmatmul.mubr.bf16.gmra.mrb[0].mxu0 %v7253
      %v9866 = vpop.f32.mrb[0].mxu0
      %v9867 = vadd.f32 %v9674, %v9866
      %v9868 = vpop.f32.mrb[0].mxu0
      %v9869 = vadd.f32 %v9676, %v9868
      %v9870 = vpop.f32.mrb[0].mxu0
      %v9871 = vadd.f32 %v9678, %v9870
      %v9872 = vpop.f32.mrb[0].mxu0
      %v9873 = vadd.f32 %v9680, %v9872
      %9874 = vmatprep.mubr.bf16.mxu0 0
      %9875 = vmatmul.mubr.bf16.gmra.mrb[0].mxu0 %v7254
      %v9876 = vpop.f32.mrb[0].mxu0
      %v9877 = vadd.f32 %v9684, %v9876
      %v9878 = vpop.f32.mrb[0].mxu0
      %v9879 = vadd.f32 %v9686, %v9878
      %v9880 = vpop.f32.mrb[0].mxu0
      %v9881 = vadd.f32 %v9688, %v9880
      %v9882 = vpop.f32.mrb[0].mxu0
      %v9883 = vadd.f32 %v9690, %v9882
      %9884 = vmatprep.mubr.bf16.mxu0 0
      %9885 = vmatmul.mubr.bf16.gmra.mrb[0].mxu0 %v7255
      %v9886 = vpop.f32.mrb[0].mxu0
      %v9887 = vadd.f32 %v9694, %v9886
      %v9888 = vpop.f32.mrb[0].mxu0
      %v9889 = vadd.f32 %v9696, %v9888
      %v9890 = vpop.f32.mrb[0].mxu0
      %v9891 = vadd.f32 %v9698, %v9890
      %v9892 = vpop.f32.mrb[0].mxu0
      %v9893 = vadd.f32 %v9700, %v9892
      %9894 = vmatprep.mubr.bf16.mxu0 0
      %9895 = vmatmul.mubr.bf16.gmra.mrb[0].mxu0 %v7256
      %v9896 = vpop.f32.mrb[0].mxu0
      %v9897 = vadd.f32 %v9704, %v9896
      %v9898 = vpop.f32.mrb[0].mxu0
      %v9899 = vadd.f32 %v9706, %v9898
      %v9900 = vpop.f32.mrb[0].mxu0
      %v9901 = vadd.f32 %v9708, %v9900
      %v9902 = vpop.f32.mrb[0].mxu0
      %v9903 = vadd.f32 %v9710, %v9902
      %9904 = vmatprep.mubr.bf16.mxu0 0
      %9905 = vmatmul.mubr.bf16.gmra.mrb[0].mxu0 %v7257
      %v9906 = vpop.f32.mrb[0].mxu0
      %v9907 = vadd.f32 %v9714, %v9906
      %v9908 = vpop.f32.mrb[0].mxu0
      %v9909 = vadd.f32 %v9716, %v9908
      %v9910 = vpop.f32.mrb[0].mxu0
      %v9911 = vadd.f32 %v9718, %v9910
      %v9912 = vpop.f32.mrb[0].mxu0
      %v9913 = vadd.f32 %v9720, %v9912
      %9914 = vmatprep.mubr.bf16.mxu0 0
      %9915 = vmatmul.mubr.bf16.gmra.mrb[0].mxu0 %v7258
      %v9916 = vpop.f32.mrb[0].mxu0
      %v9917 = vadd.f32 %v9724, %v9916
      %v9918 = vpop.f32.mrb[0].mxu0
      %v9919 = vadd.f32 %v9726, %v9918
      %v9920 = vpop.f32.mrb[0].mxu0
      %v9921 = vadd.f32 %v9728, %v9920
      %v9922 = vpop.f32.mrb[0].mxu0
      %v9923 = vadd.f32 %v9730, %v9922
      %9924 = vmatprep.mubr.bf16.mxu0 0
      %9925 = vmatmul.mubr.bf16.gmra.mrb[0].mxu0 %v7259
      %v9926 = vpop.f32.mrb[0].mxu0
      %v9927 = vadd.f32 %v9734, %v9926
      %v9928 = vpop.f32.mrb[0].mxu0
      %v9929 = vadd.f32 %v9736, %v9928
      %v9930 = vpop.f32.mrb[0].mxu0
      %v9931 = vadd.f32 %v9738, %v9930
      %v9932 = vpop.f32.mrb[0].mxu0
      %v9933 = vadd.f32 %v9740, %v9932
      %9934 = vmatprep.mubr.bf16.mxu0 0
      %9935 = vmatmul.mubr.bf16.gmra.mrb[0].mxu0 %v7260
      %v9936 = vpop.f32.mrb[0].mxu0
      %v9937 = vadd.f32 %v9744, %v9936
      %v9938 = vpop.f32.mrb[0].mxu0
      %v9939 = vadd.f32 %v9746, %v9938
      %v9940 = vpop.f32.mrb[0].mxu0
      %v9941 = vadd.f32 %v9748, %v9940
      %v9942 = vpop.f32.mrb[0].mxu0
      %v9943 = vadd.f32 %v9750, %v9942
      %9944 = vmatprep.mubr.bf16.mxu0 0
      %9945 = vmatmul.mubr.bf16.gmra.mrb[0].mxu0 %v7261
      %v9946 = vpop.f32.mrb[0].mxu0
      %v9947 = vadd.f32 %v9754, %v9946
      %v9948 = vpop.f32.mrb[0].mxu0
      %v9949 = vadd.f32 %v9756, %v9948
      %v9950 = vpop.f32.mrb[0].mxu0
      %v9951 = vadd.f32 %v9758, %v9950
      %v9952 = vpop.f32.mrb[0].mxu0
      %v9953 = vadd.f32 %v9760, %v9952
      %9954 = vmatprep.mubr.bf16.mxu0 0
      %9955 = vmatmul.mubr.bf16.gmra.mrb[0].mxu0 %v7262
      %v9956 = vpop.f32.mrb[0].mxu0
      %v9957 = vadd.f32 %v9764, %v9956
      %v9958 = vpop.f32.mrb[0].mxu0
      %v9959 = vadd.f32 %v9766, %v9958
      %v9960 = vpop.f32.mrb[0].mxu0
      %v9961 = vadd.f32 %v9768, %v9960
      %v9962 = vpop.f32.mrb[0].mxu0
      %v9963 = vadd.f32 %v9770, %v9962
      %9964 = vmatprep.mubr.bf16.mxu0 0
      %9965 = vmatmul.mubr.bf16.gmra.mrb[0].mxu0 %v7263
      %v9966 = vpop.f32.mrb[0].mxu0
      %v9967 = vadd.f32 %v9774, %v9966
      %v9968 = vpop.f32.mrb[0].mxu0
      %v9969 = vadd.f32 %v9776, %v9968
      %v9970 = vpop.f32.mrb[0].mxu0
      %v9971 = vadd.f32 %v9778, %v9970
      %v9972 = vpop.f32.mrb[0].mxu0
      %v9973 = vadd.f32 %v9780, %v9972
      %9974 = vmatprep.mubr.bf16.mxu0 0
      %9975 = vmatmul.mubr.bf16.gmra.mrb[0].mxu0 %v7264
      %v9976 = vpop.f32.mrb[0].mxu0
      %v9977 = vadd.f32 %v9784, %v9976
      %v9978 = vpop.f32.mrb[0].mxu0
      %v9979 = vadd.f32 %v9786, %v9978
      %v9980 = vpop.f32.mrb[0].mxu0
      %v9981 = vadd.f32 %v9788, %v9980
      %v9982 = vpop.f32.mrb[0].mxu0
      %v9983 = vadd.f32 %v9790, %v9982
      %9984 = vmatprep.mubr.bf16.mxu0 0
      %9985 = vmatmul.mubr.bf16.gmra.mrb[0].mxu0 %v7265
      %v9986 = vpop.f32.mrb[0].mxu0
      %v9987 = vadd.f32 %v9794, %v9986
      %v9988 = vpop.f32.mrb[0].mxu0
      %v9989 = vadd.f32 %v9796, %v9988
      %v9990 = vpop.f32.mrb[0].mxu0
      %v9991 = vadd.f32 %v9798, %v9990
      %v9992 = vpop.f32.mrb[0].mxu0
      %v9993 = vadd.f32 %v9800, %v9992
      %9994 = vmatprep.mubr.bf16.mxu0 0
      %9995 = vmatmul.mubr.bf16.gmra.mrb[0].mxu0 %v7266
      %v9996 = vpop.f32.mrb[0].mxu0
      %v9997 = vadd.f32 %v9804, %v9996
      %v9998 = vpop.f32.mrb[0].mxu0
      %v9999 = vadd.f32 %v9806, %v9998
      %v10000 = vpop.f32.mrb[0].mxu0
      %v10001 = vadd.f32 %v9808, %v10000
      %v10002 = vpop.f32.mrb[0].mxu0
      %v10003 = vadd.f32 %v9810, %v10002
      %10004 = vdwg.mxu0
      %v10005 = vmax.f32 %v8689, 0.0
      %v10006 = vmax.f32 %v8691, 0.0
      %v10007 = vmax.f32 %v9075, 0.0
      %v10008 = vmax.f32 %v9077, 0.0
      %v10009 = vmax.f32 %v9461, 0.0
      %v10010 = vmax.f32 %v9463, 0.0
      %v10011 = vmax.f32 %v9847, 0.0
      %v10012 = vmax.f32 %v9849, 0.0
      %v10013 = vmax.f32 %v8693, 0.0
      %v10014 = vmax.f32 %v8695, 0.0
      %v10015 = vmax.f32 %v9079, 0.0
      %v10016 = vmax.f32 %v9081, 0.0
      %v10017 = vmax.f32 %v9465, 0.0
      %v10018 = vmax.f32 %v9467, 0.0
      %v10019 = vmax.f32 %v9851, 0.0
      %v10020 = vmax.f32 %v9853, 0.0
      %v10021 = vmax.f32 %v8699, 0.0
      %v10022 = vmax.f32 %v8701, 0.0
      %v10023 = vmax.f32 %v9085, 0.0
      %v10024 = vmax.f32 %v9087, 0.0
      %v10025 = vmax.f32 %v9471, 0.0
      %v10026 = vmax.f32 %v9473, 0.0
      %v10027 = vmax.f32 %v9857, 0.0
      %v10028 = vmax.f32 %v9859, 0.0
      %v10029 = vmax.f32 %v8703, 0.0
      %v10030 = vmax.f32 %v8705, 0.0
      %v10031 = vmax.f32 %v9089, 0.0
      %v10032 = vmax.f32 %v9091, 0.0
      %v10033 = vmax.f32 %v9475, 0.0
      %v10034 = vmax.f32 %v9477, 0.0
      %v10035 = vmax.f32 %v9861, 0.0
      %v10036 = vmax.f32 %v9863, 0.0
      %v10037 = vmax.f32 %v8709, 0.0
      %v10038 = vmax.f32 %v8711, 0.0
      %v10039 = vmax.f32 %v9095, 0.0
      %v10040 = vmax.f32 %v9097, 0.0
      %v10041 = vmax.f32 %v9481, 0.0
      %v10042 = vmax.f32 %v9483, 0.0
      %v10043 = vmax.f32 %v9867, 0.0
      %v10044 = vmax.f32 %v9869, 0.0
      %v10045 = vmax.f32 %v8713, 0.0
      %v10046 = vmax.f32 %v8715, 0.0
      %v10047 = vmax.f32 %v9099, 0.0
      %v10048 = vmax.f32 %v9101, 0.0
      %v10049 = vmax.f32 %v9485, 0.0
      %v10050 = vmax.f32 %v9487, 0.0
      %v10051 = vmax.f32 %v9871, 0.0
      %v10052 = vmax.f32 %v9873, 0.0
      %v10053 = vmax.f32 %v8719, 0.0
      %v10054 = vmax.f32 %v8721, 0.0
      %v10055 = vmax.f32 %v9105, 0.0
      %v10056 = vmax.f32 %v9107, 0.0
      %v10057 = vmax.f32 %v9491, 0.0
      %v10058 = vmax.f32 %v9493, 0.0
      %v10059 = vmax.f32 %v9877, 0.0
      %v10060 = vmax.f32 %v9879, 0.0
      %v10061 = vmax.f32 %v8723, 0.0
      %v10062 = vmax.f32 %v8725, 0.0
      %v10063 = vmax.f32 %v9109, 0.0
      %v10064 = vmax.f32 %v9111, 0.0
      %v10065 = vmax.f32 %v9495, 0.0
      %v10066 = vmax.f32 %v9497, 0.0
      %v10067 = vmax.f32 %v9881, 0.0
      %v10068 = vmax.f32 %v9883, 0.0
      %v10069 = vmax.f32 %v8729, 0.0
      %v10070 = vmax.f32 %v8731, 0.0
      %v10071 = vmax.f32 %v9115, 0.0
      %v10072 = vmax.f32 %v9117, 0.0
      %v10073 = vmax.f32 %v9501, 0.0
      %v10074 = vmax.f32 %v9503, 0.0
      %v10075 = vmax.f32 %v9887, 0.0
      %v10076 = vmax.f32 %v9889, 0.0
      %v10077 = vmax.f32 %v8733, 0.0
      %v10078 = vmax.f32 %v8735, 0.0
      %v10079 = vmax.f32 %v9119, 0.0
      %v10080 = vmax.f32 %v9121, 0.0
      %v10081 = vmax.f32 %v9505, 0.0
      %v10082 = vmax.f32 %v9507, 0.0
      %v10083 = vmax.f32 %v9891, 0.0
      %v10084 = vmax.f32 %v9893, 0.0
      %v10085 = vmax.f32 %v8739, 0.0
      %v10086 = vmax.f32 %v8741, 0.0
      %v10087 = vmax.f32 %v9125, 0.0
      %v10088 = vmax.f32 %v9127, 0.0
      %v10089 = vmax.f32 %v9511, 0.0
      %v10090 = vmax.f32 %v9513, 0.0
      %v10091 = vmax.f32 %v9897, 0.0
      %v10092 = vmax.f32 %v9899, 0.0
      %v10093 = vmax.f32 %v8743, 0.0
      %v10094 = vmax.f32 %v8745, 0.0
      %v10095 = vmax.f32 %v9129, 0.0
      %v10096 = vmax.f32 %v9131, 0.0
      %v10097 = vmax.f32 %v9515, 0.0
      %v10098 = vmax.f32 %v9517, 0.0
      %v10099 = vmax.f32 %v9901, 0.0
      %v10100 = vmax.f32 %v9903, 0.0
      %v10101 = vmax.f32 %v8749, 0.0
      %v10102 = vmax.f32 %v8751, 0.0
      %v10103 = vmax.f32 %v9135, 0.0
      %v10104 = vmax.f32 %v9137, 0.0
      %v10105 = vmax.f32 %v9521, 0.0
      %v10106 = vmax.f32 %v9523, 0.0
      %v10107 = vmax.f32 %v9907, 0.0
      %v10108 = vmax.f32 %v9909, 0.0
      %v10109 = vmax.f32 %v8753, 0.0
      %v10110 = vmax.f32 %v8755, 0.0
      %v10111 = vmax.f32 %v9139, 0.0
      %v10112 = vmax.f32 %v9141, 0.0
      %v10113 = vmax.f32 %v9525, 0.0
      %v10114 = vmax.f32 %v9527, 0.0
      %v10115 = vmax.f32 %v9911, 0.0
      %v10116 = vmax.f32 %v9913, 0.0
      %v10117 = vmax.f32 %v8759, 0.0
      %v10118 = vmax.f32 %v8761, 0.0
      %v10119 = vmax.f32 %v9145, 0.0
      %v10120 = vmax.f32 %v9147, 0.0
      %v10121 = vmax.f32 %v9531, 0.0
      %v10122 = vmax.f32 %v9533, 0.0
      %v10123 = vmax.f32 %v9917, 0.0
      %v10124 = vmax.f32 %v9919, 0.0
      %v10125 = vmax.f32 %v8763, 0.0
      %v10126 = vmax.f32 %v8765, 0.0
      %v10127 = vmax.f32 %v9149, 0.0
      %v10128 = vmax.f32 %v9151, 0.0
      %v10129 = vmax.f32 %v9535, 0.0
      %v10130 = vmax.f32 %v9537, 0.0
      %v10131 = vmax.f32 %v9921, 0.0
      %v10132 = vmax.f32 %v9923, 0.0
      %v10133 = vmax.f32 %v8769, 0.0
      %v10134 = vmax.f32 %v8771, 0.0
      %v10135 = vmax.f32 %v9155, 0.0
      %v10136 = vmax.f32 %v9157, 0.0
      %v10137 = vmax.f32 %v9541, 0.0
      %v10138 = vmax.f32 %v9543, 0.0
      %v10139 = vmax.f32 %v9927, 0.0
      %v10140 = vmax.f32 %v9929, 0.0
      %v10141 = vmax.f32 %v8773, 0.0
      %v10142 = vmax.f32 %v8775, 0.0
      %v10143 = vmax.f32 %v9159, 0.0
      %v10144 = vmax.f32 %v9161, 0.0
      %v10145 = vmax.f32 %v9545, 0.0
      %v10146 = vmax.f32 %v9547, 0.0
      %v10147 = vmax.f32 %v9931, 0.0
      %v10148 = vmax.f32 %v9933, 0.0
      %v10149 = vmax.f32 %v8779, 0.0
      %v10150 = vmax.f32 %v8781, 0.0
      %v10151 = vmax.f32 %v9165, 0.0
      %v10152 = vmax.f32 %v9167, 0.0
      %v10153 = vmax.f32 %v9551, 0.0
      %v10154 = vmax.f32 %v9553, 0.0
      %v10155 = vmax.f32 %v9937, 0.0
      %v10156 = vmax.f32 %v9939, 0.0
      %v10157 = vmax.f32 %v8783, 0.0
      %v10158 = vmax.f32 %v8785, 0.0
      %v10159 = vmax.f32 %v9169, 0.0
      %v10160 = vmax.f32 %v9171, 0.0
      %v10161 = vmax.f32 %v9555, 0.0
      %v10162 = vmax.f32 %v9557, 0.0
      %v10163 = vmax.f32 %v9941, 0.0
      %v10164 = vmax.f32 %v9943, 0.0
      %v10165 = vmax.f32 %v8789, 0.0
      %v10166 = vmax.f32 %v8791, 0.0
      %v10167 = vmax.f32 %v9175, 0.0
      %v10168 = vmax.f32 %v9177, 0.0
      %v10169 = vmax.f32 %v9561, 0.0
      %v10170 = vmax.f32 %v9563, 0.0
      %v10171 = vmax.f32 %v9947, 0.0
      %v10172 = vmax.f32 %v9949, 0.0
      %v10173 = vmax.f32 %v8793, 0.0
      %v10174 = vmax.f32 %v8795, 0.0
      %v10175 = vmax.f32 %v9179, 0.0
      %v10176 = vmax.f32 %v9181, 0.0
      %v10177 = vmax.f32 %v9565, 0.0
      %v10178 = vmax.f32 %v9567, 0.0
      %v10179 = vmax.f32 %v9951, 0.0
      %v10180 = vmax.f32 %v9953, 0.0
      %v10181 = vmax.f32 %v8799, 0.0
      %v10182 = vmax.f32 %v8801, 0.0
      %v10183 = vmax.f32 %v9185, 0.0
      %v10184 = vmax.f32 %v9187, 0.0
      %v10185 = vmax.f32 %v9571, 0.0
      %v10186 = vmax.f32 %v9573, 0.0
      %v10187 = vmax.f32 %v9957, 0.0
      %v10188 = vmax.f32 %v9959, 0.0
      %v10189 = vmax.f32 %v8803, 0.0
      %v10190 = vmax.f32 %v8805, 0.0
      %v10191 = vmax.f32 %v9189, 0.0
      %v10192 = vmax.f32 %v9191, 0.0
      %v10193 = vmax.f32 %v9575, 0.0
      %v10194 = vmax.f32 %v9577, 0.0
      %v10195 = vmax.f32 %v9961, 0.0
      %v10196 = vmax.f32 %v9963, 0.0
      %v10197 = vmax.f32 %v8809, 0.0
      %v10198 = vmax.f32 %v8811, 0.0
      %v10199 = vmax.f32 %v9195, 0.0
      %v10200 = vmax.f32 %v9197, 0.0
      %v10201 = vmax.f32 %v9581, 0.0
      %v10202 = vmax.f32 %v9583, 0.0
      %v10203 = vmax.f32 %v9967, 0.0
      %v10204 = vmax.f32 %v9969, 0.0
      %v10205 = vmax.f32 %v8813, 0.0
      %v10206 = vmax.f32 %v8815, 0.0
      %v10207 = vmax.f32 %v9199, 0.0
      %v10208 = vmax.f32 %v9201, 0.0
      %v10209 = vmax.f32 %v9585, 0.0
      %v10210 = vmax.f32 %v9587, 0.0
      %v10211 = vmax.f32 %v9971, 0.0
      %v10212 = vmax.f32 %v9973, 0.0
      %v10213 = vmax.f32 %v8819, 0.0
      %v10214 = vmax.f32 %v8821, 0.0
      %v10215 = vmax.f32 %v9205, 0.0
      %v10216 = vmax.f32 %v9207, 0.0
      %v10217 = vmax.f32 %v9591, 0.0
      %v10218 = vmax.f32 %v9593, 0.0
      %v10219 = vmax.f32 %v9977, 0.0
      %v10220 = vmax.f32 %v9979, 0.0
      %v10221 = vmax.f32 %v8823, 0.0
      %v10222 = vmax.f32 %v8825, 0.0
      %v10223 = vmax.f32 %v9209, 0.0
      %v10224 = vmax.f32 %v9211, 0.0
      %v10225 = vmax.f32 %v9595, 0.0
      %v10226 = vmax.f32 %v9597, 0.0
      %v10227 = vmax.f32 %v9981, 0.0
      %v10228 = vmax.f32 %v9983, 0.0
      %v10229 = vmax.f32 %v8829, 0.0
      %v10230 = vmax.f32 %v8831, 0.0
      %v10231 = vmax.f32 %v9215, 0.0
      %v10232 = vmax.f32 %v9217, 0.0
      %v10233 = vmax.f32 %v9601, 0.0
      %v10234 = vmax.f32 %v9603, 0.0
      %v10235 = vmax.f32 %v9987, 0.0
      %v10236 = vmax.f32 %v9989, 0.0
      %v10237 = vmax.f32 %v8833, 0.0
      %v10238 = vmax.f32 %v8835, 0.0
      %v10239 = vmax.f32 %v9219, 0.0
      %v10240 = vmax.f32 %v9221, 0.0
      %v10241 = vmax.f32 %v9605, 0.0
      %v10242 = vmax.f32 %v9607, 0.0
      %v10243 = vmax.f32 %v9991, 0.0
      %v10244 = vmax.f32 %v9993, 0.0
      %v10245 = vmax.f32 %v8839, 0.0
      %v10246 = vmax.f32 %v8841, 0.0
      %v10247 = vmax.f32 %v9225, 0.0
      %v10248 = vmax.f32 %v9227, 0.0
      %v10249 = vmax.f32 %v9611, 0.0
      %v10250 = vmax.f32 %v9613, 0.0
      %v10251 = vmax.f32 %v9997, 0.0
      %v10252 = vmax.f32 %v9999, 0.0
      %v10253 = vmax.f32 %v8843, 0.0
      %v10254 = vmax.f32 %v8845, 0.0
      %v10255 = vmax.f32 %v9229, 0.0
      %v10256 = vmax.f32 %v9231, 0.0
      %v10257 = vmax.f32 %v9615, 0.0
      %v10258 = vmax.f32 %v9617, 0.0
      %v10259 = vmax.f32 %v10001, 0.0
      %v10260 = vmax.f32 %v10003, 0.0
      %v10261 = vadd.f32 %v10005, %v10013
      %v10262 = vadd.f32 %v10261, %v10021
      %v10263 = vadd.f32 %v10262, %v10029
      %v10264 = vadd.f32 %v10263, %v10037
      %v10265 = vadd.f32 %v10264, %v10045
      %v10266 = vadd.f32 %v10265, %v10053
      %v10267 = vadd.f32 %v10266, %v10061
      %v10268 = vadd.f32 %v10267, %v10069
      %v10269 = vadd.f32 %v10268, %v10077
      %v10270 = vadd.f32 %v10269, %v10085
      %v10271 = vadd.f32 %v10270, %v10093
      %v10272 = vadd.f32 %v10271, %v10101
      %v10273 = vadd.f32 %v10272, %v10109
      %v10274 = vadd.f32 %v10273, %v10117
      %v10275 = vadd.f32 %v10274, %v10125
      %v10276 = vadd.f32 %v10275, %v10133
      %v10277 = vadd.f32 %v10276, %v10141
      %v10278 = vadd.f32 %v10277, %v10149
      %v10279 = vadd.f32 %v10278, %v10157
      %v10280 = vadd.f32 %v10279, %v10165
      %v10281 = vadd.f32 %v10280, %v10173
      %v10282 = vadd.f32 %v10281, %v10181
      %v10283 = vadd.f32 %v10282, %v10189
      %v10284 = vadd.f32 %v10283, %v10197
      %v10285 = vadd.f32 %v10284, %v10205
      %v10286 = vadd.f32 %v10285, %v10213
      %v10287 = vadd.f32 %v10286, %v10221
      %v10288 = vadd.f32 %v10287, %v10229
      %v10289 = vadd.f32 %v10288, %v10237
      %v10290 = vadd.f32 %v10289, %v10245
      %v10291 = vadd.f32 %v10290, %v10253
      %v10292 = vrot.slane %v10291, 4
      %v10293 = vadd.f32 %v10291, %v10292
      %v10294 = vrot.slane %v10293, 2
      %v10295 = vadd.f32 %v10293, %v10294
      %v10296 = vrot.slane %v10295, 1
      %v10297 = vadd.f32 %v10295, %v10296
      %v10298 = vadd.f32 %v10006, %v10014
      %v10299 = vadd.f32 %v10298, %v10022
      %v10300 = vadd.f32 %v10299, %v10030
      %v10301 = vadd.f32 %v10300, %v10038
      %v10302 = vadd.f32 %v10301, %v10046
      %v10303 = vadd.f32 %v10302, %v10054
      %v10304 = vadd.f32 %v10303, %v10062
      %v10305 = vadd.f32 %v10304, %v10070
      %v10306 = vadd.f32 %v10305, %v10078
      %v10307 = vadd.f32 %v10306, %v10086
      %v10308 = vadd.f32 %v10307, %v10094
      %v10309 = vadd.f32 %v10308, %v10102
      %v10310 = vadd.f32 %v10309, %v10110
      %v10311 = vadd.f32 %v10310, %v10118
      %v10312 = vadd.f32 %v10311, %v10126
      %v10313 = vadd.f32 %v10312, %v10134
      %v10314 = vadd.f32 %v10313, %v10142
      %v10315 = vadd.f32 %v10314, %v10150
      %v10316 = vadd.f32 %v10315, %v10158
      %v10317 = vadd.f32 %v10316, %v10166
      %v10318 = vadd.f32 %v10317, %v10174
      %v10319 = vadd.f32 %v10318, %v10182
      %v10320 = vadd.f32 %v10319, %v10190
      %v10321 = vadd.f32 %v10320, %v10198
      %v10322 = vadd.f32 %v10321, %v10206
      %v10323 = vadd.f32 %v10322, %v10214
      %v10324 = vadd.f32 %v10323, %v10222
      %v10325 = vadd.f32 %v10324, %v10230
      %v10326 = vadd.f32 %v10325, %v10238
      %v10327 = vadd.f32 %v10326, %v10246
      %v10328 = vadd.f32 %v10327, %v10254
      %v10329 = vrot.slane %v10328, 4
      %v10330 = vadd.f32 %v10328, %v10329
      %v10331 = vrot.slane %v10330, 2
      %v10332 = vadd.f32 %v10330, %v10331
      %v10333 = vrot.slane %v10332, 1
      %v10334 = vadd.f32 %v10332, %v10333
      %v10335 = vadd.f32 %v10007, %v10015
      %v10336 = vadd.f32 %v10335, %v10023
      %v10337 = vadd.f32 %v10336, %v10031
      %v10338 = vadd.f32 %v10337, %v10039
      %v10339 = vadd.f32 %v10338, %v10047
      %v10340 = vadd.f32 %v10339, %v10055
      %v10341 = vadd.f32 %v10340, %v10063
      %v10342 = vadd.f32 %v10341, %v10071
      %v10343 = vadd.f32 %v10342, %v10079
      %v10344 = vadd.f32 %v10343, %v10087
      %v10345 = vadd.f32 %v10344, %v10095
      %v10346 = vadd.f32 %v10345, %v10103
      %v10347 = vadd.f32 %v10346, %v10111
      %v10348 = vadd.f32 %v10347, %v10119
      %v10349 = vadd.f32 %v10348, %v10127
      %v10350 = vadd.f32 %v10349, %v10135
      %v10351 = vadd.f32 %v10350, %v10143
      %v10352 = vadd.f32 %v10351, %v10151
      %v10353 = vadd.f32 %v10352, %v10159
      %v10354 = vadd.f32 %v10353, %v10167
      %v10355 = vadd.f32 %v10354, %v10175
      %v10356 = vadd.f32 %v10355, %v10183
      %v10357 = vadd.f32 %v10356, %v10191
      %v10358 = vadd.f32 %v10357, %v10199
      %v10359 = vadd.f32 %v10358, %v10207
      %v10360 = vadd.f32 %v10359, %v10215
      %v10361 = vadd.f32 %v10360, %v10223
      %v10362 = vadd.f32 %v10361, %v10231
      %v10363 = vadd.f32 %v10362, %v10239
      %v10364 = vadd.f32 %v10363, %v10247
      %v10365 = vadd.f32 %v10364, %v10255
      %v10366 = vrot.slane %v10365, 4
      %v10367 = vadd.f32 %v10365, %v10366
      %v10368 = vrot.slane %v10367, 2
      %v10369 = vadd.f32 %v10367, %v10368
      %v10370 = vrot.slane %v10369, 1
      %v10371 = vadd.f32 %v10369, %v10370
      %v10372 = vadd.f32 %v10008, %v10016
      %v10373 = vadd.f32 %v10372, %v10024
      %v10374 = vadd.f32 %v10373, %v10032
      %v10375 = vadd.f32 %v10374, %v10040
      %v10376 = vadd.f32 %v10375, %v10048
      %v10377 = vadd.f32 %v10376, %v10056
      %v10378 = vadd.f32 %v10377, %v10064
      %v10379 = vadd.f32 %v10378, %v10072
      %v10380 = vadd.f32 %v10379, %v10080
      %v10381 = vadd.f32 %v10380, %v10088
      %v10382 = vadd.f32 %v10381, %v10096
      %v10383 = vadd.f32 %v10382, %v10104
      %v10384 = vadd.f32 %v10383, %v10112
      %v10385 = vadd.f32 %v10384, %v10120
      %v10386 = vadd.f32 %v10385, %v10128
      %v10387 = vadd.f32 %v10386, %v10136
      %v10388 = vadd.f32 %v10387, %v10144
      %v10389 = vadd.f32 %v10388, %v10152
      %v10390 = vadd.f32 %v10389, %v10160
      %v10391 = vadd.f32 %v10390, %v10168
      %v10392 = vadd.f32 %v10391, %v10176
      %v10393 = vadd.f32 %v10392, %v10184
      %v10394 = vadd.f32 %v10393, %v10192
      %v10395 = vadd.f32 %v10394, %v10200
      %v10396 = vadd.f32 %v10395, %v10208
      %v10397 = vadd.f32 %v10396, %v10216
      %v10398 = vadd.f32 %v10397, %v10224
      %v10399 = vadd.f32 %v10398, %v10232
      %v10400 = vadd.f32 %v10399, %v10240
      %v10401 = vadd.f32 %v10400, %v10248
      %v10402 = vadd.f32 %v10401, %v10256
      %v10403 = vrot.slane %v10402, 4
      %v10404 = vadd.f32 %v10402, %v10403
      %v10405 = vrot.slane %v10404, 2
      %v10406 = vadd.f32 %v10404, %v10405
      %v10407 = vrot.slane %v10406, 1
      %v10408 = vadd.f32 %v10406, %v10407
      %v10409 = vadd.f32 %v10009, %v10017
      %v10410 = vadd.f32 %v10409, %v10025
      %v10411 = vadd.f32 %v10410, %v10033
      %v10412 = vadd.f32 %v10411, %v10041
      %v10413 = vadd.f32 %v10412, %v10049
      %v10414 = vadd.f32 %v10413, %v10057
      %v10415 = vadd.f32 %v10414, %v10065
      %v10416 = vadd.f32 %v10415, %v10073
      %v10417 = vadd.f32 %v10416, %v10081
      %v10418 = vadd.f32 %v10417, %v10089
      %v10419 = vadd.f32 %v10418, %v10097
      %v10420 = vadd.f32 %v10419, %v10105
      %v10421 = vadd.f32 %v10420, %v10113
      %v10422 = vadd.f32 %v10421, %v10121
      %v10423 = vadd.f32 %v10422, %v10129
      %v10424 = vadd.f32 %v10423, %v10137
      %v10425 = vadd.f32 %v10424, %v10145
      %v10426 = vadd.f32 %v10425, %v10153
      %v10427 = vadd.f32 %v10426, %v10161
      %v10428 = vadd.f32 %v10427, %v10169
      %v10429 = vadd.f32 %v10428, %v10177
      %v10430 = vadd.f32 %v10429, %v10185
      %v10431 = vadd.f32 %v10430, %v10193
      %v10432 = vadd.f32 %v10431, %v10201
      %v10433 = vadd.f32 %v10432, %v10209
      %v10434 = vadd.f32 %v10433, %v10217
      %v10435 = vadd.f32 %v10434, %v10225
      %v10436 = vadd.f32 %v10435, %v10233
      %v10437 = vadd.f32 %v10436, %v10241
      %v10438 = vadd.f32 %v10437, %v10249
      %v10439 = vadd.f32 %v10438, %v10257
      %v10440 = vrot.slane %v10439, 4
      %v10441 = vadd.f32 %v10439, %v10440
      %v10442 = vrot.slane %v10441, 2
      %v10443 = vadd.f32 %v10441, %v10442
      %v10444 = vrot.slane %v10443, 1
      %v10445 = vadd.f32 %v10443, %v10444
      %v10446 = vadd.f32 %v10010, %v10018
      %v10447 = vadd.f32 %v10446, %v10026
      %v10448 = vadd.f32 %v10447, %v10034
      %v10449 = vadd.f32 %v10448, %v10042
      %v10450 = vadd.f32 %v10449, %v10050
      %v10451 = vadd.f32 %v10450, %v10058
      %v10452 = vadd.f32 %v10451, %v10066
      %v10453 = vadd.f32 %v10452, %v10074
      %v10454 = vadd.f32 %v10453, %v10082
      %v10455 = vadd.f32 %v10454, %v10090
      %v10456 = vadd.f32 %v10455, %v10098
      %v10457 = vadd.f32 %v10456, %v10106
      %v10458 = vadd.f32 %v10457, %v10114
      %v10459 = vadd.f32 %v10458, %v10122
      %v10460 = vadd.f32 %v10459, %v10130
      %v10461 = vadd.f32 %v10460, %v10138
      %v10462 = vadd.f32 %v10461, %v10146
      %v10463 = vadd.f32 %v10462, %v10154
      %v10464 = vadd.f32 %v10463, %v10162
      %v10465 = vadd.f32 %v10464, %v10170
      %v10466 = vadd.f32 %v10465, %v10178
      %v10467 = vadd.f32 %v10466, %v10186
      %v10468 = vadd.f32 %v10467, %v10194
      %v10469 = vadd.f32 %v10468, %v10202
      %v10470 = vadd.f32 %v10469, %v10210
      %v10471 = vadd.f32 %v10470, %v10218
      %v10472 = vadd.f32 %v10471, %v10226
      %v10473 = vadd.f32 %v10472, %v10234
      %v10474 = vadd.f32 %v10473, %v10242
      %v10475 = vadd.f32 %v10474, %v10250
      %v10476 = vadd.f32 %v10475, %v10258
      %v10477 = vrot.slane %v10476, 4
      %v10478 = vadd.f32 %v10476, %v10477
      %v10479 = vrot.slane %v10478, 2
      %v10480 = vadd.f32 %v10478, %v10479
      %v10481 = vrot.slane %v10480, 1
      %v10482 = vadd.f32 %v10480, %v10481
      %v10483 = vadd.f32 %v10011, %v10019
      %v10484 = vadd.f32 %v10483, %v10027
      %v10485 = vadd.f32 %v10484, %v10035
      %v10486 = vadd.f32 %v10485, %v10043
      %v10487 = vadd.f32 %v10486, %v10051
      %v10488 = vadd.f32 %v10487, %v10059
      %v10489 = vadd.f32 %v10488, %v10067
      %v10490 = vadd.f32 %v10489, %v10075
      %v10491 = vadd.f32 %v10490, %v10083
      %v10492 = vadd.f32 %v10491, %v10091
      %v10493 = vadd.f32 %v10492, %v10099
      %v10494 = vadd.f32 %v10493, %v10107
      %v10495 = vadd.f32 %v10494, %v10115
      %v10496 = vadd.f32 %v10495, %v10123
      %v10497 = vadd.f32 %v10496, %v10131
      %v10498 = vadd.f32 %v10497, %v10139
      %v10499 = vadd.f32 %v10498, %v10147
      %v10500 = vadd.f32 %v10499, %v10155
      %v10501 = vadd.f32 %v10500, %v10163
      %v10502 = vadd.f32 %v10501, %v10171
      %v10503 = vadd.f32 %v10502, %v10179
      %v10504 = vadd.f32 %v10503, %v10187
      %v10505 = vadd.f32 %v10504, %v10195
      %v10506 = vadd.f32 %v10505, %v10203
      %v10507 = vadd.f32 %v10506, %v10211
      %v10508 = vadd.f32 %v10507, %v10219
      %v10509 = vadd.f32 %v10508, %v10227
      %v10510 = vadd.f32 %v10509, %v10235
      %v10511 = vadd.f32 %v10510, %v10243
      %v10512 = vadd.f32 %v10511, %v10251
      %v10513 = vadd.f32 %v10512, %v10259
      %v10514 = vrot.slane %v10513, 4
      %v10515 = vadd.f32 %v10513, %v10514
      %v10516 = vrot.slane %v10515, 2
      %v10517 = vadd.f32 %v10515, %v10516
      %v10518 = vrot.slane %v10517, 1
      %v10519 = vadd.f32 %v10517, %v10518
      %v10520 = vadd.f32 %v10012, %v10020
      %v10521 = vadd.f32 %v10520, %v10028
      %v10522 = vadd.f32 %v10521, %v10036
      %v10523 = vadd.f32 %v10522, %v10044
      %v10524 = vadd.f32 %v10523, %v10052
      %v10525 = vadd.f32 %v10524, %v10060
      %v10526 = vadd.f32 %v10525, %v10068
      %v10527 = vadd.f32 %v10526, %v10076
      %v10528 = vadd.f32 %v10527, %v10084
      %v10529 = vadd.f32 %v10528, %v10092
      %v10530 = vadd.f32 %v10529, %v10100
      %v10531 = vadd.f32 %v10530, %v10108
      %v10532 = vadd.f32 %v10531, %v10116
      %v10533 = vadd.f32 %v10532, %v10124
      %v10534 = vadd.f32 %v10533, %v10132
      %v10535 = vadd.f32 %v10534, %v10140
      %v10536 = vadd.f32 %v10535, %v10148
      %v10537 = vadd.f32 %v10536, %v10156
      %v10538 = vadd.f32 %v10537, %v10164
      %v10539 = vadd.f32 %v10538, %v10172
      %v10540 = vadd.f32 %v10539, %v10180
      %v10541 = vadd.f32 %v10540, %v10188
      %v10542 = vadd.f32 %v10541, %v10196
      %v10543 = vadd.f32 %v10542, %v10204
      %v10544 = vadd.f32 %v10543, %v10212
      %v10545 = vadd.f32 %v10544, %v10220
      %v10546 = vadd.f32 %v10545, %v10228
      %v10547 = vadd.f32 %v10546, %v10236
      %v10548 = vadd.f32 %v10547, %v10244
      %v10549 = vadd.f32 %v10548, %v10252
      %v10550 = vadd.f32 %v10549, %v10260
      %v10551 = vrot.slane %v10550, 4
      %v10552 = vadd.f32 %v10550, %v10551
      %v10553 = vrot.slane %v10552, 2
      %v10554 = vadd.f32 %v10552, %v10553
      %v10555 = vrot.slane %v10554, 1
      %v10556 = vadd.f32 %v10554, %v10555
      %v10557 = vpack.c.bf16 %v10297, %v10297
      %v10558 = vpack.c.bf16 %v10334, %v10334
      %v10559 = vpack.c.bf16 %v10371, %v10371
      %v10560 = vpack.c.bf16 %v10408, %v10408
      %v10561 = vpack.c.bf16 %v10445, %v10445
      %v10562 = vpack.c.bf16 %v10482, %v10482
      %v10563 = vpack.c.bf16 %v10519, %v10519
      %v10564 = vpack.c.bf16 %v10556, %v10556
      %v10565 = vld [vmem:[%s9] sm:$0xf]
      %v10566 = vld [vmem:[%s9 + $0x4] sm:$0xf]
      %v10567 = vld [vmem:[%s9 + $0x8] sm:$0xf]
      %v10568 = vld [vmem:[%s9 + $0xc] sm:$0xf]
      %v10569 = vld [vmem:[%s9 + $0x10] sm:$0xf]
      %v10570 = vld [vmem:[%s9 + $0x14] sm:$0xf]
      %v10571 = vld [vmem:[%s9 + $0x18] sm:$0xf]
      %v10572 = vld [vmem:[%s9 + $0x1c] sm:$0xf]
      %v10573 = vld [vmem:[%s9 + $0x20] sm:$0xf]
      %v10574 = vld [vmem:[%s9 + $0x24] sm:$0xf]
      %v10575 = vld [vmem:[%s9 + $0x28] sm:$0xf]
      %v10576 = vld [vmem:[%s9 + $0x2c] sm:$0xf]
      %v10577 = vld [vmem:[%s9 + $0x30] sm:$0xf]
      %v10578 = vld [vmem:[%s9 + $0x34] sm:$0xf]
      %v10579 = vld [vmem:[%s9 + $0x38] sm:$0xf]
      %v10580 = vld [vmem:[%s9 + $0x3c] sm:$0xf]
      %v10581 = vld [vmem:[%s9 + $0x40] sm:$0xf]
      %v10582 = vld [vmem:[%s9 + $0x44] sm:$0xf]
      %v10583 = vld [vmem:[%s9 + $0x48] sm:$0xf]
      %v10584 = vld [vmem:[%s9 + $0x4c] sm:$0xf]
      %v10585 = vld [vmem:[%s9 + $0x50] sm:$0xf]
      %v10586 = vld [vmem:[%s9 + $0x54] sm:$0xf]
      %v10587 = vld [vmem:[%s9 + $0x58] sm:$0xf]
      %v10588 = vld [vmem:[%s9 + $0x5c] sm:$0xf]
      %v10589 = vld [vmem:[%s9 + $0x60] sm:$0xf]
      %v10590 = vld [vmem:[%s9 + $0x64] sm:$0xf]
      %v10591 = vld [vmem:[%s9 + $0x68] sm:$0xf]
      %v10592 = vld [vmem:[%s9 + $0x6c] sm:$0xf]
      %v10593 = vld [vmem:[%s9 + $0x70] sm:$0xf]
      %v10594 = vld [vmem:[%s9 + $0x74] sm:$0xf]
      %v10595 = vld [vmem:[%s9 + $0x78] sm:$0xf]
      %v10596 = vld [vmem:[%s9 + $0x7c] sm:$0xf]
      %v10597 = vld [vmem:[%s9 + $0x80] sm:$0xf]
      %v10598 = vld [vmem:[%s9 + $0x84] sm:$0xf]
      %v10599 = vld [vmem:[%s9 + $0x88] sm:$0xf]
      %v10600 = vld [vmem:[%s9 + $0x8c] sm:$0xf]
      %v10601 = vld [vmem:[%s9 + $0x90] sm:$0xf]
      %v10602 = vld [vmem:[%s9 + $0x94] sm:$0xf]
      %v10603 = vld [vmem:[%s9 + $0x98] sm:$0xf]
      %v10604 = vld [vmem:[%s9 + $0x9c] sm:$0xf]
      %v10605 = vld [vmem:[%s9 + $0xa0] sm:$0xf]
      %v10606 = vld [vmem:[%s9 + $0xa4] sm:$0xf]
      %v10607 = vld [vmem:[%s9 + $0xa8] sm:$0xf]
      %v10608 = vld [vmem:[%s9 + $0xac] sm:$0xf]
      %v10609 = vld [vmem:[%s9 + $0xb0] sm:$0xf]
      %v10610 = vld [vmem:[%s9 + $0xb4] sm:$0xf]
      %v10611 = vld [vmem:[%s9 + $0xb8] sm:$0xf]
      %v10612 = vld [vmem:[%s9 + $0xbc] sm:$0xf]
      %v10613 = vld [vmem:[%s9 + $0xc0] sm:$0xf]
      %v10614 = vld [vmem:[%s9 + $0xc4] sm:$0xf]
      %v10615 = vld [vmem:[%s9 + $0xc8] sm:$0xf]
      %v10616 = vld [vmem:[%s9 + $0xcc] sm:$0xf]
      %v10617 = vld [vmem:[%s9 + $0xd0] sm:$0xf]
      %v10618 = vld [vmem:[%s9 + $0xd4] sm:$0xf]
      %v10619 = vld [vmem:[%s9 + $0xd8] sm:$0xf]
      %v10620 = vld [vmem:[%s9 + $0xdc] sm:$0xf]
      %v10621 = vld [vmem:[%s9 + $0xe0] sm:$0xf]
      %v10622 = vld [vmem:[%s9 + $0xe4] sm:$0xf]
      %v10623 = vld [vmem:[%s9 + $0xe8] sm:$0xf]
      %v10624 = vld [vmem:[%s9 + $0xec] sm:$0xf]
      %v10625 = vld [vmem:[%s9 + $0xf0] sm:$0xf]
      %v10626 = vld [vmem:[%s9 + $0xf4] sm:$0xf]
      %v10627 = vld [vmem:[%s9 + $0xf8] sm:$0xf]
      %v10628 = vld [vmem:[%s9 + $0xfc] sm:$0xf]
      %v10629 = vld [vmem:[%s9 + $0x100] sm:$0xf]
      %v10630 = vld [vmem:[%s9 + $0x104] sm:$0xf]
      %v10631 = vld [vmem:[%s9 + $0x108] sm:$0xf]
      %v10632 = vld [vmem:[%s9 + $0x10c] sm:$0xf]
      %v10633 = vld [vmem:[%s9 + $0x110] sm:$0xf]
      %v10634 = vld [vmem:[%s9 + $0x114] sm:$0xf]
      %v10635 = vld [vmem:[%s9 + $0x118] sm:$0xf]
      %v10636 = vld [vmem:[%s9 + $0x11c] sm:$0xf]
      %v10637 = vld [vmem:[%s9 + $0x120] sm:$0xf]
      %v10638 = vld [vmem:[%s9 + $0x124] sm:$0xf]
      %v10639 = vld [vmem:[%s9 + $0x128] sm:$0xf]
      %v10640 = vld [vmem:[%s9 + $0x12c] sm:$0xf]
      %v10641 = vld [vmem:[%s9 + $0x130] sm:$0xf]
      %v10642 = vld [vmem:[%s9 + $0x134] sm:$0xf]
      %v10643 = vld [vmem:[%s9 + $0x138] sm:$0xf]
      %v10644 = vld [vmem:[%s9 + $0x13c] sm:$0xf]
      %v10645 = vld [vmem:[%s9 + $0x140] sm:$0xf]
      %v10646 = vld [vmem:[%s9 + $0x144] sm:$0xf]
      %v10647 = vld [vmem:[%s9 + $0x148] sm:$0xf]
      %v10648 = vld [vmem:[%s9 + $0x14c] sm:$0xf]
      %v10649 = vld [vmem:[%s9 + $0x150] sm:$0xf]
      %v10650 = vld [vmem:[%s9 + $0x154] sm:$0xf]
      %v10651 = vld [vmem:[%s9 + $0x158] sm:$0xf]
      %v10652 = vld [vmem:[%s9 + $0x15c] sm:$0xf]
      %v10653 = vld [vmem:[%s9 + $0x160] sm:$0xf]
      %v10654 = vld [vmem:[%s9 + $0x164] sm:$0xf]
      %v10655 = vld [vmem:[%s9 + $0x168] sm:$0xf]
      %v10656 = vld [vmem:[%s9 + $0x16c] sm:$0xf]
      %v10657 = vld [vmem:[%s9 + $0x170] sm:$0xf]
      %v10658 = vld [vmem:[%s9 + $0x174] sm:$0xf]
      %v10659 = vld [vmem:[%s9 + $0x178] sm:$0xf]
      %v10660 = vld [vmem:[%s9 + $0x17c] sm:$0xf]
      %v10661 = vld [vmem:[%s9 + $0x180] sm:$0xf]
      %v10662 = vld [vmem:[%s9 + $0x184] sm:$0xf]
      %v10663 = vld [vmem:[%s9 + $0x188] sm:$0xf]
      %v10664 = vld [vmem:[%s9 + $0x18c] sm:$0xf]
      %v10665 = vld [vmem:[%s9 + $0x190] sm:$0xf]
      %v10666 = vld [vmem:[%s9 + $0x194] sm:$0xf]
      %v10667 = vld [vmem:[%s9 + $0x198] sm:$0xf]
      %v10668 = vld [vmem:[%s9 + $0x19c] sm:$0xf]
      %v10669 = vld [vmem:[%s9 + $0x1a0] sm:$0xf]
      %v10670 = vld [vmem:[%s9 + $0x1a4] sm:$0xf]
      %v10671 = vld [vmem:[%s9 + $0x1a8] sm:$0xf]
      %v10672 = vld [vmem:[%s9 + $0x1ac] sm:$0xf]
      %v10673 = vld [vmem:[%s9 + $0x1b0] sm:$0xf]
      %v10674 = vld [vmem:[%s9 + $0x1b4] sm:$0xf]
      %v10675 = vld [vmem:[%s9 + $0x1b8] sm:$0xf]
      %v10676 = vld [vmem:[%s9 + $0x1bc] sm:$0xf]
      %v10677 = vld [vmem:[%s9 + $0x1c0] sm:$0xf]
      %v10678 = vld [vmem:[%s9 + $0x1c4] sm:$0xf]
      %v10679 = vld [vmem:[%s9 + $0x1c8] sm:$0xf]
      %v10680 = vld [vmem:[%s9 + $0x1cc] sm:$0xf]
      %v10681 = vld [vmem:[%s9 + $0x1d0] sm:$0xf]
      %v10682 = vld [vmem:[%s9 + $0x1d4] sm:$0xf]
      %v10683 = vld [vmem:[%s9 + $0x1d8] sm:$0xf]
      %v10684 = vld [vmem:[%s9 + $0x1dc] sm:$0xf]
      %v10685 = vld [vmem:[%s9 + $0x1e0] sm:$0xf]
      %v10686 = vld [vmem:[%s9 + $0x1e4] sm:$0xf]
      %v10687 = vld [vmem:[%s9 + $0x1e8] sm:$0xf]
      %v10688 = vld [vmem:[%s9 + $0x1ec] sm:$0xf]
      %v10689 = vld [vmem:[%s9 + $0x1f0] sm:$0xf]
      %v10690 = vld [vmem:[%s9 + $0x1f4] sm:$0xf]
      %v10691 = vld [vmem:[%s9 + $0x1f8] sm:$0xf]
      %v10692 = vld [vmem:[%s9 + $0x1fc] sm:$0xf]
      %v10821 = vunpack.c.l.b16 %v10565
      %v10822 = vunpack.c.l.b16 %v10566
      %v10823 = vunpack.c.l.b16 %v10567
      %v10824 = vunpack.c.l.b16 %v10568
      %v10825 = vunpack.c.l.b16 %v10569
      %v10826 = vunpack.c.l.b16 %v10570
      %v10827 = vunpack.c.l.b16 %v10571
      %v10828 = vunpack.c.l.b16 %v10572
      %v10829 = vunpack.c.l.b16 %v10573
      %v10830 = vunpack.c.l.b16 %v10574
      %v10831 = vunpack.c.l.b16 %v10575
      %v10832 = vunpack.c.l.b16 %v10576
      %v10833 = vunpack.c.l.b16 %v10577
      %v10834 = vunpack.c.l.b16 %v10578
      %v10835 = vunpack.c.l.b16 %v10579
      %v10836 = vunpack.c.l.b16 %v10580
      %v10837 = vunpack.c.l.b16 %v10581
      %v10838 = vunpack.c.l.b16 %v10582
      %v10839 = vunpack.c.l.b16 %v10583
      %v10840 = vunpack.c.l.b16 %v10584
      %v10841 = vunpack.c.l.b16 %v10585
      %v10842 = vunpack.c.l.b16 %v10586
      %v10843 = vunpack.c.l.b16 %v10587
      %v10844 = vunpack.c.l.b16 %v10588
      %v10845 = vunpack.c.l.b16 %v10589
      %v10846 = vunpack.c.l.b16 %v10590
      %v10847 = vunpack.c.l.b16 %v10591
      %v10848 = vunpack.c.l.b16 %v10592
      %v10849 = vunpack.c.l.b16 %v10593
      %v10850 = vunpack.c.l.b16 %v10594
      %v10851 = vunpack.c.l.b16 %v10595
      %v10852 = vunpack.c.l.b16 %v10596
      %v10853 = vunpack.c.l.b16 %v10597
      %v10854 = vunpack.c.l.b16 %v10598
      %v10855 = vunpack.c.l.b16 %v10599
      %v10856 = vunpack.c.l.b16 %v10600
      %v10857 = vunpack.c.l.b16 %v10601
      %v10858 = vunpack.c.l.b16 %v10602
      %v10859 = vunpack.c.l.b16 %v10603
      %v10860 = vunpack.c.l.b16 %v10604
      %v10861 = vunpack.c.l.b16 %v10605
      %v10862 = vunpack.c.l.b16 %v10606
      %v10863 = vunpack.c.l.b16 %v10607
      %v10864 = vunpack.c.l.b16 %v10608
      %v10865 = vunpack.c.l.b16 %v10609
      %v10866 = vunpack.c.l.b16 %v10610
      %v10867 = vunpack.c.l.b16 %v10611
      %v10868 = vunpack.c.l.b16 %v10612
      %v10869 = vunpack.c.l.b16 %v10613
      %v10870 = vunpack.c.l.b16 %v10614
      %v10871 = vunpack.c.l.b16 %v10615
      %v10872 = vunpack.c.l.b16 %v10616
      %v10873 = vunpack.c.l.b16 %v10617
      %v10874 = vunpack.c.l.b16 %v10618
      %v10875 = vunpack.c.l.b16 %v10619
      %v10876 = vunpack.c.l.b16 %v10620
      %v10877 = vunpack.c.l.b16 %v10621
      %v10878 = vunpack.c.l.b16 %v10622
      %v10879 = vunpack.c.l.b16 %v10623
      %v10880 = vunpack.c.l.b16 %v10624
      %v10881 = vunpack.c.l.b16 %v10625
      %v10882 = vunpack.c.l.b16 %v10626
      %v10883 = vunpack.c.l.b16 %v10627
      %v10884 = vunpack.c.l.b16 %v10628
      %v10885 = vunpack.c.l.b16 %v10629
      %v10886 = vunpack.c.l.b16 %v10630
      %v10887 = vunpack.c.l.b16 %v10631
      %v10888 = vunpack.c.l.b16 %v10632
      %v10889 = vunpack.c.l.b16 %v10633
      %v10890 = vunpack.c.l.b16 %v10634
      %v10891 = vunpack.c.l.b16 %v10635
      %v10892 = vunpack.c.l.b16 %v10636
      %v10893 = vunpack.c.l.b16 %v10637
      %v10894 = vunpack.c.l.b16 %v10638
      %v10895 = vunpack.c.l.b16 %v10639
      %v10896 = vunpack.c.l.b16 %v10640
      %v10897 = vunpack.c.l.b16 %v10641
      %v10898 = vunpack.c.l.b16 %v10642
      %v10899 = vunpack.c.l.b16 %v10643
      %v10900 = vunpack.c.l.b16 %v10644
      %v10901 = vunpack.c.l.b16 %v10645
      %v10902 = vunpack.c.l.b16 %v10646
      %v10903 = vunpack.c.l.b16 %v10647
      %v10904 = vunpack.c.l.b16 %v10648
      %v10905 = vunpack.c.l.b16 %v10649
      %v10906 = vunpack.c.l.b16 %v10650
      %v10907 = vunpack.c.l.b16 %v10651
      %v10908 = vunpack.c.l.b16 %v10652
      %v10909 = vunpack.c.l.b16 %v10653
      %v10910 = vunpack.c.l.b16 %v10654
      %v10911 = vunpack.c.l.b16 %v10655
      %v10912 = vunpack.c.l.b16 %v10656
      %v10913 = vunpack.c.l.b16 %v10657
      %v10914 = vunpack.c.l.b16 %v10658
      %v10915 = vunpack.c.l.b16 %v10659
      %v10916 = vunpack.c.l.b16 %v10660
      %v10917 = vunpack.c.l.b16 %v10661
      %v10918 = vunpack.c.l.b16 %v10662
      %v10919 = vunpack.c.l.b16 %v10663
      %v10920 = vunpack.c.l.b16 %v10664
      %v10921 = vunpack.c.l.b16 %v10665
      %v10922 = vunpack.c.l.b16 %v10666
      %v10923 = vunpack.c.l.b16 %v10667
      %v10924 = vunpack.c.l.b16 %v10668
      %v10925 = vunpack.c.l.b16 %v10669
      %v10926 = vunpack.c.l.b16 %v10670
      %v10927 = vunpack.c.l.b16 %v10671
      %v10928 = vunpack.c.l.b16 %v10672
      %v10929 = vunpack.c.l.b16 %v10673
      %v10930 = vunpack.c.l.b16 %v10674
      %v10931 = vunpack.c.l.b16 %v10675
      %v10932 = vunpack.c.l.b16 %v10676
      %v10933 = vunpack.c.l.b16 %v10677
      %v10934 = vunpack.c.l.b16 %v10678
      %v10935 = vunpack.c.l.b16 %v10679
      %v10936 = vunpack.c.l.b16 %v10680
      %v10937 = vunpack.c.l.b16 %v10681
      %v10938 = vunpack.c.l.b16 %v10682
      %v10939 = vunpack.c.l.b16 %v10683
      %v10940 = vunpack.c.l.b16 %v10684
      %v10941 = vunpack.c.l.b16 %v10685
      %v10942 = vunpack.c.l.b16 %v10686
      %v10943 = vunpack.c.l.b16 %v10687
      %v10944 = vunpack.c.l.b16 %v10688
      %v10945 = vunpack.c.l.b16 %v10689
      %v10946 = vunpack.c.l.b16 %v10690
      %v10947 = vunpack.c.l.b16 %v10691
      %v10948 = vunpack.c.l.b16 %v10692
      %v10949 = vpack.c.b16 %v10822, %v10821
      %v10950 = vpack.c.b16 %v10824, %v10823
      %v10951 = vpack.c.b16 %v10826, %v10825
      %v10952 = vpack.c.b16 %v10828, %v10827
      %v10953 = vpack.c.b16 %v10830, %v10829
      %v10954 = vpack.c.b16 %v10832, %v10831
      %v10955 = vpack.c.b16 %v10834, %v10833
      %v10956 = vpack.c.b16 %v10836, %v10835
      %v10957 = vpack.c.b16 %v10838, %v10837
      %v10958 = vpack.c.b16 %v10840, %v10839
      %v10959 = vpack.c.b16 %v10842, %v10841
      %v10960 = vpack.c.b16 %v10844, %v10843
      %v10961 = vpack.c.b16 %v10846, %v10845
      %v10962 = vpack.c.b16 %v10848, %v10847
      %v10963 = vpack.c.b16 %v10850, %v10849
      %v10964 = vpack.c.b16 %v10852, %v10851
      %v10965 = vpack.c.b16 %v10854, %v10853
      %v10966 = vpack.c.b16 %v10856, %v10855
      %v10967 = vpack.c.b16 %v10858, %v10857
      %v10968 = vpack.c.b16 %v10860, %v10859
      %v10969 = vpack.c.b16 %v10862, %v10861
      %v10970 = vpack.c.b16 %v10864, %v10863
      %v10971 = vpack.c.b16 %v10866, %v10865
      %v10972 = vpack.c.b16 %v10868, %v10867
      %v10973 = vpack.c.b16 %v10870, %v10869
      %v10974 = vpack.c.b16 %v10872, %v10871
      %v10975 = vpack.c.b16 %v10874, %v10873
      %v10976 = vpack.c.b16 %v10876, %v10875
      %v10977 = vpack.c.b16 %v10878, %v10877
      %v10978 = vpack.c.b16 %v10880, %v10879
      %v10979 = vpack.c.b16 %v10882, %v10881
      %v10980 = vpack.c.b16 %v10884, %v10883
      %v10981 = vpack.c.b16 %v10886, %v10885
      %v10982 = vpack.c.b16 %v10888, %v10887
      %v10983 = vpack.c.b16 %v10890, %v10889
      %v10984 = vpack.c.b16 %v10892, %v10891
      %v10985 = vpack.c.b16 %v10894, %v10893
      %v10986 = vpack.c.b16 %v10896, %v10895
      %v10987 = vpack.c.b16 %v10898, %v10897
      %v10988 = vpack.c.b16 %v10900, %v10899
      %v10989 = vpack.c.b16 %v10902, %v10901
      %v10990 = vpack.c.b16 %v10904, %v10903
      %v10991 = vpack.c.b16 %v10906, %v10905
      %v10992 = vpack.c.b16 %v10908, %v10907
      %v10993 = vpack.c.b16 %v10910, %v10909
      %v10994 = vpack.c.b16 %v10912, %v10911
      %v10995 = vpack.c.b16 %v10914, %v10913
      %v10996 = vpack.c.b16 %v10916, %v10915
      %v10997 = vpack.c.b16 %v10918, %v10917
      %v10998 = vpack.c.b16 %v10920, %v10919
      %v10999 = vpack.c.b16 %v10922, %v10921
      %v11000 = vpack.c.b16 %v10924, %v10923
      %v11001 = vpack.c.b16 %v10926, %v10925
      %v11002 = vpack.c.b16 %v10928, %v10927
      %v11003 = vpack.c.b16 %v10930, %v10929
      %v11004 = vpack.c.b16 %v10932, %v10931
      %v11005 = vpack.c.b16 %v10934, %v10933
      %v11006 = vpack.c.b16 %v10936, %v10935
      %v11007 = vpack.c.b16 %v10938, %v10937
      %v11008 = vpack.c.b16 %v10940, %v10939
      %v11009 = vpack.c.b16 %v10942, %v10941
      %v11010 = vpack.c.b16 %v10944, %v10943
      %v11011 = vpack.c.b16 %v10946, %v10945
      %v11012 = vpack.c.b16 %v10948, %v10947
      %11077 = vmatprep.subr.bf16.mxu0 0
      %11078 = vmatpush1.bf16.msra.mxu0 %v10949
      %11079 = vmatprep.subr.bf16.mxu0 0
      %11080 = vmatpush1.bf16.msra.mxu0 %v10950
      %11081 = vmatprep.subr.bf16.mxu0 0
      %11082 = vmatpush1.bf16.msra.mxu0 %v10951
      %11083 = vmatprep.subr.bf16.mxu0 0
      %11084 = vmatpush1.bf16.msra.mxu0 %v10952
      %11085 = vmatprep.subr.bf16.mxu0 0
      %11086 = vmatpush1.bf16.msra.mxu0 %v10953
      %11087 = vmatprep.subr.bf16.mxu0 0
      %11088 = vmatpush1.bf16.msra.mxu0 %v10954
      %11089 = vmatprep.subr.bf16.mxu0 0
      %11090 = vmatpush1.bf16.msra.mxu0 %v10955
      %11091 = vmatprep.subr.bf16.mxu0 0
      %11092 = vmatpush1.bf16.msra.mxu0 %v10956
      %11093 = vmatprep.subr.bf16.mxu0 0
      %11094 = vmatpush1.bf16.msra.mxu0 %v10957
      %11095 = vmatprep.subr.bf16.mxu0 0
      %11096 = vmatpush1.bf16.msra.mxu0 %v10958
      %11097 = vmatprep.subr.bf16.mxu0 0
      %11098 = vmatpush1.bf16.msra.mxu0 %v10959
      %11099 = vmatprep.subr.bf16.mxu0 0
      %11100 = vmatpush1.bf16.msra.mxu0 %v10960
      %11101 = vmatprep.subr.bf16.mxu0 0
      %11102 = vmatpush1.bf16.msra.mxu0 %v10961
      %11103 = vmatprep.subr.bf16.mxu0 0
      %11104 = vmatpush1.bf16.msra.mxu0 %v10962
      %11105 = vmatprep.subr.bf16.mxu0 0
      %11106 = vmatpush1.bf16.msra.mxu0 %v10963
      %11107 = vmatprep.subr.bf16.mxu0 0
      %11108 = vmatpush1.bf16.msra.mxu0 %v10964
      %11109 = vmatprep.mubr.bf16.mxu0 %v10558
      %11110 = vmatmul.mubr.bf16.gmra.mrb[0].mxu0 %v10557
      %v11111 = vpop.f32.mrb[0].mxu0
      %v11112 = vadd.f32 0.0, %v11111
      %v11113 = vpop.f32.mrb[0].mxu0
      %v11114 = vpop.f32.mrb[0].mxu0
      %v11115 = vpop.f32.mrb[0].mxu0
      %11116 = vdwg.mxu0
      %11117 = vmatprep.subr.bf16.mxu0 0
      %11118 = vmatpush1.bf16.msra.mxu0 %v10965
      %11119 = vmatprep.subr.bf16.mxu0 0
      %11120 = vmatpush1.bf16.msra.mxu0 %v10966
      %11121 = vmatprep.subr.bf16.mxu0 0
      %11122 = vmatpush1.bf16.msra.mxu0 %v10967
      %11123 = vmatprep.subr.bf16.mxu0 0
      %11124 = vmatpush1.bf16.msra.mxu0 %v10968
      %11125 = vmatprep.subr.bf16.mxu0 0
      %11126 = vmatpush1.bf16.msra.mxu0 %v10969
      %11127 = vmatprep.subr.bf16.mxu0 0
      %11128 = vmatpush1.bf16.msra.mxu0 %v10970
      %11129 = vmatprep.subr.bf16.mxu0 0
      %11130 = vmatpush1.bf16.msra.mxu0 %v10971
      %11131 = vmatprep.subr.bf16.mxu0 0
      %11132 = vmatpush1.bf16.msra.mxu0 %v10972
      %11133 = vmatprep.subr.bf16.mxu0 0
      %11134 = vmatpush1.bf16.msra.mxu0 %v10973
      %11135 = vmatprep.subr.bf16.mxu0 0
      %11136 = vmatpush1.bf16.msra.mxu0 %v10974
      %11137 = vmatprep.subr.bf16.mxu0 0
      %11138 = vmatpush1.bf16.msra.mxu0 %v10975
      %11139 = vmatprep.subr.bf16.mxu0 0
      %11140 = vmatpush1.bf16.msra.mxu0 %v10976
      %11141 = vmatprep.subr.bf16.mxu0 0
      %11142 = vmatpush1.bf16.msra.mxu0 %v10977
      %11143 = vmatprep.subr.bf16.mxu0 0
      %11144 = vmatpush1.bf16.msra.mxu0 %v10978
      %11145 = vmatprep.subr.bf16.mxu0 0
      %11146 = vmatpush1.bf16.msra.mxu0 %v10979
      %11147 = vmatprep.subr.bf16.mxu0 0
      %11148 = vmatpush1.bf16.msra.mxu0 %v10980
      %11149 = vmatprep.mubr.bf16.mxu0 %v10560
      %11150 = vmatmul.mubr.bf16.gmra.mrb[0].mxu0 %v10559
      %v11151 = vpop.f32.mrb[0].mxu0
      %v11152 = vadd.f32 %v11112, %v11151
      %v11153 = vpop.f32.mrb[0].mxu0
      %v11154 = vpop.f32.mrb[0].mxu0
      %v11155 = vpop.f32.mrb[0].mxu0
      %11156 = vdwg.mxu0
      %11157 = vmatprep.subr.bf16.mxu0 0
      %11158 = vmatpush1.bf16.msra.mxu0 %v10981
      %11159 = vmatprep.subr.bf16.mxu0 0
      %11160 = vmatpush1.bf16.msra.mxu0 %v10982
      %11161 = vmatprep.subr.bf16.mxu0 0
      %11162 = vmatpush1.bf16.msra.mxu0 %v10983
      %11163 = vmatprep.subr.bf16.mxu0 0
      %11164 = vmatpush1.bf16.msra.mxu0 %v10984
      %11165 = vmatprep.subr.bf16.mxu0 0
      %11166 = vmatpush1.bf16.msra.mxu0 %v10985
      %11167 = vmatprep.subr.bf16.mxu0 0
      %11168 = vmatpush1.bf16.msra.mxu0 %v10986
      %11169 = vmatprep.subr.bf16.mxu0 0
      %11170 = vmatpush1.bf16.msra.mxu0 %v10987
      %11171 = vmatprep.subr.bf16.mxu0 0
      %11172 = vmatpush1.bf16.msra.mxu0 %v10988
      %11173 = vmatprep.subr.bf16.mxu0 0
      %11174 = vmatpush1.bf16.msra.mxu0 %v10989
      %11175 = vmatprep.subr.bf16.mxu0 0
      %11176 = vmatpush1.bf16.msra.mxu0 %v10990
      %11177 = vmatprep.subr.bf16.mxu0 0
      %11178 = vmatpush1.bf16.msra.mxu0 %v10991
      %11179 = vmatprep.subr.bf16.mxu0 0
      %11180 = vmatpush1.bf16.msra.mxu0 %v10992
      %11181 = vmatprep.subr.bf16.mxu0 0
      %11182 = vmatpush1.bf16.msra.mxu0 %v10993
      %11183 = vmatprep.subr.bf16.mxu0 0
      %11184 = vmatpush1.bf16.msra.mxu0 %v10994
      %11185 = vmatprep.subr.bf16.mxu0 0
      %11186 = vmatpush1.bf16.msra.mxu0 %v10995
      %11187 = vmatprep.subr.bf16.mxu0 0
      %11188 = vmatpush1.bf16.msra.mxu0 %v10996
      %11189 = vmatprep.mubr.bf16.mxu0 %v10562
      %11190 = vmatmul.mubr.bf16.gmra.mrb[0].mxu0 %v10561
      %v11191 = vpop.f32.mrb[0].mxu0
      %v11192 = vadd.f32 %v11152, %v11191
      %v11193 = vpop.f32.mrb[0].mxu0
      %v11194 = vpop.f32.mrb[0].mxu0
      %v11195 = vpop.f32.mrb[0].mxu0
      %11196 = vdwg.mxu0
      %11197 = vmatprep.subr.bf16.mxu0 0
      %11198 = vmatpush1.bf16.msra.mxu0 %v10997
      %11199 = vmatprep.subr.bf16.mxu0 0
      %11200 = vmatpush1.bf16.msra.mxu0 %v10998
      %11201 = vmatprep.subr.bf16.mxu0 0
      %11202 = vmatpush1.bf16.msra.mxu0 %v10999
      %11203 = vmatprep.subr.bf16.mxu0 0
      %11204 = vmatpush1.bf16.msra.mxu0 %v11000
      %11205 = vmatprep.subr.bf16.mxu0 0
      %11206 = vmatpush1.bf16.msra.mxu0 %v11001
      %11207 = vmatprep.subr.bf16.mxu0 0
      %11208 = vmatpush1.bf16.msra.mxu0 %v11002
      %11209 = vmatprep.subr.bf16.mxu0 0
      %11210 = vmatpush1.bf16.msra.mxu0 %v11003
      %11211 = vmatprep.subr.bf16.mxu0 0
      %11212 = vmatpush1.bf16.msra.mxu0 %v11004
      %11213 = vmatprep.subr.bf16.mxu0 0
      %11214 = vmatpush1.bf16.msra.mxu0 %v11005
      %11215 = vmatprep.subr.bf16.mxu0 0
      %11216 = vmatpush1.bf16.msra.mxu0 %v11006
      %11217 = vmatprep.subr.bf16.mxu0 0
      %11218 = vmatpush1.bf16.msra.mxu0 %v11007
      %11219 = vmatprep.subr.bf16.mxu0 0
      %11220 = vmatpush1.bf16.msra.mxu0 %v11008
      %11221 = vmatprep.subr.bf16.mxu0 0
      %11222 = vmatpush1.bf16.msra.mxu0 %v11009
      %11223 = vmatprep.subr.bf16.mxu0 0
      %11224 = vmatpush1.bf16.msra.mxu0 %v11010
      %11225 = vmatprep.subr.bf16.mxu0 0
      %11226 = vmatpush1.bf16.msra.mxu0 %v11011
      %11227 = vmatprep.subr.bf16.mxu0 0
      %11228 = vmatpush1.bf16.msra.mxu0 %v11012
      %11229 = vmatprep.mubr.bf16.mxu0 %v10564
      %11230 = vmatmul.mubr.bf16.gmra.mrb[0].mxu0 %v10563
      %v11231 = vpop.f32.mrb[0].mxu0
      %v11232 = vadd.f32 %v11192, %v11231
      %v11233 = vpop.f32.mrb[0].mxu0
      %v11234 = vpop.f32.mrb[0].mxu0
      %v11235 = vpop.f32.mrb[0].mxu0
      %11236 = vdwg.mxu0
      %v11237 = vld [vmem:[%s601] sm:$0xff]
      %v11238 = vld [vmem:[%s601 + $0x8] sm:$0xff]
      %v11239 = vld [vmem:[%s601 + $0x10] sm:$0xff]
      %v11240 = vld [vmem:[%s601 + $0x18] sm:$0xff]
      %v11241 = vld [vmem:[%s601 + $0x20] sm:$0xff]
      %v11242 = vld [vmem:[%s601 + $0x28] sm:$0xff]
      %v11243 = vld [vmem:[%s601 + $0x30] sm:$0x3f]
      %v11244 = vld [vmem:[%s601 + $0x38] sm:$0x3f]
      %v11245 = vsel %vm3360, %v11238, 0.0
      %v11246 = vadd.f32 %v11237, %v11245
      %v11247 = vadd.f32 %v11246, %v11239
      %v11248 = vsel %vm3360, %v11240, 0.0
      %v11249 = vadd.f32 %v11247, %v11248
      %v11250 = vadd.f32 %v11249, %v11241
      %v11251 = vsel %vm3360, %v11242, 0.0
      %v11252 = vadd.f32 %v11250, %v11251
      %vm11253 = vcmask 1045504
      %v11254 = vsel %vm11253, %v11243, 0.0
      %v11255 = vadd.f32 %v11252, %v11254
      %vm11256 = vcmask 259072
      %v11257 = vsel %vm11256, %v11244, 0.0
      %v11258 = vadd.f32 %v11255, %v11257
      %11259 = vadd.xlane.f32.xlu0 %v11258
      %v11260 = vpop.xlane.xlu0 %11259
      %v11261 = vrot.slane %v11260, 4
      %v11262 = vadd.f32 %v11260, %v11261
      %v11263 = vrot.slane %v11262, 2
      %v11264 = vadd.f32 %v11262, %v11263
      %v11265 = vrot.slane %v11264, 1
      %v11266 = vadd.f32 %v11264, %v11265
      %s11267 = vtos %v11266
      %v11268 = vrcp.pop 4800.0
      %s11269 = vtos %v11268
      %s11270 = smul.f32 %s11267, %s11269
      %v11271 = vstv %s11270
      %v11272 = vsub.f32 %v11237, %v11271
      %v11273 = vsub.f32 %v11238, %v11271
      %v11274 = vsub.f32 %v11239, %v11271
      %v11275 = vsub.f32 %v11240, %v11271
      %v11276 = vsub.f32 %v11241, %v11271
      %v11277 = vsub.f32 %v11242, %v11271
      %v11278 = vsub.f32 %v11243, %v11271
      %v11279 = vsub.f32 %v11244, %v11271
      %v11280 = vmul.f32 %v11272, %v11272
      %v11281 = vmul.f32 %v11273, %v11273
      %v11282 = vmul.f32 %v11274, %v11274
      %v11283 = vmul.f32 %v11275, %v11275
      %v11284 = vmul.f32 %v11276, %v11276
      %v11285 = vmul.f32 %v11277, %v11277
      %v11286 = vmul.f32 %v11278, %v11278
      %v11287 = vmul.f32 %v11279, %v11279
      %v11288 = vsel %vm3360, %v11281, 0.0
      %v11289 = vadd.f32 %v11280, %v11288
      %v11290 = vadd.f32 %v11289, %v11282
      %v11291 = vsel %vm3360, %v11283, 0.0
      %v11292 = vadd.f32 %v11290, %v11291
      %v11293 = vadd.f32 %v11292, %v11284
      %v11294 = vsel %vm3360, %v11285, 0.0
      %v11295 = vadd.f32 %v11293, %v11294
      %v11296 = vsel %vm11253, %v11286, 0.0
      %v11297 = vadd.f32 %v11295, %v11296
      %v11298 = vsel %vm11256, %v11287, 0.0
      %v11299 = vadd.f32 %v11297, %v11298
      %11300 = vadd.xlane.f32.xlu0 %v11299
      %v11301 = vpop.xlane.xlu0 %11300
      %v11302 = vrot.slane %v11301, 4
      %v11303 = vadd.f32 %v11301, %v11302
      %v11304 = vrot.slane %v11303, 2
      %v11305 = vadd.f32 %v11303, %v11304
      %v11306 = vrot.slane %v11305, 1
      %v11307 = vadd.f32 %v11305, %v11306
      %s11308 = vtos %v11307
      %v11309 = vrcp.pop 4799.0
      %s11310 = vtos %v11309
      %s11311 = smul.f32 %s11308, %s11310
      %v11312 = vstv %s11311
      %v11313 = vrsqrt.pop %v11312
      %v11314 = vmul.f32 %v11312, %v11313
      %vm11315 = vcmp.eq.f32.partialorder %v11312, inf
      %v11316 = vsel %vm11315, %v11312, %v11314
      %vm11317 = vcmp.eq.f32.partialorder %v11312, 0.0
      %v11318 = vand.u32 %v11312, 2147483648
      %v11319 = vsel %vm11317, %v11318, %v11316
      %s11320 = vtos %v11319
      %s11321 = smax.f32 %s11320, 1e-05
      %v11322 = vstv %s11321
      %v11323 = vrcp.pop %v11322
      %v11324 = vmul.f32 %v11272, %v11323
      %v11325 = vmul.f32 %v11273, %v11323
      %v11326 = vmul.f32 %v11274, %v11323
      %v11327 = vmul.f32 %v11275, %v11323
      %v11328 = vmul.f32 %v11276, %v11323
      %v11329 = vmul.f32 %v11277, %v11323
      %v11330 = vmul.f32 %v11278, %v11323
      %v11331 = vmul.f32 %v11279, %v11323
      %v11332 = vpack.c.bf16 %v11326, %v11324
      %v11333 = vpack.c.bf16 %v11327, %v11325
      %v11334 = vpack.c.bf16 %v11330, %v11328
      %v11335 = vpack.c.bf16 %v11331, %v11329
      %v11336 = vld [vmem:[%s10] sm:$0xf]
      %v11337 = vld [vmem:[%s10 + $0x4] sm:$0xf]
      %v11338 = vld [vmem:[%s10 + $0x8] sm:$0xf]
      %v11339 = vld [vmem:[%s10 + $0xc] sm:$0xf]
      %v11340 = vld [vmem:[%s10 + $0x10] sm:$0xf]
      %v11341 = vld [vmem:[%s10 + $0x14] sm:$0xf]
      %v11342 = vld [vmem:[%s10 + $0x18] sm:$0xf]
      %v11343 = vld [vmem:[%s10 + $0x1c] sm:$0xf]
      %v11344 = vld [vmem:[%s10 + $0x20] sm:$0xf]
      %v11345 = vld [vmem:[%s10 + $0x24] sm:$0xf]
      %v11346 = vld [vmem:[%s10 + $0x28] sm:$0xf]
      %v11347 = vld [vmem:[%s10 + $0x2c] sm:$0xf]
      %v11348 = vld [vmem:[%s10 + $0x30] sm:$0xf]
      %v11349 = vld [vmem:[%s10 + $0x34] sm:$0xf]
      %v11350 = vld [vmem:[%s10 + $0x38] sm:$0xf]
      %v11351 = vld [vmem:[%s10 + $0x3c] sm:$0xf]
      %v11352 = vld [vmem:[%s10 + $0x40] sm:$0xf]
      %v11353 = vld [vmem:[%s10 + $0x44] sm:$0xf]
      %v11354 = vld [vmem:[%s10 + $0x48] sm:$0xf]
      %v11355 = vld [vmem:[%s10 + $0x4c] sm:$0xf]
      %v11356 = vld [vmem:[%s11] sm:$0x1]
      %v11358 = vlaneseq
      %v11359 = vshrl.u32 %v11358, 7
      %v11360 = vsub.s32 0, %v11359
      %v11361 = vrot.slane %v11356, %v11360
      %v11383 = vunpack.c.l.b16 %v11336
      %v11384 = vunpack.c.l.b16 %v11337
      %v11385 = vunpack.c.l.b16 %v11338
      %v11386 = vunpack.c.l.b16 %v11339
      %v11387 = vunpack.c.l.b16 %v11340
      %v11388 = vunpack.c.l.b16 %v11341
      %v11389 = vunpack.c.l.b16 %v11342
      %v11390 = vunpack.c.l.b16 %v11343
      %v11391 = vunpack.c.l.b16 %v11344
      %v11392 = vunpack.c.l.b16 %v11345
      %v11393 = vunpack.c.l.b16 %v11346
      %v11394 = vunpack.c.l.b16 %v11347
      %v11395 = vunpack.c.l.b16 %v11348
      %v11396 = vunpack.c.l.b16 %v11349
      %v11397 = vunpack.c.l.b16 %v11350
      %v11398 = vunpack.c.l.b16 %v11351
      %v11399 = vunpack.c.l.b16 %v11352
      %v11400 = vunpack.c.l.b16 %v11353
      %v11401 = vunpack.c.l.b16 %v11354
      %v11402 = vunpack.c.l.b16 %v11355
      %v11403 = vpack.c.b16 %v11384, %v11383
      %v11404 = vpack.c.b16 %v11386, %v11385
      %v11405 = vpack.c.b16 %v11388, %v11387
      %v11406 = vpack.c.b16 %v11390, %v11389
      %v11407 = vpack.c.b16 %v11392, %v11391
      %v11408 = vpack.c.b16 %v11394, %v11393
      %v11409 = vpack.c.b16 %v11396, %v11395
      %v11410 = vpack.c.b16 %v11398, %v11397
      %v11411 = vpack.c.b16 %v11400, %v11399
      %v11412 = vpack.c.b16 %v11402, %v11401
      %v11424 = vsel %vm3360, %v11333, 0
      %v11427 = vsel %vm3360, %v11335, 0
      %11429 = vmatprep.subr.bf16.mxu0 0
      %11430 = vmatpush1.bf16.msra.mxu0 %v11403
      %11431 = vmatprep.subr.bf16.mxu0 0
      %11432 = vmatpush1.bf16.msra.mxu0 %v11404
      %11433 = vmatprep.subr.bf16.mxu0 0
      %11434 = vmatpush1.bf16.msra.mxu0 %v11405
      %11435 = vmatprep.subr.bf16.mxu0 0
      %11436 = vmatpush1.bf16.msra.mxu0 %v11406
      %11437 = vmatprep.subr.bf16.mxu0 0
      %11438 = vmatpush1.bf16.msra.mxu0 %v11407
      %11439 = vmatprep.subr.bf16.mxu0 0
      %11440 = vmatpush1.bf16.msra.mxu0 %v11408
      %11441 = vmatprep.subr.bf16.mxu0 0
      %11442 = vmatpush1.bf16.msra.mxu0 %v11409
      %11443 = vmatprep.subr.bf16.mxu0 0
      %11444 = vmatpush1.bf16.msra.mxu0 %v11410
      %11445 = vmatprep.subr.bf16.mxu0 0
      %11446 = vmatpush1.bf16.msra.mxu0 %v11411
      %11447 = vmatprep.subr.bf16.mxu0 0
      %11448 = vmatpush1.bf16.msra.mxu0 %v11412
      %11449 = vmatprep.subr.bf16.mxu0 0
      %11450 = vmatpush1.bf16.msra.mxu0 0
      %11451 = vmatprep.subr.bf16.mxu0 0
      %11452 = vmatpush1.bf16.msra.mxu0 0
      %11453 = vmatprep.subr.bf16.mxu0 0
      %11454 = vmatpush1.bf16.msra.mxu0 0
      %11455 = vmatprep.subr.bf16.mxu0 0
      %11456 = vmatpush1.bf16.msra.mxu0 0
      %11457 = vmatprep.subr.bf16.mxu0 0
      %11458 = vmatpush1.bf16.msra.mxu0 0
      %11459 = vmatprep.subr.bf16.mxu0 0
      %11460 = vmatpush1.bf16.msra.mxu0 0
      %11461 = vmatprep.mubr.bf16.mxu0 %v11424
      %11462 = vmatmul.mubr.bf16.gmra.mrb[0].mxu0 %v11332
      %v11463 = vpop.f32.mrb[0].mxu0
      %v11464 = vadd.f32 %v11361, %v11463
      %v11465 = vpop.f32.mrb[0].mxu0
      %v11466 = vpop.f32.mrb[0].mxu0
      %v11467 = vadd.f32 %v11361, %v11466
      %v11468 = vpop.f32.mrb[0].mxu0
      %11469 = vmatprep.mubr.bf16.mxu0 %v11427
      %11470 = vmatmul.mubr.bf16.gmra.mrb[0].mxu0 %v11334
      %v11471 = vpop.f32.mrb[0].mxu0
      %v11472 = vadd.f32 %v11361, %v11471
      %v11473 = vpop.f32.mrb[0].mxu0
      %v11474 = vpop.f32.mrb[0].mxu0
      %v11475 = vadd.f32 %v11361, %v11474
      %v11476 = vpop.f32.mrb[0].mxu0
      %11477 = vdwg.mxu0
      %v11478 = vmul.f32 %v11464, %v11464
      %v11479 = vmul.f32 %v11467, %v11467
      %v11480 = vmul.f32 %v11472, %v11472
      %v11481 = vmul.f32 %v11475, %v11475
      %v11482 = vmul.f32 %v11464, %v11478
      %v11483 = vmul.f32 %v11467, %v11479
      %v11484 = vmul.f32 %v11472, %v11480
      %v11485 = vmul.f32 %v11475, %v11481
      %v11486 = vmul.f32 %v11482, 0.044715
      %v11487 = vmul.f32 %v11483, 0.044715
      %v11488 = vmul.f32 %v11484, 0.044715
      %v11489 = vmul.f32 %v11485, 0.044715
      %v11490 = vadd.f32 %v11464, %v11486
      %v11491 = vadd.f32 %v11467, %v11487
      %v11492 = vadd.f32 %v11472, %v11488
      %v11493 = vadd.f32 %v11475, %v11489
      %v11494 = vmul.f32 %v11490, 0.7978846
      %v11495 = vmul.f32 %v11491, 0.7978846
      %v11496 = vmul.f32 %v11492, 0.7978846
      %v11497 = vmul.f32 %v11493, 0.7978846
      %v11498 = vtanh.pop %v11494
      %v11499 = vtanh.pop %v11495
      %v11500 = vtanh.pop %v11496
      %v11501 = vtanh.pop %v11497
      %v11502 = vadd.f32 %v11498, 1.0
      %v11503 = vadd.f32 %v11499, 1.0
      %v11504 = vadd.f32 %v11500, 1.0
      %v11505 = vadd.f32 %v11501, 1.0
      %v11506 = vmul.f32 %v11502, 0.5
      %v11507 = vmul.f32 %v11503, 0.5
      %v11508 = vmul.f32 %v11504, 0.5
      %v11509 = vmul.f32 %v11505, 0.5
      %v11510 = vmul.f32 %v11464, %v11506
      %v11511 = vmul.f32 %v11467, %v11507
      %v11512 = vmul.f32 %v11472, %v11508
      %v11513 = vmul.f32 %v11475, %v11509
      %vm11514 = vcmask 523264
      %v11515 = vsel %vm11514, %v11510, 0.0
      %v11516 = vsel %vm11514, %v11511, 0.0
      %v11517 = vadd.f32 %v11515, %v11516
      %v11518 = vsel %vm11514, %v11512, 0.0
      %v11519 = vadd.f32 %v11517, %v11518
      %vm11520 = vcmask 521216
      %v11521 = vsel %vm11520, %v11513, 0.0
      %v11522 = vadd.f32 %v11519, %v11521
      %v11523 = vrot.slane %v11522, 4
      %v11524 = vadd.f32 %v11522, %v11523
      %v11525 = vrot.slane %v11524, 2
      %v11526 = vadd.f32 %v11524, %v11525
      %v11527 = vrot.slane %v11526, 1
      %v11528 = vadd.f32 %v11526, %v11527
      %v11529 = vrcp.pop 30.0
      %v11530 = vmul.f32 %v11528, %v11529
      %v11531 = vld [vmem:[%s12] sm:$0xff]
      %v11532 = vld [vmem:[%s12 + $0x8] sm:$0xff]
      %v11533 = vld [vmem:[%s12 + $0x10] sm:$0xff]
      %v11534 = vld [vmem:[%s12 + $0x18] sm:$0xff]
      %v11535 = vld [vmem:[%s12 + $0x20] sm:$0xff]
      %v11536 = vld [vmem:[%s12 + $0x28] sm:$0xff]
      %v11537 = vld [vmem:[%s12 + $0x30] sm:$0xff]
      %v11538 = vld [vmem:[%s12 + $0x38] sm:$0xff]
      %v11539 = vld [vmem:[%s13] sm:$0xff]
      %v11540 = vld [vmem:[%s13 + $0x8] sm:$0xff]
      %vm11541 = vcmask 130048
      %v11543 = vsel %vm11541, %v11232, 0
      %11545 = vmatprep.subr.mxu0 0.0
      %11546 = vmatpush1.msra.mxu0 %v11539
      %11547 = vmatprep.subr.mxu0 0.0
      %11548 = vmatpush1.msra.mxu0 %v11540
      %11549 = vmatprep.subr.mxu0 0.0
      %11550 = vmatpush1.msra.mxu0 0.0
      %11551 = vmatprep.subr.mxu0 0.0
      %11552 = vmatpush1.msra.mxu0 0.0
      %11553 = vmatprep.subr.mxu0 0.0
      %11554 = vmatpush1.msra.mxu0 0.0
      %11555 = vmatprep.subr.mxu0 0.0
      %11556 = vmatpush1.msra.mxu0 0.0
      %11557 = vmatprep.subr.mxu0 0.0
      %11558 = vmatpush1.msra.mxu0 0.0
      %11559 = vmatprep.subr.mxu0 0.0
      %11560 = vmatpush1.msra.mxu0 0.0
      %11561 = vmatprep.subr.mxu0 0.0
      %11562 = vmatpush1.msra.mxu0 0.0
      %11563 = vmatprep.subr.mxu0 0.0
      %11564 = vmatpush1.msra.mxu0 0.0
      %11565 = vmatprep.subr.mxu0 0.0
      %11566 = vmatpush1.msra.mxu0 0.0
      %11567 = vmatprep.subr.mxu0 0.0
      %11568 = vmatpush1.msra.mxu0 0.0
      %11569 = vmatprep.subr.mxu0 0.0
      %11570 = vmatpush1.msra.mxu0 0.0
      %11571 = vmatprep.subr.mxu0 0.0
      %11572 = vmatpush1.msra.mxu0 0.0
      %11573 = vmatprep.subr.mxu0 0.0
      %11574 = vmatpush1.msra.mxu0 0.0
      %11575 = vmatprep.subr.mxu0 0.0
      %11576 = vmatpush1.msra.mxu0 0.0
      %11577 = vmatprep.subr.mxu0 0.0
      %11578 = vmatpush1.msra.mxu0 0.0
      %11579 = vmatprep.subr.mxu0 0.0
      %11580 = vmatpush1.msra.mxu0 0.0
      %11581 = vmatprep.subr.mxu0 0.0
      %11582 = vmatpush1.msra.mxu0 0.0
      %11583 = vmatprep.subr.mxu0 0.0
      %11584 = vmatpush1.msra.mxu0 0.0
      %11585 = vmatprep.subr.mxu0 0.0
      %11586 = vmatpush1.msra.mxu0 0.0
      %11587 = vmatprep.subr.mxu0 0.0
      %11588 = vmatpush1.msra.mxu0 0.0
      %11589 = vmatprep.subr.mxu0 0.0
      %11590 = vmatpush1.msra.mxu0 0.0
      %11591 = vmatprep.subr.mxu0 0.0
      %11592 = vmatpush1.msra.mxu0 0.0
      %11593 = vmatprep.subr.mxu0 0.0
      %11594 = vmatpush1.msra.mxu0 0.0
      %11595 = vmatprep.subr.mxu0 0.0
      %11596 = vmatpush1.msra.mxu0 0.0
      %11597 = vmatprep.subr.mxu0 0.0
      %11598 = vmatpush1.msra.mxu0 0.0
      %11599 = vmatprep.subr.mxu0 0.0
      %11600 = vmatpush1.msra.mxu0 0.0
      %11601 = vmatprep.subr.mxu0 0.0
      %11602 = vmatpush1.msra.mxu0 0.0
      %11603 = vmatprep.subr.mxu0 0.0
      %11604 = vmatpush1.msra.mxu0 0.0
      %11605 = vmatprep.subr.mxu0 0.0
      %11606 = vmatpush1.msra.mxu0 0.0
      %11607 = vmatprep.subr.mxu0 0.0
      %11608 = vmatpush1.msra.mxu0 0.0
      %11609 = vmatprep.mubr.f32.mxu0 0.0
      %11610 = vmatmul.mubr.f32.gmra.mrb[0].mxu0 %v11543
      %v11611 = vpop.f32.mrb[0].mxu0
      %v11612 = vadd.f32 0.0, %v11611
      %v11613 = vpop.f32.mrb[0].mxu0
      %11614 = vdwg.mxu0
      %v11616 = vsel %vm11514, %v11530, 0
      %11618 = vmatprep.subr.mxu0 0.0
      %11619 = vmatpush1.msra.mxu0 %v11531
      %11620 = vmatprep.subr.mxu0 0.0
      %11621 = vmatpush1.msra.mxu0 %v11532
      %11622 = vmatprep.subr.mxu0 0.0
      %11623 = vmatpush1.msra.mxu0 %v11533
      %11624 = vmatprep.subr.mxu0 0.0
      %11625 = vmatpush1.msra.mxu0 %v11534
      %11626 = vmatprep.subr.mxu0 0.0
      %11627 = vmatpush1.msra.mxu0 %v11535
      %11628 = vmatprep.subr.mxu0 0.0
      %11629 = vmatpush1.msra.mxu0 %v11536
      %11630 = vmatprep.subr.mxu0 0.0
      %11631 = vmatpush1.msra.mxu0 %v11537
      %11632 = vmatprep.subr.mxu0 0.0
      %11633 = vmatpush1.msra.mxu0 %v11538
      %11634 = vmatprep.subr.mxu0 0.0
      %11635 = vmatpush1.msra.mxu0 0.0
      %11636 = vmatprep.subr.mxu0 0.0
      %11637 = vmatpush1.msra.mxu0 0.0
      %11638 = vmatprep.subr.mxu0 0.0
      %11639 = vmatpush1.msra.mxu0 0.0
      %11640 = vmatprep.subr.mxu0 0.0
      %11641 = vmatpush1.msra.mxu0 0.0
      %11642 = vmatprep.subr.mxu0 0.0
      %11643 = vmatpush1.msra.mxu0 0.0
      %11644 = vmatprep.subr.mxu0 0.0
      %11645 = vmatpush1.msra.mxu0 0.0
      %11646 = vmatprep.subr.mxu0 0.0
      %11647 = vmatpush1.msra.mxu0 0.0
      %11648 = vmatprep.subr.mxu0 0.0
      %11649 = vmatpush1.msra.mxu0 0.0
      %11650 = vmatprep.subr.mxu0 0.0
      %11651 = vmatpush1.msra.mxu0 0.0
      %11652 = vmatprep.subr.mxu0 0.0
      %11653 = vmatpush1.msra.mxu0 0.0
      %11654 = vmatprep.subr.mxu0 0.0
      %11655 = vmatpush1.msra.mxu0 0.0
      %11656 = vmatprep.subr.mxu0 0.0
      %11657 = vmatpush1.msra.mxu0 0.0
      %11658 = vmatprep.subr.mxu0 0.0
      %11659 = vmatpush1.msra.mxu0 0.0
      %11660 = vmatprep.subr.mxu0 0.0
      %11661 = vmatpush1.msra.mxu0 0.0
      %11662 = vmatprep.subr.mxu0 0.0
      %11663 = vmatpush1.msra.mxu0 0.0
      %11664 = vmatprep.subr.mxu0 0.0
      %11665 = vmatpush1.msra.mxu0 0.0
      %11666 = vmatprep.subr.mxu0 0.0
      %11667 = vmatpush1.msra.mxu0 0.0
      %11668 = vmatprep.subr.mxu0 0.0
      %11669 = vmatpush1.msra.mxu0 0.0
      %11670 = vmatprep.subr.mxu0 0.0
      %11671 = vmatpush1.msra.mxu0 0.0
      %11672 = vmatprep.subr.mxu0 0.0
      %11673 = vmatpush1.msra.mxu0 0.0
      %11674 = vmatprep.subr.mxu0 0.0
      %11675 = vmatpush1.msra.mxu0 0.0
      %11676 = vmatprep.subr.mxu0 0.0
      %11677 = vmatpush1.msra.mxu0 0.0
      %11678 = vmatprep.subr.mxu0 0.0
      %11679 = vmatpush1.msra.mxu0 0.0
      %11680 = vmatprep.subr.mxu0 0.0
      %11681 = vmatpush1.msra.mxu0 0.0
      %11682 = vmatprep.mubr.f32.mxu0 0.0
      %11683 = vmatmul.mubr.f32.gmra.mrb[0].mxu0 %v11616
      %v11684 = vpop.f32.mrb[0].mxu0
      %v11685 = vadd.f32 %v11612, %v11684
      %v11686 = vpop.f32.mrb[0].mxu0
      %11687 = vdwg.mxu0
      %v11688 = vld [vmem:[%s604] sm:$0x1]
      %v11689 = vld [vmem:[%s14] sm:$0xff]
      %v11690 = vld [vmem:[%s14 + $0x8] sm:$0x3]
      %vm11691 = vcmask 80896
      %v11693 = vsel %vm11691, %v11688, 0
      %vm11695 = vcmask 1041408
      %v11697 = vsel %vm11695, %v11690, 0
      %11699 = vmatprep.subr.mxu0 0.0
      %11700 = vmatpush1.msra.mxu0 %v11689
      %11701 = vmatprep.subr.mxu0 0.0
      %11702 = vmatpush1.msra.mxu0 %v11697
      %11703 = vmatprep.subr.mxu0 0.0
      %11704 = vmatpush1.msra.mxu0 0.0
      %11705 = vmatprep.subr.mxu0 0.0
      %11706 = vmatpush1.msra.mxu0 0.0
      %11707 = vmatprep.subr.mxu0 0.0
      %11708 = vmatpush1.msra.mxu0 0.0
      %11709 = vmatprep.subr.mxu0 0.0
      %11710 = vmatpush1.msra.mxu0 0.0
      %11711 = vmatprep.subr.mxu0 0.0
      %11712 = vmatpush1.msra.mxu0 0.0
      %11713 = vmatprep.subr.mxu0 0.0
      %11714 = vmatpush1.msra.mxu0 0.0
      %11715 = vmatprep.subr.mxu0 0.0
      %11716 = vmatpush1.msra.mxu0 0.0
      %11717 = vmatprep.subr.mxu0 0.0
      %11718 = vmatpush1.msra.mxu0 0.0
      %11719 = vmatprep.subr.mxu0 0.0
      %11720 = vmatpush1.msra.mxu0 0.0
      %11721 = vmatprep.subr.mxu0 0.0
      %11722 = vmatpush1.msra.mxu0 0.0
      %11723 = vmatprep.subr.mxu0 0.0
      %11724 = vmatpush1.msra.mxu0 0.0
      %11725 = vmatprep.subr.mxu0 0.0
      %11726 = vmatpush1.msra.mxu0 0.0
      %11727 = vmatprep.subr.mxu0 0.0
      %11728 = vmatpush1.msra.mxu0 0.0
      %11729 = vmatprep.subr.mxu0 0.0
      %11730 = vmatpush1.msra.mxu0 0.0
      %11731 = vmatprep.subr.mxu0 0.0
      %11732 = vmatpush1.msra.mxu0 0.0
      %11733 = vmatprep.subr.mxu0 0.0
      %11734 = vmatpush1.msra.mxu0 0.0
      %11735 = vmatprep.subr.mxu0 0.0
      %11736 = vmatpush1.msra.mxu0 0.0
      %11737 = vmatprep.subr.mxu0 0.0
      %11738 = vmatpush1.msra.mxu0 0.0
      %11739 = vmatprep.subr.mxu0 0.0
      %11740 = vmatpush1.msra.mxu0 0.0
      %11741 = vmatprep.subr.mxu0 0.0
      %11742 = vmatpush1.msra.mxu0 0.0
      %11743 = vmatprep.subr.mxu0 0.0
      %11744 = vmatpush1.msra.mxu0 0.0
      %11745 = vmatprep.subr.mxu0 0.0
      %11746 = vmatpush1.msra.mxu0 0.0
      %11747 = vmatprep.subr.mxu0 0.0
      %11748 = vmatpush1.msra.mxu0 0.0
      %11749 = vmatprep.subr.mxu0 0.0
      %11750 = vmatpush1.msra.mxu0 0.0
      %11751 = vmatprep.subr.mxu0 0.0
      %11752 = vmatpush1.msra.mxu0 0.0
      %11753 = vmatprep.subr.mxu0 0.0
      %11754 = vmatpush1.msra.mxu0 0.0
      %11755 = vmatprep.subr.mxu0 0.0
      %11756 = vmatpush1.msra.mxu0 0.0
      %11757 = vmatprep.subr.mxu0 0.0
      %11758 = vmatpush1.msra.mxu0 0.0
      %11759 = vmatprep.subr.mxu0 0.0
      %11760 = vmatpush1.msra.mxu0 0.0
      %11761 = vmatprep.subr.mxu0 0.0
      %11762 = vmatpush1.msra.mxu0 0.0
      %11763 = vmatprep.mubr.f32.mxu0 0.0
      %11764 = vmatmul.mubr.f32.gmra.mrb[0].mxu0 %v11693
      %v11765 = vpop.f32.mrb[0].mxu0
      %v11766 = vadd.f32 0.0, %v11765
      %v11767 = vpop.f32.mrb[0].mxu0
      %11768 = vdwg.mxu0
      %v11769 = vadd.f32 %v11685, %v11766
      %v11770 = vld [vmem:[%s15] sm:$0x1]
      %v11771 = vadd.f32 %v11769, %v11770
      %v11772 = vmax.f32 %v11771, 0.0
      %v11773 = vld [vmem:[%s16] sm:$0x1]
      %v11774 = vmul.f32 %v11772, %v11773
      %vm11775 = vcmask 253952
      %v11776 = vsel %vm11775, %v11774, 0.0
      %11777 = vadd.xlane.f32.xlu0 %v11776
      %v11778 = vpop.xlane.xlu0 %11777
      %v11779 = vld [vmem:[#allocation2] sm:$0x1]
      %v11780 = vadd.f32 %v11778, %v11779
      %vm11781 = vcmask 0
      %11782 = vst.msk [vmem:[%s607] sm:$0x1] %vm11781, %v11780
      %p11783 = scmp.lt.s32.totalorder %s31, 1
      %s11784 = scalar_select %p11783, %s31, 1
      %s11785 = scalar_lea.vmem %s18, %s11784
      // Predicated region
      $region93: #{_lambda_.1} parent=91 // pred_check
        %p11786 = pneg %p442
      $region94: #{_lambda_.1} parent=91 // pred_check_branch
        %11788 = sbr.rel (%p11786) target = $region96
      $region95: #{_lambda_.1} parent=91 // pred_region
        _
      $region96: #{_lambda_.1} parent=91 // pred_fallthru
        _
    $region92: #{_lambda_.1} parent=5 // pred_fallthru
      _
    %p11789 = scmp.le.s32.totalorder 2, %s26
    // Predicated region
    $region97: #{_lambda_.1} parent=5 // pred_check
      %p11790 = pneg %p11789
    $region98: #{_lambda_.1} parent=5 // pred_check_branch
      %11792 = sbr.rel (%p11790) target = $region100
    $region99: #{_lambda_.1} parent=5 // pred_region
      %s11793 = ssub.s32 %s26, 2
      // Predicated region
      $region101: #{_lambda_.1} parent=99 // pred_check
        %p11794 = pneg %p448
      $region102: #{_lambda_.1} parent=99 // pred_check_branch
        %11796 = sbr.rel (%p11794) target = $region104
      $region103: #{_lambda_.1} parent=99 // pred_region
        %p11797 = scmp.lt.s32.totalorder %s32, 1
        %s11798 = scalar_select %p11797, %s32, 1
        %s11799 = scalar_lea.vmem %s18, %s11798
      $region104: #{_lambda_.1} parent=99 // pred_fallthru
        _
    $region100: #{_lambda_.1} parent=5 // pred_fallthru
      _
  $region6: #{_lambda_.1} parent=0 // loop_footer
    %s30 = sadd.s32 1, %s26
  $region7: #{_lambda_.1} parent=0 // loop_footer_branch
    %25 = sbr.rel target = $region3
  $region8: #{_lambda_.1} parent=0 // loop_exit
    _

</llo_original>
